<compile_context>
chip_gen: v5e
topology: v5e:2x2
jax: 0.10.0
libtpu: 0.0.40
codegen_flags: <defaults>
</compile_context>

<pallas_src>
import numpy as np
import jax
import jax.numpy as jnp
from jax.experimental import pallas as pl
from jax.experimental.pallas import tpu as pltpu

LOG_STD_MAX = 2.0
LOG_STD_MIN = -20.0
MAX_ACTION = 20.0
H = 256  # hidden dim fixed by the module


def _leaky_relu(x, slope=0.01):
    return jnp.where(x >= 0, x, slope * x)


def _mm(x, w_bf16, b):
    """f32 activations, bf16 weights, f32 MXU accumulation."""
    return jnp.dot(x.astype(jnp.bfloat16), w_bf16,
                   preferred_element_type=jnp.float32) + b


def _policy_kernel(
        # VMEM / SMEM inputs (small, needed immediately)
        obs_ref, w_enc_ref, bias_ref, b_fin_ref,
        # HBM (pl.ANY) inputs — copied manually so DMA overlaps compute
        gru0_hbm, gru1_hbm, post_hbm,
        # output: pre-sigmoid-scaled mean column, (S, 1) f32
        mean_ref,
        # scratch
        gru0_scr, gru1_scr, post_scr, dma_sems):
    S = obs_ref.shape[0]

    # ---- kick off weight DMAs; they land while the encoder / recurrence runs ----
    cp_gru0 = pltpu.make_async_copy(gru0_hbm, gru0_scr, dma_sems.at[0])
    cp_gru1 = pltpu.make_async_copy(gru1_hbm, gru1_scr, dma_sems.at[1])
    cp_post = pltpu.make_async_copy(post_hbm, post_scr, dma_sems.at[2])
    cp_gru0.start()
    cp_gru1.start()
    cp_post.start()

    # ---- unpack the bias slab (static, aligned slices) ----
    b_ih0 = bias_ref[0:1, :]
    b_hh0 = bias_ref[1:2, :]
    b_ih1 = bias_ref[2:3, :]
    b_hh1 = bias_ref[3:4, :]
    b_enc = bias_ref[4:5, 0:H]
    b_mid = bias_ref[4:5, H:2 * H]
    b_r1a = bias_ref[4:5, 2 * H:3 * H]
    b_r1b = bias_ref[5:6, 0:H]
    b_r2a = bias_ref[5:6, H:2 * H]
    b_r2b = bias_ref[5:6, 2 * H:3 * H]
    w_fin = bias_ref[6:7, 0:H]          # final Linear(256,1) weight stored as a row

    # ---- encoder1: Linear(state_dim, 256) + ReLU ----
    x = jnp.maximum(_mm(obs_ref[...], w_enc_ref[...], b_enc), 0.0)

    # layer-0 GRU weights (overlapped with encoder)
    cp_gru0.wait()
    w_ih0 = gru0_scr[0]
    w_hh0 = gru0_scr[1]

    # layer-0 input gates for all timesteps in one batched MXU pass
    gx0 = _mm(x, w_ih0, b_ih0)          # (S, 3H)

    # layer-1 GRU weights needed at step 0 of the fused loop
    cp_gru1.wait()
    w_ih1 = gru1_scr[0]
    w_hh1 = gru1_scr[1]

    def gru_cell(gx, gh, h_prev):
        # PyTorch gate order: r, z, n ; b_hn stays inside r * (...)
        r = jax.nn.sigmoid(gx[:, 0:H] + gh[:, 0:H])
        z = jax.nn.sigmoid(gx[:, H:2 * H] + gh[:, H:2 * H])
        n = jnp.tanh(gx[:, 2 * H:3 * H] + r * gh[:, 2 * H:3 * H])
        return (1.0 - z) * n + z * h_prev

    h0 = jnp.zeros((1, H), jnp.float32)
    h1 = jnp.zeros((1, H), jnp.float32)
    h1_rows = []

    # ---- fused, fully-unrolled wavefront over both GRU layers ----
    # (static S; static slices; gh1 is independent of the layer-0 chain so the
    #  LLO scheduler can overlap it; h1 rows stay in vregs — no VMEM round trip)
    for t in range(S):
        gh0 = _mm(h0, w_hh0, b_hh0)
        h0 = gru_cell(gx0[t:t + 1, :], gh0, h0)
        gx1 = _mm(h0, w_ih1, b_ih1)
        gh1 = _mm(h1, w_hh1, b_hh1)
        h1 = gru_cell(gx1, gh1, h1)
        h1_rows.append(h1)

    y = jnp.concatenate(h1_rows, axis=0)        # (S, H)

    # Post-GRU weights were DMA'd during the recurrence; sync before use.
    cp_post.wait()

    # ---- fc_mid: Linear + ReLU ----
    y = jnp.maximum(_mm(y, post_scr[0], b_mid), 0.0)

    # ---- rb1: (Linear, LeakyReLU) x2 + residual ----
    mem1 = y
    t1 = _leaky_relu(_mm(y, post_scr[1], b_r1a))
    t1 = _leaky_relu(_mm(t1, post_scr[2], b_r1b))
    y = t1 + mem1

    # ---- rb2: (Linear, LeakyReLU) x2 + residual ----
    mem2 = y
    t2 = _leaky_relu(_mm(y, post_scr[3], b_r2a))
    t2 = _leaky_relu(_mm(t2, post_scr[4], b_r2b))
    y = t2 + mem2

    # ---- final: Linear(256, 1) + Sigmoid, scale & clamp (matches the PyTorch src:
    #      mean * 20 * 1e6 then clamp(min=10)) ----
    pre = jnp.sum(y * w_fin, axis=-1, keepdims=True) + b_fin_ref[0]   # (S, 1)
    mean = jax.nn.sigmoid(pre) * (MAX_ACTION * 1e6)
    mean_ref[...] = jnp.maximum(mean, 10.0)


def gaussian_policy_forward(obs, h, c, params):
    """Pallas implementation of GaussianPolicy.forward. Returns (ret, h, c).
    h and c are pass-through (the PyTorch forward never consumes them; the GRU
    runs from zero initial hidden state)."""
    obs2d = jnp.squeeze(obs, 0)                      # torch.squeeze(obs, 0)
    S = obs2d.shape[0]

    vmem = pl.BlockSpec(memory_space=pltpu.MemorySpace.VMEM)
    smem = pl.BlockSpec(memory_space=pltpu.MemorySpace.SMEM)
    hbm = pl.BlockSpec(memory_space=pl.ANY)

    mean = pl.pallas_call(
        _policy_kernel,
        out_shape=jax.ShapeDtypeStruct((S, 1), jnp.float32),
        in_specs=[vmem, vmem, vmem, smem, hbm, hbm, hbm],
        out_specs=vmem,
        scratch_shapes=[
            pltpu.VMEM((2, H, 3 * H), jnp.bfloat16),   # [w_ih0 | w_hh0]
            pltpu.VMEM((2, H, 3 * H), jnp.bfloat16),   # [w_ih1 | w_hh1]
            pltpu.VMEM((5, H, H), jnp.bfloat16),       # [w_mid, w_r1a, w_r1b, w_r2a, w_r2b]
            pltpu.SemaphoreType.DMA((3,)),
        ],
    )(obs2d, params["w_enc"], params["bias_slab"], params["b_fin"],
      params["gru0"], params["gru1"], params["post"])

    std = jnp.exp(jnp.clip(params["log_std"], LOG_STD_MIN, LOG_STD_MAX))   # (1,1), act_dim==1
    std = jnp.broadcast_to(std, (S, 1))
    ret = jnp.concatenate([mean, std], axis=1)[None, ...]   # torch.unsqueeze(cat, 0)
    return ret, h, c


def init_params(key, state_dim):
    """Deterministic PyTorch-default-style init, pre-packed for the kernel.
    act_dim must be 1 (required by the module's std.expand(N, 1)).
    Big weight matrices are stored transposed to (in, out) and quantized to bf16
    (activations & MXU accumulation stay f32)."""
    keys = iter(jax.random.split(key, 40))

    def u(shape, bound):
        return jax.random.uniform(next(keys), shape, jnp.float32, -bound, bound)

    def lin(fan_in, fan_out):
        bound = 1.0 / np.sqrt(fan_in)
        return u((fan_in, fan_out), bound), u((fan_out,), bound)

    p = {}
    w_enc, b_enc = lin(state_dim, H)
    p["w_enc"] = w_enc.astype(jnp.bfloat16)

    gb = 1.0 / np.sqrt(H)
    w_ih0, w_hh0 = u((H, 3 * H), gb), u((H, 3 * H), gb)
    b_ih0, b_hh0 = u((3 * H,), gb), u((3 * H,), gb)
    w_ih1, w_hh1 = u((H, 3 * H), gb), u((H, 3 * H), gb)
    b_ih1, b_hh1 = u((3 * H,), gb), u((3 * H,), gb)
    p["gru0"] = jnp.stack([w_ih0, w_hh0]).astype(jnp.bfloat16)   # (2, 256, 768)
    p["gru1"] = jnp.stack([w_ih1, w_hh1]).astype(jnp.bfloat16)   # (2, 256, 768)

    w_mid, b_mid = lin(H, H)
    w_r1a, b_r1a = lin(H, H)
    w_r1b, b_r1b = lin(H, H)
    w_r2a, b_r2a = lin(H, H)
    w_r2b, b_r2b = lin(H, H)
    p["post"] = jnp.stack([w_mid, w_r1a, w_r1b, w_r2a, w_r2b]).astype(jnp.bfloat16)

    w_fin, b_fin = lin(H, 1)                                     # (256,1), (1,)

    # ---- single (8, 768) f32 bias slab (row layout documented in the kernel) ----
    def row3(a, b, c):
        return jnp.concatenate([a, b, c])[None, :]

    slab = jnp.concatenate([
        b_ih0[None, :], b_hh0[None, :], b_ih1[None, :], b_hh1[None, :],
        row3(b_enc, b_mid, b_r1a),
        row3(b_r1b, b_r2a, b_r2b),
        jnp.concatenate([w_fin[:, 0], jnp.zeros(2 * H, jnp.float32)])[None, :],
        jnp.zeros((1, 3 * H), jnp.float32),
    ], axis=0)
    p["bias_slab"] = slab                                        # (8, 768) f32
    p["b_fin"] = b_fin                                           # (1,) f32, SMEM scalar
    p["log_std"] = jnp.zeros((1, 1), jnp.float32)                # nn.Parameter(zeros(act_dim=1))
    return p


def reference_forward(obs, params):
    """Pure-JAX reference with the same bf16-weight / f32-accumulate numerics."""
    x = jnp.squeeze(obs, 0)
    slab = params["bias_slab"]
    b_enc = slab[4:5, 0:H]
    b_mid = slab[4:5, H:2 * H]
    b_r1a = slab[4:5, 2 * H:3 * H]
    b_r1b = slab[5:6, 0:H]
    b_r2a = slab[5:6, H:2 * H]
    b_r2b = slab[5:6, 2 * H:3 * H]
    w_fin = slab[6:7, 0:H]

    x = jax.nn.relu(_mm(x, params["w_enc"], b_enc))

    def gru_layer(xs, w_ih, w_hh, b_ih, b_hh):
        gx_all = _mm(xs, w_ih, b_ih)                 # (S, 3H)

        def step(hh, gx_row):
            gx = gx_row[None, :]
            gh = _mm(hh, w_hh, b_hh)
            r = jax.nn.sigmoid(gx[:, :H] + gh[:, :H])
            z = jax.nn.sigmoid(gx[:, H:2 * H] + gh[:, H:2 * H])
            n = jnp.tanh(gx[:, 2 * H:] + r * gh[:, 2 * H:])
            h_new = (1.0 - z) * n + z * hh
            return h_new, h_new[0]

        _, ys = jax.lax.scan(step, jnp.zeros((1, H), jnp.float32), gx_all)
        return ys

    x = gru_layer(x, params["gru0"][0], params["gru0"][1], slab[0:1, :], slab[1:2, :])
    x = gru_layer(x, params["gru1"][0], params["gru1"][1], slab[2:3, :], slab[3:4, :])

    y = jax.nn.relu(_mm(x, params["post"][0], b_mid))
    mem1 = y
    t1 = _leaky_relu(_mm(y, params["post"][1], b_r1a))
    t1 = _leaky_relu(_mm(t1, params["post"][2], b_r1b))
    y = t1 + mem1
    mem2 = y
    t2 = _leaky_relu(_mm(y, params["post"][3], b_r2a))
    t2 = _leaky_relu(_mm(t2, params["post"][4], b_r2b))
    y = t2 + mem2

    pre = jnp.sum(y * w_fin, axis=-1, keepdims=True) + params["b_fin"][0]
    mean = jnp.maximum(jax.nn.sigmoid(pre) * (MAX_ACTION * 1e6), 10.0)
    std = jnp.exp(jnp.clip(params["log_std"], LOG_STD_MIN, LOG_STD_MAX))
    std = jnp.broadcast_to(std, (mean.shape[0], 1))
    return jnp.concatenate([mean, std], axis=1)


if __name__ == "__main__":
    S, state_dim = 8, 32
    key = jax.random.PRNGKey(0)
    k_params, k_obs = jax.random.split(key)

    params = init_params(k_params, state_dim)
    obs = jax.random.normal(k_obs, (1, S, state_dim), jnp.float32)
    # h, c are pass-through arguments in the PyTorch forward (never used / modified)
    h = jnp.zeros((2, H), jnp.float32)
    c = jnp.zeros((2, H), jnp.float32)

    ret, h_out, c_out = gaussian_policy_forward(obs, h, c, params)
    ret = jax.block_until_ready(ret)

    ref = reference_forward(obs, params)[None, ...]
    np.testing.assert_allclose(np.asarray(ret), np.asarray(ref), rtol=2e-2, atol=1e-3)

    print("KERNEL_OK")
</pallas_src>

<mosaic_0001>
module attributes {stable_mosaic.version = 11 : i64} {
  func.func @_policy_kernel(%arg0: memref<8x32xf32, #tpu.memory_space<vmem>>, %arg1: memref<32x256xbf16, #tpu.memory_space<vmem>>, %arg2: memref<8x768xf32, #tpu.memory_space<vmem>>, %arg3: memref<1xf32, #tpu.memory_space<smem>>, %arg4: memref<2x256x768xbf16, #tpu.memory_space<any>>, %arg5: memref<2x256x768xbf16, #tpu.memory_space<any>>, %arg6: memref<5x256x256xbf16, #tpu.memory_space<any>>, %arg7: memref<8x1xf32, #tpu.memory_space<vmem>>, %arg8: memref<2x256x768xbf16, #tpu.memory_space<vmem>>, %arg9: memref<2x256x768xbf16, #tpu.memory_space<vmem>>, %arg10: memref<5x256x256xbf16, #tpu.memory_space<vmem>>, %arg11: memref<3x!tpu.dma_semaphore, #tpu.memory_space<semaphore_mem>>) attributes {dimension_semantics = [], scalar_prefetch = 0 : i64, scratch_operands = 4 : i64, tpu.core_type = #tpu.core_type<tc>} {
    %c0_i32 = arith.constant 0 : i32
    %0 = tpu.memref_slice %arg11[%c0_i32] : memref<3x!tpu.dma_semaphore, #tpu.memory_space<semaphore_mem>> -> memref<1x!tpu.dma_semaphore, #tpu.memory_space<semaphore_mem>>
    %1 = tpu.memref_squeeze %0 : memref<1x!tpu.dma_semaphore, #tpu.memory_space<semaphore_mem>> -> memref<!tpu.dma_semaphore, #tpu.memory_space<semaphore_mem>>
    tpu.enqueue_dma source(%arg4 : memref<2x256x768xbf16, #tpu.memory_space<any>>) target(%arg8 : memref<2x256x768xbf16, #tpu.memory_space<vmem>>) target_semaphore(%1 : memref<!tpu.dma_semaphore, #tpu.memory_space<semaphore_mem>>)
    %c1_i32 = arith.constant 1 : i32
    %2 = tpu.memref_slice %arg11[%c1_i32] : memref<3x!tpu.dma_semaphore, #tpu.memory_space<semaphore_mem>> -> memref<1x!tpu.dma_semaphore, #tpu.memory_space<semaphore_mem>>
    %3 = tpu.memref_squeeze %2 : memref<1x!tpu.dma_semaphore, #tpu.memory_space<semaphore_mem>> -> memref<!tpu.dma_semaphore, #tpu.memory_space<semaphore_mem>>
    tpu.enqueue_dma source(%arg5 : memref<2x256x768xbf16, #tpu.memory_space<any>>) target(%arg9 : memref<2x256x768xbf16, #tpu.memory_space<vmem>>) target_semaphore(%3 : memref<!tpu.dma_semaphore, #tpu.memory_space<semaphore_mem>>)
    %c2_i32 = arith.constant 2 : i32
    %4 = tpu.memref_slice %arg11[%c2_i32] : memref<3x!tpu.dma_semaphore, #tpu.memory_space<semaphore_mem>> -> memref<1x!tpu.dma_semaphore, #tpu.memory_space<semaphore_mem>>
    %5 = tpu.memref_squeeze %4 : memref<1x!tpu.dma_semaphore, #tpu.memory_space<semaphore_mem>> -> memref<!tpu.dma_semaphore, #tpu.memory_space<semaphore_mem>>
    tpu.enqueue_dma source(%arg6 : memref<5x256x256xbf16, #tpu.memory_space<any>>) target(%arg10 : memref<5x256x256xbf16, #tpu.memory_space<vmem>>) target_semaphore(%5 : memref<!tpu.dma_semaphore, #tpu.memory_space<semaphore_mem>>)
    %c0 = arith.constant 0 : index
    %c0_0 = arith.constant 0 : index
    %6 = vector.load %arg2[%c0, %c0_0] : memref<8x768xf32, #tpu.memory_space<vmem>>, vector<1x768xf32>
    %c1 = arith.constant 1 : index
    %c0_1 = arith.constant 0 : index
    %7 = vector.load %arg2[%c1, %c0_1] : memref<8x768xf32, #tpu.memory_space<vmem>>, vector<1x768xf32>
    %c2 = arith.constant 2 : index
    %c0_2 = arith.constant 0 : index
    %8 = vector.load %arg2[%c2, %c0_2] : memref<8x768xf32, #tpu.memory_space<vmem>>, vector<1x768xf32>
    %c3 = arith.constant 3 : index
    %c0_3 = arith.constant 0 : index
    %9 = vector.load %arg2[%c3, %c0_3] : memref<8x768xf32, #tpu.memory_space<vmem>>, vector<1x768xf32>
    %c4 = arith.constant 4 : index
    %c0_4 = arith.constant 0 : index
    %10 = vector.load %arg2[%c4, %c0_4] : memref<8x768xf32, #tpu.memory_space<vmem>>, vector<1x256xf32>
    %c4_5 = arith.constant 4 : index
    %c256 = arith.constant 256 : index
    %11 = vector.load %arg2[%c4_5, %c256] : memref<8x768xf32, #tpu.memory_space<vmem>>, vector<1x256xf32>
    %c4_6 = arith.constant 4 : index
    %c512 = arith.constant 512 : index
    %12 = vector.load %arg2[%c4_6, %c512] : memref<8x768xf32, #tpu.memory_space<vmem>>, vector<1x256xf32>
    %c5 = arith.constant 5 : index
    %c0_7 = arith.constant 0 : index
    %13 = vector.load %arg2[%c5, %c0_7] : memref<8x768xf32, #tpu.memory_space<vmem>>, vector<1x256xf32>
    %c5_8 = arith.constant 5 : index
    %c256_9 = arith.constant 256 : index
    %14 = vector.load %arg2[%c5_8, %c256_9] : memref<8x768xf32, #tpu.memory_space<vmem>>, vector<1x256xf32>
    %c5_10 = arith.constant 5 : index
    %c512_11 = arith.constant 512 : index
    %15 = vector.load %arg2[%c5_10, %c512_11] : memref<8x768xf32, #tpu.memory_space<vmem>>, vector<1x256xf32>
    %c6 = arith.constant 6 : index
    %c0_12 = arith.constant 0 : index
    %16 = vector.load %arg2[%c6, %c0_12] : memref<8x768xf32, #tpu.memory_space<vmem>>, vector<1x256xf32>
    %c0_13 = arith.constant 0 : index
    %c0_14 = arith.constant 0 : index
    %17 = vector.load %arg0[%c0_13, %c0_14] : memref<8x32xf32, #tpu.memory_space<vmem>>, vector<8x32xf32>
    %c0_15 = arith.constant 0 : index
    %c0_16 = arith.constant 0 : index
    %18 = vector.load %arg1[%c0_15, %c0_16] : memref<32x256xbf16, #tpu.memory_space<vmem>>, vector<32x256xbf16>
    %19 = arith.truncf %17 : vector<8x32xf32> to vector<8x32xbf16>
    %cst = arith.constant dense<0.000000e+00> : vector<8x256xf32>
    %20 = tpu.matmul %19, %18, %cst {dimension_numbers = #tpu.dot_dimension_numbers<[1], [0], [0], [1], [0, 0, 1, 1], [], []>} : vector<8x32xbf16>, vector<32x256xbf16>, vector<8x256xf32> -> vector<8x256xf32>
    %21 = vector.broadcast %10 : vector<1x256xf32> to vector<8x256xf32>
    %22 = arith.addf %20, %21 : vector<8x256xf32>
    %cst_17 = arith.constant 0.000000e+00 : f32
    %23 = vector.broadcast %cst_17 : f32 to vector<8x256xf32>
    %24 = arith.maximumf %22, %23 : vector<8x256xf32>
    %c0_i32_18 = arith.constant 0 : i32
    %25 = tpu.memref_slice %arg11[%c0_i32_18] : memref<3x!tpu.dma_semaphore, #tpu.memory_space<semaphore_mem>> -> memref<1x!tpu.dma_semaphore, #tpu.memory_space<semaphore_mem>>
    %26 = tpu.memref_squeeze %25 : memref<1x!tpu.dma_semaphore, #tpu.memory_space<semaphore_mem>> -> memref<!tpu.dma_semaphore, #tpu.memory_space<semaphore_mem>>
    tpu.wait_dma2 semaphore(%26 : memref<!tpu.dma_semaphore, #tpu.memory_space<semaphore_mem>>) src(%arg4 : memref<2x256x768xbf16, #tpu.memory_space<any>>) dst(%arg8 : memref<2x256x768xbf16, #tpu.memory_space<vmem>>)
    %c0_19 = arith.constant 0 : index
    %c0_20 = arith.constant 0 : index
    %c0_21 = arith.constant 0 : index
    %27 = vector.load %arg8[%c0_19, %c0_20, %c0_21] : memref<2x256x768xbf16, #tpu.memory_space<vmem>>, vector<1x256x768xbf16>
    %28 = vector.shape_cast %27 : vector<1x256x768xbf16> to vector<256x768xbf16>
    %c1_22 = arith.constant 1 : index
    %c0_23 = arith.constant 0 : index
    %c0_24 = arith.constant 0 : index
    %29 = vector.load %arg8[%c1_22, %c0_23, %c0_24] : memref<2x256x768xbf16, #tpu.memory_space<vmem>>, vector<1x256x768xbf16>
    %30 = vector.shape_cast %29 : vector<1x256x768xbf16> to vector<256x768xbf16>
    %31 = arith.truncf %24 : vector<8x256xf32> to vector<8x256xbf16>
    %cst_25 = arith.constant dense<0.000000e+00> : vector<8x768xf32>
    %32 = tpu.matmul %31, %28, %cst_25 {dimension_numbers = #tpu.dot_dimension_numbers<[1], [0], [0], [1], [0, 0, 1, 1], [], []>} : vector<8x256xbf16>, vector<256x768xbf16>, vector<8x768xf32> -> vector<8x768xf32>
    %33 = vector.broadcast %6 : vector<1x768xf32> to vector<8x768xf32>
    %34 = arith.addf %32, %33 : vector<8x768xf32>
    %c1_i32_26 = arith.constant 1 : i32
    %35 = tpu.memref_slice %arg11[%c1_i32_26] : memref<3x!tpu.dma_semaphore, #tpu.memory_space<semaphore_mem>> -> memref<1x!tpu.dma_semaphore, #tpu.memory_space<semaphore_mem>>
    %36 = tpu.memref_squeeze %35 : memref<1x!tpu.dma_semaphore, #tpu.memory_space<semaphore_mem>> -> memref<!tpu.dma_semaphore, #tpu.memory_space<semaphore_mem>>
    tpu.wait_dma2 semaphore(%36 : memref<!tpu.dma_semaphore, #tpu.memory_space<semaphore_mem>>) src(%arg5 : memref<2x256x768xbf16, #tpu.memory_space<any>>) dst(%arg9 : memref<2x256x768xbf16, #tpu.memory_space<vmem>>)
    %c0_27 = arith.constant 0 : index
    %c0_28 = arith.constant 0 : index
    %c0_29 = arith.constant 0 : index
    %37 = vector.load %arg9[%c0_27, %c0_28, %c0_29] : memref<2x256x768xbf16, #tpu.memory_space<vmem>>, vector<1x256x768xbf16>
    %38 = vector.shape_cast %37 : vector<1x256x768xbf16> to vector<256x768xbf16>
    %c1_30 = arith.constant 1 : index
    %c0_31 = arith.constant 0 : index
    %c0_32 = arith.constant 0 : index
    %39 = vector.load %arg9[%c1_30, %c0_31, %c0_32] : memref<2x256x768xbf16, #tpu.memory_space<vmem>>, vector<1x256x768xbf16>
    %40 = vector.shape_cast %39 : vector<1x256x768xbf16> to vector<256x768xbf16>
    %cst_33 = arith.constant 0.000000e+00 : f32
    %41 = vector.broadcast %cst_33 : f32 to vector<1x256xf32>
    %cst_34 = arith.constant 0.000000e+00 : f32
    %42 = vector.broadcast %cst_34 : f32 to vector<1x256xf32>
    %43 = arith.truncf %41 : vector<1x256xf32> to vector<1x256xbf16>
    %cst_35 = arith.constant dense<0.000000e+00> : vector<1x768xf32>
    %44 = tpu.matmul %43, %30, %cst_35 {dimension_numbers = #tpu.dot_dimension_numbers<[1], [0], [0], [1], [0, 0, 1, 1], [], []>} : vector<1x256xbf16>, vector<256x768xbf16>, vector<1x768xf32> -> vector<1x768xf32>
    %45 = arith.addf %44, %7 : vector<1x768xf32>
    %46 = vector.extract_strided_slice %34 {offsets = [0, 0], sizes = [1, 768], strides = [1, 1]} : vector<8x768xf32> to vector<1x768xf32>
    %47 = vector.extract_strided_slice %46 {offsets = [0, 0], sizes = [1, 256], strides = [1, 1]} : vector<1x768xf32> to vector<1x256xf32>
    %48 = vector.extract_strided_slice %45 {offsets = [0, 0], sizes = [1, 256], strides = [1, 1]} : vector<1x768xf32> to vector<1x256xf32>
    %49 = arith.addf %47, %48 : vector<1x256xf32>
    %50 = arith.negf %49 : vector<1x256xf32>
    %51 = math.exp %50 : vector<1x256xf32>
    %cst_36 = arith.constant 1.000000e+00 : f32
    %52 = vector.broadcast %cst_36 : f32 to vector<1x256xf32>
    %53 = arith.addf %52, %51 : vector<1x256xf32>
    %54 = arith.divf %52, %53 : vector<1x256xf32>
    %55 = vector.extract_strided_slice %46 {offsets = [0, 256], sizes = [1, 256], strides = [1, 1]} : vector<1x768xf32> to vector<1x256xf32>
    %56 = vector.extract_strided_slice %45 {offsets = [0, 256], sizes = [1, 256], strides = [1, 1]} : vector<1x768xf32> to vector<1x256xf32>
    %57 = arith.addf %55, %56 : vector<1x256xf32>
    %58 = arith.negf %57 : vector<1x256xf32>
    %59 = math.exp %58 : vector<1x256xf32>
    %cst_37 = arith.constant 1.000000e+00 : f32
    %60 = vector.broadcast %cst_37 : f32 to vector<1x256xf32>
    %61 = arith.addf %60, %59 : vector<1x256xf32>
    %62 = arith.divf %60, %61 : vector<1x256xf32>
    %63 = vector.extract_strided_slice %46 {offsets = [0, 512], sizes = [1, 256], strides = [1, 1]} : vector<1x768xf32> to vector<1x256xf32>
    %64 = vector.extract_strided_slice %45 {offsets = [0, 512], sizes = [1, 256], strides = [1, 1]} : vector<1x768xf32> to vector<1x256xf32>
    %65 = arith.mulf %54, %64 : vector<1x256xf32>
    %66 = arith.addf %63, %65 : vector<1x256xf32>
    %67 = math.tanh %66 : vector<1x256xf32>
    %cst_38 = arith.constant 1.000000e+00 : f32
    %68 = vector.broadcast %cst_38 : f32 to vector<1x256xf32>
    %69 = arith.subf %68, %62 : vector<1x256xf32>
    %70 = arith.mulf %69, %67 : vector<1x256xf32>
    %71 = arith.mulf %62, %41 : vector<1x256xf32>
    %72 = arith.addf %70, %71 : vector<1x256xf32>
    %73 = arith.truncf %72 : vector<1x256xf32> to vector<1x256xbf16>
    %cst_39 = arith.constant dense<0.000000e+00> : vector<1x768xf32>
    %74 = tpu.matmul %73, %38, %cst_39 {dimension_numbers = #tpu.dot_dimension_numbers<[1], [0], [0], [1], [0, 0, 1, 1], [], []>} : vector<1x256xbf16>, vector<256x768xbf16>, vector<1x768xf32> -> vector<1x768xf32>
    %75 = arith.addf %74, %8 : vector<1x768xf32>
    %76 = arith.truncf %42 : vector<1x256xf32> to vector<1x256xbf16>
    %cst_40 = arith.constant dense<0.000000e+00> : vector<1x768xf32>
    %77 = tpu.matmul %76, %40, %cst_40 {dimension_numbers = #tpu.dot_dimension_numbers<[1], [0], [0], [1], [0, 0, 1, 1], [], []>} : vector<1x256xbf16>, vector<256x768xbf16>, vector<1x768xf32> -> vector<1x768xf32>
    %78 = arith.addf %77, %9 : vector<1x768xf32>
    %79 = vector.extract_strided_slice %75 {offsets = [0, 0], sizes = [1, 256], strides = [1, 1]} : vector<1x768xf32> to vector<1x256xf32>
    %80 = vector.extract_strided_slice %78 {offsets = [0, 0], sizes = [1, 256], strides = [1, 1]} : vector<1x768xf32> to vector<1x256xf32>
    %81 = arith.addf %79, %80 : vector<1x256xf32>
    %82 = arith.negf %81 : vector<1x256xf32>
    %83 = math.exp %82 : vector<1x256xf32>
    %cst_41 = arith.constant 1.000000e+00 : f32
    %84 = vector.broadcast %cst_41 : f32 to vector<1x256xf32>
    %85 = arith.addf %84, %83 : vector<1x256xf32>
    %86 = arith.divf %84, %85 : vector<1x256xf32>
    %87 = vector.extract_strided_slice %75 {offsets = [0, 256], sizes = [1, 256], strides = [1, 1]} : vector<1x768xf32> to vector<1x256xf32>
    %88 = vector.extract_strided_slice %78 {offsets = [0, 256], sizes = [1, 256], strides = [1, 1]} : vector<1x768xf32> to vector<1x256xf32>
    %89 = arith.addf %87, %88 : vector<1x256xf32>
    %90 = arith.negf %89 : vector<1x256xf32>
    %91 = math.exp %90 : vector<1x256xf32>
    %cst_42 = arith.constant 1.000000e+00 : f32
    %92 = vector.broadcast %cst_42 : f32 to vector<1x256xf32>
    %93 = arith.addf %92, %91 : vector<1x256xf32>
    %94 = arith.divf %92, %93 : vector<1x256xf32>
    %95 = vector.extract_strided_slice %75 {offsets = [0, 512], sizes = [1, 256], strides = [1, 1]} : vector<1x768xf32> to vector<1x256xf32>
    %96 = vector.extract_strided_slice %78 {offsets = [0, 512], sizes = [1, 256], strides = [1, 1]} : vector<1x768xf32> to vector<1x256xf32>
    %97 = arith.mulf %86, %96 : vector<1x256xf32>
    %98 = arith.addf %95, %97 : vector<1x256xf32>
    %99 = math.tanh %98 : vector<1x256xf32>
    %cst_43 = arith.constant 1.000000e+00 : f32
    %100 = vector.broadcast %cst_43 : f32 to vector<1x256xf32>
    %101 = arith.subf %100, %94 : vector<1x256xf32>
    %102 = arith.mulf %101, %99 : vector<1x256xf32>
    %103 = arith.mulf %94, %42 : vector<1x256xf32>
    %104 = arith.addf %102, %103 : vector<1x256xf32>
    %105 = arith.truncf %72 : vector<1x256xf32> to vector<1x256xbf16>
    %cst_44 = arith.constant dense<0.000000e+00> : vector<1x768xf32>
    %106 = tpu.matmul %105, %30, %cst_44 {dimension_numbers = #tpu.dot_dimension_numbers<[1], [0], [0], [1], [0, 0, 1, 1], [], []>} : vector<1x256xbf16>, vector<256x768xbf16>, vector<1x768xf32> -> vector<1x768xf32>
    %107 = arith.addf %106, %7 : vector<1x768xf32>
    %108 = vector.extract_strided_slice %34 {offsets = [1, 0], sizes = [1, 768], strides = [1, 1]} : vector<8x768xf32> to vector<1x768xf32>
    %109 = vector.extract_strided_slice %108 {offsets = [0, 0], sizes = [1, 256], strides = [1, 1]} : vector<1x768xf32> to vector<1x256xf32>
    %110 = vector.extract_strided_slice %107 {offsets = [0, 0], sizes = [1, 256], strides = [1, 1]} : vector<1x768xf32> to vector<1x256xf32>
    %111 = arith.addf %109, %110 : vector<1x256xf32>
    %112 = arith.negf %111 : vector<1x256xf32>
    %113 = math.exp %112 : vector<1x256xf32>
    %cst_45 = arith.constant 1.000000e+00 : f32
    %114 = vector.broadcast %cst_45 : f32 to vector<1x256xf32>
    %115 = arith.addf %114, %113 : vector<1x256xf32>
    %116 = arith.divf %114, %115 : vector<1x256xf32>
    %117 = vector.extract_strided_slice %108 {offsets = [0, 256], sizes = [1, 256], strides = [1, 1]} : vector<1x768xf32> to vector<1x256xf32>
    %118 = vector.extract_strided_slice %107 {offsets = [0, 256], sizes = [1, 256], strides = [1, 1]} : vector<1x768xf32> to vector<1x256xf32>
    %119 = arith.addf %117, %118 : vector<1x256xf32>
    %120 = arith.negf %119 : vector<1x256xf32>
    %121 = math.exp %120 : vector<1x256xf32>
    %cst_46 = arith.constant 1.000000e+00 : f32
    %122 = vector.broadcast %cst_46 : f32 to vector<1x256xf32>
    %123 = arith.addf %122, %121 : vector<1x256xf32>
    %124 = arith.divf %122, %123 : vector<1x256xf32>
    %125 = vector.extract_strided_slice %108 {offsets = [0, 512], sizes = [1, 256], strides = [1, 1]} : vector<1x768xf32> to vector<1x256xf32>
    %126 = vector.extract_strided_slice %107 {offsets = [0, 512], sizes = [1, 256], strides = [1, 1]} : vector<1x768xf32> to vector<1x256xf32>
    %127 = arith.mulf %116, %126 : vector<1x256xf32>
    %128 = arith.addf %125, %127 : vector<1x256xf32>
    %129 = math.tanh %128 : vector<1x256xf32>
    %cst_47 = arith.constant 1.000000e+00 : f32
    %130 = vector.broadcast %cst_47 : f32 to vector<1x256xf32>
    %131 = arith.subf %130, %124 : vector<1x256xf32>
    %132 = arith.mulf %131, %129 : vector<1x256xf32>
    %133 = arith.mulf %124, %72 : vector<1x256xf32>
    %134 = arith.addf %132, %133 : vector<1x256xf32>
    %135 = arith.truncf %134 : vector<1x256xf32> to vector<1x256xbf16>
    %cst_48 = arith.constant dense<0.000000e+00> : vector<1x768xf32>
    %136 = tpu.matmul %135, %38, %cst_48 {dimension_numbers = #tpu.dot_dimension_numbers<[1], [0], [0], [1], [0, 0, 1, 1], [], []>} : vector<1x256xbf16>, vector<256x768xbf16>, vector<1x768xf32> -> vector<1x768xf32>
    %137 = arith.addf %136, %8 : vector<1x768xf32>
    %138 = arith.truncf %104 : vector<1x256xf32> to vector<1x256xbf16>
    %cst_49 = arith.constant dense<0.000000e+00> : vector<1x768xf32>
    %139 = tpu.matmul %138, %40, %cst_49 {dimension_numbers = #tpu.dot_dimension_numbers<[1], [0], [0], [1], [0, 0, 1, 1], [], []>} : vector<1x256xbf16>, vector<256x768xbf16>, vector<1x768xf32> -> vector<1x768xf32>
    %140 = arith.addf %139, %9 : vector<1x768xf32>
    %141 = vector.extract_strided_slice %137 {offsets = [0, 0], sizes = [1, 256], strides = [1, 1]} : vector<1x768xf32> to vector<1x256xf32>
    %142 = vector.extract_strided_slice %140 {offsets = [0, 0], sizes = [1, 256], strides = [1, 1]} : vector<1x768xf32> to vector<1x256xf32>
    %143 = arith.addf %141, %142 : vector<1x256xf32>
    %144 = arith.negf %143 : vector<1x256xf32>
    %145 = math.exp %144 : vector<1x256xf32>
    %cst_50 = arith.constant 1.000000e+00 : f32
    %146 = vector.broadcast %cst_50 : f32 to vector<1x256xf32>
    %147 = arith.addf %146, %145 : vector<1x256xf32>
    %148 = arith.divf %146, %147 : vector<1x256xf32>
    %149 = vector.extract_strided_slice %137 {offsets = [0, 256], sizes = [1, 256], strides = [1, 1]} : vector<1x768xf32> to vector<1x256xf32>
    %150 = vector.extract_strided_slice %140 {offsets = [0, 256], sizes = [1, 256], strides = [1, 1]} : vector<1x768xf32> to vector<1x256xf32>
    %151 = arith.addf %149, %150 : vector<1x256xf32>
    %152 = arith.negf %151 : vector<1x256xf32>
    %153 = math.exp %152 : vector<1x256xf32>
    %cst_51 = arith.constant 1.000000e+00 : f32
    %154 = vector.broadcast %cst_51 : f32 to vector<1x256xf32>
    %155 = arith.addf %154, %153 : vector<1x256xf32>
    %156 = arith.divf %154, %155 : vector<1x256xf32>
    %157 = vector.extract_strided_slice %137 {offsets = [0, 512], sizes = [1, 256], strides = [1, 1]} : vector<1x768xf32> to vector<1x256xf32>
    %158 = vector.extract_strided_slice %140 {offsets = [0, 512], sizes = [1, 256], strides = [1, 1]} : vector<1x768xf32> to vector<1x256xf32>
    %159 = arith.mulf %148, %158 : vector<1x256xf32>
    %160 = arith.addf %157, %159 : vector<1x256xf32>
    %161 = math.tanh %160 : vector<1x256xf32>
    %cst_52 = arith.constant 1.000000e+00 : f32
    %162 = vector.broadcast %cst_52 : f32 to vector<1x256xf32>
    %163 = arith.subf %162, %156 : vector<1x256xf32>
    %164 = arith.mulf %163, %161 : vector<1x256xf32>
    %165 = arith.mulf %156, %104 : vector<1x256xf32>
    %166 = arith.addf %164, %165 : vector<1x256xf32>
    %167 = arith.truncf %134 : vector<1x256xf32> to vector<1x256xbf16>
    %cst_53 = arith.constant dense<0.000000e+00> : vector<1x768xf32>
    %168 = tpu.matmul %167, %30, %cst_53 {dimension_numbers = #tpu.dot_dimension_numbers<[1], [0], [0], [1], [0, 0, 1, 1], [], []>} : vector<1x256xbf16>, vector<256x768xbf16>, vector<1x768xf32> -> vector<1x768xf32>
    %169 = arith.addf %168, %7 : vector<1x768xf32>
    %170 = vector.extract_strided_slice %34 {offsets = [2, 0], sizes = [1, 768], strides = [1, 1]} : vector<8x768xf32> to vector<1x768xf32>
    %171 = vector.extract_strided_slice %170 {offsets = [0, 0], sizes = [1, 256], strides = [1, 1]} : vector<1x768xf32> to vector<1x256xf32>
    %172 = vector.extract_strided_slice %169 {offsets = [0, 0], sizes = [1, 256], strides = [1, 1]} : vector<1x768xf32> to vector<1x256xf32>
    %173 = arith.addf %171, %172 : vector<1x256xf32>
    %174 = arith.negf %173 : vector<1x256xf32>
    %175 = math.exp %174 : vector<1x256xf32>
    %cst_54 = arith.constant 1.000000e+00 : f32
    %176 = vector.broadcast %cst_54 : f32 to vector<1x256xf32>
    %177 = arith.addf %176, %175 : vector<1x256xf32>
    %178 = arith.divf %176, %177 : vector<1x256xf32>
    %179 = vector.extract_strided_slice %170 {offsets = [0, 256], sizes = [1, 256], strides = [1, 1]} : vector<1x768xf32> to vector<1x256xf32>
    %180 = vector.extract_strided_slice %169 {offsets = [0, 256], sizes = [1, 256], strides = [1, 1]} : vector<1x768xf32> to vector<1x256xf32>
    %181 = arith.addf %179, %180 : vector<1x256xf32>
    %182 = arith.negf %181 : vector<1x256xf32>
    %183 = math.exp %182 : vector<1x256xf32>
    %cst_55 = arith.constant 1.000000e+00 : f32
    %184 = vector.broadcast %cst_55 : f32 to vector<1x256xf32>
    %185 = arith.addf %184, %183 : vector<1x256xf32>
    %186 = arith.divf %184, %185 : vector<1x256xf32>
    %187 = vector.extract_strided_slice %170 {offsets = [0, 512], sizes = [1, 256], strides = [1, 1]} : vector<1x768xf32> to vector<1x256xf32>
    %188 = vector.extract_strided_slice %169 {offsets = [0, 512], sizes = [1, 256], strides = [1, 1]} : vector<1x768xf32> to vector<1x256xf32>
    %189 = arith.mulf %178, %188 : vector<1x256xf32>
    %190 = arith.addf %187, %189 : vector<1x256xf32>
    %191 = math.tanh %190 : vector<1x256xf32>
    %cst_56 = arith.constant 1.000000e+00 : f32
    %192 = vector.broadcast %cst_56 : f32 to vector<1x256xf32>
    %193 = arith.subf %192, %186 : vector<1x256xf32>
    %194 = arith.mulf %193, %191 : vector<1x256xf32>
    %195 = arith.mulf %186, %134 : vector<1x256xf32>
    %196 = arith.addf %194, %195 : vector<1x256xf32>
    %197 = arith.truncf %196 : vector<1x256xf32> to vector<1x256xbf16>
    %cst_57 = arith.constant dense<0.000000e+00> : vector<1x768xf32>
    %198 = tpu.matmul %197, %38, %cst_57 {dimension_numbers = #tpu.dot_dimension_numbers<[1], [0], [0], [1], [0, 0, 1, 1], [], []>} : vector<1x256xbf16>, vector<256x768xbf16>, vector<1x768xf32> -> vector<1x768xf32>
    %199 = arith.addf %198, %8 : vector<1x768xf32>
    %200 = arith.truncf %166 : vector<1x256xf32> to vector<1x256xbf16>
    %cst_58 = arith.constant dense<0.000000e+00> : vector<1x768xf32>
    %201 = tpu.matmul %200, %40, %cst_58 {dimension_numbers = #tpu.dot_dimension_numbers<[1], [0], [0], [1], [0, 0, 1, 1], [], []>} : vector<1x256xbf16>, vector<256x768xbf16>, vector<1x768xf32> -> vector<1x768xf32>
    %202 = arith.addf %201, %9 : vector<1x768xf32>
    %203 = vector.extract_strided_slice %199 {offsets = [0, 0], sizes = [1, 256], strides = [1, 1]} : vector<1x768xf32> to vector<1x256xf32>
    %204 = vector.extract_strided_slice %202 {offsets = [0, 0], sizes = [1, 256], strides = [1, 1]} : vector<1x768xf32> to vector<1x256xf32>
    %205 = arith.addf %203, %204 : vector<1x256xf32>
    %206 = arith.negf %205 : vector<1x256xf32>
    %207 = math.exp %206 : vector<1x256xf32>
    %cst_59 = arith.constant 1.000000e+00 : f32
    %208 = vector.broadcast %cst_59 : f32 to vector<1x256xf32>
    %209 = arith.addf %208, %207 : vector<1x256xf32>
    %210 = arith.divf %208, %209 : vector<1x256xf32>
    %211 = vector.extract_strided_slice %199 {offsets = [0, 256], sizes = [1, 256], strides = [1, 1]} : vector<1x768xf32> to vector<1x256xf32>
    %212 = vector.extract_strided_slice %202 {offsets = [0, 256], sizes = [1, 256], strides = [1, 1]} : vector<1x768xf32> to vector<1x256xf32>
    %213 = arith.addf %211, %212 : vector<1x256xf32>
    %214 = arith.negf %213 : vector<1x256xf32>
    %215 = math.exp %214 : vector<1x256xf32>
    %cst_60 = arith.constant 1.000000e+00 : f32
    %216 = vector.broadcast %cst_60 : f32 to vector<1x256xf32>
    %217 = arith.addf %216, %215 : vector<1x256xf32>
    %218 = arith.divf %216, %217 : vector<1x256xf32>
    %219 = vector.extract_strided_slice %199 {offsets = [0, 512], sizes = [1, 256], strides = [1, 1]} : vector<1x768xf32> to vector<1x256xf32>
    %220 = vector.extract_strided_slice %202 {offsets = [0, 512], sizes = [1, 256], strides = [1, 1]} : vector<1x768xf32> to vector<1x256xf32>
    %221 = arith.mulf %210, %220 : vector<1x256xf32>
    %222 = arith.addf %219, %221 : vector<1x256xf32>
    %223 = math.tanh %222 : vector<1x256xf32>
    %cst_61 = arith.constant 1.000000e+00 : f32
    %224 = vector.broadcast %cst_61 : f32 to vector<1x256xf32>
    %225 = arith.subf %224, %218 : vector<1x256xf32>
    %226 = arith.mulf %225, %223 : vector<1x256xf32>
    %227 = arith.mulf %218, %166 : vector<1x256xf32>
    %228 = arith.addf %226, %227 : vector<1x256xf32>
    %229 = arith.truncf %196 : vector<1x256xf32> to vector<1x256xbf16>
    %cst_62 = arith.constant dense<0.000000e+00> : vector<1x768xf32>
    %230 = tpu.matmul %229, %30, %cst_62 {dimension_numbers = #tpu.dot_dimension_numbers<[1], [0], [0], [1], [0, 0, 1, 1], [], []>} : vector<1x256xbf16>, vector<256x768xbf16>, vector<1x768xf32> -> vector<1x768xf32>
    %231 = arith.addf %230, %7 : vector<1x768xf32>
    %232 = vector.extract_strided_slice %34 {offsets = [3, 0], sizes = [1, 768], strides = [1, 1]} : vector<8x768xf32> to vector<1x768xf32>
    %233 = vector.extract_strided_slice %232 {offsets = [0, 0], sizes = [1, 256], strides = [1, 1]} : vector<1x768xf32> to vector<1x256xf32>
    %234 = vector.extract_strided_slice %231 {offsets = [0, 0], sizes = [1, 256], strides = [1, 1]} : vector<1x768xf32> to vector<1x256xf32>
    %235 = arith.addf %233, %234 : vector<1x256xf32>
    %236 = arith.negf %235 : vector<1x256xf32>
    %237 = math.exp %236 : vector<1x256xf32>
    %cst_63 = arith.constant 1.000000e+00 : f32
    %238 = vector.broadcast %cst_63 : f32 to vector<1x256xf32>
    %239 = arith.addf %238, %237 : vector<1x256xf32>
    %240 = arith.divf %238, %239 : vector<1x256xf32>
    %241 = vector.extract_strided_slice %232 {offsets = [0, 256], sizes = [1, 256], strides = [1, 1]} : vector<1x768xf32> to vector<1x256xf32>
    %242 = vector.extract_strided_slice %231 {offsets = [0, 256], sizes = [1, 256], strides = [1, 1]} : vector<1x768xf32> to vector<1x256xf32>
    %243 = arith.addf %241, %242 : vector<1x256xf32>
    %244 = arith.negf %243 : vector<1x256xf32>
    %245 = math.exp %244 : vector<1x256xf32>
    %cst_64 = arith.constant 1.000000e+00 : f32
    %246 = vector.broadcast %cst_64 : f32 to vector<1x256xf32>
    %247 = arith.addf %246, %245 : vector<1x256xf32>
    %248 = arith.divf %246, %247 : vector<1x256xf32>
    %249 = vector.extract_strided_slice %232 {offsets = [0, 512], sizes = [1, 256], strides = [1, 1]} : vector<1x768xf32> to vector<1x256xf32>
    %250 = vector.extract_strided_slice %231 {offsets = [0, 512], sizes = [1, 256], strides = [1, 1]} : vector<1x768xf32> to vector<1x256xf32>
    %251 = arith.mulf %240, %250 : vector<1x256xf32>
    %252 = arith.addf %249, %251 : vector<1x256xf32>
    %253 = math.tanh %252 : vector<1x256xf32>
    %cst_65 = arith.constant 1.000000e+00 : f32
    %254 = vector.broadcast %cst_65 : f32 to vector<1x256xf32>
    %255 = arith.subf %254, %248 : vector<1x256xf32>
    %256 = arith.mulf %255, %253 : vector<1x256xf32>
    %257 = arith.mulf %248, %196 : vector<1x256xf32>
    %258 = arith.addf %256, %257 : vector<1x256xf32>
    %259 = arith.truncf %258 : vector<1x256xf32> to vector<1x256xbf16>
    %cst_66 = arith.constant dense<0.000000e+00> : vector<1x768xf32>
    %260 = tpu.matmul %259, %38, %cst_66 {dimension_numbers = #tpu.dot_dimension_numbers<[1], [0], [0], [1], [0, 0, 1, 1], [], []>} : vector<1x256xbf16>, vector<256x768xbf16>, vector<1x768xf32> -> vector<1x768xf32>
    %261 = arith.addf %260, %8 : vector<1x768xf32>
    %262 = arith.truncf %228 : vector<1x256xf32> to vector<1x256xbf16>
    %cst_67 = arith.constant dense<0.000000e+00> : vector<1x768xf32>
    %263 = tpu.matmul %262, %40, %cst_67 {dimension_numbers = #tpu.dot_dimension_numbers<[1], [0], [0], [1], [0, 0, 1, 1], [], []>} : vector<1x256xbf16>, vector<256x768xbf16>, vector<1x768xf32> -> vector<1x768xf32>
    %264 = arith.addf %263, %9 : vector<1x768xf32>
    %265 = vector.extract_strided_slice %261 {offsets = [0, 0], sizes = [1, 256], strides = [1, 1]} : vector<1x768xf32> to vector<1x256xf32>
    %266 = vector.extract_strided_slice %264 {offsets = [0, 0], sizes = [1, 256], strides = [1, 1]} : vector<1x768xf32> to vector<1x256xf32>
    %267 = arith.addf %265, %266 : vector<1x256xf32>
    %268 = arith.negf %267 : vector<1x256xf32>
    %269 = math.exp %268 : vector<1x256xf32>
    %cst_68 = arith.constant 1.000000e+00 : f32
    %270 = vector.broadcast %cst_68 : f32 to vector<1x256xf32>
    %271 = arith.addf %270, %269 : vector<1x256xf32>
    %272 = arith.divf %270, %271 : vector<1x256xf32>
    %273 = vector.extract_strided_slice %261 {offsets = [0, 256], sizes = [1, 256], strides = [1, 1]} : vector<1x768xf32> to vector<1x256xf32>
    %274 = vector.extract_strided_slice %264 {offsets = [0, 256], sizes = [1, 256], strides = [1, 1]} : vector<1x768xf32> to vector<1x256xf32>
    %275 = arith.addf %273, %274 : vector<1x256xf32>
    %276 = arith.negf %275 : vector<1x256xf32>
    %277 = math.exp %276 : vector<1x256xf32>
    %cst_69 = arith.constant 1.000000e+00 : f32
    %278 = vector.broadcast %cst_69 : f32 to vector<1x256xf32>
    %279 = arith.addf %278, %277 : vector<1x256xf32>
    %280 = arith.divf %278, %279 : vector<1x256xf32>
    %281 = vector.extract_strided_slice %261 {offsets = [0, 512], sizes = [1, 256], strides = [1, 1]} : vector<1x768xf32> to vector<1x256xf32>
    %282 = vector.extract_strided_slice %264 {offsets = [0, 512], sizes = [1, 256], strides = [1, 1]} : vector<1x768xf32> to vector<1x256xf32>
    %283 = arith.mulf %272, %282 : vector<1x256xf32>
    %284 = arith.addf %281, %283 : vector<1x256xf32>
    %285 = math.tanh %284 : vector<1x256xf32>
    %cst_70 = arith.constant 1.000000e+00 : f32
    %286 = vector.broadcast %cst_70 : f32 to vector<1x256xf32>
    %287 = arith.subf %286, %280 : vector<1x256xf32>
    %288 = arith.mulf %287, %285 : vector<1x256xf32>
    %289 = arith.mulf %280, %228 : vector<1x256xf32>
    %290 = arith.addf %288, %289 : vector<1x256xf32>
    %291 = arith.truncf %258 : vector<1x256xf32> to vector<1x256xbf16>
    %cst_71 = arith.constant dense<0.000000e+00> : vector<1x768xf32>
    %292 = tpu.matmul %291, %30, %cst_71 {dimension_numbers = #tpu.dot_dimension_numbers<[1], [0], [0], [1], [0, 0, 1, 1], [], []>} : vector<1x256xbf16>, vector<256x768xbf16>, vector<1x768xf32> -> vector<1x768xf32>
    %293 = arith.addf %292, %7 : vector<1x768xf32>
    %294 = vector.extract_strided_slice %34 {offsets = [4, 0], sizes = [1, 768], strides = [1, 1]} : vector<8x768xf32> to vector<1x768xf32>
    %295 = vector.extract_strided_slice %294 {offsets = [0, 0], sizes = [1, 256], strides = [1, 1]} : vector<1x768xf32> to vector<1x256xf32>
    %296 = vector.extract_strided_slice %293 {offsets = [0, 0], sizes = [1, 256], strides = [1, 1]} : vector<1x768xf32> to vector<1x256xf32>
    %297 = arith.addf %295, %296 : vector<1x256xf32>
    %298 = arith.negf %297 : vector<1x256xf32>
    %299 = math.exp %298 : vector<1x256xf32>
    %cst_72 = arith.constant 1.000000e+00 : f32
    %300 = vector.broadcast %cst_72 : f32 to vector<1x256xf32>
    %301 = arith.addf %300, %299 : vector<1x256xf32>
    %302 = arith.divf %300, %301 : vector<1x256xf32>
    %303 = vector.extract_strided_slice %294 {offsets = [0, 256], sizes = [1, 256], strides = [1, 1]} : vector<1x768xf32> to vector<1x256xf32>
    %304 = vector.extract_strided_slice %293 {offsets = [0, 256], sizes = [1, 256], strides = [1, 1]} : vector<1x768xf32> to vector<1x256xf32>
    %305 = arith.addf %303, %304 : vector<1x256xf32>
    %306 = arith.negf %305 : vector<1x256xf32>
    %307 = math.exp %306 : vector<1x256xf32>
    %cst_73 = arith.constant 1.000000e+00 : f32
    %308 = vector.broadcast %cst_73 : f32 to vector<1x256xf32>
    %309 = arith.addf %308, %307 : vector<1x256xf32>
    %310 = arith.divf %308, %309 : vector<1x256xf32>
    %311 = vector.extract_strided_slice %294 {offsets = [0, 512], sizes = [1, 256], strides = [1, 1]} : vector<1x768xf32> to vector<1x256xf32>
    %312 = vector.extract_strided_slice %293 {offsets = [0, 512], sizes = [1, 256], strides = [1, 1]} : vector<1x768xf32> to vector<1x256xf32>
    %313 = arith.mulf %302, %312 : vector<1x256xf32>
    %314 = arith.addf %311, %313 : vector<1x256xf32>
    %315 = math.tanh %314 : vector<1x256xf32>
    %cst_74 = arith.constant 1.000000e+00 : f32
    %316 = vector.broadcast %cst_74 : f32 to vector<1x256xf32>
    %317 = arith.subf %316, %310 : vector<1x256xf32>
    %318 = arith.mulf %317, %315 : vector<1x256xf32>
    %319 = arith.mulf %310, %258 : vector<1x256xf32>
    %320 = arith.addf %318, %319 : vector<1x256xf32>
    %321 = arith.truncf %320 : vector<1x256xf32> to vector<1x256xbf16>
    %cst_75 = arith.constant dense<0.000000e+00> : vector<1x768xf32>
    %322 = tpu.matmul %321, %38, %cst_75 {dimension_numbers = #tpu.dot_dimension_numbers<[1], [0], [0], [1], [0, 0, 1, 1], [], []>} : vector<1x256xbf16>, vector<256x768xbf16>, vector<1x768xf32> -> vector<1x768xf32>
    %323 = arith.addf %322, %8 : vector<1x768xf32>
    %324 = arith.truncf %290 : vector<1x256xf32> to vector<1x256xbf16>
    %cst_76 = arith.constant dense<0.000000e+00> : vector<1x768xf32>
    %325 = tpu.matmul %324, %40, %cst_76 {dimension_numbers = #tpu.dot_dimension_numbers<[1], [0], [0], [1], [0, 0, 1, 1], [], []>} : vector<1x256xbf16>, vector<256x768xbf16>, vector<1x768xf32> -> vector<1x768xf32>
    %326 = arith.addf %325, %9 : vector<1x768xf32>
    %327 = vector.extract_strided_slice %323 {offsets = [0, 0], sizes = [1, 256], strides = [1, 1]} : vector<1x768xf32> to vector<1x256xf32>
    %328 = vector.extract_strided_slice %326 {offsets = [0, 0], sizes = [1, 256], strides = [1, 1]} : vector<1x768xf32> to vector<1x256xf32>
    %329 = arith.addf %327, %328 : vector<1x256xf32>
    %330 = arith.negf %329 : vector<1x256xf32>
    %331 = math.exp %330 : vector<1x256xf32>
    %cst_77 = arith.constant 1.000000e+00 : f32
    %332 = vector.broadcast %cst_77 : f32 to vector<1x256xf32>
    %333 = arith.addf %332, %331 : vector<1x256xf32>
    %334 = arith.divf %332, %333 : vector<1x256xf32>
    %335 = vector.extract_strided_slice %323 {offsets = [0, 256], sizes = [1, 256], strides = [1, 1]} : vector<1x768xf32> to vector<1x256xf32>
    %336 = vector.extract_strided_slice %326 {offsets = [0, 256], sizes = [1, 256], strides = [1, 1]} : vector<1x768xf32> to vector<1x256xf32>
    %337 = arith.addf %335, %336 : vector<1x256xf32>
    %338 = arith.negf %337 : vector<1x256xf32>
    %339 = math.exp %338 : vector<1x256xf32>
    %cst_78 = arith.constant 1.000000e+00 : f32
    %340 = vector.broadcast %cst_78 : f32 to vector<1x256xf32>
    %341 = arith.addf %340, %339 : vector<1x256xf32>
    %342 = arith.divf %340, %341 : vector<1x256xf32>
    %343 = vector.extract_strided_slice %323 {offsets = [0, 512], sizes = [1, 256], strides = [1, 1]} : vector<1x768xf32> to vector<1x256xf32>
    %344 = vector.extract_strided_slice %326 {offsets = [0, 512], sizes = [1, 256], strides = [1, 1]} : vector<1x768xf32> to vector<1x256xf32>
    %345 = arith.mulf %334, %344 : vector<1x256xf32>
    %346 = arith.addf %343, %345 : vector<1x256xf32>
    %347 = math.tanh %346 : vector<1x256xf32>
    %cst_79 = arith.constant 1.000000e+00 : f32
    %348 = vector.broadcast %cst_79 : f32 to vector<1x256xf32>
    %349 = arith.subf %348, %342 : vector<1x256xf32>
    %350 = arith.mulf %349, %347 : vector<1x256xf32>
    %351 = arith.mulf %342, %290 : vector<1x256xf32>
    %352 = arith.addf %350, %351 : vector<1x256xf32>
    %353 = arith.truncf %320 : vector<1x256xf32> to vector<1x256xbf16>
    %cst_80 = arith.constant dense<0.000000e+00> : vector<1x768xf32>
    %354 = tpu.matmul %353, %30, %cst_80 {dimension_numbers = #tpu.dot_dimension_numbers<[1], [0], [0], [1], [0, 0, 1, 1], [], []>} : vector<1x256xbf16>, vector<256x768xbf16>, vector<1x768xf32> -> vector<1x768xf32>
    %355 = arith.addf %354, %7 : vector<1x768xf32>
    %356 = vector.extract_strided_slice %34 {offsets = [5, 0], sizes = [1, 768], strides = [1, 1]} : vector<8x768xf32> to vector<1x768xf32>
    %357 = vector.extract_strided_slice %356 {offsets = [0, 0], sizes = [1, 256], strides = [1, 1]} : vector<1x768xf32> to vector<1x256xf32>
    %358 = vector.extract_strided_slice %355 {offsets = [0, 0], sizes = [1, 256], strides = [1, 1]} : vector<1x768xf32> to vector<1x256xf32>
    %359 = arith.addf %357, %358 : vector<1x256xf32>
    %360 = arith.negf %359 : vector<1x256xf32>
    %361 = math.exp %360 : vector<1x256xf32>
    %cst_81 = arith.constant 1.000000e+00 : f32
    %362 = vector.broadcast %cst_81 : f32 to vector<1x256xf32>
    %363 = arith.addf %362, %361 : vector<1x256xf32>
    %364 = arith.divf %362, %363 : vector<1x256xf32>
    %365 = vector.extract_strided_slice %356 {offsets = [0, 256], sizes = [1, 256], strides = [1, 1]} : vector<1x768xf32> to vector<1x256xf32>
    %366 = vector.extract_strided_slice %355 {offsets = [0, 256], sizes = [1, 256], strides = [1, 1]} : vector<1x768xf32> to vector<1x256xf32>
    %367 = arith.addf %365, %366 : vector<1x256xf32>
    %368 = arith.negf %367 : vector<1x256xf32>
    %369 = math.exp %368 : vector<1x256xf32>
    %cst_82 = arith.constant 1.000000e+00 : f32
    %370 = vector.broadcast %cst_82 : f32 to vector<1x256xf32>
    %371 = arith.addf %370, %369 : vector<1x256xf32>
    %372 = arith.divf %370, %371 : vector<1x256xf32>
    %373 = vector.extract_strided_slice %356 {offsets = [0, 512], sizes = [1, 256], strides = [1, 1]} : vector<1x768xf32> to vector<1x256xf32>
    %374 = vector.extract_strided_slice %355 {offsets = [0, 512], sizes = [1, 256], strides = [1, 1]} : vector<1x768xf32> to vector<1x256xf32>
    %375 = arith.mulf %364, %374 : vector<1x256xf32>
    %376 = arith.addf %373, %375 : vector<1x256xf32>
    %377 = math.tanh %376 : vector<1x256xf32>
    %cst_83 = arith.constant 1.000000e+00 : f32
    %378 = vector.broadcast %cst_83 : f32 to vector<1x256xf32>
    %379 = arith.subf %378, %372 : vector<1x256xf32>
    %380 = arith.mulf %379, %377 : vector<1x256xf32>
    %381 = arith.mulf %372, %320 : vector<1x256xf32>
    %382 = arith.addf %380, %381 : vector<1x256xf32>
    %383 = arith.truncf %382 : vector<1x256xf32> to vector<1x256xbf16>
    %cst_84 = arith.constant dense<0.000000e+00> : vector<1x768xf32>
    %384 = tpu.matmul %383, %38, %cst_84 {dimension_numbers = #tpu.dot_dimension_numbers<[1], [0], [0], [1], [0, 0, 1, 1], [], []>} : vector<1x256xbf16>, vector<256x768xbf16>, vector<1x768xf32> -> vector<1x768xf32>
    %385 = arith.addf %384, %8 : vector<1x768xf32>
    %386 = arith.truncf %352 : vector<1x256xf32> to vector<1x256xbf16>
    %cst_85 = arith.constant dense<0.000000e+00> : vector<1x768xf32>
    %387 = tpu.matmul %386, %40, %cst_85 {dimension_numbers = #tpu.dot_dimension_numbers<[1], [0], [0], [1], [0, 0, 1, 1], [], []>} : vector<1x256xbf16>, vector<256x768xbf16>, vector<1x768xf32> -> vector<1x768xf32>
    %388 = arith.addf %387, %9 : vector<1x768xf32>
    %389 = vector.extract_strided_slice %385 {offsets = [0, 0], sizes = [1, 256], strides = [1, 1]} : vector<1x768xf32> to vector<1x256xf32>
    %390 = vector.extract_strided_slice %388 {offsets = [0, 0], sizes = [1, 256], strides = [1, 1]} : vector<1x768xf32> to vector<1x256xf32>
    %391 = arith.addf %389, %390 : vector<1x256xf32>
    %392 = arith.negf %391 : vector<1x256xf32>
    %393 = math.exp %392 : vector<1x256xf32>
    %cst_86 = arith.constant 1.000000e+00 : f32
    %394 = vector.broadcast %cst_86 : f32 to vector<1x256xf32>
    %395 = arith.addf %394, %393 : vector<1x256xf32>
    %396 = arith.divf %394, %395 : vector<1x256xf32>
    %397 = vector.extract_strided_slice %385 {offsets = [0, 256], sizes = [1, 256], strides = [1, 1]} : vector<1x768xf32> to vector<1x256xf32>
    %398 = vector.extract_strided_slice %388 {offsets = [0, 256], sizes = [1, 256], strides = [1, 1]} : vector<1x768xf32> to vector<1x256xf32>
    %399 = arith.addf %397, %398 : vector<1x256xf32>
    %400 = arith.negf %399 : vector<1x256xf32>
    %401 = math.exp %400 : vector<1x256xf32>
    %cst_87 = arith.constant 1.000000e+00 : f32
    %402 = vector.broadcast %cst_87 : f32 to vector<1x256xf32>
    %403 = arith.addf %402, %401 : vector<1x256xf32>
    %404 = arith.divf %402, %403 : vector<1x256xf32>
    %405 = vector.extract_strided_slice %385 {offsets = [0, 512], sizes = [1, 256], strides = [1, 1]} : vector<1x768xf32> to vector<1x256xf32>
    %406 = vector.extract_strided_slice %388 {offsets = [0, 512], sizes = [1, 256], strides = [1, 1]} : vector<1x768xf32> to vector<1x256xf32>
    %407 = arith.mulf %396, %406 : vector<1x256xf32>
    %408 = arith.addf %405, %407 : vector<1x256xf32>
    %409 = math.tanh %408 : vector<1x256xf32>
    %cst_88 = arith.constant 1.000000e+00 : f32
    %410 = vector.broadcast %cst_88 : f32 to vector<1x256xf32>
    %411 = arith.subf %410, %404 : vector<1x256xf32>
    %412 = arith.mulf %411, %409 : vector<1x256xf32>
    %413 = arith.mulf %404, %352 : vector<1x256xf32>
    %414 = arith.addf %412, %413 : vector<1x256xf32>
    %415 = arith.truncf %382 : vector<1x256xf32> to vector<1x256xbf16>
    %cst_89 = arith.constant dense<0.000000e+00> : vector<1x768xf32>
    %416 = tpu.matmul %415, %30, %cst_89 {dimension_numbers = #tpu.dot_dimension_numbers<[1], [0], [0], [1], [0, 0, 1, 1], [], []>} : vector<1x256xbf16>, vector<256x768xbf16>, vector<1x768xf32> -> vector<1x768xf32>
    %417 = arith.addf %416, %7 : vector<1x768xf32>
    %418 = vector.extract_strided_slice %34 {offsets = [6, 0], sizes = [1, 768], strides = [1, 1]} : vector<8x768xf32> to vector<1x768xf32>
    %419 = vector.extract_strided_slice %418 {offsets = [0, 0], sizes = [1, 256], strides = [1, 1]} : vector<1x768xf32> to vector<1x256xf32>
    %420 = vector.extract_strided_slice %417 {offsets = [0, 0], sizes = [1, 256], strides = [1, 1]} : vector<1x768xf32> to vector<1x256xf32>
    %421 = arith.addf %419, %420 : vector<1x256xf32>
    %422 = arith.negf %421 : vector<1x256xf32>
    %423 = math.exp %422 : vector<1x256xf32>
    %cst_90 = arith.constant 1.000000e+00 : f32
    %424 = vector.broadcast %cst_90 : f32 to vector<1x256xf32>
    %425 = arith.addf %424, %423 : vector<1x256xf32>
    %426 = arith.divf %424, %425 : vector<1x256xf32>
    %427 = vector.extract_strided_slice %418 {offsets = [0, 256], sizes = [1, 256], strides = [1, 1]} : vector<1x768xf32> to vector<1x256xf32>
    %428 = vector.extract_strided_slice %417 {offsets = [0, 256], sizes = [1, 256], strides = [1, 1]} : vector<1x768xf32> to vector<1x256xf32>
    %429 = arith.addf %427, %428 : vector<1x256xf32>
    %430 = arith.negf %429 : vector<1x256xf32>
    %431 = math.exp %430 : vector<1x256xf32>
    %cst_91 = arith.constant 1.000000e+00 : f32
    %432 = vector.broadcast %cst_91 : f32 to vector<1x256xf32>
    %433 = arith.addf %432, %431 : vector<1x256xf32>
    %434 = arith.divf %432, %433 : vector<1x256xf32>
    %435 = vector.extract_strided_slice %418 {offsets = [0, 512], sizes = [1, 256], strides = [1, 1]} : vector<1x768xf32> to vector<1x256xf32>
    %436 = vector.extract_strided_slice %417 {offsets = [0, 512], sizes = [1, 256], strides = [1, 1]} : vector<1x768xf32> to vector<1x256xf32>
    %437 = arith.mulf %426, %436 : vector<1x256xf32>
    %438 = arith.addf %435, %437 : vector<1x256xf32>
    %439 = math.tanh %438 : vector<1x256xf32>
    %cst_92 = arith.constant 1.000000e+00 : f32
    %440 = vector.broadcast %cst_92 : f32 to vector<1x256xf32>
    %441 = arith.subf %440, %434 : vector<1x256xf32>
    %442 = arith.mulf %441, %439 : vector<1x256xf32>
    %443 = arith.mulf %434, %382 : vector<1x256xf32>
    %444 = arith.addf %442, %443 : vector<1x256xf32>
    %445 = arith.truncf %444 : vector<1x256xf32> to vector<1x256xbf16>
    %cst_93 = arith.constant dense<0.000000e+00> : vector<1x768xf32>
    %446 = tpu.matmul %445, %38, %cst_93 {dimension_numbers = #tpu.dot_dimension_numbers<[1], [0], [0], [1], [0, 0, 1, 1], [], []>} : vector<1x256xbf16>, vector<256x768xbf16>, vector<1x768xf32> -> vector<1x768xf32>
    %447 = arith.addf %446, %8 : vector<1x768xf32>
    %448 = arith.truncf %414 : vector<1x256xf32> to vector<1x256xbf16>
    %cst_94 = arith.constant dense<0.000000e+00> : vector<1x768xf32>
    %449 = tpu.matmul %448, %40, %cst_94 {dimension_numbers = #tpu.dot_dimension_numbers<[1], [0], [0], [1], [0, 0, 1, 1], [], []>} : vector<1x256xbf16>, vector<256x768xbf16>, vector<1x768xf32> -> vector<1x768xf32>
    %450 = arith.addf %449, %9 : vector<1x768xf32>
    %451 = vector.extract_strided_slice %447 {offsets = [0, 0], sizes = [1, 256], strides = [1, 1]} : vector<1x768xf32> to vector<1x256xf32>
    %452 = vector.extract_strided_slice %450 {offsets = [0, 0], sizes = [1, 256], strides = [1, 1]} : vector<1x768xf32> to vector<1x256xf32>
    %453 = arith.addf %451, %452 : vector<1x256xf32>
    %454 = arith.negf %453 : vector<1x256xf32>
    %455 = math.exp %454 : vector<1x256xf32>
    %cst_95 = arith.constant 1.000000e+00 : f32
    %456 = vector.broadcast %cst_95 : f32 to vector<1x256xf32>
    %457 = arith.addf %456, %455 : vector<1x256xf32>
    %458 = arith.divf %456, %457 : vector<1x256xf32>
    %459 = vector.extract_strided_slice %447 {offsets = [0, 256], sizes = [1, 256], strides = [1, 1]} : vector<1x768xf32> to vector<1x256xf32>
    %460 = vector.extract_strided_slice %450 {offsets = [0, 256], sizes = [1, 256], strides = [1, 1]} : vector<1x768xf32> to vector<1x256xf32>
    %461 = arith.addf %459, %460 : vector<1x256xf32>
    %462 = arith.negf %461 : vector<1x256xf32>
    %463 = math.exp %462 : vector<1x256xf32>
    %cst_96 = arith.constant 1.000000e+00 : f32
    %464 = vector.broadcast %cst_96 : f32 to vector<1x256xf32>
    %465 = arith.addf %464, %463 : vector<1x256xf32>
    %466 = arith.divf %464, %465 : vector<1x256xf32>
    %467 = vector.extract_strided_slice %447 {offsets = [0, 512], sizes = [1, 256], strides = [1, 1]} : vector<1x768xf32> to vector<1x256xf32>
    %468 = vector.extract_strided_slice %450 {offsets = [0, 512], sizes = [1, 256], strides = [1, 1]} : vector<1x768xf32> to vector<1x256xf32>
    %469 = arith.mulf %458, %468 : vector<1x256xf32>
    %470 = arith.addf %467, %469 : vector<1x256xf32>
    %471 = math.tanh %470 : vector<1x256xf32>
    %cst_97 = arith.constant 1.000000e+00 : f32
    %472 = vector.broadcast %cst_97 : f32 to vector<1x256xf32>
    %473 = arith.subf %472, %466 : vector<1x256xf32>
    %474 = arith.mulf %473, %471 : vector<1x256xf32>
    %475 = arith.mulf %466, %414 : vector<1x256xf32>
    %476 = arith.addf %474, %475 : vector<1x256xf32>
    %477 = arith.truncf %444 : vector<1x256xf32> to vector<1x256xbf16>
    %cst_98 = arith.constant dense<0.000000e+00> : vector<1x768xf32>
    %478 = tpu.matmul %477, %30, %cst_98 {dimension_numbers = #tpu.dot_dimension_numbers<[1], [0], [0], [1], [0, 0, 1, 1], [], []>} : vector<1x256xbf16>, vector<256x768xbf16>, vector<1x768xf32> -> vector<1x768xf32>
    %479 = arith.addf %478, %7 : vector<1x768xf32>
    %480 = vector.extract_strided_slice %34 {offsets = [7, 0], sizes = [1, 768], strides = [1, 1]} : vector<8x768xf32> to vector<1x768xf32>
    %481 = vector.extract_strided_slice %480 {offsets = [0, 0], sizes = [1, 256], strides = [1, 1]} : vector<1x768xf32> to vector<1x256xf32>
    %482 = vector.extract_strided_slice %479 {offsets = [0, 0], sizes = [1, 256], strides = [1, 1]} : vector<1x768xf32> to vector<1x256xf32>
    %483 = arith.addf %481, %482 : vector<1x256xf32>
    %484 = arith.negf %483 : vector<1x256xf32>
    %485 = math.exp %484 : vector<1x256xf32>
    %cst_99 = arith.constant 1.000000e+00 : f32
    %486 = vector.broadcast %cst_99 : f32 to vector<1x256xf32>
    %487 = arith.addf %486, %485 : vector<1x256xf32>
    %488 = arith.divf %486, %487 : vector<1x256xf32>
    %489 = vector.extract_strided_slice %480 {offsets = [0, 256], sizes = [1, 256], strides = [1, 1]} : vector<1x768xf32> to vector<1x256xf32>
    %490 = vector.extract_strided_slice %479 {offsets = [0, 256], sizes = [1, 256], strides = [1, 1]} : vector<1x768xf32> to vector<1x256xf32>
    %491 = arith.addf %489, %490 : vector<1x256xf32>
    %492 = arith.negf %491 : vector<1x256xf32>
    %493 = math.exp %492 : vector<1x256xf32>
    %cst_100 = arith.constant 1.000000e+00 : f32
    %494 = vector.broadcast %cst_100 : f32 to vector<1x256xf32>
    %495 = arith.addf %494, %493 : vector<1x256xf32>
    %496 = arith.divf %494, %495 : vector<1x256xf32>
    %497 = vector.extract_strided_slice %480 {offsets = [0, 512], sizes = [1, 256], strides = [1, 1]} : vector<1x768xf32> to vector<1x256xf32>
    %498 = vector.extract_strided_slice %479 {offsets = [0, 512], sizes = [1, 256], strides = [1, 1]} : vector<1x768xf32> to vector<1x256xf32>
    %499 = arith.mulf %488, %498 : vector<1x256xf32>
    %500 = arith.addf %497, %499 : vector<1x256xf32>
    %501 = math.tanh %500 : vector<1x256xf32>
    %cst_101 = arith.constant 1.000000e+00 : f32
    %502 = vector.broadcast %cst_101 : f32 to vector<1x256xf32>
    %503 = arith.subf %502, %496 : vector<1x256xf32>
    %504 = arith.mulf %503, %501 : vector<1x256xf32>
    %505 = arith.mulf %496, %444 : vector<1x256xf32>
    %506 = arith.addf %504, %505 : vector<1x256xf32>
    %507 = arith.truncf %506 : vector<1x256xf32> to vector<1x256xbf16>
    %cst_102 = arith.constant dense<0.000000e+00> : vector<1x768xf32>
    %508 = tpu.matmul %507, %38, %cst_102 {dimension_numbers = #tpu.dot_dimension_numbers<[1], [0], [0], [1], [0, 0, 1, 1], [], []>} : vector<1x256xbf16>, vector<256x768xbf16>, vector<1x768xf32> -> vector<1x768xf32>
    %509 = arith.addf %508, %8 : vector<1x768xf32>
    %510 = arith.truncf %476 : vector<1x256xf32> to vector<1x256xbf16>
    %cst_103 = arith.constant dense<0.000000e+00> : vector<1x768xf32>
    %511 = tpu.matmul %510, %40, %cst_103 {dimension_numbers = #tpu.dot_dimension_numbers<[1], [0], [0], [1], [0, 0, 1, 1], [], []>} : vector<1x256xbf16>, vector<256x768xbf16>, vector<1x768xf32> -> vector<1x768xf32>
    %512 = arith.addf %511, %9 : vector<1x768xf32>
    %513 = vector.extract_strided_slice %509 {offsets = [0, 0], sizes = [1, 256], strides = [1, 1]} : vector<1x768xf32> to vector<1x256xf32>
    %514 = vector.extract_strided_slice %512 {offsets = [0, 0], sizes = [1, 256], strides = [1, 1]} : vector<1x768xf32> to vector<1x256xf32>
    %515 = arith.addf %513, %514 : vector<1x256xf32>
    %516 = arith.negf %515 : vector<1x256xf32>
    %517 = math.exp %516 : vector<1x256xf32>
    %cst_104 = arith.constant 1.000000e+00 : f32
    %518 = vector.broadcast %cst_104 : f32 to vector<1x256xf32>
    %519 = arith.addf %518, %517 : vector<1x256xf32>
    %520 = arith.divf %518, %519 : vector<1x256xf32>
    %521 = vector.extract_strided_slice %509 {offsets = [0, 256], sizes = [1, 256], strides = [1, 1]} : vector<1x768xf32> to vector<1x256xf32>
    %522 = vector.extract_strided_slice %512 {offsets = [0, 256], sizes = [1, 256], strides = [1, 1]} : vector<1x768xf32> to vector<1x256xf32>
    %523 = arith.addf %521, %522 : vector<1x256xf32>
    %524 = arith.negf %523 : vector<1x256xf32>
    %525 = math.exp %524 : vector<1x256xf32>
    %cst_105 = arith.constant 1.000000e+00 : f32
    %526 = vector.broadcast %cst_105 : f32 to vector<1x256xf32>
    %527 = arith.addf %526, %525 : vector<1x256xf32>
    %528 = arith.divf %526, %527 : vector<1x256xf32>
    %529 = vector.extract_strided_slice %509 {offsets = [0, 512], sizes = [1, 256], strides = [1, 1]} : vector<1x768xf32> to vector<1x256xf32>
    %530 = vector.extract_strided_slice %512 {offsets = [0, 512], sizes = [1, 256], strides = [1, 1]} : vector<1x768xf32> to vector<1x256xf32>
    %531 = arith.mulf %520, %530 : vector<1x256xf32>
    %532 = arith.addf %529, %531 : vector<1x256xf32>
    %533 = math.tanh %532 : vector<1x256xf32>
    %cst_106 = arith.constant 1.000000e+00 : f32
    %534 = vector.broadcast %cst_106 : f32 to vector<1x256xf32>
    %535 = arith.subf %534, %528 : vector<1x256xf32>
    %536 = arith.mulf %535, %533 : vector<1x256xf32>
    %537 = arith.mulf %528, %476 : vector<1x256xf32>
    %538 = arith.addf %536, %537 : vector<1x256xf32>
    %539 = tpu.concatenate %104, %166, %228, %290, %352, %414, %476, %538 in 0 : vector<1x256xf32>, vector<1x256xf32>, vector<1x256xf32>, vector<1x256xf32>, vector<1x256xf32>, vector<1x256xf32>, vector<1x256xf32>, vector<1x256xf32> -> vector<8x256xf32>
    %c2_i32_107 = arith.constant 2 : i32
    %540 = tpu.memref_slice %arg11[%c2_i32_107] : memref<3x!tpu.dma_semaphore, #tpu.memory_space<semaphore_mem>> -> memref<1x!tpu.dma_semaphore, #tpu.memory_space<semaphore_mem>>
    %541 = tpu.memref_squeeze %540 : memref<1x!tpu.dma_semaphore, #tpu.memory_space<semaphore_mem>> -> memref<!tpu.dma_semaphore, #tpu.memory_space<semaphore_mem>>
    tpu.wait_dma2 semaphore(%541 : memref<!tpu.dma_semaphore, #tpu.memory_space<semaphore_mem>>) src(%arg6 : memref<5x256x256xbf16, #tpu.memory_space<any>>) dst(%arg10 : memref<5x256x256xbf16, #tpu.memory_space<vmem>>)
    %c0_108 = arith.constant 0 : index
    %c0_109 = arith.constant 0 : index
    %c0_110 = arith.constant 0 : index
    %542 = vector.load %arg10[%c0_108, %c0_109, %c0_110] : memref<5x256x256xbf16, #tpu.memory_space<vmem>>, vector<1x256x256xbf16>
    %543 = vector.shape_cast %542 : vector<1x256x256xbf16> to vector<256x256xbf16>
    %544 = arith.truncf %539 : vector<8x256xf32> to vector<8x256xbf16>
    %cst_111 = arith.constant dense<0.000000e+00> : vector<8x256xf32>
    %545 = tpu.matmul %544, %543, %cst_111 {dimension_numbers = #tpu.dot_dimension_numbers<[1], [0], [0], [1], [0, 0, 1, 1], [], []>} : vector<8x256xbf16>, vector<256x256xbf16>, vector<8x256xf32> -> vector<8x256xf32>
    %546 = vector.broadcast %11 : vector<1x256xf32> to vector<8x256xf32>
    %547 = arith.addf %545, %546 : vector<8x256xf32>
    %cst_112 = arith.constant 0.000000e+00 : f32
    %548 = vector.broadcast %cst_112 : f32 to vector<8x256xf32>
    %549 = arith.maximumf %547, %548 : vector<8x256xf32>
    %c1_113 = arith.constant 1 : index
    %c0_114 = arith.constant 0 : index
    %c0_115 = arith.constant 0 : index
    %550 = vector.load %arg10[%c1_113, %c0_114, %c0_115] : memref<5x256x256xbf16, #tpu.memory_space<vmem>>, vector<1x256x256xbf16>
    %551 = vector.shape_cast %550 : vector<1x256x256xbf16> to vector<256x256xbf16>
    %552 = arith.truncf %549 : vector<8x256xf32> to vector<8x256xbf16>
    %cst_116 = arith.constant dense<0.000000e+00> : vector<8x256xf32>
    %553 = tpu.matmul %552, %551, %cst_116 {dimension_numbers = #tpu.dot_dimension_numbers<[1], [0], [0], [1], [0, 0, 1, 1], [], []>} : vector<8x256xbf16>, vector<256x256xbf16>, vector<8x256xf32> -> vector<8x256xf32>
    %554 = vector.broadcast %12 : vector<1x256xf32> to vector<8x256xf32>
    %555 = arith.addf %553, %554 : vector<8x256xf32>
    %cst_117 = arith.constant 0.000000e+00 : f32
    %556 = vector.broadcast %cst_117 : f32 to vector<8x256xf32>
    %557 = arith.cmpf oge, %555, %556 : vector<8x256xf32>
    %cst_118 = arith.constant 0.00999999977 : f32
    %558 = vector.broadcast %cst_118 : f32 to vector<8x256xf32>
    %559 = arith.mulf %558, %555 : vector<8x256xf32>
    %560 = arith.select %557, %555, %559 : vector<8x256xi1>, vector<8x256xf32>
    %c2_119 = arith.constant 2 : index
    %c0_120 = arith.constant 0 : index
    %c0_121 = arith.constant 0 : index
    %561 = vector.load %arg10[%c2_119, %c0_120, %c0_121] : memref<5x256x256xbf16, #tpu.memory_space<vmem>>, vector<1x256x256xbf16>
    %562 = vector.shape_cast %561 : vector<1x256x256xbf16> to vector<256x256xbf16>
    %563 = arith.truncf %560 : vector<8x256xf32> to vector<8x256xbf16>
    %cst_122 = arith.constant dense<0.000000e+00> : vector<8x256xf32>
    %564 = tpu.matmul %563, %562, %cst_122 {dimension_numbers = #tpu.dot_dimension_numbers<[1], [0], [0], [1], [0, 0, 1, 1], [], []>} : vector<8x256xbf16>, vector<256x256xbf16>, vector<8x256xf32> -> vector<8x256xf32>
    %565 = vector.broadcast %13 : vector<1x256xf32> to vector<8x256xf32>
    %566 = arith.addf %564, %565 : vector<8x256xf32>
    %cst_123 = arith.constant 0.000000e+00 : f32
    %567 = vector.broadcast %cst_123 : f32 to vector<8x256xf32>
    %568 = arith.cmpf oge, %566, %567 : vector<8x256xf32>
    %cst_124 = arith.constant 0.00999999977 : f32
    %569 = vector.broadcast %cst_124 : f32 to vector<8x256xf32>
    %570 = arith.mulf %569, %566 : vector<8x256xf32>
    %571 = arith.select %568, %566, %570 : vector<8x256xi1>, vector<8x256xf32>
    %572 = arith.addf %571, %549 : vector<8x256xf32>
    %c3_125 = arith.constant 3 : index
    %c0_126 = arith.constant 0 : index
    %c0_127 = arith.constant 0 : index
    %573 = vector.load %arg10[%c3_125, %c0_126, %c0_127] : memref<5x256x256xbf16, #tpu.memory_space<vmem>>, vector<1x256x256xbf16>
    %574 = vector.shape_cast %573 : vector<1x256x256xbf16> to vector<256x256xbf16>
    %575 = arith.truncf %572 : vector<8x256xf32> to vector<8x256xbf16>
    %cst_128 = arith.constant dense<0.000000e+00> : vector<8x256xf32>
    %576 = tpu.matmul %575, %574, %cst_128 {dimension_numbers = #tpu.dot_dimension_numbers<[1], [0], [0], [1], [0, 0, 1, 1], [], []>} : vector<8x256xbf16>, vector<256x256xbf16>, vector<8x256xf32> -> vector<8x256xf32>
    %577 = vector.broadcast %14 : vector<1x256xf32> to vector<8x256xf32>
    %578 = arith.addf %576, %577 : vector<8x256xf32>
    %cst_129 = arith.constant 0.000000e+00 : f32
    %579 = vector.broadcast %cst_129 : f32 to vector<8x256xf32>
    %580 = arith.cmpf oge, %578, %579 : vector<8x256xf32>
    %cst_130 = arith.constant 0.00999999977 : f32
    %581 = vector.broadcast %cst_130 : f32 to vector<8x256xf32>
    %582 = arith.mulf %581, %578 : vector<8x256xf32>
    %583 = arith.select %580, %578, %582 : vector<8x256xi1>, vector<8x256xf32>
    %c4_131 = arith.constant 4 : index
    %c0_132 = arith.constant 0 : index
    %c0_133 = arith.constant 0 : index
    %584 = vector.load %arg10[%c4_131, %c0_132, %c0_133] : memref<5x256x256xbf16, #tpu.memory_space<vmem>>, vector<1x256x256xbf16>
    %585 = vector.shape_cast %584 : vector<1x256x256xbf16> to vector<256x256xbf16>
    %586 = arith.truncf %583 : vector<8x256xf32> to vector<8x256xbf16>
    %cst_134 = arith.constant dense<0.000000e+00> : vector<8x256xf32>
    %587 = tpu.matmul %586, %585, %cst_134 {dimension_numbers = #tpu.dot_dimension_numbers<[1], [0], [0], [1], [0, 0, 1, 1], [], []>} : vector<8x256xbf16>, vector<256x256xbf16>, vector<8x256xf32> -> vector<8x256xf32>
    %588 = vector.broadcast %15 : vector<1x256xf32> to vector<8x256xf32>
    %589 = arith.addf %587, %588 : vector<8x256xf32>
    %cst_135 = arith.constant 0.000000e+00 : f32
    %590 = vector.broadcast %cst_135 : f32 to vector<8x256xf32>
    %591 = arith.cmpf oge, %589, %590 : vector<8x256xf32>
    %cst_136 = arith.constant 0.00999999977 : f32
    %592 = vector.broadcast %cst_136 : f32 to vector<8x256xf32>
    %593 = arith.mulf %592, %589 : vector<8x256xf32>
    %594 = arith.select %591, %589, %593 : vector<8x256xi1>, vector<8x256xf32>
    %595 = arith.addf %594, %572 : vector<8x256xf32>
    %596 = vector.broadcast %16 : vector<1x256xf32> to vector<8x256xf32>
    %597 = arith.mulf %595, %596 : vector<8x256xf32>
    %cst_137 = arith.constant dense<0.000000e+00> : vector<8xf32>
    %598 = vector.multi_reduction <add>, %597, %cst_137 [1] : vector<8x256xf32> to vector<8xf32>
    %599 = vector.shape_cast %598 : vector<8xf32> to vector<8x1xf32>
    %c0_138 = arith.constant 0 : index
    %600 = memref.load %arg3[%c0_138] : memref<1xf32, #tpu.memory_space<smem>>
    %601 = vector.broadcast %600 : f32 to vector<8x1xf32>
    %602 = arith.addf %599, %601 : vector<8x1xf32>
    %603 = arith.negf %602 : vector<8x1xf32>
    %604 = math.exp %603 : vector<8x1xf32>
    %cst_139 = arith.constant 1.000000e+00 : f32
    %605 = vector.broadcast %cst_139 : f32 to vector<8x1xf32>
    %606 = arith.addf %605, %604 : vector<8x1xf32>
    %607 = arith.divf %605, %606 : vector<8x1xf32>
    %cst_140 = arith.constant 2.000000e+07 : f32
    %608 = vector.broadcast %cst_140 : f32 to vector<8x1xf32>
    %609 = arith.mulf %607, %608 : vector<8x1xf32>
    %cst_141 = arith.constant 1.000000e+01 : f32
    %610 = vector.broadcast %cst_141 : f32 to vector<8x1xf32>
    %611 = arith.maximumf %609, %610 : vector<8x1xf32>
    %c0_142 = arith.constant 0 : index
    %c0_143 = arith.constant 0 : index
    %612 = vector.load %arg7[%c0_142, %c0_143] : memref<8x1xf32, #tpu.memory_space<vmem>>, vector<8x1xf32>
    tpu.vector_store %arg7[%c0_142, %c0_143], %611 {strides = array<i32>} : memref<8x1xf32, #tpu.memory_space<vmem>>, vector<8x1xf32>,
    return
  }
}

</mosaic_0001>

<llo_original>
// kernel: tpu_custom_call.1
$region0: #{tpu_custom_call.1}
  #allocation0 [shape = 'u32[]', space=smem, size = 0x4, offset = 0x4, fixed_abs, tag = 'smem constant byte address 0x4 - core index']
  #allocation1 [shape = 'u32[72,128]{1,0:T(1,128)}', space=vmem, size = 0x9000, scoped, tag = 'internal scratch']
  #allocation2 [shape = 'bf16[2,256,768]{2,1,0:T(8,128)(2,1)}', space=vmem, size = 0xc0000, scoped, tag = 'scratch operand']
  #allocation3 [shape = 'bf16[2,256,768]{2,1,0:T(8,128)(2,1)}', space=vmem, size = 0xc0000, scoped, tag = 'scratch operand']
  #allocation4 [shape = 'bf16[5,256,256]{2,1,0:T(8,128)(2,1)}', space=vmem, size = 0xa0000, scoped, tag = 'scratch operand']
  #allocation5 [shape = 's32[3]{0}', space=sflag, size = 0xc, scoped, tag = 'scratch operand']
  #allocation6 [shape = 'f32[1]{0:T(128)S(6)}', space=smem, size = 0x200, scoped, tag = 'scoped memory for tpu_custom_call.1']
  #allocation12 [shape = 's32[]', space=sflag, size = 0x4, offset = 0, fixed_abs, tag = 'sflag constant byte address 0x0 - dummy sync flag']
  #allocation13 [shape = 's32[]', space=sflag, size = 0x4, offset = 0, fixed_abs, tag = 'sflag constant byte address 0x0 - dummy sync flag']
  #allocation14 [shape = 'u32[]', space=smem, size = 0x4, offset = 0x44, fixed_abs, tag = 'smem constant byte address 0x44 - assertion arg 0']
  #allocation15 [shape = 'u32[]', space=smem, size = 0x4, offset = 0x48, fixed_abs, tag = 'smem constant byte address 0x48 - assertion arg 1']
  #allocation16 [shape = 's32[]', space=sflag, size = 0x4, offset = 0, fixed_abs, tag = 'sflag constant byte address 0x0 - dummy sync flag']
  #allocation17 [shape = 's32[]', space=sflag, size = 0x4, offset = 0, fixed_abs, tag = 'sflag constant byte address 0x0 - dummy sync flag']
  #allocation18 [shape = 's32[]', space=sflag, size = 0x4, offset = 0, fixed_abs, tag = 'sflag constant byte address 0x0 - dummy sync flag']
  #allocation19 [shape = 's32[]', space=sflag, size = 0x4, offset = 0, fixed_abs, tag = 'sflag constant byte address 0x0 - dummy sync flag']
  %s0 = inlined_call_operand.hbm [shape: f32[8,32], index: 0, kind: input, shape index: {}]
  %s1 = inlined_call_operand.hbm [shape: bf16[32,256], index: 1, kind: input, shape index: {}]
  %s2 = inlined_call_operand.hbm [shape: f32[8,768], index: 2, kind: input, shape index: {}]
  %s3 = inlined_call_operand.<no memory space> [shape: f32[1], index: 3, kind: input, shape index: {}]
  %s4 = inlined_call_operand.hbm [shape: bf16[2,256,768], index: 4, kind: input, shape index: {}]
  %s5 = inlined_call_operand.hbm [shape: bf16[2,256,768], index: 5, kind: input, shape index: {}]
  %s6 = inlined_call_operand.hbm [shape: bf16[5,256,256], index: 6, kind: input, shape index: {}]
  %s7 = inlined_call_operand.vmem [shape: f32[8,1], index: 7, kind: output, shape index: {}]
  %s8 = sld [smem:[#allocation0]]
  $region50: #{tpu_custom_call.1} parent=0
    _
  %s10 = ssub.s32 1, %s8
  %s11 = scalar_select 0, %s10, %s8
  %12 = sst [smem:[#allocation6]] %s3
  $region1: #{tpu_custom_call.1} parent=0
    #allocation7 [shape = 'u8[4096]{0}', space=vmem, size = 0x1000, scoped, tag = 'input window, operand 0, single buffered']
    #allocation8 [shape = 's32[1]{0}', space=sflag, size = 0x4, scoped, tag = 'scoped memory for tpu_custom_call.1']
    #allocation9 [shape = 'u8[16384]{0}', space=vmem, size = 0x4000, scoped, tag = 'input window, operand 1, single buffered']
    #allocation10 [shape = 's32[1]{0}', space=sflag, size = 0x4, scoped, tag = 'scoped memory for tpu_custom_call.1']
    #allocation11 [shape = 'u8[24576]{0}', space=vmem, size = 0x6000, scoped, tag = 'input window, operand 2, single buffered']
    %13 = vsyncpa [#allocation8], 0
    %14 = vsyncpa [#allocation10], 0
    // Predicated region
    $region2: #{tpu_custom_call.1} parent=1 // pred_check
      _
    $region3: #{tpu_custom_call.1} parent=1 // pred_check_branch
      %16 = sbr.rel (0) target = $region5
    $region4: #{tpu_custom_call.1} parent=1 // pred_region
      %18 = vsyncadd [#allocation8], 0
      %s20 = sshll.u32 %s0, 4
      %s21 = int_to_ptr.hbm [resolvable:$true] %s20
      %s22 = sshll.u32 [#allocation7], 4
      %s23 = int_to_ptr.vmem [resolvable:$true] %s22
      %25 = dma.hbm_to_vmem [thread:$0]  %s21, 128, %s23, [#allocation8]
    $region5: #{tpu_custom_call.1} parent=1 // pred_fallthru
      _
    // Predicated region
    $region6: #{tpu_custom_call.1} parent=1 // pred_check
      _
    $region7: #{tpu_custom_call.1} parent=1 // pred_check_branch
      %27 = sbr.rel (0) target = $region9
    $region8: #{tpu_custom_call.1} parent=1 // pred_region
      %29 = vsyncadd [#allocation10], 0
      %s30 = sshll.u32 %s1, 4
      %s31 = int_to_ptr.hbm [resolvable:$true] %s30
      %s32 = sshll.u32 [#allocation9], 4
      %s33 = int_to_ptr.vmem [resolvable:$true] %s32
      %38 = dma.hbm_to_vmem [thread:$0]  %s31, 512, %s33, [#allocation10], 128, 128, 8
    $region9: #{tpu_custom_call.1} parent=1 // pred_fallthru
      _
    // Predicated region
    $region10: #{tpu_custom_call.1} parent=1 // pred_check
      _
    $region11: #{tpu_custom_call.1} parent=1 // pred_check_branch
      %40 = sbr.rel (0) target = $region13
    $region12: #{tpu_custom_call.1} parent=1 // pred_region
      %42 = vsyncadd [#allocation10], 0
      %s44 = sshll.u32 %s2, 4
      %s45 = int_to_ptr.hbm [resolvable:$true] %s44
      %s46 = sshll.u32 [#allocation11], 4
      %s47 = int_to_ptr.vmem [resolvable:$true] %s46
      %49 = dma.hbm_to_vmem [thread:$0]  %s45, 768, %s47, [#allocation10]
    $region13: #{tpu_custom_call.1} parent=1 // pred_fallthru
      _
    // Predicated region
    $region14: #{tpu_custom_call.1} parent=1 // pred_check
      _
    $region15: #{tpu_custom_call.1} parent=1 // pred_check_branch
      %51 = sbr.rel (0) target = $region17
    $region16: #{tpu_custom_call.1} parent=1 // pred_region
      _
    $region17: #{tpu_custom_call.1} parent=1 // pred_fallthru
      _
    // Predicated region
    $region18: #{tpu_custom_call.1} parent=1 // pred_check
      _
    $region19: #{tpu_custom_call.1} parent=1 // pred_check_branch
      %53 = sbr.rel (0) target = $region21
    $region20: #{tpu_custom_call.1} parent=1 // pred_region
      %55 = dma.done [#allocation8], 128
    $region21: #{tpu_custom_call.1} parent=1 // pred_fallthru
      _
    // Predicated region
    $region22: #{tpu_custom_call.1} parent=1 // pred_check
      _
    $region23: #{tpu_custom_call.1} parent=1 // pred_check_branch
      %57 = sbr.rel (0) target = $region25
    $region24: #{tpu_custom_call.1} parent=1 // pred_region
      %59 = dma.done [#allocation10], 512
    $region25: #{tpu_custom_call.1} parent=1 // pred_fallthru
      _
    // Predicated region
    $region26: #{tpu_custom_call.1} parent=1 // pred_check
      _
    $region27: #{tpu_custom_call.1} parent=1 // pred_check_branch
      %61 = sbr.rel (0) target = $region29
    $region28: #{tpu_custom_call.1} parent=1 // pred_region
      %63 = dma.done [#allocation10], 768
    $region29: #{tpu_custom_call.1} parent=1 // pred_fallthru
      _
    // Predicated region
    $region30: #{tpu_custom_call.1} parent=1 // pred_check
      _
    $region31: #{tpu_custom_call.1} parent=1 // pred_check_branch
      %66 = sbr.rel target = $region33
    $region32: #{tpu_custom_call.1} parent=1 // pred_region
      %67 = sst [smem:[#allocation14]] [#allocation13]
      %68 = sst [smem:[#allocation15]] [#allocation12]
    $region33: #{tpu_custom_call.1} parent=1 // pred_fallthru
      _
    %70 = shalt.err (0)
    %s72 = sshll.u32 %s4, 4
    %s73 = int_to_ptr.hbm [resolvable:$true] %s72
    %s74 = sshll.u32 [#allocation2], 4
    %s75 = int_to_ptr.vmem [resolvable:$true] %s74
    %77 = dma.hbm_to_vmem [thread:$0]  %s73, 24576, %s75, [#allocation5]
    %s78 = scalar_lea.sflag [#allocation5], 1
    // Predicated region
    $region34: #{tpu_custom_call.1} parent=1 // pred_check
      _
    $region35: #{tpu_custom_call.1} parent=1 // pred_check_branch
      %80 = sbr.rel target = $region37
    $region36: #{tpu_custom_call.1} parent=1 // pred_region
      %81 = sst [smem:[#allocation14]] [#allocation17]
      %82 = sst [smem:[#allocation15]] [#allocation16]
    $region37: #{tpu_custom_call.1} parent=1 // pred_fallthru
      _
    %84 = shalt.err (0)
    %s86 = sshll.u32 %s5, 4
    %s87 = int_to_ptr.hbm [resolvable:$true] %s86
    %s88 = sshll.u32 [#allocation3], 4
    %s89 = int_to_ptr.vmem [resolvable:$true] %s88
    %91 = dma.hbm_to_vmem [thread:$0]  %s87, 24576, %s89, %s78
    %s92 = scalar_lea.sflag [#allocation5], 2
    // Predicated region
    $region38: #{tpu_custom_call.1} parent=1 // pred_check
      _
    $region39: #{tpu_custom_call.1} parent=1 // pred_check_branch
      %94 = sbr.rel target = $region41
    $region40: #{tpu_custom_call.1} parent=1 // pred_region
      %95 = sst [smem:[#allocation14]] [#allocation19]
      %96 = sst [smem:[#allocation15]] [#allocation18]
    $region41: #{tpu_custom_call.1} parent=1 // pred_fallthru
      _
    %98 = shalt.err (0)
    %s100 = sshll.u32 %s6, 4
    %s101 = int_to_ptr.hbm [resolvable:$true] %s100
    %s102 = sshll.u32 [#allocation4], 4
    %s103 = int_to_ptr.vmem [resolvable:$true] %s102
    %105 = dma.hbm_to_vmem [thread:$0]  %s101, 20480, %s103, %s92
    %v106 = vld [vmem:[#allocation11] ss:$8 sm:$0xf]
    %v107 = vld [vmem:[#allocation11] ss:$8 sm:$0x30]
    %v108 = vor.u32 %v106, %v107
    %s109 = scalar_lea.vmem [#allocation11], 1
    %v110 = vld [vmem:[%s109] ss:$8 sm:$0xf]
    %v111 = vld [vmem:[%s109] ss:$8 sm:$0x30]
    %v112 = vor.u32 %v110, %v111
    %s113 = scalar_lea.vmem [#allocation11], 2
    %v114 = vld [vmem:[%s113] ss:$8 sm:$0xf]
    %v115 = vld [vmem:[%s113] ss:$8 sm:$0x30]
    %v116 = vor.u32 %v114, %v115
    %s117 = scalar_lea.vmem [#allocation11], 3
    %v118 = vld [vmem:[%s117] ss:$8 sm:$0xf]
    %v119 = vld [vmem:[%s117] ss:$8 sm:$0x30]
    %v120 = vor.u32 %v118, %v119
    %s121 = scalar_lea.vmem [#allocation11], 4
    %v122 = vld [vmem:[%s121] ss:$8 sm:$0x3]
    %s123 = scalar_lea.vmem [#allocation11], 20
    %v124 = vld [vmem:[%s123] ss:$8 sm:$0x3]
    %s125 = scalar_lea.vmem [#allocation11], 36
    %v126 = vld [vmem:[%s125] ss:$8 sm:$0x3]
    %s127 = scalar_lea.vmem [#allocation11], 5
    %v128 = vld [vmem:[%s127] ss:$8 sm:$0x3]
    %s129 = scalar_lea.vmem [#allocation11], 21
    %v130 = vld [vmem:[%s129] ss:$8 sm:$0x3]
    %s131 = scalar_lea.vmem [#allocation11], 37
    %v132 = vld [vmem:[%s131] ss:$8 sm:$0x3]
    %s133 = scalar_lea.vmem [#allocation11], 6
    %v134 = vld [vmem:[%s133] ss:$8 sm:$0x3]
    %v135 = vld [vmem:[#allocation7] sm:$0xff]
    %v136 = vld [vmem:[#allocation9] sm:$0xff]
    %v137 = vld [vmem:[#allocation9 + $0x8] sm:$0xff]
    %v138 = vld [vmem:[#allocation9 + $0x10] sm:$0xff]
    %v139 = vld [vmem:[#allocation9 + $0x18] sm:$0xff]
    %v140 = vpack.c.bf16 %v135, %v135
    %v142 = vperm.slane %v122, 0
    %v143 = vperm.slane %v122, 1
    %v150 = vunpack.c.l.b16 %v136
    %v151 = vunpack.c.h.b16 %v136
    %v152 = vunpack.c.l.b16 %v137
    %v153 = vunpack.c.h.b16 %v137
    %v154 = vunpack.c.l.b16 %v138
    %v155 = vunpack.c.h.b16 %v138
    %v156 = vunpack.c.l.b16 %v139
    %v157 = vunpack.c.h.b16 %v139
    %v158 = vpack.c.b16 %v152, %v150
    %v159 = vpack.c.b16 %v153, %v151
    %v160 = vpack.c.b16 %v156, %v154
    %v161 = vpack.c.b16 %v157, %v155
    %vm166 = vcmask 261120
    %v168 = vsel %vm166, %v140, 0
    %170 = vmatpush.bf16.msra.mxu0 0
    %171 = vmatpush.bf16.msra.mxu0 0
    %172 = vmatpush.bf16.msra.mxu0 0
    %173 = vmatpush.bf16.msra.mxu0 0
    %174 = vmatpush.bf16.msra.mxu0 0
    %175 = vmatpush.bf16.msra.mxu0 0
    %176 = vmatpush.bf16.msra.mxu0 %v160
    %177 = vmatpush.bf16.msra.mxu0 %v158
    %178 = vmatmul.bf16.gmra.mxu0 %v168
    %v179 = vpop.f32.mrf.mxu0
    %v180 = vadd.f32 %v142, %v179
    %v181 = vpop.f32.mrf.mxu0
    %182 = vdwg.mxu0
    %183 = vmatpush.bf16.msra.mxu0 0
    %184 = vmatpush.bf16.msra.mxu0 0
    %185 = vmatpush.bf16.msra.mxu0 0
    %186 = vmatpush.bf16.msra.mxu0 0
    %187 = vmatpush.bf16.msra.mxu0 0
    %188 = vmatpush.bf16.msra.mxu0 0
    %189 = vmatpush.bf16.msra.mxu0 %v161
    %190 = vmatpush.bf16.msra.mxu0 %v159
    %191 = vmatmul.bf16.gmra.mxu0 %v168
    %v192 = vpop.f32.mrf.mxu0
    %v193 = vadd.f32 %v143, %v192
    %v194 = vpop.f32.mrf.mxu0
    %195 = vdwg.mxu0
    %v196 = vmax.f32 %v180, 0.0
    %v197 = vmax.f32 %v193, 0.0
    %s198 = smul.u32 4, 2
    %s199 = smul.u32 %s198, 32
    %s200 = smul.u32 %s199, 6
    %s201 = sshll.u32 %s200, 4
    %202 = dma.done [#allocation5], %s201
    %v203 = vld [vmem:[#allocation2] sm:$0xff]
    %v204 = vld [vmem:[#allocation2 + $0x8] sm:$0xff]
    %v205 = vld [vmem:[#allocation2 + $0x10] sm:$0xff]
    %v206 = vld [vmem:[#allocation2 + $0x18] sm:$0xff]
    %v207 = vld [vmem:[#allocation2 + $0x20] sm:$0xff]
    %v208 = vld [vmem:[#allocation2 + $0x28] sm:$0xff]
    %v209 = vld [vmem:[#allocation2 + $0x30] sm:$0xff]
    %v210 = vld [vmem:[#allocation2 + $0x38] sm:$0xff]
    %v211 = vld [vmem:[#allocation2 + $0x40] sm:$0xff]
    %v212 = vld [vmem:[#allocation2 + $0x48] sm:$0xff]
    %v213 = vld [vmem:[#allocation2 + $0x50] sm:$0xff]
    %v214 = vld [vmem:[#allocation2 + $0x58] sm:$0xff]
    %v215 = vld [vmem:[#allocation2 + $0x60] sm:$0xff]
    %v216 = vld [vmem:[#allocation2 + $0x68] sm:$0xff]
    %v217 = vld [vmem:[#allocation2 + $0x70] sm:$0xff]
    %v218 = vld [vmem:[#allocation2 + $0x78] sm:$0xff]
    %v219 = vld [vmem:[#allocation2 + $0x80] sm:$0xff]
    %v220 = vld [vmem:[#allocation2 + $0x88] sm:$0xff]
    %v221 = vld [vmem:[#allocation2 + $0x90] sm:$0xff]
    %v222 = vld [vmem:[#allocation2 + $0x98] sm:$0xff]
    %v223 = vld [vmem:[#allocation2 + $0xa0] sm:$0xff]
    %v224 = vld [vmem:[#allocation2 + $0xa8] sm:$0xff]
    %v225 = vld [vmem:[#allocation2 + $0xb0] sm:$0xff]
    %v226 = vld [vmem:[#allocation2 + $0xb8] sm:$0xff]
    %v227 = vld [vmem:[#allocation2 + $0xc0] sm:$0xff]
    %v228 = vld [vmem:[#allocation2 + $0xc8] sm:$0xff]
    %v229 = vld [vmem:[#allocation2 + $0xd0] sm:$0xff]
    %v230 = vld [vmem:[#allocation2 + $0xd8] sm:$0xff]
    %v231 = vld [vmem:[#allocation2 + $0xe0] sm:$0xff]
    %v232 = vld [vmem:[#allocation2 + $0xe8] sm:$0xff]
    %v233 = vld [vmem:[#allocation2 + $0xf0] sm:$0xff]
    %v234 = vld [vmem:[#allocation2 + $0xf8] sm:$0xff]
    %v235 = vld [vmem:[#allocation2 + $0x100] sm:$0xff]
    %v236 = vld [vmem:[#allocation2 + $0x108] sm:$0xff]
    %v237 = vld [vmem:[#allocation2 + $0x110] sm:$0xff]
    %v238 = vld [vmem:[#allocation2 + $0x118] sm:$0xff]
    %v239 = vld [vmem:[#allocation2 + $0x120] sm:$0xff]
    %v240 = vld [vmem:[#allocation2 + $0x128] sm:$0xff]
    %v241 = vld [vmem:[#allocation2 + $0x130] sm:$0xff]
    %v242 = vld [vmem:[#allocation2 + $0x138] sm:$0xff]
    %v243 = vld [vmem:[#allocation2 + $0x140] sm:$0xff]
    %v244 = vld [vmem:[#allocation2 + $0x148] sm:$0xff]
    %v245 = vld [vmem:[#allocation2 + $0x150] sm:$0xff]
    %v246 = vld [vmem:[#allocation2 + $0x158] sm:$0xff]
    %v247 = vld [vmem:[#allocation2 + $0x160] sm:$0xff]
    %v248 = vld [vmem:[#allocation2 + $0x168] sm:$0xff]
    %v249 = vld [vmem:[#allocation2 + $0x170] sm:$0xff]
    %v250 = vld [vmem:[#allocation2 + $0x178] sm:$0xff]
    %v251 = vld [vmem:[#allocation2 + $0x180] sm:$0xff]
    %v252 = vld [vmem:[#allocation2 + $0x188] sm:$0xff]
    %v253 = vld [vmem:[#allocation2 + $0x190] sm:$0xff]
    %v254 = vld [vmem:[#allocation2 + $0x198] sm:$0xff]
    %v255 = vld [vmem:[#allocation2 + $0x1a0] sm:$0xff]
    %v256 = vld [vmem:[#allocation2 + $0x1a8] sm:$0xff]
    %v257 = vld [vmem:[#allocation2 + $0x1b0] sm:$0xff]
    %v258 = vld [vmem:[#allocation2 + $0x1b8] sm:$0xff]
    %v259 = vld [vmem:[#allocation2 + $0x1c0] sm:$0xff]
    %v260 = vld [vmem:[#allocation2 + $0x1c8] sm:$0xff]
    %v261 = vld [vmem:[#allocation2 + $0x1d0] sm:$0xff]
    %v262 = vld [vmem:[#allocation2 + $0x1d8] sm:$0xff]
    %v263 = vld [vmem:[#allocation2 + $0x1e0] sm:$0xff]
    %v264 = vld [vmem:[#allocation2 + $0x1e8] sm:$0xff]
    %v265 = vld [vmem:[#allocation2 + $0x1f0] sm:$0xff]
    %v266 = vld [vmem:[#allocation2 + $0x1f8] sm:$0xff]
    %v267 = vld [vmem:[#allocation2 + $0x200] sm:$0xff]
    %v268 = vld [vmem:[#allocation2 + $0x208] sm:$0xff]
    %v269 = vld [vmem:[#allocation2 + $0x210] sm:$0xff]
    %v270 = vld [vmem:[#allocation2 + $0x218] sm:$0xff]
    %v271 = vld [vmem:[#allocation2 + $0x220] sm:$0xff]
    %v272 = vld [vmem:[#allocation2 + $0x228] sm:$0xff]
    %v273 = vld [vmem:[#allocation2 + $0x230] sm:$0xff]
    %v274 = vld [vmem:[#allocation2 + $0x238] sm:$0xff]
    %v275 = vld [vmem:[#allocation2 + $0x240] sm:$0xff]
    %v276 = vld [vmem:[#allocation2 + $0x248] sm:$0xff]
    %v277 = vld [vmem:[#allocation2 + $0x250] sm:$0xff]
    %v278 = vld [vmem:[#allocation2 + $0x258] sm:$0xff]
    %v279 = vld [vmem:[#allocation2 + $0x260] sm:$0xff]
    %v280 = vld [vmem:[#allocation2 + $0x268] sm:$0xff]
    %v281 = vld [vmem:[#allocation2 + $0x270] sm:$0xff]
    %v282 = vld [vmem:[#allocation2 + $0x278] sm:$0xff]
    %v283 = vld [vmem:[#allocation2 + $0x280] sm:$0xff]
    %v284 = vld [vmem:[#allocation2 + $0x288] sm:$0xff]
    %v285 = vld [vmem:[#allocation2 + $0x290] sm:$0xff]
    %v286 = vld [vmem:[#allocation2 + $0x298] sm:$0xff]
    %v287 = vld [vmem:[#allocation2 + $0x2a0] sm:$0xff]
    %v288 = vld [vmem:[#allocation2 + $0x2a8] sm:$0xff]
    %v289 = vld [vmem:[#allocation2 + $0x2b0] sm:$0xff]
    %v290 = vld [vmem:[#allocation2 + $0x2b8] sm:$0xff]
    %v291 = vld [vmem:[#allocation2 + $0x2c0] sm:$0xff]
    %v292 = vld [vmem:[#allocation2 + $0x2c8] sm:$0xff]
    %v293 = vld [vmem:[#allocation2 + $0x2d0] sm:$0xff]
    %v294 = vld [vmem:[#allocation2 + $0x2d8] sm:$0xff]
    %v295 = vld [vmem:[#allocation2 + $0x2e0] sm:$0xff]
    %v296 = vld [vmem:[#allocation2 + $0x2e8] sm:$0xff]
    %v297 = vld [vmem:[#allocation2 + $0x2f0] sm:$0xff]
    %v298 = vld [vmem:[#allocation2 + $0x2f8] sm:$0xff]
    %s299 = scalar_lea.vmem [#allocation2], 768
    %v300 = vld [vmem:[%s299] sm:$0xff]
    %v301 = vld [vmem:[%s299 + $0x8] sm:$0xff]
    %v302 = vld [vmem:[%s299 + $0x10] sm:$0xff]
    %v303 = vld [vmem:[%s299 + $0x18] sm:$0xff]
    %v304 = vld [vmem:[%s299 + $0x20] sm:$0xff]
    %v305 = vld [vmem:[%s299 + $0x28] sm:$0xff]
    %v306 = vld [vmem:[%s299 + $0x30] sm:$0xff]
    %v307 = vld [vmem:[%s299 + $0x38] sm:$0xff]
    %v308 = vld [vmem:[%s299 + $0x40] sm:$0xff]
    %v309 = vld [vmem:[%s299 + $0x48] sm:$0xff]
    %v310 = vld [vmem:[%s299 + $0x50] sm:$0xff]
    %v311 = vld [vmem:[%s299 + $0x58] sm:$0xff]
    %v312 = vld [vmem:[%s299 + $0x60] sm:$0xff]
    %v313 = vld [vmem:[%s299 + $0x68] sm:$0xff]
    %v314 = vld [vmem:[%s299 + $0x70] sm:$0xff]
    %v315 = vld [vmem:[%s299 + $0x78] sm:$0xff]
    %v316 = vld [vmem:[%s299 + $0x80] sm:$0xff]
    %v317 = vld [vmem:[%s299 + $0x88] sm:$0xff]
    %v318 = vld [vmem:[%s299 + $0x90] sm:$0xff]
    %v319 = vld [vmem:[%s299 + $0x98] sm:$0xff]
    %v320 = vld [vmem:[%s299 + $0xa0] sm:$0xff]
    %v321 = vld [vmem:[%s299 + $0xa8] sm:$0xff]
    %v322 = vld [vmem:[%s299 + $0xb0] sm:$0xff]
    %v323 = vld [vmem:[%s299 + $0xb8] sm:$0xff]
    %v324 = vld [vmem:[%s299 + $0xc0] sm:$0xff]
    %v325 = vld [vmem:[%s299 + $0xc8] sm:$0xff]
    %v326 = vld [vmem:[%s299 + $0xd0] sm:$0xff]
    %v327 = vld [vmem:[%s299 + $0xd8] sm:$0xff]
    %v328 = vld [vmem:[%s299 + $0xe0] sm:$0xff]
    %v329 = vld [vmem:[%s299 + $0xe8] sm:$0xff]
    %v330 = vld [vmem:[%s299 + $0xf0] sm:$0xff]
    %v331 = vld [vmem:[%s299 + $0xf8] sm:$0xff]
    %v332 = vld [vmem:[%s299 + $0x100] sm:$0xff]
    %v333 = vld [vmem:[%s299 + $0x108] sm:$0xff]
    %v334 = vld [vmem:[%s299 + $0x110] sm:$0xff]
    %v335 = vld [vmem:[%s299 + $0x118] sm:$0xff]
    %v336 = vld [vmem:[%s299 + $0x120] sm:$0xff]
    %v337 = vld [vmem:[%s299 + $0x128] sm:$0xff]
    %v338 = vld [vmem:[%s299 + $0x130] sm:$0xff]
    %v339 = vld [vmem:[%s299 + $0x138] sm:$0xff]
    %v340 = vld [vmem:[%s299 + $0x140] sm:$0xff]
    %v341 = vld [vmem:[%s299 + $0x148] sm:$0xff]
    %v342 = vld [vmem:[%s299 + $0x150] sm:$0xff]
    %v343 = vld [vmem:[%s299 + $0x158] sm:$0xff]
    %v344 = vld [vmem:[%s299 + $0x160] sm:$0xff]
    %v345 = vld [vmem:[%s299 + $0x168] sm:$0xff]
    %v346 = vld [vmem:[%s299 + $0x170] sm:$0xff]
    %v347 = vld [vmem:[%s299 + $0x178] sm:$0xff]
    %v348 = vld [vmem:[%s299 + $0x180] sm:$0xff]
    %v349 = vld [vmem:[%s299 + $0x188] sm:$0xff]
    %v350 = vld [vmem:[%s299 + $0x190] sm:$0xff]
    %v351 = vld [vmem:[%s299 + $0x198] sm:$0xff]
    %v352 = vld [vmem:[%s299 + $0x1a0] sm:$0xff]
    %v353 = vld [vmem:[%s299 + $0x1a8] sm:$0xff]
    %v354 = vld [vmem:[%s299 + $0x1b0] sm:$0xff]
    %v355 = vld [vmem:[%s299 + $0x1b8] sm:$0xff]
    %v356 = vld [vmem:[%s299 + $0x1c0] sm:$0xff]
    %v357 = vld [vmem:[%s299 + $0x1c8] sm:$0xff]
    %v358 = vld [vmem:[%s299 + $0x1d0] sm:$0xff]
    %v359 = vld [vmem:[%s299 + $0x1d8] sm:$0xff]
    %v360 = vld [vmem:[%s299 + $0x1e0] sm:$0xff]
    %v361 = vld [vmem:[%s299 + $0x1e8] sm:$0xff]
    %v362 = vld [vmem:[%s299 + $0x1f0] sm:$0xff]
    %v363 = vld [vmem:[%s299 + $0x1f8] sm:$0xff]
    %v364 = vld [vmem:[%s299 + $0x200] sm:$0xff]
    %v365 = vld [vmem:[%s299 + $0x208] sm:$0xff]
    %v366 = vld [vmem:[%s299 + $0x210] sm:$0xff]
    %v367 = vld [vmem:[%s299 + $0x218] sm:$0xff]
    %v368 = vld [vmem:[%s299 + $0x220] sm:$0xff]
    %v369 = vld [vmem:[%s299 + $0x228] sm:$0xff]
    %v370 = vld [vmem:[%s299 + $0x230] sm:$0xff]
    %v371 = vld [vmem:[%s299 + $0x238] sm:$0xff]
    %v372 = vld [vmem:[%s299 + $0x240] sm:$0xff]
    %v373 = vld [vmem:[%s299 + $0x248] sm:$0xff]
    %v374 = vld [vmem:[%s299 + $0x250] sm:$0xff]
    %v375 = vld [vmem:[%s299 + $0x258] sm:$0xff]
    %v376 = vld [vmem:[%s299 + $0x260] sm:$0xff]
    %v377 = vld [vmem:[%s299 + $0x268] sm:$0xff]
    %v378 = vld [vmem:[%s299 + $0x270] sm:$0xff]
    %v379 = vld [vmem:[%s299 + $0x278] sm:$0xff]
    %v380 = vld [vmem:[%s299 + $0x280] sm:$0xff]
    %v381 = vld [vmem:[%s299 + $0x288] sm:$0xff]
    %v382 = vld [vmem:[%s299 + $0x290] sm:$0xff]
    %v383 = vld [vmem:[%s299 + $0x298] sm:$0xff]
    %v384 = vld [vmem:[%s299 + $0x2a0] sm:$0xff]
    %v385 = vld [vmem:[%s299 + $0x2a8] sm:$0xff]
    %v386 = vld [vmem:[%s299 + $0x2b0] sm:$0xff]
    %v387 = vld [vmem:[%s299 + $0x2b8] sm:$0xff]
    %v388 = vld [vmem:[%s299 + $0x2c0] sm:$0xff]
    %v389 = vld [vmem:[%s299 + $0x2c8] sm:$0xff]
    %v390 = vld [vmem:[%s299 + $0x2d0] sm:$0xff]
    %v391 = vld [vmem:[%s299 + $0x2d8] sm:$0xff]
    %v392 = vld [vmem:[%s299 + $0x2e0] sm:$0xff]
    %v393 = vld [vmem:[%s299 + $0x2e8] sm:$0xff]
    %v394 = vld [vmem:[%s299 + $0x2f0] sm:$0xff]
    %v395 = vld [vmem:[%s299 + $0x2f8] sm:$0xff]
    %v396 = vpack.c.bf16 %v196, %v196
    %v397 = vpack.c.bf16 %v197, %v197
    %v399 = vperm.slane %v108, 0
    %v400 = vperm.slane %v108, 1
    %v401 = vperm.slane %v108, 2
    %v402 = vperm.slane %v108, 3
    %v403 = vperm.slane %v108, 4
    %v404 = vperm.slane %v108, 5
    %v507 = vunpack.c.l.b16 %v203
    %v508 = vunpack.c.h.b16 %v203
    %v509 = vunpack.c.l.b16 %v204
    %v510 = vunpack.c.h.b16 %v204
    %v511 = vunpack.c.l.b16 %v205
    %v512 = vunpack.c.h.b16 %v205
    %v513 = vunpack.c.l.b16 %v206
    %v514 = vunpack.c.h.b16 %v206
    %v515 = vunpack.c.l.b16 %v207
    %v516 = vunpack.c.h.b16 %v207
    %v517 = vunpack.c.l.b16 %v208
    %v518 = vunpack.c.h.b16 %v208
    %v519 = vunpack.c.l.b16 %v209
    %v520 = vunpack.c.h.b16 %v209
    %v521 = vunpack.c.l.b16 %v210
    %v522 = vunpack.c.h.b16 %v210
    %v523 = vunpack.c.l.b16 %v211
    %v524 = vunpack.c.h.b16 %v211
    %v525 = vunpack.c.l.b16 %v212
    %v526 = vunpack.c.h.b16 %v212
    %v527 = vunpack.c.l.b16 %v213
    %v528 = vunpack.c.h.b16 %v213
    %v529 = vunpack.c.l.b16 %v214
    %v530 = vunpack.c.h.b16 %v214
    %v531 = vunpack.c.l.b16 %v215
    %v532 = vunpack.c.h.b16 %v215
    %v533 = vunpack.c.l.b16 %v216
    %v534 = vunpack.c.h.b16 %v216
    %v535 = vunpack.c.l.b16 %v217
    %v536 = vunpack.c.h.b16 %v217
    %v537 = vunpack.c.l.b16 %v218
    %v538 = vunpack.c.h.b16 %v218
    %v539 = vunpack.c.l.b16 %v219
    %v540 = vunpack.c.h.b16 %v219
    %v541 = vunpack.c.l.b16 %v220
    %v542 = vunpack.c.h.b16 %v220
    %v543 = vunpack.c.l.b16 %v221
    %v544 = vunpack.c.h.b16 %v221
    %v545 = vunpack.c.l.b16 %v222
    %v546 = vunpack.c.h.b16 %v222
    %v547 = vunpack.c.l.b16 %v223
    %v548 = vunpack.c.h.b16 %v223
    %v549 = vunpack.c.l.b16 %v224
    %v550 = vunpack.c.h.b16 %v224
    %v551 = vunpack.c.l.b16 %v225
    %v552 = vunpack.c.h.b16 %v225
    %v553 = vunpack.c.l.b16 %v226
    %v554 = vunpack.c.h.b16 %v226
    %v555 = vunpack.c.l.b16 %v227
    %v556 = vunpack.c.h.b16 %v227
    %v557 = vunpack.c.l.b16 %v228
    %v558 = vunpack.c.h.b16 %v228
    %v559 = vunpack.c.l.b16 %v229
    %v560 = vunpack.c.h.b16 %v229
    %v561 = vunpack.c.l.b16 %v230
    %v562 = vunpack.c.h.b16 %v230
    %v563 = vunpack.c.l.b16 %v231
    %v564 = vunpack.c.h.b16 %v231
    %v565 = vunpack.c.l.b16 %v232
    %v566 = vunpack.c.h.b16 %v232
    %v567 = vunpack.c.l.b16 %v233
    %v568 = vunpack.c.h.b16 %v233
    %v569 = vunpack.c.l.b16 %v234
    %v570 = vunpack.c.h.b16 %v234
    %v571 = vunpack.c.l.b16 %v235
    %v572 = vunpack.c.h.b16 %v235
    %v573 = vunpack.c.l.b16 %v236
    %v574 = vunpack.c.h.b16 %v236
    %v575 = vunpack.c.l.b16 %v237
    %v576 = vunpack.c.h.b16 %v237
    %v577 = vunpack.c.l.b16 %v238
    %v578 = vunpack.c.h.b16 %v238
    %v579 = vunpack.c.l.b16 %v239
    %v580 = vunpack.c.h.b16 %v239
    %v581 = vunpack.c.l.b16 %v240
    %v582 = vunpack.c.h.b16 %v240
    %v583 = vunpack.c.l.b16 %v241
    %v584 = vunpack.c.h.b16 %v241
    %v585 = vunpack.c.l.b16 %v242
    %v586 = vunpack.c.h.b16 %v242
    %v587 = vunpack.c.l.b16 %v243
    %v588 = vunpack.c.h.b16 %v243
    %v589 = vunpack.c.l.b16 %v244
    %v590 = vunpack.c.h.b16 %v244
    %v591 = vunpack.c.l.b16 %v245
    %v592 = vunpack.c.h.b16 %v245
    %v593 = vunpack.c.l.b16 %v246
    %v594 = vunpack.c.h.b16 %v246
    %v595 = vunpack.c.l.b16 %v247
    %v596 = vunpack.c.h.b16 %v247
    %v597 = vunpack.c.l.b16 %v248
    %v598 = vunpack.c.h.b16 %v248
    %v599 = vunpack.c.l.b16 %v249
    %v600 = vunpack.c.h.b16 %v249
    %v601 = vunpack.c.l.b16 %v250
    %v602 = vunpack.c.h.b16 %v250
    %v603 = vunpack.c.l.b16 %v251
    %v604 = vunpack.c.h.b16 %v251
    %v605 = vunpack.c.l.b16 %v252
    %v606 = vunpack.c.h.b16 %v252
    %v607 = vunpack.c.l.b16 %v253
    %v608 = vunpack.c.h.b16 %v253
    %v609 = vunpack.c.l.b16 %v254
    %v610 = vunpack.c.h.b16 %v254
    %v611 = vunpack.c.l.b16 %v255
    %v612 = vunpack.c.h.b16 %v255
    %v613 = vunpack.c.l.b16 %v256
    %v614 = vunpack.c.h.b16 %v256
    %v615 = vunpack.c.l.b16 %v257
    %v616 = vunpack.c.h.b16 %v257
    %v617 = vunpack.c.l.b16 %v258
    %v618 = vunpack.c.h.b16 %v258
    %v619 = vunpack.c.l.b16 %v259
    %v620 = vunpack.c.h.b16 %v259
    %v621 = vunpack.c.l.b16 %v260
    %v622 = vunpack.c.h.b16 %v260
    %v623 = vunpack.c.l.b16 %v261
    %v624 = vunpack.c.h.b16 %v261
    %v625 = vunpack.c.l.b16 %v262
    %v626 = vunpack.c.h.b16 %v262
    %v627 = vunpack.c.l.b16 %v263
    %v628 = vunpack.c.h.b16 %v263
    %v629 = vunpack.c.l.b16 %v264
    %v630 = vunpack.c.h.b16 %v264
    %v631 = vunpack.c.l.b16 %v265
    %v632 = vunpack.c.h.b16 %v265
    %v633 = vunpack.c.l.b16 %v266
    %v634 = vunpack.c.h.b16 %v266
    %v635 = vunpack.c.l.b16 %v267
    %v636 = vunpack.c.h.b16 %v267
    %v637 = vunpack.c.l.b16 %v268
    %v638 = vunpack.c.h.b16 %v268
    %v639 = vunpack.c.l.b16 %v269
    %v640 = vunpack.c.h.b16 %v269
    %v641 = vunpack.c.l.b16 %v270
    %v642 = vunpack.c.h.b16 %v270
    %v643 = vunpack.c.l.b16 %v271
    %v644 = vunpack.c.h.b16 %v271
    %v645 = vunpack.c.l.b16 %v272
    %v646 = vunpack.c.h.b16 %v272
    %v647 = vunpack.c.l.b16 %v273
    %v648 = vunpack.c.h.b16 %v273
    %v649 = vunpack.c.l.b16 %v274
    %v650 = vunpack.c.h.b16 %v274
    %v651 = vunpack.c.l.b16 %v275
    %v652 = vunpack.c.h.b16 %v275
    %v653 = vunpack.c.l.b16 %v276
    %v654 = vunpack.c.h.b16 %v276
    %v655 = vunpack.c.l.b16 %v277
    %v656 = vunpack.c.h.b16 %v277
    %v657 = vunpack.c.l.b16 %v278
    %v658 = vunpack.c.h.b16 %v278
    %v659 = vunpack.c.l.b16 %v279
    %v660 = vunpack.c.h.b16 %v279
    %v661 = vunpack.c.l.b16 %v280
    %v662 = vunpack.c.h.b16 %v280
    %v663 = vunpack.c.l.b16 %v281
    %v664 = vunpack.c.h.b16 %v281
    %v665 = vunpack.c.l.b16 %v282
    %v666 = vunpack.c.h.b16 %v282
    %v667 = vunpack.c.l.b16 %v283
    %v668 = vunpack.c.h.b16 %v283
    %v669 = vunpack.c.l.b16 %v284
    %v670 = vunpack.c.h.b16 %v284
    %v671 = vunpack.c.l.b16 %v285
    %v672 = vunpack.c.h.b16 %v285
    %v673 = vunpack.c.l.b16 %v286
    %v674 = vunpack.c.h.b16 %v286
    %v675 = vunpack.c.l.b16 %v287
    %v676 = vunpack.c.h.b16 %v287
    %v677 = vunpack.c.l.b16 %v288
    %v678 = vunpack.c.h.b16 %v288
    %v679 = vunpack.c.l.b16 %v289
    %v680 = vunpack.c.h.b16 %v289
    %v681 = vunpack.c.l.b16 %v290
    %v682 = vunpack.c.h.b16 %v290
    %v683 = vunpack.c.l.b16 %v291
    %v684 = vunpack.c.h.b16 %v291
    %v685 = vunpack.c.l.b16 %v292
    %v686 = vunpack.c.h.b16 %v292
    %v687 = vunpack.c.l.b16 %v293
    %v688 = vunpack.c.h.b16 %v293
    %v689 = vunpack.c.l.b16 %v294
    %v690 = vunpack.c.h.b16 %v294
    %v691 = vunpack.c.l.b16 %v295
    %v692 = vunpack.c.h.b16 %v295
    %v693 = vunpack.c.l.b16 %v296
    %v694 = vunpack.c.h.b16 %v296
    %v695 = vunpack.c.l.b16 %v297
    %v696 = vunpack.c.h.b16 %v297
    %v697 = vunpack.c.l.b16 %v298
    %v698 = vunpack.c.h.b16 %v298
    %v699 = vpack.c.b16 %v513, %v507
    %v700 = vpack.c.b16 %v514, %v508
    %v701 = vpack.c.b16 %v515, %v509
    %v702 = vpack.c.b16 %v516, %v510
    %v703 = vpack.c.b16 %v517, %v511
    %v704 = vpack.c.b16 %v518, %v512
    %v705 = vpack.c.b16 %v525, %v519
    %v706 = vpack.c.b16 %v526, %v520
    %v707 = vpack.c.b16 %v527, %v521
    %v708 = vpack.c.b16 %v528, %v522
    %v709 = vpack.c.b16 %v529, %v523
    %v710 = vpack.c.b16 %v530, %v524
    %v711 = vpack.c.b16 %v537, %v531
    %v712 = vpack.c.b16 %v538, %v532
    %v713 = vpack.c.b16 %v539, %v533
    %v714 = vpack.c.b16 %v540, %v534
    %v715 = vpack.c.b16 %v541, %v535
    %v716 = vpack.c.b16 %v542, %v536
    %v717 = vpack.c.b16 %v549, %v543
    %v718 = vpack.c.b16 %v550, %v544
    %v719 = vpack.c.b16 %v551, %v545
    %v720 = vpack.c.b16 %v552, %v546
    %v721 = vpack.c.b16 %v553, %v547
    %v722 = vpack.c.b16 %v554, %v548
    %v723 = vpack.c.b16 %v561, %v555
    %v724 = vpack.c.b16 %v562, %v556
    %v725 = vpack.c.b16 %v563, %v557
    %v726 = vpack.c.b16 %v564, %v558
    %v727 = vpack.c.b16 %v565, %v559
    %v728 = vpack.c.b16 %v566, %v560
    %v729 = vpack.c.b16 %v573, %v567
    %v730 = vpack.c.b16 %v574, %v568
    %v731 = vpack.c.b16 %v575, %v569
    %v732 = vpack.c.b16 %v576, %v570
    %v733 = vpack.c.b16 %v577, %v571
    %v734 = vpack.c.b16 %v578, %v572
    %v735 = vpack.c.b16 %v585, %v579
    %v736 = vpack.c.b16 %v586, %v580
    %v737 = vpack.c.b16 %v587, %v581
    %v738 = vpack.c.b16 %v588, %v582
    %v739 = vpack.c.b16 %v589, %v583
    %v740 = vpack.c.b16 %v590, %v584
    %v741 = vpack.c.b16 %v597, %v591
    %v742 = vpack.c.b16 %v598, %v592
    %v743 = vpack.c.b16 %v599, %v593
    %v744 = vpack.c.b16 %v600, %v594
    %v745 = vpack.c.b16 %v601, %v595
    %v746 = vpack.c.b16 %v602, %v596
    %v747 = vpack.c.b16 %v609, %v603
    %v748 = vpack.c.b16 %v610, %v604
    %v749 = vpack.c.b16 %v611, %v605
    %v750 = vpack.c.b16 %v612, %v606
    %v751 = vpack.c.b16 %v613, %v607
    %v752 = vpack.c.b16 %v614, %v608
    %v753 = vpack.c.b16 %v621, %v615
    %v754 = vpack.c.b16 %v622, %v616
    %v755 = vpack.c.b16 %v623, %v617
    %v756 = vpack.c.b16 %v624, %v618
    %v757 = vpack.c.b16 %v625, %v619
    %v758 = vpack.c.b16 %v626, %v620
    %v759 = vpack.c.b16 %v633, %v627
    %v760 = vpack.c.b16 %v634, %v628
    %v761 = vpack.c.b16 %v635, %v629
    %v762 = vpack.c.b16 %v636, %v630
    %v763 = vpack.c.b16 %v637, %v631
    %v764 = vpack.c.b16 %v638, %v632
    %v765 = vpack.c.b16 %v645, %v639
    %v766 = vpack.c.b16 %v646, %v640
    %v767 = vpack.c.b16 %v647, %v641
    %v768 = vpack.c.b16 %v648, %v642
    %v769 = vpack.c.b16 %v649, %v643
    %v770 = vpack.c.b16 %v650, %v644
    %v771 = vpack.c.b16 %v657, %v651
    %v772 = vpack.c.b16 %v658, %v652
    %v773 = vpack.c.b16 %v659, %v653
    %v774 = vpack.c.b16 %v660, %v654
    %v775 = vpack.c.b16 %v661, %v655
    %v776 = vpack.c.b16 %v662, %v656
    %v777 = vpack.c.b16 %v669, %v663
    %v778 = vpack.c.b16 %v670, %v664
    %v779 = vpack.c.b16 %v671, %v665
    %v780 = vpack.c.b16 %v672, %v666
    %v781 = vpack.c.b16 %v673, %v667
    %v782 = vpack.c.b16 %v674, %v668
    %v783 = vpack.c.b16 %v681, %v675
    %v784 = vpack.c.b16 %v682, %v676
    %v785 = vpack.c.b16 %v683, %v677
    %v786 = vpack.c.b16 %v684, %v678
    %v787 = vpack.c.b16 %v685, %v679
    %v788 = vpack.c.b16 %v686, %v680
    %v789 = vpack.c.b16 %v693, %v687
    %v790 = vpack.c.b16 %v694, %v688
    %v791 = vpack.c.b16 %v695, %v689
    %v792 = vpack.c.b16 %v696, %v690
    %v793 = vpack.c.b16 %v697, %v691
    %v794 = vpack.c.b16 %v698, %v692
    %891 = vmatpush.bf16.msra.mxu0 %v741
    %892 = vmatpush.bf16.msra.mxu0 %v735
    %893 = vmatpush.bf16.msra.mxu0 %v729
    %894 = vmatpush.bf16.msra.mxu0 %v723
    %895 = vmatpush.bf16.msra.mxu0 %v717
    %896 = vmatpush.bf16.msra.mxu0 %v711
    %897 = vmatpush.bf16.msra.mxu0 %v705
    %898 = vmatpush.bf16.msra.mxu0 %v699
    %899 = vmatmul.bf16.gmra.mxu0 %v396
    %v900 = vpop.f32.mrf.mxu0
    %v901 = vadd.f32 %v399, %v900
    %v902 = vpop.f32.mrf.mxu0
    %903 = vdwg.mxu0
    %904 = vmatpush.bf16.msra.mxu0 %v789
    %905 = vmatpush.bf16.msra.mxu0 %v783
    %906 = vmatpush.bf16.msra.mxu0 %v777
    %907 = vmatpush.bf16.msra.mxu0 %v771
    %908 = vmatpush.bf16.msra.mxu0 %v765
    %909 = vmatpush.bf16.msra.mxu0 %v759
    %910 = vmatpush.bf16.msra.mxu0 %v753
    %911 = vmatpush.bf16.msra.mxu0 %v747
    %912 = vmatmul.bf16.gmra.mxu0 %v397
    %v913 = vpop.f32.mrf.mxu0
    %v914 = vadd.f32 %v901, %v913
    %v915 = vpop.f32.mrf.mxu0
    %916 = vdwg.mxu0
    %917 = vmatpush.bf16.msra.mxu0 %v742
    %918 = vmatpush.bf16.msra.mxu0 %v736
    %919 = vmatpush.bf16.msra.mxu0 %v730
    %920 = vmatpush.bf16.msra.mxu0 %v724
    %921 = vmatpush.bf16.msra.mxu0 %v718
    %922 = vmatpush.bf16.msra.mxu0 %v712
    %923 = vmatpush.bf16.msra.mxu0 %v706
    %924 = vmatpush.bf16.msra.mxu0 %v700
    %925 = vmatmul.bf16.gmra.mxu0 %v396
    %v926 = vpop.f32.mrf.mxu0
    %v927 = vadd.f32 %v400, %v926
    %v928 = vpop.f32.mrf.mxu0
    %929 = vdwg.mxu0
    %930 = vmatpush.bf16.msra.mxu0 %v790
    %931 = vmatpush.bf16.msra.mxu0 %v784
    %932 = vmatpush.bf16.msra.mxu0 %v778
    %933 = vmatpush.bf16.msra.mxu0 %v772
    %934 = vmatpush.bf16.msra.mxu0 %v766
    %935 = vmatpush.bf16.msra.mxu0 %v760
    %936 = vmatpush.bf16.msra.mxu0 %v754
    %937 = vmatpush.bf16.msra.mxu0 %v748
    %938 = vmatmul.bf16.gmra.mxu0 %v397
    %v939 = vpop.f32.mrf.mxu0
    %v940 = vadd.f32 %v927, %v939
    %v941 = vpop.f32.mrf.mxu0
    %942 = vdwg.mxu0
    %943 = vmatpush.bf16.msra.mxu0 %v743
    %944 = vmatpush.bf16.msra.mxu0 %v737
    %945 = vmatpush.bf16.msra.mxu0 %v731
    %946 = vmatpush.bf16.msra.mxu0 %v725
    %947 = vmatpush.bf16.msra.mxu0 %v719
    %948 = vmatpush.bf16.msra.mxu0 %v713
    %949 = vmatpush.bf16.msra.mxu0 %v707
    %950 = vmatpush.bf16.msra.mxu0 %v701
    %951 = vmatmul.bf16.gmra.mxu0 %v396
    %v952 = vpop.f32.mrf.mxu0
    %v953 = vadd.f32 %v401, %v952
    %v954 = vpop.f32.mrf.mxu0
    %955 = vdwg.mxu0
    %956 = vmatpush.bf16.msra.mxu0 %v791
    %957 = vmatpush.bf16.msra.mxu0 %v785
    %958 = vmatpush.bf16.msra.mxu0 %v779
    %959 = vmatpush.bf16.msra.mxu0 %v773
    %960 = vmatpush.bf16.msra.mxu0 %v767
    %961 = vmatpush.bf16.msra.mxu0 %v761
    %962 = vmatpush.bf16.msra.mxu0 %v755
    %963 = vmatpush.bf16.msra.mxu0 %v749
    %964 = vmatmul.bf16.gmra.mxu0 %v397
    %v965 = vpop.f32.mrf.mxu0
    %v966 = vadd.f32 %v953, %v965
    %v967 = vpop.f32.mrf.mxu0
    %968 = vdwg.mxu0
    %969 = vmatpush.bf16.msra.mxu0 %v744
    %970 = vmatpush.bf16.msra.mxu0 %v738
    %971 = vmatpush.bf16.msra.mxu0 %v732
    %972 = vmatpush.bf16.msra.mxu0 %v726
    %973 = vmatpush.bf16.msra.mxu0 %v720
    %974 = vmatpush.bf16.msra.mxu0 %v714
    %975 = vmatpush.bf16.msra.mxu0 %v708
    %976 = vmatpush.bf16.msra.mxu0 %v702
    %977 = vmatmul.bf16.gmra.mxu0 %v396
    %v978 = vpop.f32.mrf.mxu0
    %v979 = vadd.f32 %v402, %v978
    %v980 = vpop.f32.mrf.mxu0
    %981 = vdwg.mxu0
    %982 = vmatpush.bf16.msra.mxu0 %v792
    %983 = vmatpush.bf16.msra.mxu0 %v786
    %984 = vmatpush.bf16.msra.mxu0 %v780
    %985 = vmatpush.bf16.msra.mxu0 %v774
    %986 = vmatpush.bf16.msra.mxu0 %v768
    %987 = vmatpush.bf16.msra.mxu0 %v762
    %988 = vmatpush.bf16.msra.mxu0 %v756
    %989 = vmatpush.bf16.msra.mxu0 %v750
    %990 = vmatmul.bf16.gmra.mxu0 %v397
    %v991 = vpop.f32.mrf.mxu0
    %v992 = vadd.f32 %v979, %v991
    %v993 = vpop.f32.mrf.mxu0
    %994 = vdwg.mxu0
    %995 = vmatpush.bf16.msra.mxu0 %v745
    %996 = vmatpush.bf16.msra.mxu0 %v739
    %997 = vmatpush.bf16.msra.mxu0 %v733
    %998 = vmatpush.bf16.msra.mxu0 %v727
    %999 = vmatpush.bf16.msra.mxu0 %v721
    %1000 = vmatpush.bf16.msra.mxu0 %v715
    %1001 = vmatpush.bf16.msra.mxu0 %v709
    %1002 = vmatpush.bf16.msra.mxu0 %v703
    %1003 = vmatmul.bf16.gmra.mxu0 %v396
    %v1004 = vpop.f32.mrf.mxu0
    %v1005 = vadd.f32 %v403, %v1004
    %v1006 = vpop.f32.mrf.mxu0
    %1007 = vdwg.mxu0
    %1008 = vmatpush.bf16.msra.mxu0 %v793
    %1009 = vmatpush.bf16.msra.mxu0 %v787
    %1010 = vmatpush.bf16.msra.mxu0 %v781
    %1011 = vmatpush.bf16.msra.mxu0 %v775
    %1012 = vmatpush.bf16.msra.mxu0 %v769
    %1013 = vmatpush.bf16.msra.mxu0 %v763
    %1014 = vmatpush.bf16.msra.mxu0 %v757
    %1015 = vmatpush.bf16.msra.mxu0 %v751
    %1016 = vmatmul.bf16.gmra.mxu0 %v397
    %v1017 = vpop.f32.mrf.mxu0
    %v1018 = vadd.f32 %v1005, %v1017
    %v1019 = vpop.f32.mrf.mxu0
    %1020 = vdwg.mxu0
    %1021 = vmatpush.bf16.msra.mxu0 %v746
    %1022 = vmatpush.bf16.msra.mxu0 %v740
    %1023 = vmatpush.bf16.msra.mxu0 %v734
    %1024 = vmatpush.bf16.msra.mxu0 %v728
    %1025 = vmatpush.bf16.msra.mxu0 %v722
    %1026 = vmatpush.bf16.msra.mxu0 %v716
    %1027 = vmatpush.bf16.msra.mxu0 %v710
    %1028 = vmatpush.bf16.msra.mxu0 %v704
    %1029 = vmatmul.bf16.gmra.mxu0 %v396
    %v1030 = vpop.f32.mrf.mxu0
    %v1031 = vadd.f32 %v404, %v1030
    %v1032 = vpop.f32.mrf.mxu0
    %1033 = vdwg.mxu0
    %1034 = vmatpush.bf16.msra.mxu0 %v794
    %1035 = vmatpush.bf16.msra.mxu0 %v788
    %1036 = vmatpush.bf16.msra.mxu0 %v782
    %1037 = vmatpush.bf16.msra.mxu0 %v776
    %1038 = vmatpush.bf16.msra.mxu0 %v770
    %1039 = vmatpush.bf16.msra.mxu0 %v764
    %1040 = vmatpush.bf16.msra.mxu0 %v758
    %1041 = vmatpush.bf16.msra.mxu0 %v752
    %1042 = vmatmul.bf16.gmra.mxu0 %v397
    %v1043 = vpop.f32.mrf.mxu0
    %v1044 = vadd.f32 %v1031, %v1043
    %v1045 = vpop.f32.mrf.mxu0
    %1046 = vdwg.mxu0
    %s1047 = sshll.u32 %s200, 4
    %1048 = dma.done %s78, %s1047
    %v1049 = vld [vmem:[#allocation3] sm:$0xff]
    %v1050 = vld [vmem:[#allocation3 + $0x8] sm:$0xff]
    %v1051 = vld [vmem:[#allocation3 + $0x10] sm:$0xff]
    %v1052 = vld [vmem:[#allocation3 + $0x18] sm:$0xff]
    %v1053 = vld [vmem:[#allocation3 + $0x20] sm:$0xff]
    %v1054 = vld [vmem:[#allocation3 + $0x28] sm:$0xff]
    %v1055 = vld [vmem:[#allocation3 + $0x30] sm:$0xff]
    %v1056 = vld [vmem:[#allocation3 + $0x38] sm:$0xff]
    %v1057 = vld [vmem:[#allocation3 + $0x40] sm:$0xff]
    %v1058 = vld [vmem:[#allocation3 + $0x48] sm:$0xff]
    %v1059 = vld [vmem:[#allocation3 + $0x50] sm:$0xff]
    %v1060 = vld [vmem:[#allocation3 + $0x58] sm:$0xff]
    %v1061 = vld [vmem:[#allocation3 + $0x60] sm:$0xff]
    %v1062 = vld [vmem:[#allocation3 + $0x68] sm:$0xff]
    %v1063 = vld [vmem:[#allocation3 + $0x70] sm:$0xff]
    %v1064 = vld [vmem:[#allocation3 + $0x78] sm:$0xff]
    %v1065 = vld [vmem:[#allocation3 + $0x80] sm:$0xff]
    %v1066 = vld [vmem:[#allocation3 + $0x88] sm:$0xff]
    %v1067 = vld [vmem:[#allocation3 + $0x90] sm:$0xff]
    %v1068 = vld [vmem:[#allocation3 + $0x98] sm:$0xff]
    %v1069 = vld [vmem:[#allocation3 + $0xa0] sm:$0xff]
    %v1070 = vld [vmem:[#allocation3 + $0xa8] sm:$0xff]
    %v1071 = vld [vmem:[#allocation3 + $0xb0] sm:$0xff]
    %v1072 = vld [vmem:[#allocation3 + $0xb8] sm:$0xff]
    %v1073 = vld [vmem:[#allocation3 + $0xc0] sm:$0xff]
    %v1074 = vld [vmem:[#allocation3 + $0xc8] sm:$0xff]
    %v1075 = vld [vmem:[#allocation3 + $0xd0] sm:$0xff]
    %v1076 = vld [vmem:[#allocation3 + $0xd8] sm:$0xff]
    %v1077 = vld [vmem:[#allocation3 + $0xe0] sm:$0xff]
    %v1078 = vld [vmem:[#allocation3 + $0xe8] sm:$0xff]
    %v1079 = vld [vmem:[#allocation3 + $0xf0] sm:$0xff]
    %v1080 = vld [vmem:[#allocation3 + $0xf8] sm:$0xff]
    %v1081 = vld [vmem:[#allocation3 + $0x100] sm:$0xff]
    %v1082 = vld [vmem:[#allocation3 + $0x108] sm:$0xff]
    %v1083 = vld [vmem:[#allocation3 + $0x110] sm:$0xff]
    %v1084 = vld [vmem:[#allocation3 + $0x118] sm:$0xff]
    %v1085 = vld [vmem:[#allocation3 + $0x120] sm:$0xff]
    %v1086 = vld [vmem:[#allocation3 + $0x128] sm:$0xff]
    %v1087 = vld [vmem:[#allocation3 + $0x130] sm:$0xff]
    %v1088 = vld [vmem:[#allocation3 + $0x138] sm:$0xff]
    %v1089 = vld [vmem:[#allocation3 + $0x140] sm:$0xff]
    %v1090 = vld [vmem:[#allocation3 + $0x148] sm:$0xff]
    %v1091 = vld [vmem:[#allocation3 + $0x150] sm:$0xff]
    %v1092 = vld [vmem:[#allocation3 + $0x158] sm:$0xff]
    %v1093 = vld [vmem:[#allocation3 + $0x160] sm:$0xff]
    %v1094 = vld [vmem:[#allocation3 + $0x168] sm:$0xff]
    %v1095 = vld [vmem:[#allocation3 + $0x170] sm:$0xff]
    %v1096 = vld [vmem:[#allocation3 + $0x178] sm:$0xff]
    %v1097 = vld [vmem:[#allocation3 + $0x180] sm:$0xff]
    %v1098 = vld [vmem:[#allocation3 + $0x188] sm:$0xff]
    %v1099 = vld [vmem:[#allocation3 + $0x190] sm:$0xff]
    %v1100 = vld [vmem:[#allocation3 + $0x198] sm:$0xff]
    %v1101 = vld [vmem:[#allocation3 + $0x1a0] sm:$0xff]
    %v1102 = vld [vmem:[#allocation3 + $0x1a8] sm:$0xff]
    %v1103 = vld [vmem:[#allocation3 + $0x1b0] sm:$0xff]
    %v1104 = vld [vmem:[#allocation3 + $0x1b8] sm:$0xff]
    %v1105 = vld [vmem:[#allocation3 + $0x1c0] sm:$0xff]
    %v1106 = vld [vmem:[#allocation3 + $0x1c8] sm:$0xff]
    %v1107 = vld [vmem:[#allocation3 + $0x1d0] sm:$0xff]
    %v1108 = vld [vmem:[#allocation3 + $0x1d8] sm:$0xff]
    %v1109 = vld [vmem:[#allocation3 + $0x1e0] sm:$0xff]
    %v1110 = vld [vmem:[#allocation3 + $0x1e8] sm:$0xff]
    %v1111 = vld [vmem:[#allocation3 + $0x1f0] sm:$0xff]
    %v1112 = vld [vmem:[#allocation3 + $0x1f8] sm:$0xff]
    %v1113 = vld [vmem:[#allocation3 + $0x200] sm:$0xff]
    %v1114 = vld [vmem:[#allocation3 + $0x208] sm:$0xff]
    %v1115 = vld [vmem:[#allocation3 + $0x210] sm:$0xff]
    %v1116 = vld [vmem:[#allocation3 + $0x218] sm:$0xff]
    %v1117 = vld [vmem:[#allocation3 + $0x220] sm:$0xff]
    %v1118 = vld [vmem:[#allocation3 + $0x228] sm:$0xff]
    %v1119 = vld [vmem:[#allocation3 + $0x230] sm:$0xff]
    %v1120 = vld [vmem:[#allocation3 + $0x238] sm:$0xff]
    %v1121 = vld [vmem:[#allocation3 + $0x240] sm:$0xff]
    %v1122 = vld [vmem:[#allocation3 + $0x248] sm:$0xff]
    %v1123 = vld [vmem:[#allocation3 + $0x250] sm:$0xff]
    %v1124 = vld [vmem:[#allocation3 + $0x258] sm:$0xff]
    %v1125 = vld [vmem:[#allocation3 + $0x260] sm:$0xff]
    %v1126 = vld [vmem:[#allocation3 + $0x268] sm:$0xff]
    %v1127 = vld [vmem:[#allocation3 + $0x270] sm:$0xff]
    %v1128 = vld [vmem:[#allocation3 + $0x278] sm:$0xff]
    %v1129 = vld [vmem:[#allocation3 + $0x280] sm:$0xff]
    %v1130 = vld [vmem:[#allocation3 + $0x288] sm:$0xff]
    %v1131 = vld [vmem:[#allocation3 + $0x290] sm:$0xff]
    %v1132 = vld [vmem:[#allocation3 + $0x298] sm:$0xff]
    %v1133 = vld [vmem:[#allocation3 + $0x2a0] sm:$0xff]
    %v1134 = vld [vmem:[#allocation3 + $0x2a8] sm:$0xff]
    %v1135 = vld [vmem:[#allocation3 + $0x2b0] sm:$0xff]
    %v1136 = vld [vmem:[#allocation3 + $0x2b8] sm:$0xff]
    %v1137 = vld [vmem:[#allocation3 + $0x2c0] sm:$0xff]
    %v1138 = vld [vmem:[#allocation3 + $0x2c8] sm:$0xff]
    %v1139 = vld [vmem:[#allocation3 + $0x2d0] sm:$0xff]
    %v1140 = vld [vmem:[#allocation3 + $0x2d8] sm:$0xff]
    %v1141 = vld [vmem:[#allocation3 + $0x2e0] sm:$0xff]
    %v1142 = vld [vmem:[#allocation3 + $0x2e8] sm:$0xff]
    %v1143 = vld [vmem:[#allocation3 + $0x2f0] sm:$0xff]
    %v1144 = vld [vmem:[#allocation3 + $0x2f8] sm:$0xff]
    %s1145 = scalar_lea.vmem [#allocation3], 768
    %v1146 = vld [vmem:[%s1145] sm:$0xff]
    %v1147 = vld [vmem:[%s1145 + $0x8] sm:$0xff]
    %v1148 = vld [vmem:[%s1145 + $0x10] sm:$0xff]
    %v1149 = vld [vmem:[%s1145 + $0x18] sm:$0xff]
    %v1150 = vld [vmem:[%s1145 + $0x20] sm:$0xff]
    %v1151 = vld [vmem:[%s1145 + $0x28] sm:$0xff]
    %v1152 = vld [vmem:[%s1145 + $0x30] sm:$0xff]
    %v1153 = vld [vmem:[%s1145 + $0x38] sm:$0xff]
    %v1154 = vld [vmem:[%s1145 + $0x40] sm:$0xff]
    %v1155 = vld [vmem:[%s1145 + $0x48] sm:$0xff]
    %v1156 = vld [vmem:[%s1145 + $0x50] sm:$0xff]
    %v1157 = vld [vmem:[%s1145 + $0x58] sm:$0xff]
    %v1158 = vld [vmem:[%s1145 + $0x60] sm:$0xff]
    %v1159 = vld [vmem:[%s1145 + $0x68] sm:$0xff]
    %v1160 = vld [vmem:[%s1145 + $0x70] sm:$0xff]
    %v1161 = vld [vmem:[%s1145 + $0x78] sm:$0xff]
    %v1162 = vld [vmem:[%s1145 + $0x80] sm:$0xff]
    %v1163 = vld [vmem:[%s1145 + $0x88] sm:$0xff]
    %v1164 = vld [vmem:[%s1145 + $0x90] sm:$0xff]
    %v1165 = vld [vmem:[%s1145 + $0x98] sm:$0xff]
    %v1166 = vld [vmem:[%s1145 + $0xa0] sm:$0xff]
    %v1167 = vld [vmem:[%s1145 + $0xa8] sm:$0xff]
    %v1168 = vld [vmem:[%s1145 + $0xb0] sm:$0xff]
    %v1169 = vld [vmem:[%s1145 + $0xb8] sm:$0xff]
    %v1170 = vld [vmem:[%s1145 + $0xc0] sm:$0xff]
    %v1171 = vld [vmem:[%s1145 + $0xc8] sm:$0xff]
    %v1172 = vld [vmem:[%s1145 + $0xd0] sm:$0xff]
    %v1173 = vld [vmem:[%s1145 + $0xd8] sm:$0xff]
    %v1174 = vld [vmem:[%s1145 + $0xe0] sm:$0xff]
    %v1175 = vld [vmem:[%s1145 + $0xe8] sm:$0xff]
    %v1176 = vld [vmem:[%s1145 + $0xf0] sm:$0xff]
    %v1177 = vld [vmem:[%s1145 + $0xf8] sm:$0xff]
    %v1178 = vld [vmem:[%s1145 + $0x100] sm:$0xff]
    %v1179 = vld [vmem:[%s1145 + $0x108] sm:$0xff]
    %v1180 = vld [vmem:[%s1145 + $0x110] sm:$0xff]
    %v1181 = vld [vmem:[%s1145 + $0x118] sm:$0xff]
    %v1182 = vld [vmem:[%s1145 + $0x120] sm:$0xff]
    %v1183 = vld [vmem:[%s1145 + $0x128] sm:$0xff]
    %v1184 = vld [vmem:[%s1145 + $0x130] sm:$0xff]
    %v1185 = vld [vmem:[%s1145 + $0x138] sm:$0xff]
    %v1186 = vld [vmem:[%s1145 + $0x140] sm:$0xff]
    %v1187 = vld [vmem:[%s1145 + $0x148] sm:$0xff]
    %v1188 = vld [vmem:[%s1145 + $0x150] sm:$0xff]
    %v1189 = vld [vmem:[%s1145 + $0x158] sm:$0xff]
    %v1190 = vld [vmem:[%s1145 + $0x160] sm:$0xff]
    %v1191 = vld [vmem:[%s1145 + $0x168] sm:$0xff]
    %v1192 = vld [vmem:[%s1145 + $0x170] sm:$0xff]
    %v1193 = vld [vmem:[%s1145 + $0x178] sm:$0xff]
    %v1194 = vld [vmem:[%s1145 + $0x180] sm:$0xff]
    %v1195 = vld [vmem:[%s1145 + $0x188] sm:$0xff]
    %v1196 = vld [vmem:[%s1145 + $0x190] sm:$0xff]
    %v1197 = vld [vmem:[%s1145 + $0x198] sm:$0xff]
    %v1198 = vld [vmem:[%s1145 + $0x1a0] sm:$0xff]
    %v1199 = vld [vmem:[%s1145 + $0x1a8] sm:$0xff]
    %v1200 = vld [vmem:[%s1145 + $0x1b0] sm:$0xff]
    %v1201 = vld [vmem:[%s1145 + $0x1b8] sm:$0xff]
    %v1202 = vld [vmem:[%s1145 + $0x1c0] sm:$0xff]
    %v1203 = vld [vmem:[%s1145 + $0x1c8] sm:$0xff]
    %v1204 = vld [vmem:[%s1145 + $0x1d0] sm:$0xff]
    %v1205 = vld [vmem:[%s1145 + $0x1d8] sm:$0xff]
    %v1206 = vld [vmem:[%s1145 + $0x1e0] sm:$0xff]
    %v1207 = vld [vmem:[%s1145 + $0x1e8] sm:$0xff]
    %v1208 = vld [vmem:[%s1145 + $0x1f0] sm:$0xff]
    %v1209 = vld [vmem:[%s1145 + $0x1f8] sm:$0xff]
    %v1210 = vld [vmem:[%s1145 + $0x200] sm:$0xff]
    %v1211 = vld [vmem:[%s1145 + $0x208] sm:$0xff]
    %v1212 = vld [vmem:[%s1145 + $0x210] sm:$0xff]
    %v1213 = vld [vmem:[%s1145 + $0x218] sm:$0xff]
    %v1214 = vld [vmem:[%s1145 + $0x220] sm:$0xff]
    %v1215 = vld [vmem:[%s1145 + $0x228] sm:$0xff]
    %v1216 = vld [vmem:[%s1145 + $0x230] sm:$0xff]
    %v1217 = vld [vmem:[%s1145 + $0x238] sm:$0xff]
    %v1218 = vld [vmem:[%s1145 + $0x240] sm:$0xff]
    %v1219 = vld [vmem:[%s1145 + $0x248] sm:$0xff]
    %v1220 = vld [vmem:[%s1145 + $0x250] sm:$0xff]
    %v1221 = vld [vmem:[%s1145 + $0x258] sm:$0xff]
    %v1222 = vld [vmem:[%s1145 + $0x260] sm:$0xff]
    %v1223 = vld [vmem:[%s1145 + $0x268] sm:$0xff]
    %v1224 = vld [vmem:[%s1145 + $0x270] sm:$0xff]
    %v1225 = vld [vmem:[%s1145 + $0x278] sm:$0xff]
    %v1226 = vld [vmem:[%s1145 + $0x280] sm:$0xff]
    %v1227 = vld [vmem:[%s1145 + $0x288] sm:$0xff]
    %v1228 = vld [vmem:[%s1145 + $0x290] sm:$0xff]
    %v1229 = vld [vmem:[%s1145 + $0x298] sm:$0xff]
    %v1230 = vld [vmem:[%s1145 + $0x2a0] sm:$0xff]
    %v1231 = vld [vmem:[%s1145 + $0x2a8] sm:$0xff]
    %v1232 = vld [vmem:[%s1145 + $0x2b0] sm:$0xff]
    %v1233 = vld [vmem:[%s1145 + $0x2b8] sm:$0xff]
    %v1234 = vld [vmem:[%s1145 + $0x2c0] sm:$0xff]
    %v1235 = vld [vmem:[%s1145 + $0x2c8] sm:$0xff]
    %v1236 = vld [vmem:[%s1145 + $0x2d0] sm:$0xff]
    %v1237 = vld [vmem:[%s1145 + $0x2d8] sm:$0xff]
    %v1238 = vld [vmem:[%s1145 + $0x2e0] sm:$0xff]
    %v1239 = vld [vmem:[%s1145 + $0x2e8] sm:$0xff]
    %v1240 = vld [vmem:[%s1145 + $0x2f0] sm:$0xff]
    %v1241 = vld [vmem:[%s1145 + $0x2f8] sm:$0xff]
    %v1338 = vunpack.c.l.b16 %v300
    %v1339 = vunpack.c.h.b16 %v300
    %v1340 = vunpack.c.l.b16 %v301
    %v1341 = vunpack.c.h.b16 %v301
    %v1342 = vunpack.c.l.b16 %v302
    %v1343 = vunpack.c.h.b16 %v302
    %v1344 = vunpack.c.l.b16 %v303
    %v1345 = vunpack.c.h.b16 %v303
    %v1346 = vunpack.c.l.b16 %v304
    %v1347 = vunpack.c.h.b16 %v304
    %v1348 = vunpack.c.l.b16 %v305
    %v1349 = vunpack.c.h.b16 %v305
    %v1350 = vunpack.c.l.b16 %v306
    %v1351 = vunpack.c.h.b16 %v306
    %v1352 = vunpack.c.l.b16 %v307
    %v1353 = vunpack.c.h.b16 %v307
    %v1354 = vunpack.c.l.b16 %v308
    %v1355 = vunpack.c.h.b16 %v308
    %v1356 = vunpack.c.l.b16 %v309
    %v1357 = vunpack.c.h.b16 %v309
    %v1358 = vunpack.c.l.b16 %v310
    %v1359 = vunpack.c.h.b16 %v310
    %v1360 = vunpack.c.l.b16 %v311
    %v1361 = vunpack.c.h.b16 %v311
    %v1362 = vunpack.c.l.b16 %v312
    %v1363 = vunpack.c.h.b16 %v312
    %v1364 = vunpack.c.l.b16 %v313
    %v1365 = vunpack.c.h.b16 %v313
    %v1366 = vunpack.c.l.b16 %v314
    %v1367 = vunpack.c.h.b16 %v314
    %v1368 = vunpack.c.l.b16 %v315
    %v1369 = vunpack.c.h.b16 %v315
    %v1370 = vunpack.c.l.b16 %v316
    %v1371 = vunpack.c.h.b16 %v316
    %v1372 = vunpack.c.l.b16 %v317
    %v1373 = vunpack.c.h.b16 %v317
    %v1374 = vunpack.c.l.b16 %v318
    %v1375 = vunpack.c.h.b16 %v318
    %v1376 = vunpack.c.l.b16 %v319
    %v1377 = vunpack.c.h.b16 %v319
    %v1378 = vunpack.c.l.b16 %v320
    %v1379 = vunpack.c.h.b16 %v320
    %v1380 = vunpack.c.l.b16 %v321
    %v1381 = vunpack.c.h.b16 %v321
    %v1382 = vunpack.c.l.b16 %v322
    %v1383 = vunpack.c.h.b16 %v322
    %v1384 = vunpack.c.l.b16 %v323
    %v1385 = vunpack.c.h.b16 %v323
    %v1386 = vunpack.c.l.b16 %v324
    %v1387 = vunpack.c.h.b16 %v324
    %v1388 = vunpack.c.l.b16 %v325
    %v1389 = vunpack.c.h.b16 %v325
    %v1390 = vunpack.c.l.b16 %v326
    %v1391 = vunpack.c.h.b16 %v326
    %v1392 = vunpack.c.l.b16 %v327
    %v1393 = vunpack.c.h.b16 %v327
    %v1394 = vunpack.c.l.b16 %v328
    %v1395 = vunpack.c.h.b16 %v328
    %v1396 = vunpack.c.l.b16 %v329
    %v1397 = vunpack.c.h.b16 %v329
    %v1398 = vunpack.c.l.b16 %v330
    %v1399 = vunpack.c.h.b16 %v330
    %v1400 = vunpack.c.l.b16 %v331
    %v1401 = vunpack.c.h.b16 %v331
    %v1402 = vunpack.c.l.b16 %v332
    %v1403 = vunpack.c.h.b16 %v332
    %v1404 = vunpack.c.l.b16 %v333
    %v1405 = vunpack.c.h.b16 %v333
    %v1406 = vunpack.c.l.b16 %v334
    %v1407 = vunpack.c.h.b16 %v334
    %v1408 = vunpack.c.l.b16 %v335
    %v1409 = vunpack.c.h.b16 %v335
    %v1410 = vunpack.c.l.b16 %v336
    %v1411 = vunpack.c.h.b16 %v336
    %v1412 = vunpack.c.l.b16 %v337
    %v1413 = vunpack.c.h.b16 %v337
    %v1414 = vunpack.c.l.b16 %v338
    %v1415 = vunpack.c.h.b16 %v338
    %v1416 = vunpack.c.l.b16 %v339
    %v1417 = vunpack.c.h.b16 %v339
    %v1418 = vunpack.c.l.b16 %v340
    %v1419 = vunpack.c.h.b16 %v340
    %v1420 = vunpack.c.l.b16 %v341
    %v1421 = vunpack.c.h.b16 %v341
    %v1422 = vunpack.c.l.b16 %v342
    %v1423 = vunpack.c.h.b16 %v342
    %v1424 = vunpack.c.l.b16 %v343
    %v1425 = vunpack.c.h.b16 %v343
    %v1426 = vunpack.c.l.b16 %v344
    %v1427 = vunpack.c.h.b16 %v344
    %v1428 = vunpack.c.l.b16 %v345
    %v1429 = vunpack.c.h.b16 %v345
    %v1430 = vunpack.c.l.b16 %v346
    %v1431 = vunpack.c.h.b16 %v346
    %v1432 = vunpack.c.l.b16 %v347
    %v1433 = vunpack.c.h.b16 %v347
    %v1434 = vunpack.c.l.b16 %v348
    %v1435 = vunpack.c.h.b16 %v348
    %v1436 = vunpack.c.l.b16 %v349
    %v1437 = vunpack.c.h.b16 %v349
    %v1438 = vunpack.c.l.b16 %v350
    %v1439 = vunpack.c.h.b16 %v350
    %v1440 = vunpack.c.l.b16 %v351
    %v1441 = vunpack.c.h.b16 %v351
    %v1442 = vunpack.c.l.b16 %v352
    %v1443 = vunpack.c.h.b16 %v352
    %v1444 = vunpack.c.l.b16 %v353
    %v1445 = vunpack.c.h.b16 %v353
    %v1446 = vunpack.c.l.b16 %v354
    %v1447 = vunpack.c.h.b16 %v354
    %v1448 = vunpack.c.l.b16 %v355
    %v1449 = vunpack.c.h.b16 %v355
    %v1450 = vunpack.c.l.b16 %v356
    %v1451 = vunpack.c.h.b16 %v356
    %v1452 = vunpack.c.l.b16 %v357
    %v1453 = vunpack.c.h.b16 %v357
    %v1454 = vunpack.c.l.b16 %v358
    %v1455 = vunpack.c.h.b16 %v358
    %v1456 = vunpack.c.l.b16 %v359
    %v1457 = vunpack.c.h.b16 %v359
    %v1458 = vunpack.c.l.b16 %v360
    %v1459 = vunpack.c.h.b16 %v360
    %v1460 = vunpack.c.l.b16 %v361
    %v1461 = vunpack.c.h.b16 %v361
    %v1462 = vunpack.c.l.b16 %v362
    %v1463 = vunpack.c.h.b16 %v362
    %v1464 = vunpack.c.l.b16 %v363
    %v1465 = vunpack.c.h.b16 %v363
    %v1466 = vunpack.c.l.b16 %v364
    %v1467 = vunpack.c.h.b16 %v364
    %v1468 = vunpack.c.l.b16 %v365
    %v1469 = vunpack.c.h.b16 %v365
    %v1470 = vunpack.c.l.b16 %v366
    %v1471 = vunpack.c.h.b16 %v366
    %v1472 = vunpack.c.l.b16 %v367
    %v1473 = vunpack.c.h.b16 %v367
    %v1474 = vunpack.c.l.b16 %v368
    %v1475 = vunpack.c.h.b16 %v368
    %v1476 = vunpack.c.l.b16 %v369
    %v1477 = vunpack.c.h.b16 %v369
    %v1478 = vunpack.c.l.b16 %v370
    %v1479 = vunpack.c.h.b16 %v370
    %v1480 = vunpack.c.l.b16 %v371
    %v1481 = vunpack.c.h.b16 %v371
    %v1482 = vunpack.c.l.b16 %v372
    %v1483 = vunpack.c.h.b16 %v372
    %v1484 = vunpack.c.l.b16 %v373
    %v1485 = vunpack.c.h.b16 %v373
    %v1486 = vunpack.c.l.b16 %v374
    %v1487 = vunpack.c.h.b16 %v374
    %v1488 = vunpack.c.l.b16 %v375
    %v1489 = vunpack.c.h.b16 %v375
    %v1490 = vunpack.c.l.b16 %v376
    %v1491 = vunpack.c.h.b16 %v376
    %v1492 = vunpack.c.l.b16 %v377
    %v1493 = vunpack.c.h.b16 %v377
    %v1494 = vunpack.c.l.b16 %v378
    %v1495 = vunpack.c.h.b16 %v378
    %v1496 = vunpack.c.l.b16 %v379
    %v1497 = vunpack.c.h.b16 %v379
    %v1498 = vunpack.c.l.b16 %v380
    %v1499 = vunpack.c.h.b16 %v380
    %v1500 = vunpack.c.l.b16 %v381
    %v1501 = vunpack.c.h.b16 %v381
    %v1502 = vunpack.c.l.b16 %v382
    %v1503 = vunpack.c.h.b16 %v382
    %v1504 = vunpack.c.l.b16 %v383
    %v1505 = vunpack.c.h.b16 %v383
    %v1506 = vunpack.c.l.b16 %v384
    %v1507 = vunpack.c.h.b16 %v384
    %v1508 = vunpack.c.l.b16 %v385
    %v1509 = vunpack.c.h.b16 %v385
    %v1510 = vunpack.c.l.b16 %v386
    %v1511 = vunpack.c.h.b16 %v386
    %v1512 = vunpack.c.l.b16 %v387
    %v1513 = vunpack.c.h.b16 %v387
    %v1514 = vunpack.c.l.b16 %v388
    %v1515 = vunpack.c.h.b16 %v388
    %v1516 = vunpack.c.l.b16 %v389
    %v1517 = vunpack.c.h.b16 %v389
    %v1518 = vunpack.c.l.b16 %v390
    %v1519 = vunpack.c.h.b16 %v390
    %v1520 = vunpack.c.l.b16 %v391
    %v1521 = vunpack.c.h.b16 %v391
    %v1522 = vunpack.c.l.b16 %v392
    %v1523 = vunpack.c.h.b16 %v392
    %v1524 = vunpack.c.l.b16 %v393
    %v1525 = vunpack.c.h.b16 %v393
    %v1526 = vunpack.c.l.b16 %v394
    %v1527 = vunpack.c.h.b16 %v394
    %v1528 = vunpack.c.l.b16 %v395
    %v1529 = vunpack.c.h.b16 %v395
    %v1530 = vpack.c.b16 %v1344, %v1338
    %v1531 = vpack.c.b16 %v1345, %v1339
    %v1532 = vpack.c.b16 %v1346, %v1340
    %v1533 = vpack.c.b16 %v1347, %v1341
    %v1534 = vpack.c.b16 %v1348, %v1342
    %v1535 = vpack.c.b16 %v1349, %v1343
    %v1536 = vpack.c.b16 %v1356, %v1350
    %v1537 = vpack.c.b16 %v1357, %v1351
    %v1538 = vpack.c.b16 %v1358, %v1352
    %v1539 = vpack.c.b16 %v1359, %v1353
    %v1540 = vpack.c.b16 %v1360, %v1354
    %v1541 = vpack.c.b16 %v1361, %v1355
    %v1542 = vpack.c.b16 %v1368, %v1362
    %v1543 = vpack.c.b16 %v1369, %v1363
    %v1544 = vpack.c.b16 %v1370, %v1364
    %v1545 = vpack.c.b16 %v1371, %v1365
    %v1546 = vpack.c.b16 %v1372, %v1366
    %v1547 = vpack.c.b16 %v1373, %v1367
    %v1548 = vpack.c.b16 %v1380, %v1374
    %v1549 = vpack.c.b16 %v1381, %v1375
    %v1550 = vpack.c.b16 %v1382, %v1376
    %v1551 = vpack.c.b16 %v1383, %v1377
    %v1552 = vpack.c.b16 %v1384, %v1378
    %v1553 = vpack.c.b16 %v1385, %v1379
    %v1554 = vpack.c.b16 %v1392, %v1386
    %v1555 = vpack.c.b16 %v1393, %v1387
    %v1556 = vpack.c.b16 %v1394, %v1388
    %v1557 = vpack.c.b16 %v1395, %v1389
    %v1558 = vpack.c.b16 %v1396, %v1390
    %v1559 = vpack.c.b16 %v1397, %v1391
    %v1560 = vpack.c.b16 %v1404, %v1398
    %v1561 = vpack.c.b16 %v1405, %v1399
    %v1562 = vpack.c.b16 %v1406, %v1400
    %v1563 = vpack.c.b16 %v1407, %v1401
    %v1564 = vpack.c.b16 %v1408, %v1402
    %v1565 = vpack.c.b16 %v1409, %v1403
    %v1566 = vpack.c.b16 %v1416, %v1410
    %v1567 = vpack.c.b16 %v1417, %v1411
    %v1568 = vpack.c.b16 %v1418, %v1412
    %v1569 = vpack.c.b16 %v1419, %v1413
    %v1570 = vpack.c.b16 %v1420, %v1414
    %v1571 = vpack.c.b16 %v1421, %v1415
    %v1572 = vpack.c.b16 %v1428, %v1422
    %v1573 = vpack.c.b16 %v1429, %v1423
    %v1574 = vpack.c.b16 %v1430, %v1424
    %v1575 = vpack.c.b16 %v1431, %v1425
    %v1576 = vpack.c.b16 %v1432, %v1426
    %v1577 = vpack.c.b16 %v1433, %v1427
    %v1578 = vpack.c.b16 %v1440, %v1434
    %v1579 = vpack.c.b16 %v1441, %v1435
    %v1580 = vpack.c.b16 %v1442, %v1436
    %v1581 = vpack.c.b16 %v1443, %v1437
    %v1582 = vpack.c.b16 %v1444, %v1438
    %v1583 = vpack.c.b16 %v1445, %v1439
    %v1584 = vpack.c.b16 %v1452, %v1446
    %v1585 = vpack.c.b16 %v1453, %v1447
    %v1586 = vpack.c.b16 %v1454, %v1448
    %v1587 = vpack.c.b16 %v1455, %v1449
    %v1588 = vpack.c.b16 %v1456, %v1450
    %v1589 = vpack.c.b16 %v1457, %v1451
    %v1590 = vpack.c.b16 %v1464, %v1458
    %v1591 = vpack.c.b16 %v1465, %v1459
    %v1592 = vpack.c.b16 %v1466, %v1460
    %v1593 = vpack.c.b16 %v1467, %v1461
    %v1594 = vpack.c.b16 %v1468, %v1462
    %v1595 = vpack.c.b16 %v1469, %v1463
    %v1596 = vpack.c.b16 %v1476, %v1470
    %v1597 = vpack.c.b16 %v1477, %v1471
    %v1598 = vpack.c.b16 %v1478, %v1472
    %v1599 = vpack.c.b16 %v1479, %v1473
    %v1600 = vpack.c.b16 %v1480, %v1474
    %v1601 = vpack.c.b16 %v1481, %v1475
    %v1602 = vpack.c.b16 %v1488, %v1482
    %v1603 = vpack.c.b16 %v1489, %v1483
    %v1604 = vpack.c.b16 %v1490, %v1484
    %v1605 = vpack.c.b16 %v1491, %v1485
    %v1606 = vpack.c.b16 %v1492, %v1486
    %v1607 = vpack.c.b16 %v1493, %v1487
    %v1608 = vpack.c.b16 %v1500, %v1494
    %v1609 = vpack.c.b16 %v1501, %v1495
    %v1610 = vpack.c.b16 %v1502, %v1496
    %v1611 = vpack.c.b16 %v1503, %v1497
    %v1612 = vpack.c.b16 %v1504, %v1498
    %v1613 = vpack.c.b16 %v1505, %v1499
    %v1614 = vpack.c.b16 %v1512, %v1506
    %v1615 = vpack.c.b16 %v1513, %v1507
    %v1616 = vpack.c.b16 %v1514, %v1508
    %v1617 = vpack.c.b16 %v1515, %v1509
    %v1618 = vpack.c.b16 %v1516, %v1510
    %v1619 = vpack.c.b16 %v1517, %v1511
    %v1620 = vpack.c.b16 %v1524, %v1518
    %v1621 = vpack.c.b16 %v1525, %v1519
    %v1622 = vpack.c.b16 %v1526, %v1520
    %v1623 = vpack.c.b16 %v1527, %v1521
    %v1624 = vpack.c.b16 %v1528, %v1522
    %v1625 = vpack.c.b16 %v1529, %v1523
    %v1723 = vperm.slane %v112, 0
    %v1724 = vperm.slane %v112, 1
    %v1725 = vperm.slane %v112, 2
    %v1726 = vperm.slane %v112, 3
    %v1727 = vperm.slane %v112, 4
    %v1728 = vperm.slane %v112, 5
    %1735 = vmatpush.bf16.msra.mxu0 %v1572
    %1736 = vmatpush.bf16.msra.mxu0 %v1566
    %1737 = vmatpush.bf16.msra.mxu0 %v1560
    %1738 = vmatpush.bf16.msra.mxu0 %v1554
    %1739 = vmatpush.bf16.msra.mxu0 %v1548
    %1740 = vmatpush.bf16.msra.mxu0 %v1542
    %1741 = vmatpush.bf16.msra.mxu0 %v1536
    %1742 = vmatpush.bf16.msra.mxu0 %v1530
    %1743 = vmatmul.bf16.gmra.mxu0 0
    %v1744 = vpop.f32.mrf.mxu0
    %v1745 = vadd.f32 %v1723, %v1744
    %v1746 = vpop.f32.mrf.mxu0
    %1747 = vdwg.mxu0
    %1748 = vmatpush.bf16.msra.mxu0 %v1620
    %1749 = vmatpush.bf16.msra.mxu0 %v1614
    %1750 = vmatpush.bf16.msra.mxu0 %v1608
    %1751 = vmatpush.bf16.msra.mxu0 %v1602
    %1752 = vmatpush.bf16.msra.mxu0 %v1596
    %1753 = vmatpush.bf16.msra.mxu0 %v1590
    %1754 = vmatpush.bf16.msra.mxu0 %v1584
    %1755 = vmatpush.bf16.msra.mxu0 %v1578
    %1756 = vmatmul.bf16.gmra.mxu0 0
    %v1757 = vpop.f32.mrf.mxu0
    %v1758 = vadd.f32 %v1745, %v1757
    %v1759 = vpop.f32.mrf.mxu0
    %1760 = vdwg.mxu0
    %1761 = vmatpush.bf16.msra.mxu0 %v1573
    %1762 = vmatpush.bf16.msra.mxu0 %v1567
    %1763 = vmatpush.bf16.msra.mxu0 %v1561
    %1764 = vmatpush.bf16.msra.mxu0 %v1555
    %1765 = vmatpush.bf16.msra.mxu0 %v1549
    %1766 = vmatpush.bf16.msra.mxu0 %v1543
    %1767 = vmatpush.bf16.msra.mxu0 %v1537
    %1768 = vmatpush.bf16.msra.mxu0 %v1531
    %1769 = vmatmul.bf16.gmra.mxu0 0
    %v1770 = vpop.f32.mrf.mxu0
    %v1771 = vadd.f32 %v1724, %v1770
    %v1772 = vpop.f32.mrf.mxu0
    %1773 = vdwg.mxu0
    %1774 = vmatpush.bf16.msra.mxu0 %v1621
    %1775 = vmatpush.bf16.msra.mxu0 %v1615
    %1776 = vmatpush.bf16.msra.mxu0 %v1609
    %1777 = vmatpush.bf16.msra.mxu0 %v1603
    %1778 = vmatpush.bf16.msra.mxu0 %v1597
    %1779 = vmatpush.bf16.msra.mxu0 %v1591
    %1780 = vmatpush.bf16.msra.mxu0 %v1585
    %1781 = vmatpush.bf16.msra.mxu0 %v1579
    %1782 = vmatmul.bf16.gmra.mxu0 0
    %v1783 = vpop.f32.mrf.mxu0
    %v1784 = vadd.f32 %v1771, %v1783
    %v1785 = vpop.f32.mrf.mxu0
    %1786 = vdwg.mxu0
    %1787 = vmatpush.bf16.msra.mxu0 %v1574
    %1788 = vmatpush.bf16.msra.mxu0 %v1568
    %1789 = vmatpush.bf16.msra.mxu0 %v1562
    %1790 = vmatpush.bf16.msra.mxu0 %v1556
    %1791 = vmatpush.bf16.msra.mxu0 %v1550
    %1792 = vmatpush.bf16.msra.mxu0 %v1544
    %1793 = vmatpush.bf16.msra.mxu0 %v1538
    %1794 = vmatpush.bf16.msra.mxu0 %v1532
    %1795 = vmatmul.bf16.gmra.mxu0 0
    %v1796 = vpop.f32.mrf.mxu0
    %v1797 = vadd.f32 %v1725, %v1796
    %v1798 = vpop.f32.mrf.mxu0
    %1799 = vdwg.mxu0
    %1800 = vmatpush.bf16.msra.mxu0 %v1622
    %1801 = vmatpush.bf16.msra.mxu0 %v1616
    %1802 = vmatpush.bf16.msra.mxu0 %v1610
    %1803 = vmatpush.bf16.msra.mxu0 %v1604
    %1804 = vmatpush.bf16.msra.mxu0 %v1598
    %1805 = vmatpush.bf16.msra.mxu0 %v1592
    %1806 = vmatpush.bf16.msra.mxu0 %v1586
    %1807 = vmatpush.bf16.msra.mxu0 %v1580
    %1808 = vmatmul.bf16.gmra.mxu0 0
    %v1809 = vpop.f32.mrf.mxu0
    %v1810 = vadd.f32 %v1797, %v1809
    %v1811 = vpop.f32.mrf.mxu0
    %1812 = vdwg.mxu0
    %1813 = vmatpush.bf16.msra.mxu0 %v1575
    %1814 = vmatpush.bf16.msra.mxu0 %v1569
    %1815 = vmatpush.bf16.msra.mxu0 %v1563
    %1816 = vmatpush.bf16.msra.mxu0 %v1557
    %1817 = vmatpush.bf16.msra.mxu0 %v1551
    %1818 = vmatpush.bf16.msra.mxu0 %v1545
    %1819 = vmatpush.bf16.msra.mxu0 %v1539
    %1820 = vmatpush.bf16.msra.mxu0 %v1533
    %1821 = vmatmul.bf16.gmra.mxu0 0
    %v1822 = vpop.f32.mrf.mxu0
    %v1823 = vadd.f32 %v1726, %v1822
    %v1824 = vpop.f32.mrf.mxu0
    %1825 = vdwg.mxu0
    %1826 = vmatpush.bf16.msra.mxu0 %v1623
    %1827 = vmatpush.bf16.msra.mxu0 %v1617
    %1828 = vmatpush.bf16.msra.mxu0 %v1611
    %1829 = vmatpush.bf16.msra.mxu0 %v1605
    %1830 = vmatpush.bf16.msra.mxu0 %v1599
    %1831 = vmatpush.bf16.msra.mxu0 %v1593
    %1832 = vmatpush.bf16.msra.mxu0 %v1587
    %1833 = vmatpush.bf16.msra.mxu0 %v1581
    %1834 = vmatmul.bf16.gmra.mxu0 0
    %v1835 = vpop.f32.mrf.mxu0
    %v1836 = vadd.f32 %v1823, %v1835
    %v1837 = vpop.f32.mrf.mxu0
    %1838 = vdwg.mxu0
    %1839 = vmatpush.bf16.msra.mxu0 %v1576
    %1840 = vmatpush.bf16.msra.mxu0 %v1570
    %1841 = vmatpush.bf16.msra.mxu0 %v1564
    %1842 = vmatpush.bf16.msra.mxu0 %v1558
    %1843 = vmatpush.bf16.msra.mxu0 %v1552
    %1844 = vmatpush.bf16.msra.mxu0 %v1546
    %1845 = vmatpush.bf16.msra.mxu0 %v1540
    %1846 = vmatpush.bf16.msra.mxu0 %v1534
    %1847 = vmatmul.bf16.gmra.mxu0 0
    %v1848 = vpop.f32.mrf.mxu0
    %v1849 = vadd.f32 %v1727, %v1848
    %v1850 = vpop.f32.mrf.mxu0
    %1851 = vdwg.mxu0
    %1852 = vmatpush.bf16.msra.mxu0 %v1624
    %1853 = vmatpush.bf16.msra.mxu0 %v1618
    %1854 = vmatpush.bf16.msra.mxu0 %v1612
    %1855 = vmatpush.bf16.msra.mxu0 %v1606
    %1856 = vmatpush.bf16.msra.mxu0 %v1600
    %1857 = vmatpush.bf16.msra.mxu0 %v1594
    %1858 = vmatpush.bf16.msra.mxu0 %v1588
    %1859 = vmatpush.bf16.msra.mxu0 %v1582
    %1860 = vmatmul.bf16.gmra.mxu0 0
    %v1861 = vpop.f32.mrf.mxu0
    %v1862 = vadd.f32 %v1849, %v1861
    %v1863 = vpop.f32.mrf.mxu0
    %1864 = vdwg.mxu0
    %1865 = vmatpush.bf16.msra.mxu0 %v1577
    %1866 = vmatpush.bf16.msra.mxu0 %v1571
    %1867 = vmatpush.bf16.msra.mxu0 %v1565
    %1868 = vmatpush.bf16.msra.mxu0 %v1559
    %1869 = vmatpush.bf16.msra.mxu0 %v1553
    %1870 = vmatpush.bf16.msra.mxu0 %v1547
    %1871 = vmatpush.bf16.msra.mxu0 %v1541
    %1872 = vmatpush.bf16.msra.mxu0 %v1535
    %1873 = vmatmul.bf16.gmra.mxu0 0
    %v1874 = vpop.f32.mrf.mxu0
    %v1875 = vadd.f32 %v1728, %v1874
    %v1876 = vpop.f32.mrf.mxu0
    %1877 = vdwg.mxu0
    %1878 = vmatpush.bf16.msra.mxu0 %v1625
    %1879 = vmatpush.bf16.msra.mxu0 %v1619
    %1880 = vmatpush.bf16.msra.mxu0 %v1613
    %1881 = vmatpush.bf16.msra.mxu0 %v1607
    %1882 = vmatpush.bf16.msra.mxu0 %v1601
    %1883 = vmatpush.bf16.msra.mxu0 %v1595
    %1884 = vmatpush.bf16.msra.mxu0 %v1589
    %1885 = vmatpush.bf16.msra.mxu0 %v1583
    %1886 = vmatmul.bf16.gmra.mxu0 0
    %v1887 = vpop.f32.mrf.mxu0
    %v1888 = vadd.f32 %v1875, %v1887
    %v1889 = vpop.f32.mrf.mxu0
    %1890 = vdwg.mxu0
    %v1891 = vadd.f32 %v914, %v1758
    %v1892 = vadd.f32 %v940, %v1784
    %v1893 = vxor.u32 %v1891, 2147483648
    %v1894 = vxor.u32 %v1892, 2147483648
    %v1895 = vmul.f32 %v1893, 1.442695
    %v1896 = vpow.pop %v1895
    %v1897 = vmul.f32 %v1894, 1.442695
    %v1898 = vpow.pop %v1897
    %v1899 = vadd.f32 %v1896, 1.0
    %v1900 = vadd.f32 %v1898, 1.0
    %v1901 = vrcp.pop %v1899
    %v1902 = vmul.f32 %v1899, %v1901
    %v1903 = vsub.f32 1.0, %v1902
    %v1904 = vmul.f32 %v1901, %v1903
    %v1905 = vadd.f32 %v1901, %v1904
    %vm1906 = vweird.f32 %v1899
    %vm1907 = vweird.f32 %v1901
    %vm1908 = vmor %vm1906, %vm1907
    %v1909 = vsel %vm1908, %v1901, %v1905
    %v1910 = vand.u32 2147483647, %v1899
    %vm1911 = vcmp.eq.f32.partialorder %v1910, 8.507059e+37
    %v1912 = vand.u32 %v1899, 2147483648
    %v1913 = vor.u32 1.1754944e-38, %v1912
    %v1914 = vsel %vm1911, %v1913, %v1909
    %v1915 = vmul.f32 1.0, %v1914
    %v1916 = vrcp.pop %v1900
    %v1917 = vmul.f32 %v1900, %v1916
    %v1918 = vsub.f32 1.0, %v1917
    %v1919 = vmul.f32 %v1916, %v1918
    %v1920 = vadd.f32 %v1916, %v1919
    %vm1921 = vweird.f32 %v1900
    %vm1922 = vweird.f32 %v1916
    %vm1923 = vmor %vm1921, %vm1922
    %v1924 = vsel %vm1923, %v1916, %v1920
    %v1925 = vand.u32 2147483647, %v1900
    %vm1926 = vcmp.eq.f32.partialorder %v1925, 8.507059e+37
    %v1927 = vand.u32 %v1900, 2147483648
    %v1928 = vor.u32 1.1754944e-38, %v1927
    %v1929 = vsel %vm1926, %v1928, %v1924
    %v1930 = vmul.f32 1.0, %v1929
    %v1931 = vadd.f32 %v966, %v1810
    %v1932 = vadd.f32 %v992, %v1836
    %v1933 = vxor.u32 %v1931, 2147483648
    %v1934 = vxor.u32 %v1932, 2147483648
    %v1935 = vmul.f32 %v1933, 1.442695
    %v1936 = vpow.pop %v1935
    %v1937 = vmul.f32 %v1934, 1.442695
    %v1938 = vpow.pop %v1937
    %v1939 = vadd.f32 %v1936, 1.0
    %v1940 = vadd.f32 %v1938, 1.0
    %v1941 = vrcp.pop %v1939
    %v1942 = vmul.f32 %v1939, %v1941
    %v1943 = vsub.f32 1.0, %v1942
    %v1944 = vmul.f32 %v1941, %v1943
    %v1945 = vadd.f32 %v1941, %v1944
    %vm1946 = vweird.f32 %v1939
    %vm1947 = vweird.f32 %v1941
    %vm1948 = vmor %vm1946, %vm1947
    %v1949 = vsel %vm1948, %v1941, %v1945
    %v1950 = vand.u32 2147483647, %v1939
    %vm1951 = vcmp.eq.f32.partialorder %v1950, 8.507059e+37
    %v1952 = vand.u32 %v1939, 2147483648
    %v1953 = vor.u32 1.1754944e-38, %v1952
    %v1954 = vsel %vm1951, %v1953, %v1949
    %v1955 = vmul.f32 1.0, %v1954
    %v1956 = vrcp.pop %v1940
    %v1957 = vmul.f32 %v1940, %v1956
    %v1958 = vsub.f32 1.0, %v1957
    %v1959 = vmul.f32 %v1956, %v1958
    %v1960 = vadd.f32 %v1956, %v1959
    %vm1961 = vweird.f32 %v1940
    %vm1962 = vweird.f32 %v1956
    %vm1963 = vmor %vm1961, %vm1962
    %v1964 = vsel %vm1963, %v1956, %v1960
    %v1965 = vand.u32 2147483647, %v1940
    %vm1966 = vcmp.eq.f32.partialorder %v1965, 8.507059e+37
    %v1967 = vand.u32 %v1940, 2147483648
    %v1968 = vor.u32 1.1754944e-38, %v1967
    %v1969 = vsel %vm1966, %v1968, %v1964
    %v1970 = vmul.f32 1.0, %v1969
    %v1971 = vmul.f32 %v1915, %v1862
    %v1972 = vmul.f32 %v1930, %v1888
    %v1973 = vadd.f32 %v1018, %v1971
    %v1974 = vadd.f32 %v1044, %v1972
    %v1975 = vtanh.pop %v1973
    %v1976 = vtanh.pop %v1974
    %v1977 = vsub.f32 1.0, %v1955
    %v1978 = vsub.f32 1.0, %v1970
    %v1979 = vmul.f32 %v1977, %v1975
    %v1980 = vmul.f32 %v1978, %v1976
    %v1981 = vmul.f32 %v1955, 0.0
    %v1982 = vmul.f32 %v1970, 0.0
    %v1983 = vadd.f32 %v1979, %v1981
    %v1984 = vadd.f32 %v1980, %v1982
    %v1985 = vpack.c.bf16 %v1983, %v1983
    %v1986 = vpack.c.bf16 %v1984, %v1984
    %v2083 = vunpack.c.l.b16 %v1049
    %v2084 = vunpack.c.h.b16 %v1049
    %v2085 = vunpack.c.l.b16 %v1050
    %v2086 = vunpack.c.h.b16 %v1050
    %v2087 = vunpack.c.l.b16 %v1051
    %v2088 = vunpack.c.h.b16 %v1051
    %v2089 = vunpack.c.l.b16 %v1052
    %v2090 = vunpack.c.h.b16 %v1052
    %v2091 = vunpack.c.l.b16 %v1053
    %v2092 = vunpack.c.h.b16 %v1053
    %v2093 = vunpack.c.l.b16 %v1054
    %v2094 = vunpack.c.h.b16 %v1054
    %v2095 = vunpack.c.l.b16 %v1055
    %v2096 = vunpack.c.h.b16 %v1055
    %v2097 = vunpack.c.l.b16 %v1056
    %v2098 = vunpack.c.h.b16 %v1056
    %v2099 = vunpack.c.l.b16 %v1057
    %v2100 = vunpack.c.h.b16 %v1057
    %v2101 = vunpack.c.l.b16 %v1058
    %v2102 = vunpack.c.h.b16 %v1058
    %v2103 = vunpack.c.l.b16 %v1059
    %v2104 = vunpack.c.h.b16 %v1059
    %v2105 = vunpack.c.l.b16 %v1060
    %v2106 = vunpack.c.h.b16 %v1060
    %v2107 = vunpack.c.l.b16 %v1061
    %v2108 = vunpack.c.h.b16 %v1061
    %v2109 = vunpack.c.l.b16 %v1062
    %v2110 = vunpack.c.h.b16 %v1062
    %v2111 = vunpack.c.l.b16 %v1063
    %v2112 = vunpack.c.h.b16 %v1063
    %v2113 = vunpack.c.l.b16 %v1064
    %v2114 = vunpack.c.h.b16 %v1064
    %v2115 = vunpack.c.l.b16 %v1065
    %v2116 = vunpack.c.h.b16 %v1065
    %v2117 = vunpack.c.l.b16 %v1066
    %v2118 = vunpack.c.h.b16 %v1066
    %v2119 = vunpack.c.l.b16 %v1067
    %v2120 = vunpack.c.h.b16 %v1067
    %v2121 = vunpack.c.l.b16 %v1068
    %v2122 = vunpack.c.h.b16 %v1068
    %v2123 = vunpack.c.l.b16 %v1069
    %v2124 = vunpack.c.h.b16 %v1069
    %v2125 = vunpack.c.l.b16 %v1070
    %v2126 = vunpack.c.h.b16 %v1070
    %v2127 = vunpack.c.l.b16 %v1071
    %v2128 = vunpack.c.h.b16 %v1071
    %v2129 = vunpack.c.l.b16 %v1072
    %v2130 = vunpack.c.h.b16 %v1072
    %v2131 = vunpack.c.l.b16 %v1073
    %v2132 = vunpack.c.h.b16 %v1073
    %v2133 = vunpack.c.l.b16 %v1074
    %v2134 = vunpack.c.h.b16 %v1074
    %v2135 = vunpack.c.l.b16 %v1075
    %v2136 = vunpack.c.h.b16 %v1075
    %v2137 = vunpack.c.l.b16 %v1076
    %v2138 = vunpack.c.h.b16 %v1076
    %v2139 = vunpack.c.l.b16 %v1077
    %v2140 = vunpack.c.h.b16 %v1077
    %v2141 = vunpack.c.l.b16 %v1078
    %v2142 = vunpack.c.h.b16 %v1078
    %v2143 = vunpack.c.l.b16 %v1079
    %v2144 = vunpack.c.h.b16 %v1079
    %v2145 = vunpack.c.l.b16 %v1080
    %v2146 = vunpack.c.h.b16 %v1080
    %v2147 = vunpack.c.l.b16 %v1081
    %v2148 = vunpack.c.h.b16 %v1081
    %v2149 = vunpack.c.l.b16 %v1082
    %v2150 = vunpack.c.h.b16 %v1082
    %v2151 = vunpack.c.l.b16 %v1083
    %v2152 = vunpack.c.h.b16 %v1083
    %v2153 = vunpack.c.l.b16 %v1084
    %v2154 = vunpack.c.h.b16 %v1084
    %v2155 = vunpack.c.l.b16 %v1085
    %v2156 = vunpack.c.h.b16 %v1085
    %v2157 = vunpack.c.l.b16 %v1086
    %v2158 = vunpack.c.h.b16 %v1086
    %v2159 = vunpack.c.l.b16 %v1087
    %v2160 = vunpack.c.h.b16 %v1087
    %v2161 = vunpack.c.l.b16 %v1088
    %v2162 = vunpack.c.h.b16 %v1088
    %v2163 = vunpack.c.l.b16 %v1089
    %v2164 = vunpack.c.h.b16 %v1089
    %v2165 = vunpack.c.l.b16 %v1090
    %v2166 = vunpack.c.h.b16 %v1090
    %v2167 = vunpack.c.l.b16 %v1091
    %v2168 = vunpack.c.h.b16 %v1091
    %v2169 = vunpack.c.l.b16 %v1092
    %v2170 = vunpack.c.h.b16 %v1092
    %v2171 = vunpack.c.l.b16 %v1093
    %v2172 = vunpack.c.h.b16 %v1093
    %v2173 = vunpack.c.l.b16 %v1094
    %v2174 = vunpack.c.h.b16 %v1094
    %v2175 = vunpack.c.l.b16 %v1095
    %v2176 = vunpack.c.h.b16 %v1095
    %v2177 = vunpack.c.l.b16 %v1096
    %v2178 = vunpack.c.h.b16 %v1096
    %v2179 = vunpack.c.l.b16 %v1097
    %v2180 = vunpack.c.h.b16 %v1097
    %v2181 = vunpack.c.l.b16 %v1098
    %v2182 = vunpack.c.h.b16 %v1098
    %v2183 = vunpack.c.l.b16 %v1099
    %v2184 = vunpack.c.h.b16 %v1099
    %v2185 = vunpack.c.l.b16 %v1100
    %v2186 = vunpack.c.h.b16 %v1100
    %v2187 = vunpack.c.l.b16 %v1101
    %v2188 = vunpack.c.h.b16 %v1101
    %v2189 = vunpack.c.l.b16 %v1102
    %v2190 = vunpack.c.h.b16 %v1102
    %v2191 = vunpack.c.l.b16 %v1103
    %v2192 = vunpack.c.h.b16 %v1103
    %v2193 = vunpack.c.l.b16 %v1104
    %v2194 = vunpack.c.h.b16 %v1104
    %v2195 = vunpack.c.l.b16 %v1105
    %v2196 = vunpack.c.h.b16 %v1105
    %v2197 = vunpack.c.l.b16 %v1106
    %v2198 = vunpack.c.h.b16 %v1106
    %v2199 = vunpack.c.l.b16 %v1107
    %v2200 = vunpack.c.h.b16 %v1107
    %v2201 = vunpack.c.l.b16 %v1108
    %v2202 = vunpack.c.h.b16 %v1108
    %v2203 = vunpack.c.l.b16 %v1109
    %v2204 = vunpack.c.h.b16 %v1109
    %v2205 = vunpack.c.l.b16 %v1110
    %v2206 = vunpack.c.h.b16 %v1110
    %v2207 = vunpack.c.l.b16 %v1111
    %v2208 = vunpack.c.h.b16 %v1111
    %v2209 = vunpack.c.l.b16 %v1112
    %v2210 = vunpack.c.h.b16 %v1112
    %v2211 = vunpack.c.l.b16 %v1113
    %v2212 = vunpack.c.h.b16 %v1113
    %v2213 = vunpack.c.l.b16 %v1114
    %v2214 = vunpack.c.h.b16 %v1114
    %v2215 = vunpack.c.l.b16 %v1115
    %v2216 = vunpack.c.h.b16 %v1115
    %v2217 = vunpack.c.l.b16 %v1116
    %v2218 = vunpack.c.h.b16 %v1116
    %v2219 = vunpack.c.l.b16 %v1117
    %v2220 = vunpack.c.h.b16 %v1117
    %v2221 = vunpack.c.l.b16 %v1118
    %v2222 = vunpack.c.h.b16 %v1118
    %v2223 = vunpack.c.l.b16 %v1119
    %v2224 = vunpack.c.h.b16 %v1119
    %v2225 = vunpack.c.l.b16 %v1120
    %v2226 = vunpack.c.h.b16 %v1120
    %v2227 = vunpack.c.l.b16 %v1121
    %v2228 = vunpack.c.h.b16 %v1121
    %v2229 = vunpack.c.l.b16 %v1122
    %v2230 = vunpack.c.h.b16 %v1122
    %v2231 = vunpack.c.l.b16 %v1123
    %v2232 = vunpack.c.h.b16 %v1123
    %v2233 = vunpack.c.l.b16 %v1124
    %v2234 = vunpack.c.h.b16 %v1124
    %v2235 = vunpack.c.l.b16 %v1125
    %v2236 = vunpack.c.h.b16 %v1125
    %v2237 = vunpack.c.l.b16 %v1126
    %v2238 = vunpack.c.h.b16 %v1126
    %v2239 = vunpack.c.l.b16 %v1127
    %v2240 = vunpack.c.h.b16 %v1127
    %v2241 = vunpack.c.l.b16 %v1128
    %v2242 = vunpack.c.h.b16 %v1128
    %v2243 = vunpack.c.l.b16 %v1129
    %v2244 = vunpack.c.h.b16 %v1129
    %v2245 = vunpack.c.l.b16 %v1130
    %v2246 = vunpack.c.h.b16 %v1130
    %v2247 = vunpack.c.l.b16 %v1131
    %v2248 = vunpack.c.h.b16 %v1131
    %v2249 = vunpack.c.l.b16 %v1132
    %v2250 = vunpack.c.h.b16 %v1132
    %v2251 = vunpack.c.l.b16 %v1133
    %v2252 = vunpack.c.h.b16 %v1133
    %v2253 = vunpack.c.l.b16 %v1134
    %v2254 = vunpack.c.h.b16 %v1134
    %v2255 = vunpack.c.l.b16 %v1135
    %v2256 = vunpack.c.h.b16 %v1135
    %v2257 = vunpack.c.l.b16 %v1136
    %v2258 = vunpack.c.h.b16 %v1136
    %v2259 = vunpack.c.l.b16 %v1137
    %v2260 = vunpack.c.h.b16 %v1137
    %v2261 = vunpack.c.l.b16 %v1138
    %v2262 = vunpack.c.h.b16 %v1138
    %v2263 = vunpack.c.l.b16 %v1139
    %v2264 = vunpack.c.h.b16 %v1139
    %v2265 = vunpack.c.l.b16 %v1140
    %v2266 = vunpack.c.h.b16 %v1140
    %v2267 = vunpack.c.l.b16 %v1141
    %v2268 = vunpack.c.h.b16 %v1141
    %v2269 = vunpack.c.l.b16 %v1142
    %v2270 = vunpack.c.h.b16 %v1142
    %v2271 = vunpack.c.l.b16 %v1143
    %v2272 = vunpack.c.h.b16 %v1143
    %v2273 = vunpack.c.l.b16 %v1144
    %v2274 = vunpack.c.h.b16 %v1144
    %v2275 = vpack.c.b16 %v2089, %v2083
    %v2276 = vpack.c.b16 %v2090, %v2084
    %v2277 = vpack.c.b16 %v2091, %v2085
    %v2278 = vpack.c.b16 %v2092, %v2086
    %v2279 = vpack.c.b16 %v2093, %v2087
    %v2280 = vpack.c.b16 %v2094, %v2088
    %v2281 = vpack.c.b16 %v2101, %v2095
    %v2282 = vpack.c.b16 %v2102, %v2096
    %v2283 = vpack.c.b16 %v2103, %v2097
    %v2284 = vpack.c.b16 %v2104, %v2098
    %v2285 = vpack.c.b16 %v2105, %v2099
    %v2286 = vpack.c.b16 %v2106, %v2100
    %v2287 = vpack.c.b16 %v2113, %v2107
    %v2288 = vpack.c.b16 %v2114, %v2108
    %v2289 = vpack.c.b16 %v2115, %v2109
    %v2290 = vpack.c.b16 %v2116, %v2110
    %v2291 = vpack.c.b16 %v2117, %v2111
    %v2292 = vpack.c.b16 %v2118, %v2112
    %v2293 = vpack.c.b16 %v2125, %v2119
    %v2294 = vpack.c.b16 %v2126, %v2120
    %v2295 = vpack.c.b16 %v2127, %v2121
    %v2296 = vpack.c.b16 %v2128, %v2122
    %v2297 = vpack.c.b16 %v2129, %v2123
    %v2298 = vpack.c.b16 %v2130, %v2124
    %v2299 = vpack.c.b16 %v2137, %v2131
    %v2300 = vpack.c.b16 %v2138, %v2132
    %v2301 = vpack.c.b16 %v2139, %v2133
    %v2302 = vpack.c.b16 %v2140, %v2134
    %v2303 = vpack.c.b16 %v2141, %v2135
    %v2304 = vpack.c.b16 %v2142, %v2136
    %v2305 = vpack.c.b16 %v2149, %v2143
    %v2306 = vpack.c.b16 %v2150, %v2144
    %v2307 = vpack.c.b16 %v2151, %v2145
    %v2308 = vpack.c.b16 %v2152, %v2146
    %v2309 = vpack.c.b16 %v2153, %v2147
    %v2310 = vpack.c.b16 %v2154, %v2148
    %v2311 = vpack.c.b16 %v2161, %v2155
    %v2312 = vpack.c.b16 %v2162, %v2156
    %v2313 = vpack.c.b16 %v2163, %v2157
    %v2314 = vpack.c.b16 %v2164, %v2158
    %v2315 = vpack.c.b16 %v2165, %v2159
    %v2316 = vpack.c.b16 %v2166, %v2160
    %v2317 = vpack.c.b16 %v2173, %v2167
    %v2318 = vpack.c.b16 %v2174, %v2168
    %v2319 = vpack.c.b16 %v2175, %v2169
    %v2320 = vpack.c.b16 %v2176, %v2170
    %v2321 = vpack.c.b16 %v2177, %v2171
    %v2322 = vpack.c.b16 %v2178, %v2172
    %v2323 = vpack.c.b16 %v2185, %v2179
    %v2324 = vpack.c.b16 %v2186, %v2180
    %v2325 = vpack.c.b16 %v2187, %v2181
    %v2326 = vpack.c.b16 %v2188, %v2182
    %v2327 = vpack.c.b16 %v2189, %v2183
    %v2328 = vpack.c.b16 %v2190, %v2184
    %v2329 = vpack.c.b16 %v2197, %v2191
    %v2330 = vpack.c.b16 %v2198, %v2192
    %v2331 = vpack.c.b16 %v2199, %v2193
    %v2332 = vpack.c.b16 %v2200, %v2194
    %v2333 = vpack.c.b16 %v2201, %v2195
    %v2334 = vpack.c.b16 %v2202, %v2196
    %v2335 = vpack.c.b16 %v2209, %v2203
    %v2336 = vpack.c.b16 %v2210, %v2204
    %v2337 = vpack.c.b16 %v2211, %v2205
    %v2338 = vpack.c.b16 %v2212, %v2206
    %v2339 = vpack.c.b16 %v2213, %v2207
    %v2340 = vpack.c.b16 %v2214, %v2208
    %v2341 = vpack.c.b16 %v2221, %v2215
    %v2342 = vpack.c.b16 %v2222, %v2216
    %v2343 = vpack.c.b16 %v2223, %v2217
    %v2344 = vpack.c.b16 %v2224, %v2218
    %v2345 = vpack.c.b16 %v2225, %v2219
    %v2346 = vpack.c.b16 %v2226, %v2220
    %v2347 = vpack.c.b16 %v2233, %v2227
    %v2348 = vpack.c.b16 %v2234, %v2228
    %v2349 = vpack.c.b16 %v2235, %v2229
    %v2350 = vpack.c.b16 %v2236, %v2230
    %v2351 = vpack.c.b16 %v2237, %v2231
    %v2352 = vpack.c.b16 %v2238, %v2232
    %v2353 = vpack.c.b16 %v2245, %v2239
    %v2354 = vpack.c.b16 %v2246, %v2240
    %v2355 = vpack.c.b16 %v2247, %v2241
    %v2356 = vpack.c.b16 %v2248, %v2242
    %v2357 = vpack.c.b16 %v2249, %v2243
    %v2358 = vpack.c.b16 %v2250, %v2244
    %v2359 = vpack.c.b16 %v2257, %v2251
    %v2360 = vpack.c.b16 %v2258, %v2252
    %v2361 = vpack.c.b16 %v2259, %v2253
    %v2362 = vpack.c.b16 %v2260, %v2254
    %v2363 = vpack.c.b16 %v2261, %v2255
    %v2364 = vpack.c.b16 %v2262, %v2256
    %v2365 = vpack.c.b16 %v2269, %v2263
    %v2366 = vpack.c.b16 %v2270, %v2264
    %v2367 = vpack.c.b16 %v2271, %v2265
    %v2368 = vpack.c.b16 %v2272, %v2266
    %v2369 = vpack.c.b16 %v2273, %v2267
    %v2370 = vpack.c.b16 %v2274, %v2268
    %v2468 = vperm.slane %v116, 0
    %v2469 = vperm.slane %v116, 1
    %v2470 = vperm.slane %v116, 2
    %v2471 = vperm.slane %v116, 3
    %v2472 = vperm.slane %v116, 4
    %v2473 = vperm.slane %v116, 5
    %2480 = vmatpush.bf16.msra.mxu0 %v2317
    %2481 = vmatpush.bf16.msra.mxu0 %v2311
    %2482 = vmatpush.bf16.msra.mxu0 %v2305
    %2483 = vmatpush.bf16.msra.mxu0 %v2299
    %2484 = vmatpush.bf16.msra.mxu0 %v2293
    %2485 = vmatpush.bf16.msra.mxu0 %v2287
    %2486 = vmatpush.bf16.msra.mxu0 %v2281
    %2487 = vmatpush.bf16.msra.mxu0 %v2275
    %2488 = vmatmul.bf16.gmra.mxu0 %v1985
    %v2489 = vpop.f32.mrf.mxu0
    %v2490 = vadd.f32 %v2468, %v2489
    %v2491 = vpop.f32.mrf.mxu0
    %2492 = vdwg.mxu0
    %2493 = vmatpush.bf16.msra.mxu0 %v2365
    %2494 = vmatpush.bf16.msra.mxu0 %v2359
    %2495 = vmatpush.bf16.msra.mxu0 %v2353
    %2496 = vmatpush.bf16.msra.mxu0 %v2347
    %2497 = vmatpush.bf16.msra.mxu0 %v2341
    %2498 = vmatpush.bf16.msra.mxu0 %v2335
    %2499 = vmatpush.bf16.msra.mxu0 %v2329
    %2500 = vmatpush.bf16.msra.mxu0 %v2323
    %2501 = vmatmul.bf16.gmra.mxu0 %v1986
    %v2502 = vpop.f32.mrf.mxu0
    %v2503 = vadd.f32 %v2490, %v2502
    %v2504 = vpop.f32.mrf.mxu0
    %2505 = vdwg.mxu0
    %2506 = vmatpush.bf16.msra.mxu0 %v2318
    %2507 = vmatpush.bf16.msra.mxu0 %v2312
    %2508 = vmatpush.bf16.msra.mxu0 %v2306
    %2509 = vmatpush.bf16.msra.mxu0 %v2300
    %2510 = vmatpush.bf16.msra.mxu0 %v2294
    %2511 = vmatpush.bf16.msra.mxu0 %v2288
    %2512 = vmatpush.bf16.msra.mxu0 %v2282
    %2513 = vmatpush.bf16.msra.mxu0 %v2276
    %2514 = vmatmul.bf16.gmra.mxu0 %v1985
    %v2515 = vpop.f32.mrf.mxu0
    %v2516 = vadd.f32 %v2469, %v2515
    %v2517 = vpop.f32.mrf.mxu0
    %2518 = vdwg.mxu0
    %2519 = vmatpush.bf16.msra.mxu0 %v2366
    %2520 = vmatpush.bf16.msra.mxu0 %v2360
    %2521 = vmatpush.bf16.msra.mxu0 %v2354
    %2522 = vmatpush.bf16.msra.mxu0 %v2348
    %2523 = vmatpush.bf16.msra.mxu0 %v2342
    %2524 = vmatpush.bf16.msra.mxu0 %v2336
    %2525 = vmatpush.bf16.msra.mxu0 %v2330
    %2526 = vmatpush.bf16.msra.mxu0 %v2324
    %2527 = vmatmul.bf16.gmra.mxu0 %v1986
    %v2528 = vpop.f32.mrf.mxu0
    %v2529 = vadd.f32 %v2516, %v2528
    %v2530 = vpop.f32.mrf.mxu0
    %2531 = vdwg.mxu0
    %2532 = vmatpush.bf16.msra.mxu0 %v2319
    %2533 = vmatpush.bf16.msra.mxu0 %v2313
    %2534 = vmatpush.bf16.msra.mxu0 %v2307
    %2535 = vmatpush.bf16.msra.mxu0 %v2301
    %2536 = vmatpush.bf16.msra.mxu0 %v2295
    %2537 = vmatpush.bf16.msra.mxu0 %v2289
    %2538 = vmatpush.bf16.msra.mxu0 %v2283
    %2539 = vmatpush.bf16.msra.mxu0 %v2277
    %2540 = vmatmul.bf16.gmra.mxu0 %v1985
    %v2541 = vpop.f32.mrf.mxu0
    %v2542 = vadd.f32 %v2470, %v2541
    %v2543 = vpop.f32.mrf.mxu0
    %2544 = vdwg.mxu0
    %2545 = vmatpush.bf16.msra.mxu0 %v2367
    %2546 = vmatpush.bf16.msra.mxu0 %v2361
    %2547 = vmatpush.bf16.msra.mxu0 %v2355
    %2548 = vmatpush.bf16.msra.mxu0 %v2349
    %2549 = vmatpush.bf16.msra.mxu0 %v2343
    %2550 = vmatpush.bf16.msra.mxu0 %v2337
    %2551 = vmatpush.bf16.msra.mxu0 %v2331
    %2552 = vmatpush.bf16.msra.mxu0 %v2325
    %2553 = vmatmul.bf16.gmra.mxu0 %v1986
    %v2554 = vpop.f32.mrf.mxu0
    %v2555 = vadd.f32 %v2542, %v2554
    %v2556 = vpop.f32.mrf.mxu0
    %2557 = vdwg.mxu0
    %2558 = vmatpush.bf16.msra.mxu0 %v2320
    %2559 = vmatpush.bf16.msra.mxu0 %v2314
    %2560 = vmatpush.bf16.msra.mxu0 %v2308
    %2561 = vmatpush.bf16.msra.mxu0 %v2302
    %2562 = vmatpush.bf16.msra.mxu0 %v2296
    %2563 = vmatpush.bf16.msra.mxu0 %v2290
    %2564 = vmatpush.bf16.msra.mxu0 %v2284
    %2565 = vmatpush.bf16.msra.mxu0 %v2278
    %2566 = vmatmul.bf16.gmra.mxu0 %v1985
    %v2567 = vpop.f32.mrf.mxu0
    %v2568 = vadd.f32 %v2471, %v2567
    %v2569 = vpop.f32.mrf.mxu0
    %2570 = vdwg.mxu0
    %2571 = vmatpush.bf16.msra.mxu0 %v2368
    %2572 = vmatpush.bf16.msra.mxu0 %v2362
    %2573 = vmatpush.bf16.msra.mxu0 %v2356
    %2574 = vmatpush.bf16.msra.mxu0 %v2350
    %2575 = vmatpush.bf16.msra.mxu0 %v2344
    %2576 = vmatpush.bf16.msra.mxu0 %v2338
    %2577 = vmatpush.bf16.msra.mxu0 %v2332
    %2578 = vmatpush.bf16.msra.mxu0 %v2326
    %2579 = vmatmul.bf16.gmra.mxu0 %v1986
    %v2580 = vpop.f32.mrf.mxu0
    %v2581 = vadd.f32 %v2568, %v2580
    %v2582 = vpop.f32.mrf.mxu0
    %2583 = vdwg.mxu0
    %2584 = vmatpush.bf16.msra.mxu0 %v2321
    %2585 = vmatpush.bf16.msra.mxu0 %v2315
    %2586 = vmatpush.bf16.msra.mxu0 %v2309
    %2587 = vmatpush.bf16.msra.mxu0 %v2303
    %2588 = vmatpush.bf16.msra.mxu0 %v2297
    %2589 = vmatpush.bf16.msra.mxu0 %v2291
    %2590 = vmatpush.bf16.msra.mxu0 %v2285
    %2591 = vmatpush.bf16.msra.mxu0 %v2279
    %2592 = vmatmul.bf16.gmra.mxu0 %v1985
    %v2593 = vpop.f32.mrf.mxu0
    %v2594 = vadd.f32 %v2472, %v2593
    %v2595 = vpop.f32.mrf.mxu0
    %2596 = vdwg.mxu0
    %2597 = vmatpush.bf16.msra.mxu0 %v2369
    %2598 = vmatpush.bf16.msra.mxu0 %v2363
    %2599 = vmatpush.bf16.msra.mxu0 %v2357
    %2600 = vmatpush.bf16.msra.mxu0 %v2351
    %2601 = vmatpush.bf16.msra.mxu0 %v2345
    %2602 = vmatpush.bf16.msra.mxu0 %v2339
    %2603 = vmatpush.bf16.msra.mxu0 %v2333
    %2604 = vmatpush.bf16.msra.mxu0 %v2327
    %2605 = vmatmul.bf16.gmra.mxu0 %v1986
    %v2606 = vpop.f32.mrf.mxu0
    %v2607 = vadd.f32 %v2594, %v2606
    %v2608 = vpop.f32.mrf.mxu0
    %2609 = vdwg.mxu0
    %2610 = vmatpush.bf16.msra.mxu0 %v2322
    %2611 = vmatpush.bf16.msra.mxu0 %v2316
    %2612 = vmatpush.bf16.msra.mxu0 %v2310
    %2613 = vmatpush.bf16.msra.mxu0 %v2304
    %2614 = vmatpush.bf16.msra.mxu0 %v2298
    %2615 = vmatpush.bf16.msra.mxu0 %v2292
    %2616 = vmatpush.bf16.msra.mxu0 %v2286
    %2617 = vmatpush.bf16.msra.mxu0 %v2280
    %2618 = vmatmul.bf16.gmra.mxu0 %v1985
    %v2619 = vpop.f32.mrf.mxu0
    %v2620 = vadd.f32 %v2473, %v2619
    %v2621 = vpop.f32.mrf.mxu0
    %2622 = vdwg.mxu0
    %2623 = vmatpush.bf16.msra.mxu0 %v2370
    %2624 = vmatpush.bf16.msra.mxu0 %v2364
    %2625 = vmatpush.bf16.msra.mxu0 %v2358
    %2626 = vmatpush.bf16.msra.mxu0 %v2352
    %2627 = vmatpush.bf16.msra.mxu0 %v2346
    %2628 = vmatpush.bf16.msra.mxu0 %v2340
    %2629 = vmatpush.bf16.msra.mxu0 %v2334
    %2630 = vmatpush.bf16.msra.mxu0 %v2328
    %2631 = vmatmul.bf16.gmra.mxu0 %v1986
    %v2632 = vpop.f32.mrf.mxu0
    %v2633 = vadd.f32 %v2620, %v2632
    %v2634 = vpop.f32.mrf.mxu0
    %2635 = vdwg.mxu0
    %v2732 = vunpack.c.l.b16 %v1146
    %v2733 = vunpack.c.h.b16 %v1146
    %v2734 = vunpack.c.l.b16 %v1147
    %v2735 = vunpack.c.h.b16 %v1147
    %v2736 = vunpack.c.l.b16 %v1148
    %v2737 = vunpack.c.h.b16 %v1148
    %v2738 = vunpack.c.l.b16 %v1149
    %v2739 = vunpack.c.h.b16 %v1149
    %v2740 = vunpack.c.l.b16 %v1150
    %v2741 = vunpack.c.h.b16 %v1150
    %v2742 = vunpack.c.l.b16 %v1151
    %v2743 = vunpack.c.h.b16 %v1151
    %v2744 = vunpack.c.l.b16 %v1152
    %v2745 = vunpack.c.h.b16 %v1152
    %v2746 = vunpack.c.l.b16 %v1153
    %v2747 = vunpack.c.h.b16 %v1153
    %v2748 = vunpack.c.l.b16 %v1154
    %v2749 = vunpack.c.h.b16 %v1154
    %v2750 = vunpack.c.l.b16 %v1155
    %v2751 = vunpack.c.h.b16 %v1155
    %v2752 = vunpack.c.l.b16 %v1156
    %v2753 = vunpack.c.h.b16 %v1156
    %v2754 = vunpack.c.l.b16 %v1157
    %v2755 = vunpack.c.h.b16 %v1157
    %v2756 = vunpack.c.l.b16 %v1158
    %v2757 = vunpack.c.h.b16 %v1158
    %v2758 = vunpack.c.l.b16 %v1159
    %v2759 = vunpack.c.h.b16 %v1159
    %v2760 = vunpack.c.l.b16 %v1160
    %v2761 = vunpack.c.h.b16 %v1160
    %v2762 = vunpack.c.l.b16 %v1161
    %v2763 = vunpack.c.h.b16 %v1161
    %v2764 = vunpack.c.l.b16 %v1162
    %v2765 = vunpack.c.h.b16 %v1162
    %v2766 = vunpack.c.l.b16 %v1163
    %v2767 = vunpack.c.h.b16 %v1163
    %v2768 = vunpack.c.l.b16 %v1164
    %v2769 = vunpack.c.h.b16 %v1164
    %v2770 = vunpack.c.l.b16 %v1165
    %v2771 = vunpack.c.h.b16 %v1165
    %v2772 = vunpack.c.l.b16 %v1166
    %v2773 = vunpack.c.h.b16 %v1166
    %v2774 = vunpack.c.l.b16 %v1167
    %v2775 = vunpack.c.h.b16 %v1167
    %v2776 = vunpack.c.l.b16 %v1168
    %v2777 = vunpack.c.h.b16 %v1168
    %v2778 = vunpack.c.l.b16 %v1169
    %v2779 = vunpack.c.h.b16 %v1169
    %v2780 = vunpack.c.l.b16 %v1170
    %v2781 = vunpack.c.h.b16 %v1170
    %v2782 = vunpack.c.l.b16 %v1171
    %v2783 = vunpack.c.h.b16 %v1171
    %v2784 = vunpack.c.l.b16 %v1172
    %v2785 = vunpack.c.h.b16 %v1172
    %v2786 = vunpack.c.l.b16 %v1173
    %v2787 = vunpack.c.h.b16 %v1173
    %v2788 = vunpack.c.l.b16 %v1174
    %v2789 = vunpack.c.h.b16 %v1174
    %v2790 = vunpack.c.l.b16 %v1175
    %v2791 = vunpack.c.h.b16 %v1175
    %v2792 = vunpack.c.l.b16 %v1176
    %v2793 = vunpack.c.h.b16 %v1176
    %v2794 = vunpack.c.l.b16 %v1177
    %v2795 = vunpack.c.h.b16 %v1177
    %v2796 = vunpack.c.l.b16 %v1178
    %v2797 = vunpack.c.h.b16 %v1178
    %v2798 = vunpack.c.l.b16 %v1179
    %v2799 = vunpack.c.h.b16 %v1179
    %v2800 = vunpack.c.l.b16 %v1180
    %v2801 = vunpack.c.h.b16 %v1180
    %v2802 = vunpack.c.l.b16 %v1181
    %v2803 = vunpack.c.h.b16 %v1181
    %v2804 = vunpack.c.l.b16 %v1182
    %v2805 = vunpack.c.h.b16 %v1182
    %v2806 = vunpack.c.l.b16 %v1183
    %v2807 = vunpack.c.h.b16 %v1183
    %v2808 = vunpack.c.l.b16 %v1184
    %v2809 = vunpack.c.h.b16 %v1184
    %v2810 = vunpack.c.l.b16 %v1185
    %v2811 = vunpack.c.h.b16 %v1185
    %v2812 = vunpack.c.l.b16 %v1186
    %v2813 = vunpack.c.h.b16 %v1186
    %v2814 = vunpack.c.l.b16 %v1187
    %v2815 = vunpack.c.h.b16 %v1187
    %v2816 = vunpack.c.l.b16 %v1188
    %v2817 = vunpack.c.h.b16 %v1188
    %v2818 = vunpack.c.l.b16 %v1189
    %v2819 = vunpack.c.h.b16 %v1189
    %v2820 = vunpack.c.l.b16 %v1190
    %v2821 = vunpack.c.h.b16 %v1190
    %v2822 = vunpack.c.l.b16 %v1191
    %v2823 = vunpack.c.h.b16 %v1191
    %v2824 = vunpack.c.l.b16 %v1192
    %v2825 = vunpack.c.h.b16 %v1192
    %v2826 = vunpack.c.l.b16 %v1193
    %v2827 = vunpack.c.h.b16 %v1193
    %v2828 = vunpack.c.l.b16 %v1194
    %v2829 = vunpack.c.h.b16 %v1194
    %v2830 = vunpack.c.l.b16 %v1195
    %v2831 = vunpack.c.h.b16 %v1195
    %v2832 = vunpack.c.l.b16 %v1196
    %v2833 = vunpack.c.h.b16 %v1196
    %v2834 = vunpack.c.l.b16 %v1197
    %v2835 = vunpack.c.h.b16 %v1197
    %v2836 = vunpack.c.l.b16 %v1198
    %v2837 = vunpack.c.h.b16 %v1198
    %v2838 = vunpack.c.l.b16 %v1199
    %v2839 = vunpack.c.h.b16 %v1199
    %v2840 = vunpack.c.l.b16 %v1200
    %v2841 = vunpack.c.h.b16 %v1200
    %v2842 = vunpack.c.l.b16 %v1201
    %v2843 = vunpack.c.h.b16 %v1201
    %v2844 = vunpack.c.l.b16 %v1202
    %v2845 = vunpack.c.h.b16 %v1202
    %v2846 = vunpack.c.l.b16 %v1203
    %v2847 = vunpack.c.h.b16 %v1203
    %v2848 = vunpack.c.l.b16 %v1204
    %v2849 = vunpack.c.h.b16 %v1204
    %v2850 = vunpack.c.l.b16 %v1205
    %v2851 = vunpack.c.h.b16 %v1205
    %v2852 = vunpack.c.l.b16 %v1206
    %v2853 = vunpack.c.h.b16 %v1206
    %v2854 = vunpack.c.l.b16 %v1207
    %v2855 = vunpack.c.h.b16 %v1207
    %v2856 = vunpack.c.l.b16 %v1208
    %v2857 = vunpack.c.h.b16 %v1208
    %v2858 = vunpack.c.l.b16 %v1209
    %v2859 = vunpack.c.h.b16 %v1209
    %v2860 = vunpack.c.l.b16 %v1210
    %v2861 = vunpack.c.h.b16 %v1210
    %v2862 = vunpack.c.l.b16 %v1211
    %v2863 = vunpack.c.h.b16 %v1211
    %v2864 = vunpack.c.l.b16 %v1212
    %v2865 = vunpack.c.h.b16 %v1212
    %v2866 = vunpack.c.l.b16 %v1213
    %v2867 = vunpack.c.h.b16 %v1213
    %v2868 = vunpack.c.l.b16 %v1214
    %v2869 = vunpack.c.h.b16 %v1214
    %v2870 = vunpack.c.l.b16 %v1215
    %v2871 = vunpack.c.h.b16 %v1215
    %v2872 = vunpack.c.l.b16 %v1216
    %v2873 = vunpack.c.h.b16 %v1216
    %v2874 = vunpack.c.l.b16 %v1217
    %v2875 = vunpack.c.h.b16 %v1217
    %v2876 = vunpack.c.l.b16 %v1218
    %v2877 = vunpack.c.h.b16 %v1218
    %v2878 = vunpack.c.l.b16 %v1219
    %v2879 = vunpack.c.h.b16 %v1219
    %v2880 = vunpack.c.l.b16 %v1220
    %v2881 = vunpack.c.h.b16 %v1220
    %v2882 = vunpack.c.l.b16 %v1221
    %v2883 = vunpack.c.h.b16 %v1221
    %v2884 = vunpack.c.l.b16 %v1222
    %v2885 = vunpack.c.h.b16 %v1222
    %v2886 = vunpack.c.l.b16 %v1223
    %v2887 = vunpack.c.h.b16 %v1223
    %v2888 = vunpack.c.l.b16 %v1224
    %v2889 = vunpack.c.h.b16 %v1224
    %v2890 = vunpack.c.l.b16 %v1225
    %v2891 = vunpack.c.h.b16 %v1225
    %v2892 = vunpack.c.l.b16 %v1226
    %v2893 = vunpack.c.h.b16 %v1226
    %v2894 = vunpack.c.l.b16 %v1227
    %v2895 = vunpack.c.h.b16 %v1227
    %v2896 = vunpack.c.l.b16 %v1228
    %v2897 = vunpack.c.h.b16 %v1228
    %v2898 = vunpack.c.l.b16 %v1229
    %v2899 = vunpack.c.h.b16 %v1229
    %v2900 = vunpack.c.l.b16 %v1230
    %v2901 = vunpack.c.h.b16 %v1230
    %v2902 = vunpack.c.l.b16 %v1231
    %v2903 = vunpack.c.h.b16 %v1231
    %v2904 = vunpack.c.l.b16 %v1232
    %v2905 = vunpack.c.h.b16 %v1232
    %v2906 = vunpack.c.l.b16 %v1233
    %v2907 = vunpack.c.h.b16 %v1233
    %v2908 = vunpack.c.l.b16 %v1234
    %v2909 = vunpack.c.h.b16 %v1234
    %v2910 = vunpack.c.l.b16 %v1235
    %v2911 = vunpack.c.h.b16 %v1235
    %v2912 = vunpack.c.l.b16 %v1236
    %v2913 = vunpack.c.h.b16 %v1236
    %v2914 = vunpack.c.l.b16 %v1237
    %v2915 = vunpack.c.h.b16 %v1237
    %v2916 = vunpack.c.l.b16 %v1238
    %v2917 = vunpack.c.h.b16 %v1238
    %v2918 = vunpack.c.l.b16 %v1239
    %v2919 = vunpack.c.h.b16 %v1239
    %v2920 = vunpack.c.l.b16 %v1240
    %v2921 = vunpack.c.h.b16 %v1240
    %v2922 = vunpack.c.l.b16 %v1241
    %v2923 = vunpack.c.h.b16 %v1241
    %v2924 = vpack.c.b16 %v2738, %v2732
    %v2925 = vpack.c.b16 %v2739, %v2733
    %v2926 = vpack.c.b16 %v2740, %v2734
    %v2927 = vpack.c.b16 %v2741, %v2735
    %v2928 = vpack.c.b16 %v2742, %v2736
    %v2929 = vpack.c.b16 %v2743, %v2737
    %v2930 = vpack.c.b16 %v2750, %v2744
    %v2931 = vpack.c.b16 %v2751, %v2745
    %v2932 = vpack.c.b16 %v2752, %v2746
    %v2933 = vpack.c.b16 %v2753, %v2747
    %v2934 = vpack.c.b16 %v2754, %v2748
    %v2935 = vpack.c.b16 %v2755, %v2749
    %v2936 = vpack.c.b16 %v2762, %v2756
    %v2937 = vpack.c.b16 %v2763, %v2757
    %v2938 = vpack.c.b16 %v2764, %v2758
    %v2939 = vpack.c.b16 %v2765, %v2759
    %v2940 = vpack.c.b16 %v2766, %v2760
    %v2941 = vpack.c.b16 %v2767, %v2761
    %v2942 = vpack.c.b16 %v2774, %v2768
    %v2943 = vpack.c.b16 %v2775, %v2769
    %v2944 = vpack.c.b16 %v2776, %v2770
    %v2945 = vpack.c.b16 %v2777, %v2771
    %v2946 = vpack.c.b16 %v2778, %v2772
    %v2947 = vpack.c.b16 %v2779, %v2773
    %v2948 = vpack.c.b16 %v2786, %v2780
    %v2949 = vpack.c.b16 %v2787, %v2781
    %v2950 = vpack.c.b16 %v2788, %v2782
    %v2951 = vpack.c.b16 %v2789, %v2783
    %v2952 = vpack.c.b16 %v2790, %v2784
    %v2953 = vpack.c.b16 %v2791, %v2785
    %v2954 = vpack.c.b16 %v2798, %v2792
    %v2955 = vpack.c.b16 %v2799, %v2793
    %v2956 = vpack.c.b16 %v2800, %v2794
    %v2957 = vpack.c.b16 %v2801, %v2795
    %v2958 = vpack.c.b16 %v2802, %v2796
    %v2959 = vpack.c.b16 %v2803, %v2797
    %v2960 = vpack.c.b16 %v2810, %v2804
    %v2961 = vpack.c.b16 %v2811, %v2805
    %v2962 = vpack.c.b16 %v2812, %v2806
    %v2963 = vpack.c.b16 %v2813, %v2807
    %v2964 = vpack.c.b16 %v2814, %v2808
    %v2965 = vpack.c.b16 %v2815, %v2809
    %v2966 = vpack.c.b16 %v2822, %v2816
    %v2967 = vpack.c.b16 %v2823, %v2817
    %v2968 = vpack.c.b16 %v2824, %v2818
    %v2969 = vpack.c.b16 %v2825, %v2819
    %v2970 = vpack.c.b16 %v2826, %v2820
    %v2971 = vpack.c.b16 %v2827, %v2821
    %v2972 = vpack.c.b16 %v2834, %v2828
    %v2973 = vpack.c.b16 %v2835, %v2829
    %v2974 = vpack.c.b16 %v2836, %v2830
    %v2975 = vpack.c.b16 %v2837, %v2831
    %v2976 = vpack.c.b16 %v2838, %v2832
    %v2977 = vpack.c.b16 %v2839, %v2833
    %v2978 = vpack.c.b16 %v2846, %v2840
    %v2979 = vpack.c.b16 %v2847, %v2841
    %v2980 = vpack.c.b16 %v2848, %v2842
    %v2981 = vpack.c.b16 %v2849, %v2843
    %v2982 = vpack.c.b16 %v2850, %v2844
    %v2983 = vpack.c.b16 %v2851, %v2845
    %v2984 = vpack.c.b16 %v2858, %v2852
    %v2985 = vpack.c.b16 %v2859, %v2853
    %v2986 = vpack.c.b16 %v2860, %v2854
    %v2987 = vpack.c.b16 %v2861, %v2855
    %v2988 = vpack.c.b16 %v2862, %v2856
    %v2989 = vpack.c.b16 %v2863, %v2857
    %v2990 = vpack.c.b16 %v2870, %v2864
    %v2991 = vpack.c.b16 %v2871, %v2865
    %v2992 = vpack.c.b16 %v2872, %v2866
    %v2993 = vpack.c.b16 %v2873, %v2867
    %v2994 = vpack.c.b16 %v2874, %v2868
    %v2995 = vpack.c.b16 %v2875, %v2869
    %v2996 = vpack.c.b16 %v2882, %v2876
    %v2997 = vpack.c.b16 %v2883, %v2877
    %v2998 = vpack.c.b16 %v2884, %v2878
    %v2999 = vpack.c.b16 %v2885, %v2879
    %v3000 = vpack.c.b16 %v2886, %v2880
    %v3001 = vpack.c.b16 %v2887, %v2881
    %v3002 = vpack.c.b16 %v2894, %v2888
    %v3003 = vpack.c.b16 %v2895, %v2889
    %v3004 = vpack.c.b16 %v2896, %v2890
    %v3005 = vpack.c.b16 %v2897, %v2891
    %v3006 = vpack.c.b16 %v2898, %v2892
    %v3007 = vpack.c.b16 %v2899, %v2893
    %v3008 = vpack.c.b16 %v2906, %v2900
    %v3009 = vpack.c.b16 %v2907, %v2901
    %v3010 = vpack.c.b16 %v2908, %v2902
    %v3011 = vpack.c.b16 %v2909, %v2903
    %v3012 = vpack.c.b16 %v2910, %v2904
    %v3013 = vpack.c.b16 %v2911, %v2905
    %v3014 = vpack.c.b16 %v2918, %v2912
    %v3015 = vpack.c.b16 %v2919, %v2913
    %v3016 = vpack.c.b16 %v2920, %v2914
    %v3017 = vpack.c.b16 %v2921, %v2915
    %v3018 = vpack.c.b16 %v2922, %v2916
    %v3019 = vpack.c.b16 %v2923, %v2917
    %v3117 = vperm.slane %v120, 0
    %v3118 = vperm.slane %v120, 1
    %v3119 = vperm.slane %v120, 2
    %v3120 = vperm.slane %v120, 3
    %v3121 = vperm.slane %v120, 4
    %v3122 = vperm.slane %v120, 5
    %3129 = vmatpush.bf16.msra.mxu0 %v2966
    %3130 = vmatpush.bf16.msra.mxu0 %v2960
    %3131 = vmatpush.bf16.msra.mxu0 %v2954
    %3132 = vmatpush.bf16.msra.mxu0 %v2948
    %3133 = vmatpush.bf16.msra.mxu0 %v2942
    %3134 = vmatpush.bf16.msra.mxu0 %v2936
    %3135 = vmatpush.bf16.msra.mxu0 %v2930
    %3136 = vmatpush.bf16.msra.mxu0 %v2924
    %3137 = vmatmul.bf16.gmra.mxu0 0
    %v3138 = vpop.f32.mrf.mxu0
    %v3139 = vadd.f32 %v3117, %v3138
    %v3140 = vpop.f32.mrf.mxu0
    %3141 = vdwg.mxu0
    %3142 = vmatpush.bf16.msra.mxu0 %v3014
    %3143 = vmatpush.bf16.msra.mxu0 %v3008
    %3144 = vmatpush.bf16.msra.mxu0 %v3002
    %3145 = vmatpush.bf16.msra.mxu0 %v2996
    %3146 = vmatpush.bf16.msra.mxu0 %v2990
    %3147 = vmatpush.bf16.msra.mxu0 %v2984
    %3148 = vmatpush.bf16.msra.mxu0 %v2978
    %3149 = vmatpush.bf16.msra.mxu0 %v2972
    %3150 = vmatmul.bf16.gmra.mxu0 0
    %v3151 = vpop.f32.mrf.mxu0
    %v3152 = vadd.f32 %v3139, %v3151
    %v3153 = vpop.f32.mrf.mxu0
    %3154 = vdwg.mxu0
    %3155 = vmatpush.bf16.msra.mxu0 %v2967
    %3156 = vmatpush.bf16.msra.mxu0 %v2961
    %3157 = vmatpush.bf16.msra.mxu0 %v2955
    %3158 = vmatpush.bf16.msra.mxu0 %v2949
    %3159 = vmatpush.bf16.msra.mxu0 %v2943
    %3160 = vmatpush.bf16.msra.mxu0 %v2937
    %3161 = vmatpush.bf16.msra.mxu0 %v2931
    %3162 = vmatpush.bf16.msra.mxu0 %v2925
    %3163 = vmatmul.bf16.gmra.mxu0 0
    %v3164 = vpop.f32.mrf.mxu0
    %v3165 = vadd.f32 %v3118, %v3164
    %v3166 = vpop.f32.mrf.mxu0
    %3167 = vdwg.mxu0
    %3168 = vmatpush.bf16.msra.mxu0 %v3015
    %3169 = vmatpush.bf16.msra.mxu0 %v3009
    %3170 = vmatpush.bf16.msra.mxu0 %v3003
    %3171 = vmatpush.bf16.msra.mxu0 %v2997
    %3172 = vmatpush.bf16.msra.mxu0 %v2991
    %3173 = vmatpush.bf16.msra.mxu0 %v2985
    %3174 = vmatpush.bf16.msra.mxu0 %v2979
    %3175 = vmatpush.bf16.msra.mxu0 %v2973
    %3176 = vmatmul.bf16.gmra.mxu0 0
    %v3177 = vpop.f32.mrf.mxu0
    %v3178 = vadd.f32 %v3165, %v3177
    %v3179 = vpop.f32.mrf.mxu0
    %3180 = vdwg.mxu0
    %3181 = vmatpush.bf16.msra.mxu0 %v2968
    %3182 = vmatpush.bf16.msra.mxu0 %v2962
    %3183 = vmatpush.bf16.msra.mxu0 %v2956
    %3184 = vmatpush.bf16.msra.mxu0 %v2950
    %3185 = vmatpush.bf16.msra.mxu0 %v2944
    %3186 = vmatpush.bf16.msra.mxu0 %v2938
    %3187 = vmatpush.bf16.msra.mxu0 %v2932
    %3188 = vmatpush.bf16.msra.mxu0 %v2926
    %3189 = vmatmul.bf16.gmra.mxu0 0
    %v3190 = vpop.f32.mrf.mxu0
    %v3191 = vadd.f32 %v3119, %v3190
    %v3192 = vpop.f32.mrf.mxu0
    %3193 = vdwg.mxu0
    %3194 = vmatpush.bf16.msra.mxu0 %v3016
    %3195 = vmatpush.bf16.msra.mxu0 %v3010
    %3196 = vmatpush.bf16.msra.mxu0 %v3004
    %3197 = vmatpush.bf16.msra.mxu0 %v2998
    %3198 = vmatpush.bf16.msra.mxu0 %v2992
    %3199 = vmatpush.bf16.msra.mxu0 %v2986
    %3200 = vmatpush.bf16.msra.mxu0 %v2980
    %3201 = vmatpush.bf16.msra.mxu0 %v2974
    %3202 = vmatmul.bf16.gmra.mxu0 0
    %v3203 = vpop.f32.mrf.mxu0
    %v3204 = vadd.f32 %v3191, %v3203
    %v3205 = vpop.f32.mrf.mxu0
    %3206 = vdwg.mxu0
    %3207 = vmatpush.bf16.msra.mxu0 %v2969
    %3208 = vmatpush.bf16.msra.mxu0 %v2963
    %3209 = vmatpush.bf16.msra.mxu0 %v2957
    %3210 = vmatpush.bf16.msra.mxu0 %v2951
    %3211 = vmatpush.bf16.msra.mxu0 %v2945
    %3212 = vmatpush.bf16.msra.mxu0 %v2939
    %3213 = vmatpush.bf16.msra.mxu0 %v2933
    %3214 = vmatpush.bf16.msra.mxu0 %v2927
    %3215 = vmatmul.bf16.gmra.mxu0 0
    %v3216 = vpop.f32.mrf.mxu0
    %v3217 = vadd.f32 %v3120, %v3216
    %v3218 = vpop.f32.mrf.mxu0
    %3219 = vdwg.mxu0
    %3220 = vmatpush.bf16.msra.mxu0 %v3017
    %3221 = vmatpush.bf16.msra.mxu0 %v3011
    %3222 = vmatpush.bf16.msra.mxu0 %v3005
    %3223 = vmatpush.bf16.msra.mxu0 %v2999
    %3224 = vmatpush.bf16.msra.mxu0 %v2993
    %3225 = vmatpush.bf16.msra.mxu0 %v2987
    %3226 = vmatpush.bf16.msra.mxu0 %v2981
    %3227 = vmatpush.bf16.msra.mxu0 %v2975
    %3228 = vmatmul.bf16.gmra.mxu0 0
    %v3229 = vpop.f32.mrf.mxu0
    %v3230 = vadd.f32 %v3217, %v3229
    %v3231 = vpop.f32.mrf.mxu0
    %3232 = vdwg.mxu0
    %3233 = vmatpush.bf16.msra.mxu0 %v2970
    %3234 = vmatpush.bf16.msra.mxu0 %v2964
    %3235 = vmatpush.bf16.msra.mxu0 %v2958
    %3236 = vmatpush.bf16.msra.mxu0 %v2952
    %3237 = vmatpush.bf16.msra.mxu0 %v2946
    %3238 = vmatpush.bf16.msra.mxu0 %v2940
    %3239 = vmatpush.bf16.msra.mxu0 %v2934
    %3240 = vmatpush.bf16.msra.mxu0 %v2928
    %3241 = vmatmul.bf16.gmra.mxu0 0
    %v3242 = vpop.f32.mrf.mxu0
    %v3243 = vadd.f32 %v3121, %v3242
    %v3244 = vpop.f32.mrf.mxu0
    %3245 = vdwg.mxu0
    %3246 = vmatpush.bf16.msra.mxu0 %v3018
    %3247 = vmatpush.bf16.msra.mxu0 %v3012
    %3248 = vmatpush.bf16.msra.mxu0 %v3006
    %3249 = vmatpush.bf16.msra.mxu0 %v3000
    %3250 = vmatpush.bf16.msra.mxu0 %v2994
    %3251 = vmatpush.bf16.msra.mxu0 %v2988
    %3252 = vmatpush.bf16.msra.mxu0 %v2982
    %3253 = vmatpush.bf16.msra.mxu0 %v2976
    %3254 = vmatmul.bf16.gmra.mxu0 0
    %v3255 = vpop.f32.mrf.mxu0
    %v3256 = vadd.f32 %v3243, %v3255
    %v3257 = vpop.f32.mrf.mxu0
    %3258 = vdwg.mxu0
    %3259 = vmatpush.bf16.msra.mxu0 %v2971
    %3260 = vmatpush.bf16.msra.mxu0 %v2965
    %3261 = vmatpush.bf16.msra.mxu0 %v2959
    %3262 = vmatpush.bf16.msra.mxu0 %v2953
    %3263 = vmatpush.bf16.msra.mxu0 %v2947
    %3264 = vmatpush.bf16.msra.mxu0 %v2941
    %3265 = vmatpush.bf16.msra.mxu0 %v2935
    %3266 = vmatpush.bf16.msra.mxu0 %v2929
    %3267 = vmatmul.bf16.gmra.mxu0 0
    %v3268 = vpop.f32.mrf.mxu0
    %v3269 = vadd.f32 %v3122, %v3268
    %v3270 = vpop.f32.mrf.mxu0
    %3271 = vdwg.mxu0
    %3272 = vmatpush.bf16.msra.mxu0 %v3019
    %3273 = vmatpush.bf16.msra.mxu0 %v3013
    %3274 = vmatpush.bf16.msra.mxu0 %v3007
    %3275 = vmatpush.bf16.msra.mxu0 %v3001
    %3276 = vmatpush.bf16.msra.mxu0 %v2995
    %3277 = vmatpush.bf16.msra.mxu0 %v2989
    %3278 = vmatpush.bf16.msra.mxu0 %v2983
    %3279 = vmatpush.bf16.msra.mxu0 %v2977
    %3280 = vmatmul.bf16.gmra.mxu0 0
    %v3281 = vpop.f32.mrf.mxu0
    %v3282 = vadd.f32 %v3269, %v3281
    %v3283 = vpop.f32.mrf.mxu0
    %3284 = vdwg.mxu0
    %v3285 = vadd.f32 %v2503, %v3152
    %v3286 = vadd.f32 %v2529, %v3178
    %v3287 = vxor.u32 %v3285, 2147483648
    %v3288 = vxor.u32 %v3286, 2147483648
    %v3289 = vmul.f32 %v3287, 1.442695
    %v3290 = vpow.pop %v3289
    %v3291 = vmul.f32 %v3288, 1.442695
    %v3292 = vpow.pop %v3291
    %v3293 = vadd.f32 %v3290, 1.0
    %v3294 = vadd.f32 %v3292, 1.0
    %v3295 = vrcp.pop %v3293
    %v3296 = vmul.f32 %v3293, %v3295
    %v3297 = vsub.f32 1.0, %v3296
    %v3298 = vmul.f32 %v3295, %v3297
    %v3299 = vadd.f32 %v3295, %v3298
    %vm3300 = vweird.f32 %v3293
    %vm3301 = vweird.f32 %v3295
    %vm3302 = vmor %vm3300, %vm3301
    %v3303 = vsel %vm3302, %v3295, %v3299
    %v3304 = vand.u32 2147483647, %v3293
    %vm3305 = vcmp.eq.f32.partialorder %v3304, 8.507059e+37
    %v3306 = vand.u32 %v3293, 2147483648
    %v3307 = vor.u32 1.1754944e-38, %v3306
    %v3308 = vsel %vm3305, %v3307, %v3303
    %v3309 = vmul.f32 1.0, %v3308
    %v3310 = vrcp.pop %v3294
    %v3311 = vmul.f32 %v3294, %v3310
    %v3312 = vsub.f32 1.0, %v3311
    %v3313 = vmul.f32 %v3310, %v3312
    %v3314 = vadd.f32 %v3310, %v3313
    %vm3315 = vweird.f32 %v3294
    %vm3316 = vweird.f32 %v3310
    %vm3317 = vmor %vm3315, %vm3316
    %v3318 = vsel %vm3317, %v3310, %v3314
    %v3319 = vand.u32 2147483647, %v3294
    %vm3320 = vcmp.eq.f32.partialorder %v3319, 8.507059e+37
    %v3321 = vand.u32 %v3294, 2147483648
    %v3322 = vor.u32 1.1754944e-38, %v3321
    %v3323 = vsel %vm3320, %v3322, %v3318
    %v3324 = vmul.f32 1.0, %v3323
    %v3325 = vadd.f32 %v2555, %v3204
    %v3326 = vadd.f32 %v2581, %v3230
    %v3327 = vxor.u32 %v3325, 2147483648
    %v3328 = vxor.u32 %v3326, 2147483648
    %v3329 = vmul.f32 %v3327, 1.442695
    %v3330 = vpow.pop %v3329
    %v3331 = vmul.f32 %v3328, 1.442695
    %v3332 = vpow.pop %v3331
    %v3333 = vadd.f32 %v3330, 1.0
    %v3334 = vadd.f32 %v3332, 1.0
    %v3335 = vrcp.pop %v3333
    %v3336 = vmul.f32 %v3333, %v3335
    %v3337 = vsub.f32 1.0, %v3336
    %v3338 = vmul.f32 %v3335, %v3337
    %v3339 = vadd.f32 %v3335, %v3338
    %vm3340 = vweird.f32 %v3333
    %vm3341 = vweird.f32 %v3335
    %vm3342 = vmor %vm3340, %vm3341
    %v3343 = vsel %vm3342, %v3335, %v3339
    %v3344 = vand.u32 2147483647, %v3333
    %vm3345 = vcmp.eq.f32.partialorder %v3344, 8.507059e+37
    %v3346 = vand.u32 %v3333, 2147483648
    %v3347 = vor.u32 1.1754944e-38, %v3346
    %v3348 = vsel %vm3345, %v3347, %v3343
    %v3349 = vmul.f32 1.0, %v3348
    %v3350 = vrcp.pop %v3334
    %v3351 = vmul.f32 %v3334, %v3350
    %v3352 = vsub.f32 1.0, %v3351
    %v3353 = vmul.f32 %v3350, %v3352
    %v3354 = vadd.f32 %v3350, %v3353
    %vm3355 = vweird.f32 %v3334
    %vm3356 = vweird.f32 %v3350
    %vm3357 = vmor %vm3355, %vm3356
    %v3358 = vsel %vm3357, %v3350, %v3354
    %v3359 = vand.u32 2147483647, %v3334
    %vm3360 = vcmp.eq.f32.partialorder %v3359, 8.507059e+37
    %v3361 = vand.u32 %v3334, 2147483648
    %v3362 = vor.u32 1.1754944e-38, %v3361
    %v3363 = vsel %vm3360, %v3362, %v3358
    %v3364 = vmul.f32 1.0, %v3363
    %v3365 = vmul.f32 %v3309, %v3256
    %v3366 = vmul.f32 %v3324, %v3282
    %v3367 = vadd.f32 %v2607, %v3365
    %v3368 = vadd.f32 %v2633, %v3366
    %v3369 = vtanh.pop %v3367
    %v3370 = vtanh.pop %v3368
    %v3371 = vsub.f32 1.0, %v3349
    %v3372 = vsub.f32 1.0, %v3364
    %v3373 = vmul.f32 %v3371, %v3369
    %v3374 = vmul.f32 %v3372, %v3370
    %v3375 = vmul.f32 %v3349, 0.0
    %v3376 = vmul.f32 %v3364, 0.0
    %v3377 = vadd.f32 %v3373, %v3375
    %v3378 = vadd.f32 %v3374, %v3376
    %3379 = vmatpush.bf16.msra.mxu0 %v1572
    %3380 = vmatpush.bf16.msra.mxu0 %v1566
    %3381 = vmatpush.bf16.msra.mxu0 %v1560
    %3382 = vmatpush.bf16.msra.mxu0 %v1554
    %3383 = vmatpush.bf16.msra.mxu0 %v1548
    %3384 = vmatpush.bf16.msra.mxu0 %v1542
    %3385 = vmatpush.bf16.msra.mxu0 %v1536
    %3386 = vmatpush.bf16.msra.mxu0 %v1530
    %3387 = vmatmul.bf16.gmra.mxu0 %v1985
    %v3388 = vpop.f32.mrf.mxu0
    %v3389 = vadd.f32 %v1723, %v3388
    %v3390 = vpop.f32.mrf.mxu0
    %3391 = vdwg.mxu0
    %3392 = vmatpush.bf16.msra.mxu0 %v1620
    %3393 = vmatpush.bf16.msra.mxu0 %v1614
    %3394 = vmatpush.bf16.msra.mxu0 %v1608
    %3395 = vmatpush.bf16.msra.mxu0 %v1602
    %3396 = vmatpush.bf16.msra.mxu0 %v1596
    %3397 = vmatpush.bf16.msra.mxu0 %v1590
    %3398 = vmatpush.bf16.msra.mxu0 %v1584
    %3399 = vmatpush.bf16.msra.mxu0 %v1578
    %3400 = vmatmul.bf16.gmra.mxu0 %v1986
    %v3401 = vpop.f32.mrf.mxu0
    %v3402 = vadd.f32 %v3389, %v3401
    %v3403 = vpop.f32.mrf.mxu0
    %3404 = vdwg.mxu0
    %3405 = vmatpush.bf16.msra.mxu0 %v1573
    %3406 = vmatpush.bf16.msra.mxu0 %v1567
    %3407 = vmatpush.bf16.msra.mxu0 %v1561
    %3408 = vmatpush.bf16.msra.mxu0 %v1555
    %3409 = vmatpush.bf16.msra.mxu0 %v1549
    %3410 = vmatpush.bf16.msra.mxu0 %v1543
    %3411 = vmatpush.bf16.msra.mxu0 %v1537
    %3412 = vmatpush.bf16.msra.mxu0 %v1531
    %3413 = vmatmul.bf16.gmra.mxu0 %v1985
    %v3414 = vpop.f32.mrf.mxu0
    %v3415 = vadd.f32 %v1724, %v3414
    %v3416 = vpop.f32.mrf.mxu0
    %3417 = vdwg.mxu0
    %3418 = vmatpush.bf16.msra.mxu0 %v1621
    %3419 = vmatpush.bf16.msra.mxu0 %v1615
    %3420 = vmatpush.bf16.msra.mxu0 %v1609
    %3421 = vmatpush.bf16.msra.mxu0 %v1603
    %3422 = vmatpush.bf16.msra.mxu0 %v1597
    %3423 = vmatpush.bf16.msra.mxu0 %v1591
    %3424 = vmatpush.bf16.msra.mxu0 %v1585
    %3425 = vmatpush.bf16.msra.mxu0 %v1579
    %3426 = vmatmul.bf16.gmra.mxu0 %v1986
    %v3427 = vpop.f32.mrf.mxu0
    %v3428 = vadd.f32 %v3415, %v3427
    %v3429 = vpop.f32.mrf.mxu0
    %3430 = vdwg.mxu0
    %3431 = vmatpush.bf16.msra.mxu0 %v1574
    %3432 = vmatpush.bf16.msra.mxu0 %v1568
    %3433 = vmatpush.bf16.msra.mxu0 %v1562
    %3434 = vmatpush.bf16.msra.mxu0 %v1556
    %3435 = vmatpush.bf16.msra.mxu0 %v1550
    %3436 = vmatpush.bf16.msra.mxu0 %v1544
    %3437 = vmatpush.bf16.msra.mxu0 %v1538
    %3438 = vmatpush.bf16.msra.mxu0 %v1532
    %3439 = vmatmul.bf16.gmra.mxu0 %v1985
    %v3440 = vpop.f32.mrf.mxu0
    %v3441 = vadd.f32 %v1725, %v3440
    %v3442 = vpop.f32.mrf.mxu0
    %3443 = vdwg.mxu0
    %3444 = vmatpush.bf16.msra.mxu0 %v1622
    %3445 = vmatpush.bf16.msra.mxu0 %v1616
    %3446 = vmatpush.bf16.msra.mxu0 %v1610
    %3447 = vmatpush.bf16.msra.mxu0 %v1604
    %3448 = vmatpush.bf16.msra.mxu0 %v1598
    %3449 = vmatpush.bf16.msra.mxu0 %v1592
    %3450 = vmatpush.bf16.msra.mxu0 %v1586
    %3451 = vmatpush.bf16.msra.mxu0 %v1580
    %3452 = vmatmul.bf16.gmra.mxu0 %v1986
    %v3453 = vpop.f32.mrf.mxu0
    %v3454 = vadd.f32 %v3441, %v3453
    %v3455 = vpop.f32.mrf.mxu0
    %3456 = vdwg.mxu0
    %3457 = vmatpush.bf16.msra.mxu0 %v1575
    %3458 = vmatpush.bf16.msra.mxu0 %v1569
    %3459 = vmatpush.bf16.msra.mxu0 %v1563
    %3460 = vmatpush.bf16.msra.mxu0 %v1557
    %3461 = vmatpush.bf16.msra.mxu0 %v1551
    %3462 = vmatpush.bf16.msra.mxu0 %v1545
    %3463 = vmatpush.bf16.msra.mxu0 %v1539
    %3464 = vmatpush.bf16.msra.mxu0 %v1533
    %3465 = vmatmul.bf16.gmra.mxu0 %v1985
    %v3466 = vpop.f32.mrf.mxu0
    %v3467 = vadd.f32 %v1726, %v3466
    %v3468 = vpop.f32.mrf.mxu0
    %3469 = vdwg.mxu0
    %3470 = vmatpush.bf16.msra.mxu0 %v1623
    %3471 = vmatpush.bf16.msra.mxu0 %v1617
    %3472 = vmatpush.bf16.msra.mxu0 %v1611
    %3473 = vmatpush.bf16.msra.mxu0 %v1605
    %3474 = vmatpush.bf16.msra.mxu0 %v1599
    %3475 = vmatpush.bf16.msra.mxu0 %v1593
    %3476 = vmatpush.bf16.msra.mxu0 %v1587
    %3477 = vmatpush.bf16.msra.mxu0 %v1581
    %3478 = vmatmul.bf16.gmra.mxu0 %v1986
    %v3479 = vpop.f32.mrf.mxu0
    %v3480 = vadd.f32 %v3467, %v3479
    %v3481 = vpop.f32.mrf.mxu0
    %3482 = vdwg.mxu0
    %3483 = vmatpush.bf16.msra.mxu0 %v1576
    %3484 = vmatpush.bf16.msra.mxu0 %v1570
    %3485 = vmatpush.bf16.msra.mxu0 %v1564
    %3486 = vmatpush.bf16.msra.mxu0 %v1558
    %3487 = vmatpush.bf16.msra.mxu0 %v1552
    %3488 = vmatpush.bf16.msra.mxu0 %v1546
    %3489 = vmatpush.bf16.msra.mxu0 %v1540
    %3490 = vmatpush.bf16.msra.mxu0 %v1534
    %3491 = vmatmul.bf16.gmra.mxu0 %v1985
    %v3492 = vpop.f32.mrf.mxu0
    %v3493 = vadd.f32 %v1727, %v3492
    %v3494 = vpop.f32.mrf.mxu0
    %3495 = vdwg.mxu0
    %3496 = vmatpush.bf16.msra.mxu0 %v1624
    %3497 = vmatpush.bf16.msra.mxu0 %v1618
    %3498 = vmatpush.bf16.msra.mxu0 %v1612
    %3499 = vmatpush.bf16.msra.mxu0 %v1606
    %3500 = vmatpush.bf16.msra.mxu0 %v1600
    %3501 = vmatpush.bf16.msra.mxu0 %v1594
    %3502 = vmatpush.bf16.msra.mxu0 %v1588
    %3503 = vmatpush.bf16.msra.mxu0 %v1582
    %3504 = vmatmul.bf16.gmra.mxu0 %v1986
    %v3505 = vpop.f32.mrf.mxu0
    %v3506 = vadd.f32 %v3493, %v3505
    %v3507 = vpop.f32.mrf.mxu0
    %3508 = vdwg.mxu0
    %3509 = vmatpush.bf16.msra.mxu0 %v1577
    %3510 = vmatpush.bf16.msra.mxu0 %v1571
    %3511 = vmatpush.bf16.msra.mxu0 %v1565
    %3512 = vmatpush.bf16.msra.mxu0 %v1559
    %3513 = vmatpush.bf16.msra.mxu0 %v1553
    %3514 = vmatpush.bf16.msra.mxu0 %v1547
    %3515 = vmatpush.bf16.msra.mxu0 %v1541
    %3516 = vmatpush.bf16.msra.mxu0 %v1535
    %3517 = vmatmul.bf16.gmra.mxu0 %v1985
    %v3518 = vpop.f32.mrf.mxu0
    %v3519 = vadd.f32 %v1728, %v3518
    %v3520 = vpop.f32.mrf.mxu0
    %3521 = vdwg.mxu0
    %3522 = vmatpush.bf16.msra.mxu0 %v1625
    %3523 = vmatpush.bf16.msra.mxu0 %v1619
    %3524 = vmatpush.bf16.msra.mxu0 %v1613
    %3525 = vmatpush.bf16.msra.mxu0 %v1607
    %3526 = vmatpush.bf16.msra.mxu0 %v1601
    %3527 = vmatpush.bf16.msra.mxu0 %v1595
    %3528 = vmatpush.bf16.msra.mxu0 %v1589
    %3529 = vmatpush.bf16.msra.mxu0 %v1583
    %3530 = vmatmul.bf16.gmra.mxu0 %v1986
    %v3531 = vpop.f32.mrf.mxu0
    %v3532 = vadd.f32 %v3519, %v3531
    %v3533 = vpop.f32.mrf.mxu0
    %3534 = vdwg.mxu0
    %v3537 = vrot.slane %v3402, 7
    %v3538 = vrot.slane %v3428, 7
    %v3541 = vadd.f32 %v914, %v3537
    %v3542 = vadd.f32 %v940, %v3538
    %v3543 = vxor.u32 %v3541, 2147483648
    %v3544 = vxor.u32 %v3542, 2147483648
    %v3545 = vmul.f32 %v3543, 1.442695
    %v3546 = vpow.pop %v3545
    %v3547 = vmul.f32 %v3544, 1.442695
    %v3548 = vpow.pop %v3547
    %v3549 = vadd.f32 %v3546, 1.0
    %v3550 = vadd.f32 %v3548, 1.0
    %v3551 = vrcp.pop %v3549
    %v3552 = vmul.f32 %v3549, %v3551
    %v3553 = vsub.f32 1.0, %v3552
    %v3554 = vmul.f32 %v3551, %v3553
    %v3555 = vadd.f32 %v3551, %v3554
    %vm3556 = vweird.f32 %v3549
    %vm3557 = vweird.f32 %v3551
    %vm3558 = vmor %vm3556, %vm3557
    %v3559 = vsel %vm3558, %v3551, %v3555
    %v3560 = vand.u32 2147483647, %v3549
    %vm3561 = vcmp.eq.f32.partialorder %v3560, 8.507059e+37
    %v3562 = vand.u32 %v3549, 2147483648
    %v3563 = vor.u32 1.1754944e-38, %v3562
    %v3564 = vsel %vm3561, %v3563, %v3559
    %v3565 = vmul.f32 1.0, %v3564
    %v3566 = vrcp.pop %v3550
    %v3567 = vmul.f32 %v3550, %v3566
    %v3568 = vsub.f32 1.0, %v3567
    %v3569 = vmul.f32 %v3566, %v3568
    %v3570 = vadd.f32 %v3566, %v3569
    %vm3571 = vweird.f32 %v3550
    %vm3572 = vweird.f32 %v3566
    %vm3573 = vmor %vm3571, %vm3572
    %v3574 = vsel %vm3573, %v3566, %v3570
    %v3575 = vand.u32 2147483647, %v3550
    %vm3576 = vcmp.eq.f32.partialorder %v3575, 8.507059e+37
    %v3577 = vand.u32 %v3550, 2147483648
    %v3578 = vor.u32 1.1754944e-38, %v3577
    %v3579 = vsel %vm3576, %v3578, %v3574
    %v3580 = vmul.f32 1.0, %v3579
    %v3583 = vrot.slane %v3454, 7
    %v3584 = vrot.slane %v3480, 7
    %v3587 = vadd.f32 %v966, %v3583
    %v3588 = vadd.f32 %v992, %v3584
    %v3589 = vxor.u32 %v3587, 2147483648
    %v3590 = vxor.u32 %v3588, 2147483648
    %v3591 = vmul.f32 %v3589, 1.442695
    %v3592 = vpow.pop %v3591
    %v3593 = vmul.f32 %v3590, 1.442695
    %v3594 = vpow.pop %v3593
    %v3595 = vadd.f32 %v3592, 1.0
    %v3596 = vadd.f32 %v3594, 1.0
    %v3597 = vrcp.pop %v3595
    %v3598 = vmul.f32 %v3595, %v3597
    %v3599 = vsub.f32 1.0, %v3598
    %v3600 = vmul.f32 %v3597, %v3599
    %v3601 = vadd.f32 %v3597, %v3600
    %vm3602 = vweird.f32 %v3595
    %vm3603 = vweird.f32 %v3597
    %vm3604 = vmor %vm3602, %vm3603
    %v3605 = vsel %vm3604, %v3597, %v3601
    %v3606 = vand.u32 2147483647, %v3595
    %vm3607 = vcmp.eq.f32.partialorder %v3606, 8.507059e+37
    %v3608 = vand.u32 %v3595, 2147483648
    %v3609 = vor.u32 1.1754944e-38, %v3608
    %v3610 = vsel %vm3607, %v3609, %v3605
    %v3611 = vmul.f32 1.0, %v3610
    %v3612 = vrcp.pop %v3596
    %v3613 = vmul.f32 %v3596, %v3612
    %v3614 = vsub.f32 1.0, %v3613
    %v3615 = vmul.f32 %v3612, %v3614
    %v3616 = vadd.f32 %v3612, %v3615
    %vm3617 = vweird.f32 %v3596
    %vm3618 = vweird.f32 %v3612
    %vm3619 = vmor %vm3617, %vm3618
    %v3620 = vsel %vm3619, %v3612, %v3616
    %v3621 = vand.u32 2147483647, %v3596
    %vm3622 = vcmp.eq.f32.partialorder %v3621, 8.507059e+37
    %v3623 = vand.u32 %v3596, 2147483648
    %v3624 = vor.u32 1.1754944e-38, %v3623
    %v3625 = vsel %vm3622, %v3624, %v3620
    %v3626 = vmul.f32 1.0, %v3625
    %v3629 = vrot.slane %v3506, 7
    %v3630 = vrot.slane %v3532, 7
    %v3633 = vmul.f32 %v3565, %v3629
    %v3634 = vmul.f32 %v3580, %v3630
    %v3635 = vadd.f32 %v1018, %v3633
    %v3636 = vadd.f32 %v1044, %v3634
    %v3637 = vtanh.pop %v3635
    %v3638 = vtanh.pop %v3636
    %v3639 = vsub.f32 1.0, %v3611
    %v3640 = vsub.f32 1.0, %v3626
    %v3641 = vmul.f32 %v3639, %v3637
    %v3642 = vmul.f32 %v3640, %v3638
    %v3645 = vrot.slane %v1983, 7
    %v3646 = vrot.slane %v1984, 7
    %v3649 = vmul.f32 %v3611, %v3645
    %v3650 = vmul.f32 %v3626, %v3646
    %v3651 = vadd.f32 %v3641, %v3649
    %v3652 = vadd.f32 %v3642, %v3650
    %v3653 = vpack.c.bf16 %v3651, %v3651
    %v3654 = vpack.c.bf16 %v3652, %v3652
    %v3656 = vshrl.u32 %v3653, 16
    %v3659 = vshrl.u32 %v3654, 16
    %3663 = vmatpush.bf16.msra.mxu0 %v2317
    %3664 = vmatpush.bf16.msra.mxu0 %v2311
    %3665 = vmatpush.bf16.msra.mxu0 %v2305
    %3666 = vmatpush.bf16.msra.mxu0 %v2299
    %3667 = vmatpush.bf16.msra.mxu0 %v2293
    %3668 = vmatpush.bf16.msra.mxu0 %v2287
    %3669 = vmatpush.bf16.msra.mxu0 %v2281
    %3670 = vmatpush.bf16.msra.mxu0 %v2275
    %3671 = vmatmul.bf16.gmra.mxu0 %v3656
    %v3672 = vpop.f32.mrf.mxu0
    %v3673 = vadd.f32 %v2468, %v3672
    %v3674 = vpop.f32.mrf.mxu0
    %3675 = vdwg.mxu0
    %3676 = vmatpush.bf16.msra.mxu0 %v2365
    %3677 = vmatpush.bf16.msra.mxu0 %v2359
    %3678 = vmatpush.bf16.msra.mxu0 %v2353
    %3679 = vmatpush.bf16.msra.mxu0 %v2347
    %3680 = vmatpush.bf16.msra.mxu0 %v2341
    %3681 = vmatpush.bf16.msra.mxu0 %v2335
    %3682 = vmatpush.bf16.msra.mxu0 %v2329
    %3683 = vmatpush.bf16.msra.mxu0 %v2323
    %3684 = vmatmul.bf16.gmra.mxu0 %v3659
    %v3685 = vpop.f32.mrf.mxu0
    %v3686 = vadd.f32 %v3673, %v3685
    %v3687 = vpop.f32.mrf.mxu0
    %3688 = vdwg.mxu0
    %3689 = vmatpush.bf16.msra.mxu0 %v2318
    %3690 = vmatpush.bf16.msra.mxu0 %v2312
    %3691 = vmatpush.bf16.msra.mxu0 %v2306
    %3692 = vmatpush.bf16.msra.mxu0 %v2300
    %3693 = vmatpush.bf16.msra.mxu0 %v2294
    %3694 = vmatpush.bf16.msra.mxu0 %v2288
    %3695 = vmatpush.bf16.msra.mxu0 %v2282
    %3696 = vmatpush.bf16.msra.mxu0 %v2276
    %3697 = vmatmul.bf16.gmra.mxu0 %v3656
    %v3698 = vpop.f32.mrf.mxu0
    %v3699 = vadd.f32 %v2469, %v3698
    %v3700 = vpop.f32.mrf.mxu0
    %3701 = vdwg.mxu0
    %3702 = vmatpush.bf16.msra.mxu0 %v2366
    %3703 = vmatpush.bf16.msra.mxu0 %v2360
    %3704 = vmatpush.bf16.msra.mxu0 %v2354
    %3705 = vmatpush.bf16.msra.mxu0 %v2348
    %3706 = vmatpush.bf16.msra.mxu0 %v2342
    %3707 = vmatpush.bf16.msra.mxu0 %v2336
    %3708 = vmatpush.bf16.msra.mxu0 %v2330
    %3709 = vmatpush.bf16.msra.mxu0 %v2324
    %3710 = vmatmul.bf16.gmra.mxu0 %v3659
    %v3711 = vpop.f32.mrf.mxu0
    %v3712 = vadd.f32 %v3699, %v3711
    %v3713 = vpop.f32.mrf.mxu0
    %3714 = vdwg.mxu0
    %3715 = vmatpush.bf16.msra.mxu0 %v2319
    %3716 = vmatpush.bf16.msra.mxu0 %v2313
    %3717 = vmatpush.bf16.msra.mxu0 %v2307
    %3718 = vmatpush.bf16.msra.mxu0 %v2301
    %3719 = vmatpush.bf16.msra.mxu0 %v2295
    %3720 = vmatpush.bf16.msra.mxu0 %v2289
    %3721 = vmatpush.bf16.msra.mxu0 %v2283
    %3722 = vmatpush.bf16.msra.mxu0 %v2277
    %3723 = vmatmul.bf16.gmra.mxu0 %v3656
    %v3724 = vpop.f32.mrf.mxu0
    %v3725 = vadd.f32 %v2470, %v3724
    %v3726 = vpop.f32.mrf.mxu0
    %3727 = vdwg.mxu0
    %3728 = vmatpush.bf16.msra.mxu0 %v2367
    %3729 = vmatpush.bf16.msra.mxu0 %v2361
    %3730 = vmatpush.bf16.msra.mxu0 %v2355
    %3731 = vmatpush.bf16.msra.mxu0 %v2349
    %3732 = vmatpush.bf16.msra.mxu0 %v2343
    %3733 = vmatpush.bf16.msra.mxu0 %v2337
    %3734 = vmatpush.bf16.msra.mxu0 %v2331
    %3735 = vmatpush.bf16.msra.mxu0 %v2325
    %3736 = vmatmul.bf16.gmra.mxu0 %v3659
    %v3737 = vpop.f32.mrf.mxu0
    %v3738 = vadd.f32 %v3725, %v3737
    %v3739 = vpop.f32.mrf.mxu0
    %3740 = vdwg.mxu0
    %3741 = vmatpush.bf16.msra.mxu0 %v2320
    %3742 = vmatpush.bf16.msra.mxu0 %v2314
    %3743 = vmatpush.bf16.msra.mxu0 %v2308
    %3744 = vmatpush.bf16.msra.mxu0 %v2302
    %3745 = vmatpush.bf16.msra.mxu0 %v2296
    %3746 = vmatpush.bf16.msra.mxu0 %v2290
    %3747 = vmatpush.bf16.msra.mxu0 %v2284
    %3748 = vmatpush.bf16.msra.mxu0 %v2278
    %3749 = vmatmul.bf16.gmra.mxu0 %v3656
    %v3750 = vpop.f32.mrf.mxu0
    %v3751 = vadd.f32 %v2471, %v3750
    %v3752 = vpop.f32.mrf.mxu0
    %3753 = vdwg.mxu0
    %3754 = vmatpush.bf16.msra.mxu0 %v2368
    %3755 = vmatpush.bf16.msra.mxu0 %v2362
    %3756 = vmatpush.bf16.msra.mxu0 %v2356
    %3757 = vmatpush.bf16.msra.mxu0 %v2350
    %3758 = vmatpush.bf16.msra.mxu0 %v2344
    %3759 = vmatpush.bf16.msra.mxu0 %v2338
    %3760 = vmatpush.bf16.msra.mxu0 %v2332
    %3761 = vmatpush.bf16.msra.mxu0 %v2326
    %3762 = vmatmul.bf16.gmra.mxu0 %v3659
    %v3763 = vpop.f32.mrf.mxu0
    %v3764 = vadd.f32 %v3751, %v3763
    %v3765 = vpop.f32.mrf.mxu0
    %3766 = vdwg.mxu0
    %3767 = vmatpush.bf16.msra.mxu0 %v2321
    %3768 = vmatpush.bf16.msra.mxu0 %v2315
    %3769 = vmatpush.bf16.msra.mxu0 %v2309
    %3770 = vmatpush.bf16.msra.mxu0 %v2303
    %3771 = vmatpush.bf16.msra.mxu0 %v2297
    %3772 = vmatpush.bf16.msra.mxu0 %v2291
    %3773 = vmatpush.bf16.msra.mxu0 %v2285
    %3774 = vmatpush.bf16.msra.mxu0 %v2279
    %3775 = vmatmul.bf16.gmra.mxu0 %v3656
    %v3776 = vpop.f32.mrf.mxu0
    %v3777 = vadd.f32 %v2472, %v3776
    %v3778 = vpop.f32.mrf.mxu0
    %3779 = vdwg.mxu0
    %3780 = vmatpush.bf16.msra.mxu0 %v2369
    %3781 = vmatpush.bf16.msra.mxu0 %v2363
    %3782 = vmatpush.bf16.msra.mxu0 %v2357
    %3783 = vmatpush.bf16.msra.mxu0 %v2351
    %3784 = vmatpush.bf16.msra.mxu0 %v2345
    %3785 = vmatpush.bf16.msra.mxu0 %v2339
    %3786 = vmatpush.bf16.msra.mxu0 %v2333
    %3787 = vmatpush.bf16.msra.mxu0 %v2327
    %3788 = vmatmul.bf16.gmra.mxu0 %v3659
    %v3789 = vpop.f32.mrf.mxu0
    %v3790 = vadd.f32 %v3777, %v3789
    %v3791 = vpop.f32.mrf.mxu0
    %3792 = vdwg.mxu0
    %3793 = vmatpush.bf16.msra.mxu0 %v2322
    %3794 = vmatpush.bf16.msra.mxu0 %v2316
    %3795 = vmatpush.bf16.msra.mxu0 %v2310
    %3796 = vmatpush.bf16.msra.mxu0 %v2304
    %3797 = vmatpush.bf16.msra.mxu0 %v2298
    %3798 = vmatpush.bf16.msra.mxu0 %v2292
    %3799 = vmatpush.bf16.msra.mxu0 %v2286
    %3800 = vmatpush.bf16.msra.mxu0 %v2280
    %3801 = vmatmul.bf16.gmra.mxu0 %v3656
    %v3802 = vpop.f32.mrf.mxu0
    %v3803 = vadd.f32 %v2473, %v3802
    %v3804 = vpop.f32.mrf.mxu0
    %3805 = vdwg.mxu0
    %3806 = vmatpush.bf16.msra.mxu0 %v2370
    %3807 = vmatpush.bf16.msra.mxu0 %v2364
    %3808 = vmatpush.bf16.msra.mxu0 %v2358
    %3809 = vmatpush.bf16.msra.mxu0 %v2352
    %3810 = vmatpush.bf16.msra.mxu0 %v2346
    %3811 = vmatpush.bf16.msra.mxu0 %v2340
    %3812 = vmatpush.bf16.msra.mxu0 %v2334
    %3813 = vmatpush.bf16.msra.mxu0 %v2328
    %3814 = vmatmul.bf16.gmra.mxu0 %v3659
    %v3815 = vpop.f32.mrf.mxu0
    %v3816 = vadd.f32 %v3803, %v3815
    %v3817 = vpop.f32.mrf.mxu0
    %3818 = vdwg.mxu0
    %v3819 = vpack.c.bf16 %v3377, %v3377
    %v3820 = vpack.c.bf16 %v3378, %v3378
    %3821 = vmatpush.bf16.msra.mxu0 %v2966
    %3822 = vmatpush.bf16.msra.mxu0 %v2960
    %3823 = vmatpush.bf16.msra.mxu0 %v2954
    %3824 = vmatpush.bf16.msra.mxu0 %v2948
    %3825 = vmatpush.bf16.msra.mxu0 %v2942
    %3826 = vmatpush.bf16.msra.mxu0 %v2936
    %3827 = vmatpush.bf16.msra.mxu0 %v2930
    %3828 = vmatpush.bf16.msra.mxu0 %v2924
    %3829 = vmatmul.bf16.gmra.mxu0 %v3819
    %v3830 = vpop.f32.mrf.mxu0
    %v3831 = vadd.f32 %v3117, %v3830
    %v3832 = vpop.f32.mrf.mxu0
    %3833 = vdwg.mxu0
    %3834 = vmatpush.bf16.msra.mxu0 %v3014
    %3835 = vmatpush.bf16.msra.mxu0 %v3008
    %3836 = vmatpush.bf16.msra.mxu0 %v3002
    %3837 = vmatpush.bf16.msra.mxu0 %v2996
    %3838 = vmatpush.bf16.msra.mxu0 %v2990
    %3839 = vmatpush.bf16.msra.mxu0 %v2984
    %3840 = vmatpush.bf16.msra.mxu0 %v2978
    %3841 = vmatpush.bf16.msra.mxu0 %v2972
    %3842 = vmatmul.bf16.gmra.mxu0 %v3820
    %v3843 = vpop.f32.mrf.mxu0
    %v3844 = vadd.f32 %v3831, %v3843
    %v3845 = vpop.f32.mrf.mxu0
    %3846 = vdwg.mxu0
    %3847 = vmatpush.bf16.msra.mxu0 %v2967
    %3848 = vmatpush.bf16.msra.mxu0 %v2961
    %3849 = vmatpush.bf16.msra.mxu0 %v2955
    %3850 = vmatpush.bf16.msra.mxu0 %v2949
    %3851 = vmatpush.bf16.msra.mxu0 %v2943
    %3852 = vmatpush.bf16.msra.mxu0 %v2937
    %3853 = vmatpush.bf16.msra.mxu0 %v2931
    %3854 = vmatpush.bf16.msra.mxu0 %v2925
    %3855 = vmatmul.bf16.gmra.mxu0 %v3819
    %v3856 = vpop.f32.mrf.mxu0
    %v3857 = vadd.f32 %v3118, %v3856
    %v3858 = vpop.f32.mrf.mxu0
    %3859 = vdwg.mxu0
    %3860 = vmatpush.bf16.msra.mxu0 %v3015
    %3861 = vmatpush.bf16.msra.mxu0 %v3009
    %3862 = vmatpush.bf16.msra.mxu0 %v3003
    %3863 = vmatpush.bf16.msra.mxu0 %v2997
    %3864 = vmatpush.bf16.msra.mxu0 %v2991
    %3865 = vmatpush.bf16.msra.mxu0 %v2985
    %3866 = vmatpush.bf16.msra.mxu0 %v2979
    %3867 = vmatpush.bf16.msra.mxu0 %v2973
    %3868 = vmatmul.bf16.gmra.mxu0 %v3820
    %v3869 = vpop.f32.mrf.mxu0
    %v3870 = vadd.f32 %v3857, %v3869
    %v3871 = vpop.f32.mrf.mxu0
    %3872 = vdwg.mxu0
    %3873 = vmatpush.bf16.msra.mxu0 %v2968
    %3874 = vmatpush.bf16.msra.mxu0 %v2962
    %3875 = vmatpush.bf16.msra.mxu0 %v2956
    %3876 = vmatpush.bf16.msra.mxu0 %v2950
    %3877 = vmatpush.bf16.msra.mxu0 %v2944
    %3878 = vmatpush.bf16.msra.mxu0 %v2938
    %3879 = vmatpush.bf16.msra.mxu0 %v2932
    %3880 = vmatpush.bf16.msra.mxu0 %v2926
    %3881 = vmatmul.bf16.gmra.mxu0 %v3819
    %v3882 = vpop.f32.mrf.mxu0
    %v3883 = vadd.f32 %v3119, %v3882
    %v3884 = vpop.f32.mrf.mxu0
    %3885 = vdwg.mxu0
    %3886 = vmatpush.bf16.msra.mxu0 %v3016
    %3887 = vmatpush.bf16.msra.mxu0 %v3010
    %3888 = vmatpush.bf16.msra.mxu0 %v3004
    %3889 = vmatpush.bf16.msra.mxu0 %v2998
    %3890 = vmatpush.bf16.msra.mxu0 %v2992
    %3891 = vmatpush.bf16.msra.mxu0 %v2986
    %3892 = vmatpush.bf16.msra.mxu0 %v2980
    %3893 = vmatpush.bf16.msra.mxu0 %v2974
    %3894 = vmatmul.bf16.gmra.mxu0 %v3820
    %v3895 = vpop.f32.mrf.mxu0
    %v3896 = vadd.f32 %v3883, %v3895
    %v3897 = vpop.f32.mrf.mxu0
    %3898 = vdwg.mxu0
    %3899 = vmatpush.bf16.msra.mxu0 %v2969
    %3900 = vmatpush.bf16.msra.mxu0 %v2963
    %3901 = vmatpush.bf16.msra.mxu0 %v2957
    %3902 = vmatpush.bf16.msra.mxu0 %v2951
    %3903 = vmatpush.bf16.msra.mxu0 %v2945
    %3904 = vmatpush.bf16.msra.mxu0 %v2939
    %3905 = vmatpush.bf16.msra.mxu0 %v2933
    %3906 = vmatpush.bf16.msra.mxu0 %v2927
    %3907 = vmatmul.bf16.gmra.mxu0 %v3819
    %v3908 = vpop.f32.mrf.mxu0
    %v3909 = vadd.f32 %v3120, %v3908
    %v3910 = vpop.f32.mrf.mxu0
    %3911 = vdwg.mxu0
    %3912 = vmatpush.bf16.msra.mxu0 %v3017
    %3913 = vmatpush.bf16.msra.mxu0 %v3011
    %3914 = vmatpush.bf16.msra.mxu0 %v3005
    %3915 = vmatpush.bf16.msra.mxu0 %v2999
    %3916 = vmatpush.bf16.msra.mxu0 %v2993
    %3917 = vmatpush.bf16.msra.mxu0 %v2987
    %3918 = vmatpush.bf16.msra.mxu0 %v2981
    %3919 = vmatpush.bf16.msra.mxu0 %v2975
    %3920 = vmatmul.bf16.gmra.mxu0 %v3820
    %v3921 = vpop.f32.mrf.mxu0
    %v3922 = vadd.f32 %v3909, %v3921
    %v3923 = vpop.f32.mrf.mxu0
    %3924 = vdwg.mxu0
    %3925 = vmatpush.bf16.msra.mxu0 %v2970
    %3926 = vmatpush.bf16.msra.mxu0 %v2964
    %3927 = vmatpush.bf16.msra.mxu0 %v2958
    %3928 = vmatpush.bf16.msra.mxu0 %v2952
    %3929 = vmatpush.bf16.msra.mxu0 %v2946
    %3930 = vmatpush.bf16.msra.mxu0 %v2940
    %3931 = vmatpush.bf16.msra.mxu0 %v2934
    %3932 = vmatpush.bf16.msra.mxu0 %v2928
    %3933 = vmatmul.bf16.gmra.mxu0 %v3819
    %v3934 = vpop.f32.mrf.mxu0
    %v3935 = vadd.f32 %v3121, %v3934
    %v3936 = vpop.f32.mrf.mxu0
    %3937 = vdwg.mxu0
    %3938 = vmatpush.bf16.msra.mxu0 %v3018
    %3939 = vmatpush.bf16.msra.mxu0 %v3012
    %3940 = vmatpush.bf16.msra.mxu0 %v3006
    %3941 = vmatpush.bf16.msra.mxu0 %v3000
    %3942 = vmatpush.bf16.msra.mxu0 %v2994
    %3943 = vmatpush.bf16.msra.mxu0 %v2988
    %3944 = vmatpush.bf16.msra.mxu0 %v2982
    %3945 = vmatpush.bf16.msra.mxu0 %v2976
    %3946 = vmatmul.bf16.gmra.mxu0 %v3820
    %v3947 = vpop.f32.mrf.mxu0
    %v3948 = vadd.f32 %v3935, %v3947
    %v3949 = vpop.f32.mrf.mxu0
    %3950 = vdwg.mxu0
    %3951 = vmatpush.bf16.msra.mxu0 %v2971
    %3952 = vmatpush.bf16.msra.mxu0 %v2965
    %3953 = vmatpush.bf16.msra.mxu0 %v2959
    %3954 = vmatpush.bf16.msra.mxu0 %v2953
    %3955 = vmatpush.bf16.msra.mxu0 %v2947
    %3956 = vmatpush.bf16.msra.mxu0 %v2941
    %3957 = vmatpush.bf16.msra.mxu0 %v2935
    %3958 = vmatpush.bf16.msra.mxu0 %v2929
    %3959 = vmatmul.bf16.gmra.mxu0 %v3819
    %v3960 = vpop.f32.mrf.mxu0
    %v3961 = vadd.f32 %v3122, %v3960
    %v3962 = vpop.f32.mrf.mxu0
    %3963 = vdwg.mxu0
    %3964 = vmatpush.bf16.msra.mxu0 %v3019
    %3965 = vmatpush.bf16.msra.mxu0 %v3013
    %3966 = vmatpush.bf16.msra.mxu0 %v3007
    %3967 = vmatpush.bf16.msra.mxu0 %v3001
    %3968 = vmatpush.bf16.msra.mxu0 %v2995
    %3969 = vmatpush.bf16.msra.mxu0 %v2989
    %3970 = vmatpush.bf16.msra.mxu0 %v2983
    %3971 = vmatpush.bf16.msra.mxu0 %v2977
    %3972 = vmatmul.bf16.gmra.mxu0 %v3820
    %v3973 = vpop.f32.mrf.mxu0
    %v3974 = vadd.f32 %v3961, %v3973
    %v3975 = vpop.f32.mrf.mxu0
    %3976 = vdwg.mxu0
    %v3977 = vadd.f32 %v3686, %v3844
    %v3978 = vadd.f32 %v3712, %v3870
    %v3979 = vxor.u32 %v3977, 2147483648
    %v3980 = vxor.u32 %v3978, 2147483648
    %v3981 = vmul.f32 %v3979, 1.442695
    %v3982 = vpow.pop %v3981
    %v3983 = vmul.f32 %v3980, 1.442695
    %v3984 = vpow.pop %v3983
    %v3985 = vadd.f32 %v3982, 1.0
    %v3986 = vadd.f32 %v3984, 1.0
    %v3987 = vrcp.pop %v3985
    %v3988 = vmul.f32 %v3985, %v3987
    %v3989 = vsub.f32 1.0, %v3988
    %v3990 = vmul.f32 %v3987, %v3989
    %v3991 = vadd.f32 %v3987, %v3990
    %vm3992 = vweird.f32 %v3985
    %vm3993 = vweird.f32 %v3987
    %vm3994 = vmor %vm3992, %vm3993
    %v3995 = vsel %vm3994, %v3987, %v3991
    %v3996 = vand.u32 2147483647, %v3985
    %vm3997 = vcmp.eq.f32.partialorder %v3996, 8.507059e+37
    %v3998 = vand.u32 %v3985, 2147483648
    %v3999 = vor.u32 1.1754944e-38, %v3998
    %v4000 = vsel %vm3997, %v3999, %v3995
    %v4001 = vmul.f32 1.0, %v4000
    %v4002 = vrcp.pop %v3986
    %v4003 = vmul.f32 %v3986, %v4002
    %v4004 = vsub.f32 1.0, %v4003
    %v4005 = vmul.f32 %v4002, %v4004
    %v4006 = vadd.f32 %v4002, %v4005
    %vm4007 = vweird.f32 %v3986
    %vm4008 = vweird.f32 %v4002
    %vm4009 = vmor %vm4007, %vm4008
    %v4010 = vsel %vm4009, %v4002, %v4006
    %v4011 = vand.u32 2147483647, %v3986
    %vm4012 = vcmp.eq.f32.partialorder %v4011, 8.507059e+37
    %v4013 = vand.u32 %v3986, 2147483648
    %v4014 = vor.u32 1.1754944e-38, %v4013
    %v4015 = vsel %vm4012, %v4014, %v4010
    %v4016 = vmul.f32 1.0, %v4015
    %v4017 = vadd.f32 %v3738, %v3896
    %v4018 = vadd.f32 %v3764, %v3922
    %v4019 = vxor.u32 %v4017, 2147483648
    %v4020 = vxor.u32 %v4018, 2147483648
    %v4021 = vmul.f32 %v4019, 1.442695
    %v4022 = vpow.pop %v4021
    %v4023 = vmul.f32 %v4020, 1.442695
    %v4024 = vpow.pop %v4023
    %v4025 = vadd.f32 %v4022, 1.0
    %v4026 = vadd.f32 %v4024, 1.0
    %v4027 = vrcp.pop %v4025
    %v4028 = vmul.f32 %v4025, %v4027
    %v4029 = vsub.f32 1.0, %v4028
    %v4030 = vmul.f32 %v4027, %v4029
    %v4031 = vadd.f32 %v4027, %v4030
    %vm4032 = vweird.f32 %v4025
    %vm4033 = vweird.f32 %v4027
    %vm4034 = vmor %vm4032, %vm4033
    %v4035 = vsel %vm4034, %v4027, %v4031
    %v4036 = vand.u32 2147483647, %v4025
    %vm4037 = vcmp.eq.f32.partialorder %v4036, 8.507059e+37
    %v4038 = vand.u32 %v4025, 2147483648
    %v4039 = vor.u32 1.1754944e-38, %v4038
    %v4040 = vsel %vm4037, %v4039, %v4035
    %v4041 = vmul.f32 1.0, %v4040
    %v4042 = vrcp.pop %v4026
    %v4043 = vmul.f32 %v4026, %v4042
    %v4044 = vsub.f32 1.0, %v4043
    %v4045 = vmul.f32 %v4042, %v4044
    %v4046 = vadd.f32 %v4042, %v4045
    %vm4047 = vweird.f32 %v4026
    %vm4048 = vweird.f32 %v4042
    %vm4049 = vmor %vm4047, %vm4048
    %v4050 = vsel %vm4049, %v4042, %v4046
    %v4051 = vand.u32 2147483647, %v4026
    %vm4052 = vcmp.eq.f32.partialorder %v4051, 8.507059e+37
    %v4053 = vand.u32 %v4026, 2147483648
    %v4054 = vor.u32 1.1754944e-38, %v4053
    %v4055 = vsel %vm4052, %v4054, %v4050
    %v4056 = vmul.f32 1.0, %v4055
    %v4057 = vmul.f32 %v4001, %v3948
    %v4058 = vmul.f32 %v4016, %v3974
    %v4059 = vadd.f32 %v3790, %v4057
    %v4060 = vadd.f32 %v3816, %v4058
    %v4061 = vtanh.pop %v4059
    %v4062 = vtanh.pop %v4060
    %v4063 = vsub.f32 1.0, %v4041
    %v4064 = vsub.f32 1.0, %v4056
    %v4065 = vmul.f32 %v4063, %v4061
    %v4066 = vmul.f32 %v4064, %v4062
    %v4067 = vmul.f32 %v4041, %v3377
    %v4068 = vmul.f32 %v4056, %v3378
    %v4069 = vadd.f32 %v4065, %v4067
    %v4070 = vadd.f32 %v4066, %v4068
    %4071 = vmatpush.bf16.msra.mxu0 %v1572
    %4072 = vmatpush.bf16.msra.mxu0 %v1566
    %4073 = vmatpush.bf16.msra.mxu0 %v1560
    %4074 = vmatpush.bf16.msra.mxu0 %v1554
    %4075 = vmatpush.bf16.msra.mxu0 %v1548
    %4076 = vmatpush.bf16.msra.mxu0 %v1542
    %4077 = vmatpush.bf16.msra.mxu0 %v1536
    %4078 = vmatpush.bf16.msra.mxu0 %v1530
    %4079 = vmatmul.bf16.gmra.mxu0 %v3656
    %v4080 = vpop.f32.mrf.mxu0
    %v4081 = vadd.f32 %v1723, %v4080
    %v4082 = vpop.f32.mrf.mxu0
    %4083 = vdwg.mxu0
    %4084 = vmatpush.bf16.msra.mxu0 %v1620
    %4085 = vmatpush.bf16.msra.mxu0 %v1614
    %4086 = vmatpush.bf16.msra.mxu0 %v1608
    %4087 = vmatpush.bf16.msra.mxu0 %v1602
    %4088 = vmatpush.bf16.msra.mxu0 %v1596
    %4089 = vmatpush.bf16.msra.mxu0 %v1590
    %4090 = vmatpush.bf16.msra.mxu0 %v1584
    %4091 = vmatpush.bf16.msra.mxu0 %v1578
    %4092 = vmatmul.bf16.gmra.mxu0 %v3659
    %v4093 = vpop.f32.mrf.mxu0
    %v4094 = vadd.f32 %v4081, %v4093
    %v4095 = vpop.f32.mrf.mxu0
    %4096 = vdwg.mxu0
    %4097 = vmatpush.bf16.msra.mxu0 %v1573
    %4098 = vmatpush.bf16.msra.mxu0 %v1567
    %4099 = vmatpush.bf16.msra.mxu0 %v1561
    %4100 = vmatpush.bf16.msra.mxu0 %v1555
    %4101 = vmatpush.bf16.msra.mxu0 %v1549
    %4102 = vmatpush.bf16.msra.mxu0 %v1543
    %4103 = vmatpush.bf16.msra.mxu0 %v1537
    %4104 = vmatpush.bf16.msra.mxu0 %v1531
    %4105 = vmatmul.bf16.gmra.mxu0 %v3656
    %v4106 = vpop.f32.mrf.mxu0
    %v4107 = vadd.f32 %v1724, %v4106
    %v4108 = vpop.f32.mrf.mxu0
    %4109 = vdwg.mxu0
    %4110 = vmatpush.bf16.msra.mxu0 %v1621
    %4111 = vmatpush.bf16.msra.mxu0 %v1615
    %4112 = vmatpush.bf16.msra.mxu0 %v1609
    %4113 = vmatpush.bf16.msra.mxu0 %v1603
    %4114 = vmatpush.bf16.msra.mxu0 %v1597
    %4115 = vmatpush.bf16.msra.mxu0 %v1591
    %4116 = vmatpush.bf16.msra.mxu0 %v1585
    %4117 = vmatpush.bf16.msra.mxu0 %v1579
    %4118 = vmatmul.bf16.gmra.mxu0 %v3659
    %v4119 = vpop.f32.mrf.mxu0
    %v4120 = vadd.f32 %v4107, %v4119
    %v4121 = vpop.f32.mrf.mxu0
    %4122 = vdwg.mxu0
    %4123 = vmatpush.bf16.msra.mxu0 %v1574
    %4124 = vmatpush.bf16.msra.mxu0 %v1568
    %4125 = vmatpush.bf16.msra.mxu0 %v1562
    %4126 = vmatpush.bf16.msra.mxu0 %v1556
    %4127 = vmatpush.bf16.msra.mxu0 %v1550
    %4128 = vmatpush.bf16.msra.mxu0 %v1544
    %4129 = vmatpush.bf16.msra.mxu0 %v1538
    %4130 = vmatpush.bf16.msra.mxu0 %v1532
    %4131 = vmatmul.bf16.gmra.mxu0 %v3656
    %v4132 = vpop.f32.mrf.mxu0
    %v4133 = vadd.f32 %v1725, %v4132
    %v4134 = vpop.f32.mrf.mxu0
    %4135 = vdwg.mxu0
    %4136 = vmatpush.bf16.msra.mxu0 %v1622
    %4137 = vmatpush.bf16.msra.mxu0 %v1616
    %4138 = vmatpush.bf16.msra.mxu0 %v1610
    %4139 = vmatpush.bf16.msra.mxu0 %v1604
    %4140 = vmatpush.bf16.msra.mxu0 %v1598
    %4141 = vmatpush.bf16.msra.mxu0 %v1592
    %4142 = vmatpush.bf16.msra.mxu0 %v1586
    %4143 = vmatpush.bf16.msra.mxu0 %v1580
    %4144 = vmatmul.bf16.gmra.mxu0 %v3659
    %v4145 = vpop.f32.mrf.mxu0
    %v4146 = vadd.f32 %v4133, %v4145
    %v4147 = vpop.f32.mrf.mxu0
    %4148 = vdwg.mxu0
    %4149 = vmatpush.bf16.msra.mxu0 %v1575
    %4150 = vmatpush.bf16.msra.mxu0 %v1569
    %4151 = vmatpush.bf16.msra.mxu0 %v1563
    %4152 = vmatpush.bf16.msra.mxu0 %v1557
    %4153 = vmatpush.bf16.msra.mxu0 %v1551
    %4154 = vmatpush.bf16.msra.mxu0 %v1545
    %4155 = vmatpush.bf16.msra.mxu0 %v1539
    %4156 = vmatpush.bf16.msra.mxu0 %v1533
    %4157 = vmatmul.bf16.gmra.mxu0 %v3656
    %v4158 = vpop.f32.mrf.mxu0
    %v4159 = vadd.f32 %v1726, %v4158
    %v4160 = vpop.f32.mrf.mxu0
    %4161 = vdwg.mxu0
    %4162 = vmatpush.bf16.msra.mxu0 %v1623
    %4163 = vmatpush.bf16.msra.mxu0 %v1617
    %4164 = vmatpush.bf16.msra.mxu0 %v1611
    %4165 = vmatpush.bf16.msra.mxu0 %v1605
    %4166 = vmatpush.bf16.msra.mxu0 %v1599
    %4167 = vmatpush.bf16.msra.mxu0 %v1593
    %4168 = vmatpush.bf16.msra.mxu0 %v1587
    %4169 = vmatpush.bf16.msra.mxu0 %v1581
    %4170 = vmatmul.bf16.gmra.mxu0 %v3659
    %v4171 = vpop.f32.mrf.mxu0
    %v4172 = vadd.f32 %v4159, %v4171
    %v4173 = vpop.f32.mrf.mxu0
    %4174 = vdwg.mxu0
    %4175 = vmatpush.bf16.msra.mxu0 %v1576
    %4176 = vmatpush.bf16.msra.mxu0 %v1570
    %4177 = vmatpush.bf16.msra.mxu0 %v1564
    %4178 = vmatpush.bf16.msra.mxu0 %v1558
    %4179 = vmatpush.bf16.msra.mxu0 %v1552
    %4180 = vmatpush.bf16.msra.mxu0 %v1546
    %4181 = vmatpush.bf16.msra.mxu0 %v1540
    %4182 = vmatpush.bf16.msra.mxu0 %v1534
    %4183 = vmatmul.bf16.gmra.mxu0 %v3656
    %v4184 = vpop.f32.mrf.mxu0
    %v4185 = vadd.f32 %v1727, %v4184
    %v4186 = vpop.f32.mrf.mxu0
    %4187 = vdwg.mxu0
    %4188 = vmatpush.bf16.msra.mxu0 %v1624
    %4189 = vmatpush.bf16.msra.mxu0 %v1618
    %4190 = vmatpush.bf16.msra.mxu0 %v1612
    %4191 = vmatpush.bf16.msra.mxu0 %v1606
    %4192 = vmatpush.bf16.msra.mxu0 %v1600
    %4193 = vmatpush.bf16.msra.mxu0 %v1594
    %4194 = vmatpush.bf16.msra.mxu0 %v1588
    %4195 = vmatpush.bf16.msra.mxu0 %v1582
    %4196 = vmatmul.bf16.gmra.mxu0 %v3659
    %v4197 = vpop.f32.mrf.mxu0
    %v4198 = vadd.f32 %v4185, %v4197
    %v4199 = vpop.f32.mrf.mxu0
    %4200 = vdwg.mxu0
    %4201 = vmatpush.bf16.msra.mxu0 %v1577
    %4202 = vmatpush.bf16.msra.mxu0 %v1571
    %4203 = vmatpush.bf16.msra.mxu0 %v1565
    %4204 = vmatpush.bf16.msra.mxu0 %v1559
    %4205 = vmatpush.bf16.msra.mxu0 %v1553
    %4206 = vmatpush.bf16.msra.mxu0 %v1547
    %4207 = vmatpush.bf16.msra.mxu0 %v1541
    %4208 = vmatpush.bf16.msra.mxu0 %v1535
    %4209 = vmatmul.bf16.gmra.mxu0 %v3656
    %v4210 = vpop.f32.mrf.mxu0
    %v4211 = vadd.f32 %v1728, %v4210
    %v4212 = vpop.f32.mrf.mxu0
    %4213 = vdwg.mxu0
    %4214 = vmatpush.bf16.msra.mxu0 %v1625
    %4215 = vmatpush.bf16.msra.mxu0 %v1619
    %4216 = vmatpush.bf16.msra.mxu0 %v1613
    %4217 = vmatpush.bf16.msra.mxu0 %v1607
    %4218 = vmatpush.bf16.msra.mxu0 %v1601
    %4219 = vmatpush.bf16.msra.mxu0 %v1595
    %4220 = vmatpush.bf16.msra.mxu0 %v1589
    %4221 = vmatpush.bf16.msra.mxu0 %v1583
    %4222 = vmatmul.bf16.gmra.mxu0 %v3659
    %v4223 = vpop.f32.mrf.mxu0
    %v4224 = vadd.f32 %v4211, %v4223
    %v4225 = vpop.f32.mrf.mxu0
    %4226 = vdwg.mxu0
    %v4229 = vrot.slane %v4094, 6
    %v4230 = vrot.slane %v4120, 6
    %v4233 = vadd.f32 %v914, %v4229
    %v4234 = vadd.f32 %v940, %v4230
    %v4235 = vxor.u32 %v4233, 2147483648
    %v4236 = vxor.u32 %v4234, 2147483648
    %v4237 = vmul.f32 %v4235, 1.442695
    %v4238 = vpow.pop %v4237
    %v4239 = vmul.f32 %v4236, 1.442695
    %v4240 = vpow.pop %v4239
    %v4241 = vadd.f32 %v4238, 1.0
    %v4242 = vadd.f32 %v4240, 1.0
    %v4243 = vrcp.pop %v4241
    %v4244 = vmul.f32 %v4241, %v4243
    %v4245 = vsub.f32 1.0, %v4244
    %v4246 = vmul.f32 %v4243, %v4245
    %v4247 = vadd.f32 %v4243, %v4246
    %vm4248 = vweird.f32 %v4241
    %vm4249 = vweird.f32 %v4243
    %vm4250 = vmor %vm4248, %vm4249
    %v4251 = vsel %vm4250, %v4243, %v4247
    %v4252 = vand.u32 2147483647, %v4241
    %vm4253 = vcmp.eq.f32.partialorder %v4252, 8.507059e+37
    %v4254 = vand.u32 %v4241, 2147483648
    %v4255 = vor.u32 1.1754944e-38, %v4254
    %v4256 = vsel %vm4253, %v4255, %v4251
    %v4257 = vmul.f32 1.0, %v4256
    %v4258 = vrcp.pop %v4242
    %v4259 = vmul.f32 %v4242, %v4258
    %v4260 = vsub.f32 1.0, %v4259
    %v4261 = vmul.f32 %v4258, %v4260
    %v4262 = vadd.f32 %v4258, %v4261
    %vm4263 = vweird.f32 %v4242
    %vm4264 = vweird.f32 %v4258
    %vm4265 = vmor %vm4263, %vm4264
    %v4266 = vsel %vm4265, %v4258, %v4262
    %v4267 = vand.u32 2147483647, %v4242
    %vm4268 = vcmp.eq.f32.partialorder %v4267, 8.507059e+37
    %v4269 = vand.u32 %v4242, 2147483648
    %v4270 = vor.u32 1.1754944e-38, %v4269
    %v4271 = vsel %vm4268, %v4270, %v4266
    %v4272 = vmul.f32 1.0, %v4271
    %v4275 = vrot.slane %v4146, 6
    %v4276 = vrot.slane %v4172, 6
    %v4279 = vadd.f32 %v966, %v4275
    %v4280 = vadd.f32 %v992, %v4276
    %v4281 = vxor.u32 %v4279, 2147483648
    %v4282 = vxor.u32 %v4280, 2147483648
    %v4283 = vmul.f32 %v4281, 1.442695
    %v4284 = vpow.pop %v4283
    %v4285 = vmul.f32 %v4282, 1.442695
    %v4286 = vpow.pop %v4285
    %v4287 = vadd.f32 %v4284, 1.0
    %v4288 = vadd.f32 %v4286, 1.0
    %v4289 = vrcp.pop %v4287
    %v4290 = vmul.f32 %v4287, %v4289
    %v4291 = vsub.f32 1.0, %v4290
    %v4292 = vmul.f32 %v4289, %v4291
    %v4293 = vadd.f32 %v4289, %v4292
    %vm4294 = vweird.f32 %v4287
    %vm4295 = vweird.f32 %v4289
    %vm4296 = vmor %vm4294, %vm4295
    %v4297 = vsel %vm4296, %v4289, %v4293
    %v4298 = vand.u32 2147483647, %v4287
    %vm4299 = vcmp.eq.f32.partialorder %v4298, 8.507059e+37
    %v4300 = vand.u32 %v4287, 2147483648
    %v4301 = vor.u32 1.1754944e-38, %v4300
    %v4302 = vsel %vm4299, %v4301, %v4297
    %v4303 = vmul.f32 1.0, %v4302
    %v4304 = vrcp.pop %v4288
    %v4305 = vmul.f32 %v4288, %v4304
    %v4306 = vsub.f32 1.0, %v4305
    %v4307 = vmul.f32 %v4304, %v4306
    %v4308 = vadd.f32 %v4304, %v4307
    %vm4309 = vweird.f32 %v4288
    %vm4310 = vweird.f32 %v4304
    %vm4311 = vmor %vm4309, %vm4310
    %v4312 = vsel %vm4311, %v4304, %v4308
    %v4313 = vand.u32 2147483647, %v4288
    %vm4314 = vcmp.eq.f32.partialorder %v4313, 8.507059e+37
    %v4315 = vand.u32 %v4288, 2147483648
    %v4316 = vor.u32 1.1754944e-38, %v4315
    %v4317 = vsel %vm4314, %v4316, %v4312
    %v4318 = vmul.f32 1.0, %v4317
    %v4321 = vrot.slane %v4198, 6
    %v4322 = vrot.slane %v4224, 6
    %v4325 = vmul.f32 %v4257, %v4321
    %v4326 = vmul.f32 %v4272, %v4322
    %v4327 = vadd.f32 %v1018, %v4325
    %v4328 = vadd.f32 %v1044, %v4326
    %v4329 = vtanh.pop %v4327
    %v4330 = vtanh.pop %v4328
    %v4331 = vsub.f32 1.0, %v4303
    %v4332 = vsub.f32 1.0, %v4318
    %v4333 = vmul.f32 %v4331, %v4329
    %v4334 = vmul.f32 %v4332, %v4330
    %v4337 = vrot.slane %v3651, 7
    %v4338 = vrot.slane %v3652, 7
    %v4341 = vmul.f32 %v4303, %v4337
    %v4342 = vmul.f32 %v4318, %v4338
    %v4343 = vadd.f32 %v4333, %v4341
    %v4344 = vadd.f32 %v4334, %v4342
    %v4345 = vpack.c.bf16 %v4343, %v4343
    %v4346 = vpack.c.bf16 %v4344, %v4344
    %v4349 = vrot.slane %v4345, 1
    %v4350 = vrot.slane %v4346, 1
    %4353 = vmatpush.bf16.msra.mxu0 %v2317
    %4354 = vmatpush.bf16.msra.mxu0 %v2311
    %4355 = vmatpush.bf16.msra.mxu0 %v2305
    %4356 = vmatpush.bf16.msra.mxu0 %v2299
    %4357 = vmatpush.bf16.msra.mxu0 %v2293
    %4358 = vmatpush.bf16.msra.mxu0 %v2287
    %4359 = vmatpush.bf16.msra.mxu0 %v2281
    %4360 = vmatpush.bf16.msra.mxu0 %v2275
    %4361 = vmatmul.bf16.gmra.mxu0 %v4349
    %v4362 = vpop.f32.mrf.mxu0
    %v4363 = vadd.f32 %v2468, %v4362
    %v4364 = vpop.f32.mrf.mxu0
    %4365 = vdwg.mxu0
    %4366 = vmatpush.bf16.msra.mxu0 %v2365
    %4367 = vmatpush.bf16.msra.mxu0 %v2359
    %4368 = vmatpush.bf16.msra.mxu0 %v2353
    %4369 = vmatpush.bf16.msra.mxu0 %v2347
    %4370 = vmatpush.bf16.msra.mxu0 %v2341
    %4371 = vmatpush.bf16.msra.mxu0 %v2335
    %4372 = vmatpush.bf16.msra.mxu0 %v2329
    %4373 = vmatpush.bf16.msra.mxu0 %v2323
    %4374 = vmatmul.bf16.gmra.mxu0 %v4350
    %v4375 = vpop.f32.mrf.mxu0
    %v4376 = vadd.f32 %v4363, %v4375
    %v4377 = vpop.f32.mrf.mxu0
    %4378 = vdwg.mxu0
    %4379 = vmatpush.bf16.msra.mxu0 %v2318
    %4380 = vmatpush.bf16.msra.mxu0 %v2312
    %4381 = vmatpush.bf16.msra.mxu0 %v2306
    %4382 = vmatpush.bf16.msra.mxu0 %v2300
    %4383 = vmatpush.bf16.msra.mxu0 %v2294
    %4384 = vmatpush.bf16.msra.mxu0 %v2288
    %4385 = vmatpush.bf16.msra.mxu0 %v2282
    %4386 = vmatpush.bf16.msra.mxu0 %v2276
    %4387 = vmatmul.bf16.gmra.mxu0 %v4349
    %v4388 = vpop.f32.mrf.mxu0
    %v4389 = vadd.f32 %v2469, %v4388
    %v4390 = vpop.f32.mrf.mxu0
    %4391 = vdwg.mxu0
    %4392 = vmatpush.bf16.msra.mxu0 %v2366
    %4393 = vmatpush.bf16.msra.mxu0 %v2360
    %4394 = vmatpush.bf16.msra.mxu0 %v2354
    %4395 = vmatpush.bf16.msra.mxu0 %v2348
    %4396 = vmatpush.bf16.msra.mxu0 %v2342
    %4397 = vmatpush.bf16.msra.mxu0 %v2336
    %4398 = vmatpush.bf16.msra.mxu0 %v2330
    %4399 = vmatpush.bf16.msra.mxu0 %v2324
    %4400 = vmatmul.bf16.gmra.mxu0 %v4350
    %v4401 = vpop.f32.mrf.mxu0
    %v4402 = vadd.f32 %v4389, %v4401
    %v4403 = vpop.f32.mrf.mxu0
    %4404 = vdwg.mxu0
    %4405 = vmatpush.bf16.msra.mxu0 %v2319
    %4406 = vmatpush.bf16.msra.mxu0 %v2313
    %4407 = vmatpush.bf16.msra.mxu0 %v2307
    %4408 = vmatpush.bf16.msra.mxu0 %v2301
    %4409 = vmatpush.bf16.msra.mxu0 %v2295
    %4410 = vmatpush.bf16.msra.mxu0 %v2289
    %4411 = vmatpush.bf16.msra.mxu0 %v2283
    %4412 = vmatpush.bf16.msra.mxu0 %v2277
    %4413 = vmatmul.bf16.gmra.mxu0 %v4349
    %v4414 = vpop.f32.mrf.mxu0
    %v4415 = vadd.f32 %v2470, %v4414
    %v4416 = vpop.f32.mrf.mxu0
    %4417 = vdwg.mxu0
    %4418 = vmatpush.bf16.msra.mxu0 %v2367
    %4419 = vmatpush.bf16.msra.mxu0 %v2361
    %4420 = vmatpush.bf16.msra.mxu0 %v2355
    %4421 = vmatpush.bf16.msra.mxu0 %v2349
    %4422 = vmatpush.bf16.msra.mxu0 %v2343
    %4423 = vmatpush.bf16.msra.mxu0 %v2337
    %4424 = vmatpush.bf16.msra.mxu0 %v2331
    %4425 = vmatpush.bf16.msra.mxu0 %v2325
    %4426 = vmatmul.bf16.gmra.mxu0 %v4350
    %v4427 = vpop.f32.mrf.mxu0
    %v4428 = vadd.f32 %v4415, %v4427
    %v4429 = vpop.f32.mrf.mxu0
    %4430 = vdwg.mxu0
    %4431 = vmatpush.bf16.msra.mxu0 %v2320
    %4432 = vmatpush.bf16.msra.mxu0 %v2314
    %4433 = vmatpush.bf16.msra.mxu0 %v2308
    %4434 = vmatpush.bf16.msra.mxu0 %v2302
    %4435 = vmatpush.bf16.msra.mxu0 %v2296
    %4436 = vmatpush.bf16.msra.mxu0 %v2290
    %4437 = vmatpush.bf16.msra.mxu0 %v2284
    %4438 = vmatpush.bf16.msra.mxu0 %v2278
    %4439 = vmatmul.bf16.gmra.mxu0 %v4349
    %v4440 = vpop.f32.mrf.mxu0
    %v4441 = vadd.f32 %v2471, %v4440
    %v4442 = vpop.f32.mrf.mxu0
    %4443 = vdwg.mxu0
    %4444 = vmatpush.bf16.msra.mxu0 %v2368
    %4445 = vmatpush.bf16.msra.mxu0 %v2362
    %4446 = vmatpush.bf16.msra.mxu0 %v2356
    %4447 = vmatpush.bf16.msra.mxu0 %v2350
    %4448 = vmatpush.bf16.msra.mxu0 %v2344
    %4449 = vmatpush.bf16.msra.mxu0 %v2338
    %4450 = vmatpush.bf16.msra.mxu0 %v2332
    %4451 = vmatpush.bf16.msra.mxu0 %v2326
    %4452 = vmatmul.bf16.gmra.mxu0 %v4350
    %v4453 = vpop.f32.mrf.mxu0
    %v4454 = vadd.f32 %v4441, %v4453
    %v4455 = vpop.f32.mrf.mxu0
    %4456 = vdwg.mxu0
    %4457 = vmatpush.bf16.msra.mxu0 %v2321
    %4458 = vmatpush.bf16.msra.mxu0 %v2315
    %4459 = vmatpush.bf16.msra.mxu0 %v2309
    %4460 = vmatpush.bf16.msra.mxu0 %v2303
    %4461 = vmatpush.bf16.msra.mxu0 %v2297
    %4462 = vmatpush.bf16.msra.mxu0 %v2291
    %4463 = vmatpush.bf16.msra.mxu0 %v2285
    %4464 = vmatpush.bf16.msra.mxu0 %v2279
    %4465 = vmatmul.bf16.gmra.mxu0 %v4349
    %v4466 = vpop.f32.mrf.mxu0
    %v4467 = vadd.f32 %v2472, %v4466
    %v4468 = vpop.f32.mrf.mxu0
    %4469 = vdwg.mxu0
    %4470 = vmatpush.bf16.msra.mxu0 %v2369
    %4471 = vmatpush.bf16.msra.mxu0 %v2363
    %4472 = vmatpush.bf16.msra.mxu0 %v2357
    %4473 = vmatpush.bf16.msra.mxu0 %v2351
    %4474 = vmatpush.bf16.msra.mxu0 %v2345
    %4475 = vmatpush.bf16.msra.mxu0 %v2339
    %4476 = vmatpush.bf16.msra.mxu0 %v2333
    %4477 = vmatpush.bf16.msra.mxu0 %v2327
    %4478 = vmatmul.bf16.gmra.mxu0 %v4350
    %v4479 = vpop.f32.mrf.mxu0
    %v4480 = vadd.f32 %v4467, %v4479
    %v4481 = vpop.f32.mrf.mxu0
    %4482 = vdwg.mxu0
    %4483 = vmatpush.bf16.msra.mxu0 %v2322
    %4484 = vmatpush.bf16.msra.mxu0 %v2316
    %4485 = vmatpush.bf16.msra.mxu0 %v2310
    %4486 = vmatpush.bf16.msra.mxu0 %v2304
    %4487 = vmatpush.bf16.msra.mxu0 %v2298
    %4488 = vmatpush.bf16.msra.mxu0 %v2292
    %4489 = vmatpush.bf16.msra.mxu0 %v2286
    %4490 = vmatpush.bf16.msra.mxu0 %v2280
    %4491 = vmatmul.bf16.gmra.mxu0 %v4349
    %v4492 = vpop.f32.mrf.mxu0
    %v4493 = vadd.f32 %v2473, %v4492
    %v4494 = vpop.f32.mrf.mxu0
    %4495 = vdwg.mxu0
    %4496 = vmatpush.bf16.msra.mxu0 %v2370
    %4497 = vmatpush.bf16.msra.mxu0 %v2364
    %4498 = vmatpush.bf16.msra.mxu0 %v2358
    %4499 = vmatpush.bf16.msra.mxu0 %v2352
    %4500 = vmatpush.bf16.msra.mxu0 %v2346
    %4501 = vmatpush.bf16.msra.mxu0 %v2340
    %4502 = vmatpush.bf16.msra.mxu0 %v2334
    %4503 = vmatpush.bf16.msra.mxu0 %v2328
    %4504 = vmatmul.bf16.gmra.mxu0 %v4350
    %v4505 = vpop.f32.mrf.mxu0
    %v4506 = vadd.f32 %v4493, %v4505
    %v4507 = vpop.f32.mrf.mxu0
    %4508 = vdwg.mxu0
    %v4509 = vpack.c.bf16 %v4069, %v4069
    %v4510 = vpack.c.bf16 %v4070, %v4070
    %4511 = vmatpush.bf16.msra.mxu0 %v2966
    %4512 = vmatpush.bf16.msra.mxu0 %v2960
    %4513 = vmatpush.bf16.msra.mxu0 %v2954
    %4514 = vmatpush.bf16.msra.mxu0 %v2948
    %4515 = vmatpush.bf16.msra.mxu0 %v2942
    %4516 = vmatpush.bf16.msra.mxu0 %v2936
    %4517 = vmatpush.bf16.msra.mxu0 %v2930
    %4518 = vmatpush.bf16.msra.mxu0 %v2924
    %4519 = vmatmul.bf16.gmra.mxu0 %v4509
    %v4520 = vpop.f32.mrf.mxu0
    %v4521 = vadd.f32 %v3117, %v4520
    %v4522 = vpop.f32.mrf.mxu0
    %4523 = vdwg.mxu0
    %4524 = vmatpush.bf16.msra.mxu0 %v3014
    %4525 = vmatpush.bf16.msra.mxu0 %v3008
    %4526 = vmatpush.bf16.msra.mxu0 %v3002
    %4527 = vmatpush.bf16.msra.mxu0 %v2996
    %4528 = vmatpush.bf16.msra.mxu0 %v2990
    %4529 = vmatpush.bf16.msra.mxu0 %v2984
    %4530 = vmatpush.bf16.msra.mxu0 %v2978
    %4531 = vmatpush.bf16.msra.mxu0 %v2972
    %4532 = vmatmul.bf16.gmra.mxu0 %v4510
    %v4533 = vpop.f32.mrf.mxu0
    %v4534 = vadd.f32 %v4521, %v4533
    %v4535 = vpop.f32.mrf.mxu0
    %4536 = vdwg.mxu0
    %4537 = vmatpush.bf16.msra.mxu0 %v2967
    %4538 = vmatpush.bf16.msra.mxu0 %v2961
    %4539 = vmatpush.bf16.msra.mxu0 %v2955
    %4540 = vmatpush.bf16.msra.mxu0 %v2949
    %4541 = vmatpush.bf16.msra.mxu0 %v2943
    %4542 = vmatpush.bf16.msra.mxu0 %v2937
    %4543 = vmatpush.bf16.msra.mxu0 %v2931
    %4544 = vmatpush.bf16.msra.mxu0 %v2925
    %4545 = vmatmul.bf16.gmra.mxu0 %v4509
    %v4546 = vpop.f32.mrf.mxu0
    %v4547 = vadd.f32 %v3118, %v4546
    %v4548 = vpop.f32.mrf.mxu0
    %4549 = vdwg.mxu0
    %4550 = vmatpush.bf16.msra.mxu0 %v3015
    %4551 = vmatpush.bf16.msra.mxu0 %v3009
    %4552 = vmatpush.bf16.msra.mxu0 %v3003
    %4553 = vmatpush.bf16.msra.mxu0 %v2997
    %4554 = vmatpush.bf16.msra.mxu0 %v2991
    %4555 = vmatpush.bf16.msra.mxu0 %v2985
    %4556 = vmatpush.bf16.msra.mxu0 %v2979
    %4557 = vmatpush.bf16.msra.mxu0 %v2973
    %4558 = vmatmul.bf16.gmra.mxu0 %v4510
    %v4559 = vpop.f32.mrf.mxu0
    %v4560 = vadd.f32 %v4547, %v4559
    %v4561 = vpop.f32.mrf.mxu0
    %4562 = vdwg.mxu0
    %4563 = vmatpush.bf16.msra.mxu0 %v2968
    %4564 = vmatpush.bf16.msra.mxu0 %v2962
    %4565 = vmatpush.bf16.msra.mxu0 %v2956
    %4566 = vmatpush.bf16.msra.mxu0 %v2950
    %4567 = vmatpush.bf16.msra.mxu0 %v2944
    %4568 = vmatpush.bf16.msra.mxu0 %v2938
    %4569 = vmatpush.bf16.msra.mxu0 %v2932
    %4570 = vmatpush.bf16.msra.mxu0 %v2926
    %4571 = vmatmul.bf16.gmra.mxu0 %v4509
    %v4572 = vpop.f32.mrf.mxu0
    %v4573 = vadd.f32 %v3119, %v4572
    %v4574 = vpop.f32.mrf.mxu0
    %4575 = vdwg.mxu0
    %4576 = vmatpush.bf16.msra.mxu0 %v3016
    %4577 = vmatpush.bf16.msra.mxu0 %v3010
    %4578 = vmatpush.bf16.msra.mxu0 %v3004
    %4579 = vmatpush.bf16.msra.mxu0 %v2998
    %4580 = vmatpush.bf16.msra.mxu0 %v2992
    %4581 = vmatpush.bf16.msra.mxu0 %v2986
    %4582 = vmatpush.bf16.msra.mxu0 %v2980
    %4583 = vmatpush.bf16.msra.mxu0 %v2974
    %4584 = vmatmul.bf16.gmra.mxu0 %v4510
    %v4585 = vpop.f32.mrf.mxu0
    %v4586 = vadd.f32 %v4573, %v4585
    %v4587 = vpop.f32.mrf.mxu0
    %4588 = vdwg.mxu0
    %4589 = vmatpush.bf16.msra.mxu0 %v2969
    %4590 = vmatpush.bf16.msra.mxu0 %v2963
    %4591 = vmatpush.bf16.msra.mxu0 %v2957
    %4592 = vmatpush.bf16.msra.mxu0 %v2951
    %4593 = vmatpush.bf16.msra.mxu0 %v2945
    %4594 = vmatpush.bf16.msra.mxu0 %v2939
    %4595 = vmatpush.bf16.msra.mxu0 %v2933
    %4596 = vmatpush.bf16.msra.mxu0 %v2927
    %4597 = vmatmul.bf16.gmra.mxu0 %v4509
    %v4598 = vpop.f32.mrf.mxu0
    %v4599 = vadd.f32 %v3120, %v4598
    %v4600 = vpop.f32.mrf.mxu0
    %4601 = vdwg.mxu0
    %4602 = vmatpush.bf16.msra.mxu0 %v3017
    %4603 = vmatpush.bf16.msra.mxu0 %v3011
    %4604 = vmatpush.bf16.msra.mxu0 %v3005
    %4605 = vmatpush.bf16.msra.mxu0 %v2999
    %4606 = vmatpush.bf16.msra.mxu0 %v2993
    %4607 = vmatpush.bf16.msra.mxu0 %v2987
    %4608 = vmatpush.bf16.msra.mxu0 %v2981
    %4609 = vmatpush.bf16.msra.mxu0 %v2975
    %4610 = vmatmul.bf16.gmra.mxu0 %v4510
    %v4611 = vpop.f32.mrf.mxu0
    %v4612 = vadd.f32 %v4599, %v4611
    %v4613 = vpop.f32.mrf.mxu0
    %4614 = vdwg.mxu0
    %4615 = vmatpush.bf16.msra.mxu0 %v2970
    %4616 = vmatpush.bf16.msra.mxu0 %v2964
    %4617 = vmatpush.bf16.msra.mxu0 %v2958
    %4618 = vmatpush.bf16.msra.mxu0 %v2952
    %4619 = vmatpush.bf16.msra.mxu0 %v2946
    %4620 = vmatpush.bf16.msra.mxu0 %v2940
    %4621 = vmatpush.bf16.msra.mxu0 %v2934
    %4622 = vmatpush.bf16.msra.mxu0 %v2928
    %4623 = vmatmul.bf16.gmra.mxu0 %v4509
    %v4624 = vpop.f32.mrf.mxu0
    %v4625 = vadd.f32 %v3121, %v4624
    %v4626 = vpop.f32.mrf.mxu0
    %4627 = vdwg.mxu0
    %4628 = vmatpush.bf16.msra.mxu0 %v3018
    %4629 = vmatpush.bf16.msra.mxu0 %v3012
    %4630 = vmatpush.bf16.msra.mxu0 %v3006
    %4631 = vmatpush.bf16.msra.mxu0 %v3000
    %4632 = vmatpush.bf16.msra.mxu0 %v2994
    %4633 = vmatpush.bf16.msra.mxu0 %v2988
    %4634 = vmatpush.bf16.msra.mxu0 %v2982
    %4635 = vmatpush.bf16.msra.mxu0 %v2976
    %4636 = vmatmul.bf16.gmra.mxu0 %v4510
    %v4637 = vpop.f32.mrf.mxu0
    %v4638 = vadd.f32 %v4625, %v4637
    %v4639 = vpop.f32.mrf.mxu0
    %4640 = vdwg.mxu0
    %4641 = vmatpush.bf16.msra.mxu0 %v2971
    %4642 = vmatpush.bf16.msra.mxu0 %v2965
    %4643 = vmatpush.bf16.msra.mxu0 %v2959
    %4644 = vmatpush.bf16.msra.mxu0 %v2953
    %4645 = vmatpush.bf16.msra.mxu0 %v2947
    %4646 = vmatpush.bf16.msra.mxu0 %v2941
    %4647 = vmatpush.bf16.msra.mxu0 %v2935
    %4648 = vmatpush.bf16.msra.mxu0 %v2929
    %4649 = vmatmul.bf16.gmra.mxu0 %v4509
    %v4650 = vpop.f32.mrf.mxu0
    %v4651 = vadd.f32 %v3122, %v4650
    %v4652 = vpop.f32.mrf.mxu0
    %4653 = vdwg.mxu0
    %4654 = vmatpush.bf16.msra.mxu0 %v3019
    %4655 = vmatpush.bf16.msra.mxu0 %v3013
    %4656 = vmatpush.bf16.msra.mxu0 %v3007
    %4657 = vmatpush.bf16.msra.mxu0 %v3001
    %4658 = vmatpush.bf16.msra.mxu0 %v2995
    %4659 = vmatpush.bf16.msra.mxu0 %v2989
    %4660 = vmatpush.bf16.msra.mxu0 %v2983
    %4661 = vmatpush.bf16.msra.mxu0 %v2977
    %4662 = vmatmul.bf16.gmra.mxu0 %v4510
    %v4663 = vpop.f32.mrf.mxu0
    %v4664 = vadd.f32 %v4651, %v4663
    %v4665 = vpop.f32.mrf.mxu0
    %4666 = vdwg.mxu0
    %v4667 = vadd.f32 %v4376, %v4534
    %v4668 = vadd.f32 %v4402, %v4560
    %v4669 = vxor.u32 %v4667, 2147483648
    %v4670 = vxor.u32 %v4668, 2147483648
    %v4671 = vmul.f32 %v4669, 1.442695
    %v4672 = vpow.pop %v4671
    %v4673 = vmul.f32 %v4670, 1.442695
    %v4674 = vpow.pop %v4673
    %v4675 = vadd.f32 %v4672, 1.0
    %v4676 = vadd.f32 %v4674, 1.0
    %v4677 = vrcp.pop %v4675
    %v4678 = vmul.f32 %v4675, %v4677
    %v4679 = vsub.f32 1.0, %v4678
    %v4680 = vmul.f32 %v4677, %v4679
    %v4681 = vadd.f32 %v4677, %v4680
    %vm4682 = vweird.f32 %v4675
    %vm4683 = vweird.f32 %v4677
    %vm4684 = vmor %vm4682, %vm4683
    %v4685 = vsel %vm4684, %v4677, %v4681
    %v4686 = vand.u32 2147483647, %v4675
    %vm4687 = vcmp.eq.f32.partialorder %v4686, 8.507059e+37
    %v4688 = vand.u32 %v4675, 2147483648
    %v4689 = vor.u32 1.1754944e-38, %v4688
    %v4690 = vsel %vm4687, %v4689, %v4685
    %v4691 = vmul.f32 1.0, %v4690
    %v4692 = vrcp.pop %v4676
    %v4693 = vmul.f32 %v4676, %v4692
    %v4694 = vsub.f32 1.0, %v4693
    %v4695 = vmul.f32 %v4692, %v4694
    %v4696 = vadd.f32 %v4692, %v4695
    %vm4697 = vweird.f32 %v4676
    %vm4698 = vweird.f32 %v4692
    %vm4699 = vmor %vm4697, %vm4698
    %v4700 = vsel %vm4699, %v4692, %v4696
    %v4701 = vand.u32 2147483647, %v4676
    %vm4702 = vcmp.eq.f32.partialorder %v4701, 8.507059e+37
    %v4703 = vand.u32 %v4676, 2147483648
    %v4704 = vor.u32 1.1754944e-38, %v4703
    %v4705 = vsel %vm4702, %v4704, %v4700
    %v4706 = vmul.f32 1.0, %v4705
    %v4707 = vadd.f32 %v4428, %v4586
    %v4708 = vadd.f32 %v4454, %v4612
    %v4709 = vxor.u32 %v4707, 2147483648
    %v4710 = vxor.u32 %v4708, 2147483648
    %v4711 = vmul.f32 %v4709, 1.442695
    %v4712 = vpow.pop %v4711
    %v4713 = vmul.f32 %v4710, 1.442695
    %v4714 = vpow.pop %v4713
    %v4715 = vadd.f32 %v4712, 1.0
    %v4716 = vadd.f32 %v4714, 1.0
    %v4717 = vrcp.pop %v4715
    %v4718 = vmul.f32 %v4715, %v4717
    %v4719 = vsub.f32 1.0, %v4718
    %v4720 = vmul.f32 %v4717, %v4719
    %v4721 = vadd.f32 %v4717, %v4720
    %vm4722 = vweird.f32 %v4715
    %vm4723 = vweird.f32 %v4717
    %vm4724 = vmor %vm4722, %vm4723
    %v4725 = vsel %vm4724, %v4717, %v4721
    %v4726 = vand.u32 2147483647, %v4715
    %vm4727 = vcmp.eq.f32.partialorder %v4726, 8.507059e+37
    %v4728 = vand.u32 %v4715, 2147483648
    %v4729 = vor.u32 1.1754944e-38, %v4728
    %v4730 = vsel %vm4727, %v4729, %v4725
    %v4731 = vmul.f32 1.0, %v4730
    %v4732 = vrcp.pop %v4716
    %v4733 = vmul.f32 %v4716, %v4732
    %v4734 = vsub.f32 1.0, %v4733
    %v4735 = vmul.f32 %v4732, %v4734
    %v4736 = vadd.f32 %v4732, %v4735
    %vm4737 = vweird.f32 %v4716
    %vm4738 = vweird.f32 %v4732
    %vm4739 = vmor %vm4737, %vm4738
    %v4740 = vsel %vm4739, %v4732, %v4736
    %v4741 = vand.u32 2147483647, %v4716
    %vm4742 = vcmp.eq.f32.partialorder %v4741, 8.507059e+37
    %v4743 = vand.u32 %v4716, 2147483648
    %v4744 = vor.u32 1.1754944e-38, %v4743
    %v4745 = vsel %vm4742, %v4744, %v4740
    %v4746 = vmul.f32 1.0, %v4745
    %v4747 = vmul.f32 %v4691, %v4638
    %v4748 = vmul.f32 %v4706, %v4664
    %v4749 = vadd.f32 %v4480, %v4747
    %v4750 = vadd.f32 %v4506, %v4748
    %v4751 = vtanh.pop %v4749
    %v4752 = vtanh.pop %v4750
    %v4753 = vsub.f32 1.0, %v4731
    %v4754 = vsub.f32 1.0, %v4746
    %v4755 = vmul.f32 %v4753, %v4751
    %v4756 = vmul.f32 %v4754, %v4752
    %v4757 = vmul.f32 %v4731, %v4069
    %v4758 = vmul.f32 %v4746, %v4070
    %v4759 = vadd.f32 %v4755, %v4757
    %v4760 = vadd.f32 %v4756, %v4758
    %4761 = vmatpush.bf16.msra.mxu0 %v1572
    %4762 = vmatpush.bf16.msra.mxu0 %v1566
    %4763 = vmatpush.bf16.msra.mxu0 %v1560
    %4764 = vmatpush.bf16.msra.mxu0 %v1554
    %4765 = vmatpush.bf16.msra.mxu0 %v1548
    %4766 = vmatpush.bf16.msra.mxu0 %v1542
    %4767 = vmatpush.bf16.msra.mxu0 %v1536
    %4768 = vmatpush.bf16.msra.mxu0 %v1530
    %4769 = vmatmul.bf16.gmra.mxu0 %v4349
    %v4770 = vpop.f32.mrf.mxu0
    %v4771 = vadd.f32 %v1723, %v4770
    %v4772 = vpop.f32.mrf.mxu0
    %4773 = vdwg.mxu0
    %4774 = vmatpush.bf16.msra.mxu0 %v1620
    %4775 = vmatpush.bf16.msra.mxu0 %v1614
    %4776 = vmatpush.bf16.msra.mxu0 %v1608
    %4777 = vmatpush.bf16.msra.mxu0 %v1602
    %4778 = vmatpush.bf16.msra.mxu0 %v1596
    %4779 = vmatpush.bf16.msra.mxu0 %v1590
    %4780 = vmatpush.bf16.msra.mxu0 %v1584
    %4781 = vmatpush.bf16.msra.mxu0 %v1578
    %4782 = vmatmul.bf16.gmra.mxu0 %v4350
    %v4783 = vpop.f32.mrf.mxu0
    %v4784 = vadd.f32 %v4771, %v4783
    %v4785 = vpop.f32.mrf.mxu0
    %4786 = vdwg.mxu0
    %4787 = vmatpush.bf16.msra.mxu0 %v1573
    %4788 = vmatpush.bf16.msra.mxu0 %v1567
    %4789 = vmatpush.bf16.msra.mxu0 %v1561
    %4790 = vmatpush.bf16.msra.mxu0 %v1555
    %4791 = vmatpush.bf16.msra.mxu0 %v1549
    %4792 = vmatpush.bf16.msra.mxu0 %v1543
    %4793 = vmatpush.bf16.msra.mxu0 %v1537
    %4794 = vmatpush.bf16.msra.mxu0 %v1531
    %4795 = vmatmul.bf16.gmra.mxu0 %v4349
    %v4796 = vpop.f32.mrf.mxu0
    %v4797 = vadd.f32 %v1724, %v4796
    %v4798 = vpop.f32.mrf.mxu0
    %4799 = vdwg.mxu0
    %4800 = vmatpush.bf16.msra.mxu0 %v1621
    %4801 = vmatpush.bf16.msra.mxu0 %v1615
    %4802 = vmatpush.bf16.msra.mxu0 %v1609
    %4803 = vmatpush.bf16.msra.mxu0 %v1603
    %4804 = vmatpush.bf16.msra.mxu0 %v1597
    %4805 = vmatpush.bf16.msra.mxu0 %v1591
    %4806 = vmatpush.bf16.msra.mxu0 %v1585
    %4807 = vmatpush.bf16.msra.mxu0 %v1579
    %4808 = vmatmul.bf16.gmra.mxu0 %v4350
    %v4809 = vpop.f32.mrf.mxu0
    %v4810 = vadd.f32 %v4797, %v4809
    %v4811 = vpop.f32.mrf.mxu0
    %4812 = vdwg.mxu0
    %4813 = vmatpush.bf16.msra.mxu0 %v1574
    %4814 = vmatpush.bf16.msra.mxu0 %v1568
    %4815 = vmatpush.bf16.msra.mxu0 %v1562
    %4816 = vmatpush.bf16.msra.mxu0 %v1556
    %4817 = vmatpush.bf16.msra.mxu0 %v1550
    %4818 = vmatpush.bf16.msra.mxu0 %v1544
    %4819 = vmatpush.bf16.msra.mxu0 %v1538
    %4820 = vmatpush.bf16.msra.mxu0 %v1532
    %4821 = vmatmul.bf16.gmra.mxu0 %v4349
    %v4822 = vpop.f32.mrf.mxu0
    %v4823 = vadd.f32 %v1725, %v4822
    %v4824 = vpop.f32.mrf.mxu0
    %4825 = vdwg.mxu0
    %4826 = vmatpush.bf16.msra.mxu0 %v1622
    %4827 = vmatpush.bf16.msra.mxu0 %v1616
    %4828 = vmatpush.bf16.msra.mxu0 %v1610
    %4829 = vmatpush.bf16.msra.mxu0 %v1604
    %4830 = vmatpush.bf16.msra.mxu0 %v1598
    %4831 = vmatpush.bf16.msra.mxu0 %v1592
    %4832 = vmatpush.bf16.msra.mxu0 %v1586
    %4833 = vmatpush.bf16.msra.mxu0 %v1580
    %4834 = vmatmul.bf16.gmra.mxu0 %v4350
    %v4835 = vpop.f32.mrf.mxu0
    %v4836 = vadd.f32 %v4823, %v4835
    %v4837 = vpop.f32.mrf.mxu0
    %4838 = vdwg.mxu0
    %4839 = vmatpush.bf16.msra.mxu0 %v1575
    %4840 = vmatpush.bf16.msra.mxu0 %v1569
    %4841 = vmatpush.bf16.msra.mxu0 %v1563
    %4842 = vmatpush.bf16.msra.mxu0 %v1557
    %4843 = vmatpush.bf16.msra.mxu0 %v1551
    %4844 = vmatpush.bf16.msra.mxu0 %v1545
    %4845 = vmatpush.bf16.msra.mxu0 %v1539
    %4846 = vmatpush.bf16.msra.mxu0 %v1533
    %4847 = vmatmul.bf16.gmra.mxu0 %v4349
    %v4848 = vpop.f32.mrf.mxu0
    %v4849 = vadd.f32 %v1726, %v4848
    %v4850 = vpop.f32.mrf.mxu0
    %4851 = vdwg.mxu0
    %4852 = vmatpush.bf16.msra.mxu0 %v1623
    %4853 = vmatpush.bf16.msra.mxu0 %v1617
    %4854 = vmatpush.bf16.msra.mxu0 %v1611
    %4855 = vmatpush.bf16.msra.mxu0 %v1605
    %4856 = vmatpush.bf16.msra.mxu0 %v1599
    %4857 = vmatpush.bf16.msra.mxu0 %v1593
    %4858 = vmatpush.bf16.msra.mxu0 %v1587
    %4859 = vmatpush.bf16.msra.mxu0 %v1581
    %4860 = vmatmul.bf16.gmra.mxu0 %v4350
    %v4861 = vpop.f32.mrf.mxu0
    %v4862 = vadd.f32 %v4849, %v4861
    %v4863 = vpop.f32.mrf.mxu0
    %4864 = vdwg.mxu0
    %4865 = vmatpush.bf16.msra.mxu0 %v1576
    %4866 = vmatpush.bf16.msra.mxu0 %v1570
    %4867 = vmatpush.bf16.msra.mxu0 %v1564
    %4868 = vmatpush.bf16.msra.mxu0 %v1558
    %4869 = vmatpush.bf16.msra.mxu0 %v1552
    %4870 = vmatpush.bf16.msra.mxu0 %v1546
    %4871 = vmatpush.bf16.msra.mxu0 %v1540
    %4872 = vmatpush.bf16.msra.mxu0 %v1534
    %4873 = vmatmul.bf16.gmra.mxu0 %v4349
    %v4874 = vpop.f32.mrf.mxu0
    %v4875 = vadd.f32 %v1727, %v4874
    %v4876 = vpop.f32.mrf.mxu0
    %4877 = vdwg.mxu0
    %4878 = vmatpush.bf16.msra.mxu0 %v1624
    %4879 = vmatpush.bf16.msra.mxu0 %v1618
    %4880 = vmatpush.bf16.msra.mxu0 %v1612
    %4881 = vmatpush.bf16.msra.mxu0 %v1606
    %4882 = vmatpush.bf16.msra.mxu0 %v1600
    %4883 = vmatpush.bf16.msra.mxu0 %v1594
    %4884 = vmatpush.bf16.msra.mxu0 %v1588
    %4885 = vmatpush.bf16.msra.mxu0 %v1582
    %4886 = vmatmul.bf16.gmra.mxu0 %v4350
    %v4887 = vpop.f32.mrf.mxu0
    %v4888 = vadd.f32 %v4875, %v4887
    %v4889 = vpop.f32.mrf.mxu0
    %4890 = vdwg.mxu0
    %4891 = vmatpush.bf16.msra.mxu0 %v1577
    %4892 = vmatpush.bf16.msra.mxu0 %v1571
    %4893 = vmatpush.bf16.msra.mxu0 %v1565
    %4894 = vmatpush.bf16.msra.mxu0 %v1559
    %4895 = vmatpush.bf16.msra.mxu0 %v1553
    %4896 = vmatpush.bf16.msra.mxu0 %v1547
    %4897 = vmatpush.bf16.msra.mxu0 %v1541
    %4898 = vmatpush.bf16.msra.mxu0 %v1535
    %4899 = vmatmul.bf16.gmra.mxu0 %v4349
    %v4900 = vpop.f32.mrf.mxu0
    %v4901 = vadd.f32 %v1728, %v4900
    %v4902 = vpop.f32.mrf.mxu0
    %4903 = vdwg.mxu0
    %4904 = vmatpush.bf16.msra.mxu0 %v1625
    %4905 = vmatpush.bf16.msra.mxu0 %v1619
    %4906 = vmatpush.bf16.msra.mxu0 %v1613
    %4907 = vmatpush.bf16.msra.mxu0 %v1607
    %4908 = vmatpush.bf16.msra.mxu0 %v1601
    %4909 = vmatpush.bf16.msra.mxu0 %v1595
    %4910 = vmatpush.bf16.msra.mxu0 %v1589
    %4911 = vmatpush.bf16.msra.mxu0 %v1583
    %4912 = vmatmul.bf16.gmra.mxu0 %v4350
    %v4913 = vpop.f32.mrf.mxu0
    %v4914 = vadd.f32 %v4901, %v4913
    %v4915 = vpop.f32.mrf.mxu0
    %4916 = vdwg.mxu0
    %v4919 = vrot.slane %v4784, 5
    %v4920 = vrot.slane %v4810, 5
    %v4923 = vadd.f32 %v914, %v4919
    %v4924 = vadd.f32 %v940, %v4920
    %v4925 = vxor.u32 %v4923, 2147483648
    %v4926 = vxor.u32 %v4924, 2147483648
    %v4927 = vmul.f32 %v4925, 1.442695
    %v4928 = vpow.pop %v4927
    %v4929 = vmul.f32 %v4926, 1.442695
    %v4930 = vpow.pop %v4929
    %v4931 = vadd.f32 %v4928, 1.0
    %v4932 = vadd.f32 %v4930, 1.0
    %v4933 = vrcp.pop %v4931
    %v4934 = vmul.f32 %v4931, %v4933
    %v4935 = vsub.f32 1.0, %v4934
    %v4936 = vmul.f32 %v4933, %v4935
    %v4937 = vadd.f32 %v4933, %v4936
    %vm4938 = vweird.f32 %v4931
    %vm4939 = vweird.f32 %v4933
    %vm4940 = vmor %vm4938, %vm4939
    %v4941 = vsel %vm4940, %v4933, %v4937
    %v4942 = vand.u32 2147483647, %v4931
    %vm4943 = vcmp.eq.f32.partialorder %v4942, 8.507059e+37
    %v4944 = vand.u32 %v4931, 2147483648
    %v4945 = vor.u32 1.1754944e-38, %v4944
    %v4946 = vsel %vm4943, %v4945, %v4941
    %v4947 = vmul.f32 1.0, %v4946
    %v4948 = vrcp.pop %v4932
    %v4949 = vmul.f32 %v4932, %v4948
    %v4950 = vsub.f32 1.0, %v4949
    %v4951 = vmul.f32 %v4948, %v4950
    %v4952 = vadd.f32 %v4948, %v4951
    %vm4953 = vweird.f32 %v4932
    %vm4954 = vweird.f32 %v4948
    %vm4955 = vmor %vm4953, %vm4954
    %v4956 = vsel %vm4955, %v4948, %v4952
    %v4957 = vand.u32 2147483647, %v4932
    %vm4958 = vcmp.eq.f32.partialorder %v4957, 8.507059e+37
    %v4959 = vand.u32 %v4932, 2147483648
    %v4960 = vor.u32 1.1754944e-38, %v4959
    %v4961 = vsel %vm4958, %v4960, %v4956
    %v4962 = vmul.f32 1.0, %v4961
    %v4965 = vrot.slane %v4836, 5
    %v4966 = vrot.slane %v4862, 5
    %v4969 = vadd.f32 %v966, %v4965
    %v4970 = vadd.f32 %v992, %v4966
    %v4971 = vxor.u32 %v4969, 2147483648
    %v4972 = vxor.u32 %v4970, 2147483648
    %v4973 = vmul.f32 %v4971, 1.442695
    %v4974 = vpow.pop %v4973
    %v4975 = vmul.f32 %v4972, 1.442695
    %v4976 = vpow.pop %v4975
    %v4977 = vadd.f32 %v4974, 1.0
    %v4978 = vadd.f32 %v4976, 1.0
    %v4979 = vrcp.pop %v4977
    %v4980 = vmul.f32 %v4977, %v4979
    %v4981 = vsub.f32 1.0, %v4980
    %v4982 = vmul.f32 %v4979, %v4981
    %v4983 = vadd.f32 %v4979, %v4982
    %vm4984 = vweird.f32 %v4977
    %vm4985 = vweird.f32 %v4979
    %vm4986 = vmor %vm4984, %vm4985
    %v4987 = vsel %vm4986, %v4979, %v4983
    %v4988 = vand.u32 2147483647, %v4977
    %vm4989 = vcmp.eq.f32.partialorder %v4988, 8.507059e+37
    %v4990 = vand.u32 %v4977, 2147483648
    %v4991 = vor.u32 1.1754944e-38, %v4990
    %v4992 = vsel %vm4989, %v4991, %v4987
    %v4993 = vmul.f32 1.0, %v4992
    %v4994 = vrcp.pop %v4978
    %v4995 = vmul.f32 %v4978, %v4994
    %v4996 = vsub.f32 1.0, %v4995
    %v4997 = vmul.f32 %v4994, %v4996
    %v4998 = vadd.f32 %v4994, %v4997
    %vm4999 = vweird.f32 %v4978
    %vm5000 = vweird.f32 %v4994
    %vm5001 = vmor %vm4999, %vm5000
    %v5002 = vsel %vm5001, %v4994, %v4998
    %v5003 = vand.u32 2147483647, %v4978
    %vm5004 = vcmp.eq.f32.partialorder %v5003, 8.507059e+37
    %v5005 = vand.u32 %v4978, 2147483648
    %v5006 = vor.u32 1.1754944e-38, %v5005
    %v5007 = vsel %vm5004, %v5006, %v5002
    %v5008 = vmul.f32 1.0, %v5007
    %v5011 = vrot.slane %v4888, 5
    %v5012 = vrot.slane %v4914, 5
    %v5015 = vmul.f32 %v4947, %v5011
    %v5016 = vmul.f32 %v4962, %v5012
    %v5017 = vadd.f32 %v1018, %v5015
    %v5018 = vadd.f32 %v1044, %v5016
    %v5019 = vtanh.pop %v5017
    %v5020 = vtanh.pop %v5018
    %v5021 = vsub.f32 1.0, %v4993
    %v5022 = vsub.f32 1.0, %v5008
    %v5023 = vmul.f32 %v5021, %v5019
    %v5024 = vmul.f32 %v5022, %v5020
    %v5027 = vrot.slane %v4343, 7
    %v5028 = vrot.slane %v4344, 7
    %v5031 = vmul.f32 %v4993, %v5027
    %v5032 = vmul.f32 %v5008, %v5028
    %v5033 = vadd.f32 %v5023, %v5031
    %v5034 = vadd.f32 %v5024, %v5032
    %v5035 = vpack.c.bf16 %v5033, %v5033
    %v5036 = vpack.c.bf16 %v5034, %v5034
    %v5038 = vshrl.u32 %v5035, 16
    %v5040 = vrot.slane %v5038, 1
    %v5042 = vshrl.u32 %v5036, 16
    %v5044 = vrot.slane %v5042, 1
    %5047 = vmatpush.bf16.msra.mxu0 %v2317
    %5048 = vmatpush.bf16.msra.mxu0 %v2311
    %5049 = vmatpush.bf16.msra.mxu0 %v2305
    %5050 = vmatpush.bf16.msra.mxu0 %v2299
    %5051 = vmatpush.bf16.msra.mxu0 %v2293
    %5052 = vmatpush.bf16.msra.mxu0 %v2287
    %5053 = vmatpush.bf16.msra.mxu0 %v2281
    %5054 = vmatpush.bf16.msra.mxu0 %v2275
    %5055 = vmatmul.bf16.gmra.mxu0 %v5040
    %v5056 = vpop.f32.mrf.mxu0
    %v5057 = vadd.f32 %v2468, %v5056
    %v5058 = vpop.f32.mrf.mxu0
    %5059 = vdwg.mxu0
    %5060 = vmatpush.bf16.msra.mxu0 %v2365
    %5061 = vmatpush.bf16.msra.mxu0 %v2359
    %5062 = vmatpush.bf16.msra.mxu0 %v2353
    %5063 = vmatpush.bf16.msra.mxu0 %v2347
    %5064 = vmatpush.bf16.msra.mxu0 %v2341
    %5065 = vmatpush.bf16.msra.mxu0 %v2335
    %5066 = vmatpush.bf16.msra.mxu0 %v2329
    %5067 = vmatpush.bf16.msra.mxu0 %v2323
    %5068 = vmatmul.bf16.gmra.mxu0 %v5044
    %v5069 = vpop.f32.mrf.mxu0
    %v5070 = vadd.f32 %v5057, %v5069
    %v5071 = vpop.f32.mrf.mxu0
    %5072 = vdwg.mxu0
    %5073 = vmatpush.bf16.msra.mxu0 %v2318
    %5074 = vmatpush.bf16.msra.mxu0 %v2312
    %5075 = vmatpush.bf16.msra.mxu0 %v2306
    %5076 = vmatpush.bf16.msra.mxu0 %v2300
    %5077 = vmatpush.bf16.msra.mxu0 %v2294
    %5078 = vmatpush.bf16.msra.mxu0 %v2288
    %5079 = vmatpush.bf16.msra.mxu0 %v2282
    %5080 = vmatpush.bf16.msra.mxu0 %v2276
    %5081 = vmatmul.bf16.gmra.mxu0 %v5040
    %v5082 = vpop.f32.mrf.mxu0
    %v5083 = vadd.f32 %v2469, %v5082
    %v5084 = vpop.f32.mrf.mxu0
    %5085 = vdwg.mxu0
    %5086 = vmatpush.bf16.msra.mxu0 %v2366
    %5087 = vmatpush.bf16.msra.mxu0 %v2360
    %5088 = vmatpush.bf16.msra.mxu0 %v2354
    %5089 = vmatpush.bf16.msra.mxu0 %v2348
    %5090 = vmatpush.bf16.msra.mxu0 %v2342
    %5091 = vmatpush.bf16.msra.mxu0 %v2336
    %5092 = vmatpush.bf16.msra.mxu0 %v2330
    %5093 = vmatpush.bf16.msra.mxu0 %v2324
    %5094 = vmatmul.bf16.gmra.mxu0 %v5044
    %v5095 = vpop.f32.mrf.mxu0
    %v5096 = vadd.f32 %v5083, %v5095
    %v5097 = vpop.f32.mrf.mxu0
    %5098 = vdwg.mxu0
    %5099 = vmatpush.bf16.msra.mxu0 %v2319
    %5100 = vmatpush.bf16.msra.mxu0 %v2313
    %5101 = vmatpush.bf16.msra.mxu0 %v2307
    %5102 = vmatpush.bf16.msra.mxu0 %v2301
    %5103 = vmatpush.bf16.msra.mxu0 %v2295
    %5104 = vmatpush.bf16.msra.mxu0 %v2289
    %5105 = vmatpush.bf16.msra.mxu0 %v2283
    %5106 = vmatpush.bf16.msra.mxu0 %v2277
    %5107 = vmatmul.bf16.gmra.mxu0 %v5040
    %v5108 = vpop.f32.mrf.mxu0
    %v5109 = vadd.f32 %v2470, %v5108
    %v5110 = vpop.f32.mrf.mxu0
    %5111 = vdwg.mxu0
    %5112 = vmatpush.bf16.msra.mxu0 %v2367
    %5113 = vmatpush.bf16.msra.mxu0 %v2361
    %5114 = vmatpush.bf16.msra.mxu0 %v2355
    %5115 = vmatpush.bf16.msra.mxu0 %v2349
    %5116 = vmatpush.bf16.msra.mxu0 %v2343
    %5117 = vmatpush.bf16.msra.mxu0 %v2337
    %5118 = vmatpush.bf16.msra.mxu0 %v2331
    %5119 = vmatpush.bf16.msra.mxu0 %v2325
    %5120 = vmatmul.bf16.gmra.mxu0 %v5044
    %v5121 = vpop.f32.mrf.mxu0
    %v5122 = vadd.f32 %v5109, %v5121
    %v5123 = vpop.f32.mrf.mxu0
    %5124 = vdwg.mxu0
    %5125 = vmatpush.bf16.msra.mxu0 %v2320
    %5126 = vmatpush.bf16.msra.mxu0 %v2314
    %5127 = vmatpush.bf16.msra.mxu0 %v2308
    %5128 = vmatpush.bf16.msra.mxu0 %v2302
    %5129 = vmatpush.bf16.msra.mxu0 %v2296
    %5130 = vmatpush.bf16.msra.mxu0 %v2290
    %5131 = vmatpush.bf16.msra.mxu0 %v2284
    %5132 = vmatpush.bf16.msra.mxu0 %v2278
    %5133 = vmatmul.bf16.gmra.mxu0 %v5040
    %v5134 = vpop.f32.mrf.mxu0
    %v5135 = vadd.f32 %v2471, %v5134
    %v5136 = vpop.f32.mrf.mxu0
    %5137 = vdwg.mxu0
    %5138 = vmatpush.bf16.msra.mxu0 %v2368
    %5139 = vmatpush.bf16.msra.mxu0 %v2362
    %5140 = vmatpush.bf16.msra.mxu0 %v2356
    %5141 = vmatpush.bf16.msra.mxu0 %v2350
    %5142 = vmatpush.bf16.msra.mxu0 %v2344
    %5143 = vmatpush.bf16.msra.mxu0 %v2338
    %5144 = vmatpush.bf16.msra.mxu0 %v2332
    %5145 = vmatpush.bf16.msra.mxu0 %v2326
    %5146 = vmatmul.bf16.gmra.mxu0 %v5044
    %v5147 = vpop.f32.mrf.mxu0
    %v5148 = vadd.f32 %v5135, %v5147
    %v5149 = vpop.f32.mrf.mxu0
    %5150 = vdwg.mxu0
    %5151 = vmatpush.bf16.msra.mxu0 %v2321
    %5152 = vmatpush.bf16.msra.mxu0 %v2315
    %5153 = vmatpush.bf16.msra.mxu0 %v2309
    %5154 = vmatpush.bf16.msra.mxu0 %v2303
    %5155 = vmatpush.bf16.msra.mxu0 %v2297
    %5156 = vmatpush.bf16.msra.mxu0 %v2291
    %5157 = vmatpush.bf16.msra.mxu0 %v2285
    %5158 = vmatpush.bf16.msra.mxu0 %v2279
    %5159 = vmatmul.bf16.gmra.mxu0 %v5040
    %v5160 = vpop.f32.mrf.mxu0
    %v5161 = vadd.f32 %v2472, %v5160
    %v5162 = vpop.f32.mrf.mxu0
    %5163 = vdwg.mxu0
    %5164 = vmatpush.bf16.msra.mxu0 %v2369
    %5165 = vmatpush.bf16.msra.mxu0 %v2363
    %5166 = vmatpush.bf16.msra.mxu0 %v2357
    %5167 = vmatpush.bf16.msra.mxu0 %v2351
    %5168 = vmatpush.bf16.msra.mxu0 %v2345
    %5169 = vmatpush.bf16.msra.mxu0 %v2339
    %5170 = vmatpush.bf16.msra.mxu0 %v2333
    %5171 = vmatpush.bf16.msra.mxu0 %v2327
    %5172 = vmatmul.bf16.gmra.mxu0 %v5044
    %v5173 = vpop.f32.mrf.mxu0
    %v5174 = vadd.f32 %v5161, %v5173
    %v5175 = vpop.f32.mrf.mxu0
    %5176 = vdwg.mxu0
    %5177 = vmatpush.bf16.msra.mxu0 %v2322
    %5178 = vmatpush.bf16.msra.mxu0 %v2316
    %5179 = vmatpush.bf16.msra.mxu0 %v2310
    %5180 = vmatpush.bf16.msra.mxu0 %v2304
    %5181 = vmatpush.bf16.msra.mxu0 %v2298
    %5182 = vmatpush.bf16.msra.mxu0 %v2292
    %5183 = vmatpush.bf16.msra.mxu0 %v2286
    %5184 = vmatpush.bf16.msra.mxu0 %v2280
    %5185 = vmatmul.bf16.gmra.mxu0 %v5040
    %v5186 = vpop.f32.mrf.mxu0
    %v5187 = vadd.f32 %v2473, %v5186
    %v5188 = vpop.f32.mrf.mxu0
    %5189 = vdwg.mxu0
    %5190 = vmatpush.bf16.msra.mxu0 %v2370
    %5191 = vmatpush.bf16.msra.mxu0 %v2364
    %5192 = vmatpush.bf16.msra.mxu0 %v2358
    %5193 = vmatpush.bf16.msra.mxu0 %v2352
    %5194 = vmatpush.bf16.msra.mxu0 %v2346
    %5195 = vmatpush.bf16.msra.mxu0 %v2340
    %5196 = vmatpush.bf16.msra.mxu0 %v2334
    %5197 = vmatpush.bf16.msra.mxu0 %v2328
    %5198 = vmatmul.bf16.gmra.mxu0 %v5044
    %v5199 = vpop.f32.mrf.mxu0
    %v5200 = vadd.f32 %v5187, %v5199
    %v5201 = vpop.f32.mrf.mxu0
    %5202 = vdwg.mxu0
    %v5203 = vpack.c.bf16 %v4759, %v4759
    %v5204 = vpack.c.bf16 %v4760, %v4760
    %5205 = vmatpush.bf16.msra.mxu0 %v2966
    %5206 = vmatpush.bf16.msra.mxu0 %v2960
    %5207 = vmatpush.bf16.msra.mxu0 %v2954
    %5208 = vmatpush.bf16.msra.mxu0 %v2948
    %5209 = vmatpush.bf16.msra.mxu0 %v2942
    %5210 = vmatpush.bf16.msra.mxu0 %v2936
    %5211 = vmatpush.bf16.msra.mxu0 %v2930
    %5212 = vmatpush.bf16.msra.mxu0 %v2924
    %5213 = vmatmul.bf16.gmra.mxu0 %v5203
    %v5214 = vpop.f32.mrf.mxu0
    %v5215 = vadd.f32 %v3117, %v5214
    %v5216 = vpop.f32.mrf.mxu0
    %5217 = vdwg.mxu0
    %5218 = vmatpush.bf16.msra.mxu0 %v3014
    %5219 = vmatpush.bf16.msra.mxu0 %v3008
    %5220 = vmatpush.bf16.msra.mxu0 %v3002
    %5221 = vmatpush.bf16.msra.mxu0 %v2996
    %5222 = vmatpush.bf16.msra.mxu0 %v2990
    %5223 = vmatpush.bf16.msra.mxu0 %v2984
    %5224 = vmatpush.bf16.msra.mxu0 %v2978
    %5225 = vmatpush.bf16.msra.mxu0 %v2972
    %5226 = vmatmul.bf16.gmra.mxu0 %v5204
    %v5227 = vpop.f32.mrf.mxu0
    %v5228 = vadd.f32 %v5215, %v5227
    %v5229 = vpop.f32.mrf.mxu0
    %5230 = vdwg.mxu0
    %5231 = vmatpush.bf16.msra.mxu0 %v2967
    %5232 = vmatpush.bf16.msra.mxu0 %v2961
    %5233 = vmatpush.bf16.msra.mxu0 %v2955
    %5234 = vmatpush.bf16.msra.mxu0 %v2949
    %5235 = vmatpush.bf16.msra.mxu0 %v2943
    %5236 = vmatpush.bf16.msra.mxu0 %v2937
    %5237 = vmatpush.bf16.msra.mxu0 %v2931
    %5238 = vmatpush.bf16.msra.mxu0 %v2925
    %5239 = vmatmul.bf16.gmra.mxu0 %v5203
    %v5240 = vpop.f32.mrf.mxu0
    %v5241 = vadd.f32 %v3118, %v5240
    %v5242 = vpop.f32.mrf.mxu0
    %5243 = vdwg.mxu0
    %5244 = vmatpush.bf16.msra.mxu0 %v3015
    %5245 = vmatpush.bf16.msra.mxu0 %v3009
    %5246 = vmatpush.bf16.msra.mxu0 %v3003
    %5247 = vmatpush.bf16.msra.mxu0 %v2997
    %5248 = vmatpush.bf16.msra.mxu0 %v2991
    %5249 = vmatpush.bf16.msra.mxu0 %v2985
    %5250 = vmatpush.bf16.msra.mxu0 %v2979
    %5251 = vmatpush.bf16.msra.mxu0 %v2973
    %5252 = vmatmul.bf16.gmra.mxu0 %v5204
    %v5253 = vpop.f32.mrf.mxu0
    %v5254 = vadd.f32 %v5241, %v5253
    %v5255 = vpop.f32.mrf.mxu0
    %5256 = vdwg.mxu0
    %5257 = vmatpush.bf16.msra.mxu0 %v2968
    %5258 = vmatpush.bf16.msra.mxu0 %v2962
    %5259 = vmatpush.bf16.msra.mxu0 %v2956
    %5260 = vmatpush.bf16.msra.mxu0 %v2950
    %5261 = vmatpush.bf16.msra.mxu0 %v2944
    %5262 = vmatpush.bf16.msra.mxu0 %v2938
    %5263 = vmatpush.bf16.msra.mxu0 %v2932
    %5264 = vmatpush.bf16.msra.mxu0 %v2926
    %5265 = vmatmul.bf16.gmra.mxu0 %v5203
    %v5266 = vpop.f32.mrf.mxu0
    %v5267 = vadd.f32 %v3119, %v5266
    %v5268 = vpop.f32.mrf.mxu0
    %5269 = vdwg.mxu0
    %5270 = vmatpush.bf16.msra.mxu0 %v3016
    %5271 = vmatpush.bf16.msra.mxu0 %v3010
    %5272 = vmatpush.bf16.msra.mxu0 %v3004
    %5273 = vmatpush.bf16.msra.mxu0 %v2998
    %5274 = vmatpush.bf16.msra.mxu0 %v2992
    %5275 = vmatpush.bf16.msra.mxu0 %v2986
    %5276 = vmatpush.bf16.msra.mxu0 %v2980
    %5277 = vmatpush.bf16.msra.mxu0 %v2974
    %5278 = vmatmul.bf16.gmra.mxu0 %v5204
    %v5279 = vpop.f32.mrf.mxu0
    %v5280 = vadd.f32 %v5267, %v5279
    %v5281 = vpop.f32.mrf.mxu0
    %5282 = vdwg.mxu0
    %5283 = vmatpush.bf16.msra.mxu0 %v2969
    %5284 = vmatpush.bf16.msra.mxu0 %v2963
    %5285 = vmatpush.bf16.msra.mxu0 %v2957
    %5286 = vmatpush.bf16.msra.mxu0 %v2951
    %5287 = vmatpush.bf16.msra.mxu0 %v2945
    %5288 = vmatpush.bf16.msra.mxu0 %v2939
    %5289 = vmatpush.bf16.msra.mxu0 %v2933
    %5290 = vmatpush.bf16.msra.mxu0 %v2927
    %5291 = vmatmul.bf16.gmra.mxu0 %v5203
    %v5292 = vpop.f32.mrf.mxu0
    %v5293 = vadd.f32 %v3120, %v5292
    %v5294 = vpop.f32.mrf.mxu0
    %5295 = vdwg.mxu0
    %5296 = vmatpush.bf16.msra.mxu0 %v3017
    %5297 = vmatpush.bf16.msra.mxu0 %v3011
    %5298 = vmatpush.bf16.msra.mxu0 %v3005
    %5299 = vmatpush.bf16.msra.mxu0 %v2999
    %5300 = vmatpush.bf16.msra.mxu0 %v2993
    %5301 = vmatpush.bf16.msra.mxu0 %v2987
    %5302 = vmatpush.bf16.msra.mxu0 %v2981
    %5303 = vmatpush.bf16.msra.mxu0 %v2975
    %5304 = vmatmul.bf16.gmra.mxu0 %v5204
    %v5305 = vpop.f32.mrf.mxu0
    %v5306 = vadd.f32 %v5293, %v5305
    %v5307 = vpop.f32.mrf.mxu0
    %5308 = vdwg.mxu0
    %5309 = vmatpush.bf16.msra.mxu0 %v2970
    %5310 = vmatpush.bf16.msra.mxu0 %v2964
    %5311 = vmatpush.bf16.msra.mxu0 %v2958
    %5312 = vmatpush.bf16.msra.mxu0 %v2952
    %5313 = vmatpush.bf16.msra.mxu0 %v2946
    %5314 = vmatpush.bf16.msra.mxu0 %v2940
    %5315 = vmatpush.bf16.msra.mxu0 %v2934
    %5316 = vmatpush.bf16.msra.mxu0 %v2928
    %5317 = vmatmul.bf16.gmra.mxu0 %v5203
    %v5318 = vpop.f32.mrf.mxu0
    %v5319 = vadd.f32 %v3121, %v5318
    %v5320 = vpop.f32.mrf.mxu0
    %5321 = vdwg.mxu0
    %5322 = vmatpush.bf16.msra.mxu0 %v3018
    %5323 = vmatpush.bf16.msra.mxu0 %v3012
    %5324 = vmatpush.bf16.msra.mxu0 %v3006
    %5325 = vmatpush.bf16.msra.mxu0 %v3000
    %5326 = vmatpush.bf16.msra.mxu0 %v2994
    %5327 = vmatpush.bf16.msra.mxu0 %v2988
    %5328 = vmatpush.bf16.msra.mxu0 %v2982
    %5329 = vmatpush.bf16.msra.mxu0 %v2976
    %5330 = vmatmul.bf16.gmra.mxu0 %v5204
    %v5331 = vpop.f32.mrf.mxu0
    %v5332 = vadd.f32 %v5319, %v5331
    %v5333 = vpop.f32.mrf.mxu0
    %5334 = vdwg.mxu0
    %5335 = vmatpush.bf16.msra.mxu0 %v2971
    %5336 = vmatpush.bf16.msra.mxu0 %v2965
    %5337 = vmatpush.bf16.msra.mxu0 %v2959
    %5338 = vmatpush.bf16.msra.mxu0 %v2953
    %5339 = vmatpush.bf16.msra.mxu0 %v2947
    %5340 = vmatpush.bf16.msra.mxu0 %v2941
    %5341 = vmatpush.bf16.msra.mxu0 %v2935
    %5342 = vmatpush.bf16.msra.mxu0 %v2929
    %5343 = vmatmul.bf16.gmra.mxu0 %v5203
    %v5344 = vpop.f32.mrf.mxu0
    %v5345 = vadd.f32 %v3122, %v5344
    %v5346 = vpop.f32.mrf.mxu0
    %5347 = vdwg.mxu0
    %5348 = vmatpush.bf16.msra.mxu0 %v3019
    %5349 = vmatpush.bf16.msra.mxu0 %v3013
    %5350 = vmatpush.bf16.msra.mxu0 %v3007
    %5351 = vmatpush.bf16.msra.mxu0 %v3001
    %5352 = vmatpush.bf16.msra.mxu0 %v2995
    %5353 = vmatpush.bf16.msra.mxu0 %v2989
    %5354 = vmatpush.bf16.msra.mxu0 %v2983
    %5355 = vmatpush.bf16.msra.mxu0 %v2977
    %5356 = vmatmul.bf16.gmra.mxu0 %v5204
    %v5357 = vpop.f32.mrf.mxu0
    %v5358 = vadd.f32 %v5345, %v5357
    %v5359 = vpop.f32.mrf.mxu0
    %5360 = vdwg.mxu0
    %v5361 = vadd.f32 %v5070, %v5228
    %v5362 = vadd.f32 %v5096, %v5254
    %v5363 = vxor.u32 %v5361, 2147483648
    %v5364 = vxor.u32 %v5362, 2147483648
    %v5365 = vmul.f32 %v5363, 1.442695
    %v5366 = vpow.pop %v5365
    %v5367 = vmul.f32 %v5364, 1.442695
    %v5368 = vpow.pop %v5367
    %v5369 = vadd.f32 %v5366, 1.0
    %v5370 = vadd.f32 %v5368, 1.0
    %v5371 = vrcp.pop %v5369
    %v5372 = vmul.f32 %v5369, %v5371
    %v5373 = vsub.f32 1.0, %v5372
    %v5374 = vmul.f32 %v5371, %v5373
    %v5375 = vadd.f32 %v5371, %v5374
    %vm5376 = vweird.f32 %v5369
    %vm5377 = vweird.f32 %v5371
    %vm5378 = vmor %vm5376, %vm5377
    %v5379 = vsel %vm5378, %v5371, %v5375
    %v5380 = vand.u32 2147483647, %v5369
    %vm5381 = vcmp.eq.f32.partialorder %v5380, 8.507059e+37
    %v5382 = vand.u32 %v5369, 2147483648
    %v5383 = vor.u32 1.1754944e-38, %v5382
    %v5384 = vsel %vm5381, %v5383, %v5379
    %v5385 = vmul.f32 1.0, %v5384
    %v5386 = vrcp.pop %v5370
    %v5387 = vmul.f32 %v5370, %v5386
    %v5388 = vsub.f32 1.0, %v5387
    %v5389 = vmul.f32 %v5386, %v5388
    %v5390 = vadd.f32 %v5386, %v5389
    %vm5391 = vweird.f32 %v5370
    %vm5392 = vweird.f32 %v5386
    %vm5393 = vmor %vm5391, %vm5392
    %v5394 = vsel %vm5393, %v5386, %v5390
    %v5395 = vand.u32 2147483647, %v5370
    %vm5396 = vcmp.eq.f32.partialorder %v5395, 8.507059e+37
    %v5397 = vand.u32 %v5370, 2147483648
    %v5398 = vor.u32 1.1754944e-38, %v5397
    %v5399 = vsel %vm5396, %v5398, %v5394
    %v5400 = vmul.f32 1.0, %v5399
    %v5401 = vadd.f32 %v5122, %v5280
    %v5402 = vadd.f32 %v5148, %v5306
    %v5403 = vxor.u32 %v5401, 2147483648
    %v5404 = vxor.u32 %v5402, 2147483648
    %v5405 = vmul.f32 %v5403, 1.442695
    %v5406 = vpow.pop %v5405
    %v5407 = vmul.f32 %v5404, 1.442695
    %v5408 = vpow.pop %v5407
    %v5409 = vadd.f32 %v5406, 1.0
    %v5410 = vadd.f32 %v5408, 1.0
    %v5411 = vrcp.pop %v5409
    %v5412 = vmul.f32 %v5409, %v5411
    %v5413 = vsub.f32 1.0, %v5412
    %v5414 = vmul.f32 %v5411, %v5413
    %v5415 = vadd.f32 %v5411, %v5414
    %vm5416 = vweird.f32 %v5409
    %vm5417 = vweird.f32 %v5411
    %vm5418 = vmor %vm5416, %vm5417
    %v5419 = vsel %vm5418, %v5411, %v5415
    %v5420 = vand.u32 2147483647, %v5409
    %vm5421 = vcmp.eq.f32.partialorder %v5420, 8.507059e+37
    %v5422 = vand.u32 %v5409, 2147483648
    %v5423 = vor.u32 1.1754944e-38, %v5422
    %v5424 = vsel %vm5421, %v5423, %v5419
    %v5425 = vmul.f32 1.0, %v5424
    %v5426 = vrcp.pop %v5410
    %v5427 = vmul.f32 %v5410, %v5426
    %v5428 = vsub.f32 1.0, %v5427
    %v5429 = vmul.f32 %v5426, %v5428
    %v5430 = vadd.f32 %v5426, %v5429
    %vm5431 = vweird.f32 %v5410
    %vm5432 = vweird.f32 %v5426
    %vm5433 = vmor %vm5431, %vm5432
    %v5434 = vsel %vm5433, %v5426, %v5430
    %v5435 = vand.u32 2147483647, %v5410
    %vm5436 = vcmp.eq.f32.partialorder %v5435, 8.507059e+37
    %v5437 = vand.u32 %v5410, 2147483648
    %v5438 = vor.u32 1.1754944e-38, %v5437
    %v5439 = vsel %vm5436, %v5438, %v5434
    %v5440 = vmul.f32 1.0, %v5439
    %v5441 = vmul.f32 %v5385, %v5332
    %v5442 = vmul.f32 %v5400, %v5358
    %v5443 = vadd.f32 %v5174, %v5441
    %v5444 = vadd.f32 %v5200, %v5442
    %v5445 = vtanh.pop %v5443
    %v5446 = vtanh.pop %v5444
    %v5447 = vsub.f32 1.0, %v5425
    %v5448 = vsub.f32 1.0, %v5440
    %v5449 = vmul.f32 %v5447, %v5445
    %v5450 = vmul.f32 %v5448, %v5446
    %v5451 = vmul.f32 %v5425, %v4759
    %v5452 = vmul.f32 %v5440, %v4760
    %v5453 = vadd.f32 %v5449, %v5451
    %v5454 = vadd.f32 %v5450, %v5452
    %5455 = vmatpush.bf16.msra.mxu0 %v1572
    %5456 = vmatpush.bf16.msra.mxu0 %v1566
    %5457 = vmatpush.bf16.msra.mxu0 %v1560
    %5458 = vmatpush.bf16.msra.mxu0 %v1554
    %5459 = vmatpush.bf16.msra.mxu0 %v1548
    %5460 = vmatpush.bf16.msra.mxu0 %v1542
    %5461 = vmatpush.bf16.msra.mxu0 %v1536
    %5462 = vmatpush.bf16.msra.mxu0 %v1530
    %5463 = vmatmul.bf16.gmra.mxu0 %v5040
    %v5464 = vpop.f32.mrf.mxu0
    %v5465 = vadd.f32 %v1723, %v5464
    %v5466 = vpop.f32.mrf.mxu0
    %5467 = vdwg.mxu0
    %5468 = vmatpush.bf16.msra.mxu0 %v1620
    %5469 = vmatpush.bf16.msra.mxu0 %v1614
    %5470 = vmatpush.bf16.msra.mxu0 %v1608
    %5471 = vmatpush.bf16.msra.mxu0 %v1602
    %5472 = vmatpush.bf16.msra.mxu0 %v1596
    %5473 = vmatpush.bf16.msra.mxu0 %v1590
    %5474 = vmatpush.bf16.msra.mxu0 %v1584
    %5475 = vmatpush.bf16.msra.mxu0 %v1578
    %5476 = vmatmul.bf16.gmra.mxu0 %v5044
    %v5477 = vpop.f32.mrf.mxu0
    %v5478 = vadd.f32 %v5465, %v5477
    %v5479 = vpop.f32.mrf.mxu0
    %5480 = vdwg.mxu0
    %5481 = vmatpush.bf16.msra.mxu0 %v1573
    %5482 = vmatpush.bf16.msra.mxu0 %v1567
    %5483 = vmatpush.bf16.msra.mxu0 %v1561
    %5484 = vmatpush.bf16.msra.mxu0 %v1555
    %5485 = vmatpush.bf16.msra.mxu0 %v1549
    %5486 = vmatpush.bf16.msra.mxu0 %v1543
    %5487 = vmatpush.bf16.msra.mxu0 %v1537
    %5488 = vmatpush.bf16.msra.mxu0 %v1531
    %5489 = vmatmul.bf16.gmra.mxu0 %v5040
    %v5490 = vpop.f32.mrf.mxu0
    %v5491 = vadd.f32 %v1724, %v5490
    %v5492 = vpop.f32.mrf.mxu0
    %5493 = vdwg.mxu0
    %5494 = vmatpush.bf16.msra.mxu0 %v1621
    %5495 = vmatpush.bf16.msra.mxu0 %v1615
    %5496 = vmatpush.bf16.msra.mxu0 %v1609
    %5497 = vmatpush.bf16.msra.mxu0 %v1603
    %5498 = vmatpush.bf16.msra.mxu0 %v1597
    %5499 = vmatpush.bf16.msra.mxu0 %v1591
    %5500 = vmatpush.bf16.msra.mxu0 %v1585
    %5501 = vmatpush.bf16.msra.mxu0 %v1579
    %5502 = vmatmul.bf16.gmra.mxu0 %v5044
    %v5503 = vpop.f32.mrf.mxu0
    %v5504 = vadd.f32 %v5491, %v5503
    %v5505 = vpop.f32.mrf.mxu0
    %5506 = vdwg.mxu0
    %5507 = vmatpush.bf16.msra.mxu0 %v1574
    %5508 = vmatpush.bf16.msra.mxu0 %v1568
    %5509 = vmatpush.bf16.msra.mxu0 %v1562
    %5510 = vmatpush.bf16.msra.mxu0 %v1556
    %5511 = vmatpush.bf16.msra.mxu0 %v1550
    %5512 = vmatpush.bf16.msra.mxu0 %v1544
    %5513 = vmatpush.bf16.msra.mxu0 %v1538
    %5514 = vmatpush.bf16.msra.mxu0 %v1532
    %5515 = vmatmul.bf16.gmra.mxu0 %v5040
    %v5516 = vpop.f32.mrf.mxu0
    %v5517 = vadd.f32 %v1725, %v5516
    %v5518 = vpop.f32.mrf.mxu0
    %5519 = vdwg.mxu0
    %5520 = vmatpush.bf16.msra.mxu0 %v1622
    %5521 = vmatpush.bf16.msra.mxu0 %v1616
    %5522 = vmatpush.bf16.msra.mxu0 %v1610
    %5523 = vmatpush.bf16.msra.mxu0 %v1604
    %5524 = vmatpush.bf16.msra.mxu0 %v1598
    %5525 = vmatpush.bf16.msra.mxu0 %v1592
    %5526 = vmatpush.bf16.msra.mxu0 %v1586
    %5527 = vmatpush.bf16.msra.mxu0 %v1580
    %5528 = vmatmul.bf16.gmra.mxu0 %v5044
    %v5529 = vpop.f32.mrf.mxu0
    %v5530 = vadd.f32 %v5517, %v5529
    %v5531 = vpop.f32.mrf.mxu0
    %5532 = vdwg.mxu0
    %5533 = vmatpush.bf16.msra.mxu0 %v1575
    %5534 = vmatpush.bf16.msra.mxu0 %v1569
    %5535 = vmatpush.bf16.msra.mxu0 %v1563
    %5536 = vmatpush.bf16.msra.mxu0 %v1557
    %5537 = vmatpush.bf16.msra.mxu0 %v1551
    %5538 = vmatpush.bf16.msra.mxu0 %v1545
    %5539 = vmatpush.bf16.msra.mxu0 %v1539
    %5540 = vmatpush.bf16.msra.mxu0 %v1533
    %5541 = vmatmul.bf16.gmra.mxu0 %v5040
    %v5542 = vpop.f32.mrf.mxu0
    %v5543 = vadd.f32 %v1726, %v5542
    %v5544 = vpop.f32.mrf.mxu0
    %5545 = vdwg.mxu0
    %5546 = vmatpush.bf16.msra.mxu0 %v1623
    %5547 = vmatpush.bf16.msra.mxu0 %v1617
    %5548 = vmatpush.bf16.msra.mxu0 %v1611
    %5549 = vmatpush.bf16.msra.mxu0 %v1605
    %5550 = vmatpush.bf16.msra.mxu0 %v1599
    %5551 = vmatpush.bf16.msra.mxu0 %v1593
    %5552 = vmatpush.bf16.msra.mxu0 %v1587
    %5553 = vmatpush.bf16.msra.mxu0 %v1581
    %5554 = vmatmul.bf16.gmra.mxu0 %v5044
    %v5555 = vpop.f32.mrf.mxu0
    %v5556 = vadd.f32 %v5543, %v5555
    %v5557 = vpop.f32.mrf.mxu0
    %5558 = vdwg.mxu0
    %5559 = vmatpush.bf16.msra.mxu0 %v1576
    %5560 = vmatpush.bf16.msra.mxu0 %v1570
    %5561 = vmatpush.bf16.msra.mxu0 %v1564
    %5562 = vmatpush.bf16.msra.mxu0 %v1558
    %5563 = vmatpush.bf16.msra.mxu0 %v1552
    %5564 = vmatpush.bf16.msra.mxu0 %v1546
    %5565 = vmatpush.bf16.msra.mxu0 %v1540
    %5566 = vmatpush.bf16.msra.mxu0 %v1534
    %5567 = vmatmul.bf16.gmra.mxu0 %v5040
    %v5568 = vpop.f32.mrf.mxu0
    %v5569 = vadd.f32 %v1727, %v5568
    %v5570 = vpop.f32.mrf.mxu0
    %5571 = vdwg.mxu0
    %5572 = vmatpush.bf16.msra.mxu0 %v1624
    %5573 = vmatpush.bf16.msra.mxu0 %v1618
    %5574 = vmatpush.bf16.msra.mxu0 %v1612
    %5575 = vmatpush.bf16.msra.mxu0 %v1606
    %5576 = vmatpush.bf16.msra.mxu0 %v1600
    %5577 = vmatpush.bf16.msra.mxu0 %v1594
    %5578 = vmatpush.bf16.msra.mxu0 %v1588
    %5579 = vmatpush.bf16.msra.mxu0 %v1582
    %5580 = vmatmul.bf16.gmra.mxu0 %v5044
    %v5581 = vpop.f32.mrf.mxu0
    %v5582 = vadd.f32 %v5569, %v5581
    %v5583 = vpop.f32.mrf.mxu0
    %5584 = vdwg.mxu0
    %5585 = vmatpush.bf16.msra.mxu0 %v1577
    %5586 = vmatpush.bf16.msra.mxu0 %v1571
    %5587 = vmatpush.bf16.msra.mxu0 %v1565
    %5588 = vmatpush.bf16.msra.mxu0 %v1559
    %5589 = vmatpush.bf16.msra.mxu0 %v1553
    %5590 = vmatpush.bf16.msra.mxu0 %v1547
    %5591 = vmatpush.bf16.msra.mxu0 %v1541
    %5592 = vmatpush.bf16.msra.mxu0 %v1535
    %5593 = vmatmul.bf16.gmra.mxu0 %v5040
    %v5594 = vpop.f32.mrf.mxu0
    %v5595 = vadd.f32 %v1728, %v5594
    %v5596 = vpop.f32.mrf.mxu0
    %5597 = vdwg.mxu0
    %5598 = vmatpush.bf16.msra.mxu0 %v1625
    %5599 = vmatpush.bf16.msra.mxu0 %v1619
    %5600 = vmatpush.bf16.msra.mxu0 %v1613
    %5601 = vmatpush.bf16.msra.mxu0 %v1607
    %5602 = vmatpush.bf16.msra.mxu0 %v1601
    %5603 = vmatpush.bf16.msra.mxu0 %v1595
    %5604 = vmatpush.bf16.msra.mxu0 %v1589
    %5605 = vmatpush.bf16.msra.mxu0 %v1583
    %5606 = vmatmul.bf16.gmra.mxu0 %v5044
    %v5607 = vpop.f32.mrf.mxu0
    %v5608 = vadd.f32 %v5595, %v5607
    %v5609 = vpop.f32.mrf.mxu0
    %5610 = vdwg.mxu0
    %v5613 = vrot.slane %v5478, 4
    %v5614 = vrot.slane %v5504, 4
    %v5617 = vadd.f32 %v914, %v5613
    %v5618 = vadd.f32 %v940, %v5614
    %v5619 = vxor.u32 %v5617, 2147483648
    %v5620 = vxor.u32 %v5618, 2147483648
    %v5621 = vmul.f32 %v5619, 1.442695
    %v5622 = vpow.pop %v5621
    %v5623 = vmul.f32 %v5620, 1.442695
    %v5624 = vpow.pop %v5623
    %v5625 = vadd.f32 %v5622, 1.0
    %v5626 = vadd.f32 %v5624, 1.0
    %v5627 = vrcp.pop %v5625
    %v5628 = vmul.f32 %v5625, %v5627
    %v5629 = vsub.f32 1.0, %v5628
    %v5630 = vmul.f32 %v5627, %v5629
    %v5631 = vadd.f32 %v5627, %v5630
    %vm5632 = vweird.f32 %v5625
    %vm5633 = vweird.f32 %v5627
    %vm5634 = vmor %vm5632, %vm5633
    %v5635 = vsel %vm5634, %v5627, %v5631
    %v5636 = vand.u32 2147483647, %v5625
    %vm5637 = vcmp.eq.f32.partialorder %v5636, 8.507059e+37
    %v5638 = vand.u32 %v5625, 2147483648
    %v5639 = vor.u32 1.1754944e-38, %v5638
    %v5640 = vsel %vm5637, %v5639, %v5635
    %v5641 = vmul.f32 1.0, %v5640
    %v5642 = vrcp.pop %v5626
    %v5643 = vmul.f32 %v5626, %v5642
    %v5644 = vsub.f32 1.0, %v5643
    %v5645 = vmul.f32 %v5642, %v5644
    %v5646 = vadd.f32 %v5642, %v5645
    %vm5647 = vweird.f32 %v5626
    %vm5648 = vweird.f32 %v5642
    %vm5649 = vmor %vm5647, %vm5648
    %v5650 = vsel %vm5649, %v5642, %v5646
    %v5651 = vand.u32 2147483647, %v5626
    %vm5652 = vcmp.eq.f32.partialorder %v5651, 8.507059e+37
    %v5653 = vand.u32 %v5626, 2147483648
    %v5654 = vor.u32 1.1754944e-38, %v5653
    %v5655 = vsel %vm5652, %v5654, %v5650
    %v5656 = vmul.f32 1.0, %v5655
    %v5659 = vrot.slane %v5530, 4
    %v5660 = vrot.slane %v5556, 4
    %v5663 = vadd.f32 %v966, %v5659
    %v5664 = vadd.f32 %v992, %v5660
    %v5665 = vxor.u32 %v5663, 2147483648
    %v5666 = vxor.u32 %v5664, 2147483648
    %v5667 = vmul.f32 %v5665, 1.442695
    %v5668 = vpow.pop %v5667
    %v5669 = vmul.f32 %v5666, 1.442695
    %v5670 = vpow.pop %v5669
    %v5671 = vadd.f32 %v5668, 1.0
    %v5672 = vadd.f32 %v5670, 1.0
    %v5673 = vrcp.pop %v5671
    %v5674 = vmul.f32 %v5671, %v5673
    %v5675 = vsub.f32 1.0, %v5674
    %v5676 = vmul.f32 %v5673, %v5675
    %v5677 = vadd.f32 %v5673, %v5676
    %vm5678 = vweird.f32 %v5671
    %vm5679 = vweird.f32 %v5673
    %vm5680 = vmor %vm5678, %vm5679
    %v5681 = vsel %vm5680, %v5673, %v5677
    %v5682 = vand.u32 2147483647, %v5671
    %vm5683 = vcmp.eq.f32.partialorder %v5682, 8.507059e+37
    %v5684 = vand.u32 %v5671, 2147483648
    %v5685 = vor.u32 1.1754944e-38, %v5684
    %v5686 = vsel %vm5683, %v5685, %v5681
    %v5687 = vmul.f32 1.0, %v5686
    %v5688 = vrcp.pop %v5672
    %v5689 = vmul.f32 %v5672, %v5688
    %v5690 = vsub.f32 1.0, %v5689
    %v5691 = vmul.f32 %v5688, %v5690
    %v5692 = vadd.f32 %v5688, %v5691
    %vm5693 = vweird.f32 %v5672
    %vm5694 = vweird.f32 %v5688
    %vm5695 = vmor %vm5693, %vm5694
    %v5696 = vsel %vm5695, %v5688, %v5692
    %v5697 = vand.u32 2147483647, %v5672
    %vm5698 = vcmp.eq.f32.partialorder %v5697, 8.507059e+37
    %v5699 = vand.u32 %v5672, 2147483648
    %v5700 = vor.u32 1.1754944e-38, %v5699
    %v5701 = vsel %vm5698, %v5700, %v5696
    %v5702 = vmul.f32 1.0, %v5701
    %v5705 = vrot.slane %v5582, 4
    %v5706 = vrot.slane %v5608, 4
    %v5709 = vmul.f32 %v5641, %v5705
    %v5710 = vmul.f32 %v5656, %v5706
    %v5711 = vadd.f32 %v1018, %v5709
    %v5712 = vadd.f32 %v1044, %v5710
    %v5713 = vtanh.pop %v5711
    %v5714 = vtanh.pop %v5712
    %v5715 = vsub.f32 1.0, %v5687
    %v5716 = vsub.f32 1.0, %v5702
    %v5717 = vmul.f32 %v5715, %v5713
    %v5718 = vmul.f32 %v5716, %v5714
    %v5721 = vrot.slane %v5033, 7
    %v5722 = vrot.slane %v5034, 7
    %v5725 = vmul.f32 %v5687, %v5721
    %v5726 = vmul.f32 %v5702, %v5722
    %v5727 = vadd.f32 %v5717, %v5725
    %v5728 = vadd.f32 %v5718, %v5726
    %v5729 = vpack.c.bf16 %v5727, %v5727
    %v5730 = vpack.c.bf16 %v5728, %v5728
    %v5733 = vrot.slane %v5729, 2
    %v5734 = vrot.slane %v5730, 2
    %5737 = vmatpush.bf16.msra.mxu0 %v2317
    %5738 = vmatpush.bf16.msra.mxu0 %v2311
    %5739 = vmatpush.bf16.msra.mxu0 %v2305
    %5740 = vmatpush.bf16.msra.mxu0 %v2299
    %5741 = vmatpush.bf16.msra.mxu0 %v2293
    %5742 = vmatpush.bf16.msra.mxu0 %v2287
    %5743 = vmatpush.bf16.msra.mxu0 %v2281
    %5744 = vmatpush.bf16.msra.mxu0 %v2275
    %5745 = vmatmul.bf16.gmra.mxu0 %v5733
    %v5746 = vpop.f32.mrf.mxu0
    %v5747 = vadd.f32 %v2468, %v5746
    %v5748 = vpop.f32.mrf.mxu0
    %5749 = vdwg.mxu0
    %5750 = vmatpush.bf16.msra.mxu0 %v2365
    %5751 = vmatpush.bf16.msra.mxu0 %v2359
    %5752 = vmatpush.bf16.msra.mxu0 %v2353
    %5753 = vmatpush.bf16.msra.mxu0 %v2347
    %5754 = vmatpush.bf16.msra.mxu0 %v2341
    %5755 = vmatpush.bf16.msra.mxu0 %v2335
    %5756 = vmatpush.bf16.msra.mxu0 %v2329
    %5757 = vmatpush.bf16.msra.mxu0 %v2323
    %5758 = vmatmul.bf16.gmra.mxu0 %v5734
    %v5759 = vpop.f32.mrf.mxu0
    %v5760 = vadd.f32 %v5747, %v5759
    %v5761 = vpop.f32.mrf.mxu0
    %5762 = vdwg.mxu0
    %5763 = vmatpush.bf16.msra.mxu0 %v2318
    %5764 = vmatpush.bf16.msra.mxu0 %v2312
    %5765 = vmatpush.bf16.msra.mxu0 %v2306
    %5766 = vmatpush.bf16.msra.mxu0 %v2300
    %5767 = vmatpush.bf16.msra.mxu0 %v2294
    %5768 = vmatpush.bf16.msra.mxu0 %v2288
    %5769 = vmatpush.bf16.msra.mxu0 %v2282
    %5770 = vmatpush.bf16.msra.mxu0 %v2276
    %5771 = vmatmul.bf16.gmra.mxu0 %v5733
    %v5772 = vpop.f32.mrf.mxu0
    %v5773 = vadd.f32 %v2469, %v5772
    %v5774 = vpop.f32.mrf.mxu0
    %5775 = vdwg.mxu0
    %5776 = vmatpush.bf16.msra.mxu0 %v2366
    %5777 = vmatpush.bf16.msra.mxu0 %v2360
    %5778 = vmatpush.bf16.msra.mxu0 %v2354
    %5779 = vmatpush.bf16.msra.mxu0 %v2348
    %5780 = vmatpush.bf16.msra.mxu0 %v2342
    %5781 = vmatpush.bf16.msra.mxu0 %v2336
    %5782 = vmatpush.bf16.msra.mxu0 %v2330
    %5783 = vmatpush.bf16.msra.mxu0 %v2324
    %5784 = vmatmul.bf16.gmra.mxu0 %v5734
    %v5785 = vpop.f32.mrf.mxu0
    %v5786 = vadd.f32 %v5773, %v5785
    %v5787 = vpop.f32.mrf.mxu0
    %5788 = vdwg.mxu0
    %5789 = vmatpush.bf16.msra.mxu0 %v2319
    %5790 = vmatpush.bf16.msra.mxu0 %v2313
    %5791 = vmatpush.bf16.msra.mxu0 %v2307
    %5792 = vmatpush.bf16.msra.mxu0 %v2301
    %5793 = vmatpush.bf16.msra.mxu0 %v2295
    %5794 = vmatpush.bf16.msra.mxu0 %v2289
    %5795 = vmatpush.bf16.msra.mxu0 %v2283
    %5796 = vmatpush.bf16.msra.mxu0 %v2277
    %5797 = vmatmul.bf16.gmra.mxu0 %v5733
    %v5798 = vpop.f32.mrf.mxu0
    %v5799 = vadd.f32 %v2470, %v5798
    %v5800 = vpop.f32.mrf.mxu0
    %5801 = vdwg.mxu0
    %5802 = vmatpush.bf16.msra.mxu0 %v2367
    %5803 = vmatpush.bf16.msra.mxu0 %v2361
    %5804 = vmatpush.bf16.msra.mxu0 %v2355
    %5805 = vmatpush.bf16.msra.mxu0 %v2349
    %5806 = vmatpush.bf16.msra.mxu0 %v2343
    %5807 = vmatpush.bf16.msra.mxu0 %v2337
    %5808 = vmatpush.bf16.msra.mxu0 %v2331
    %5809 = vmatpush.bf16.msra.mxu0 %v2325
    %5810 = vmatmul.bf16.gmra.mxu0 %v5734
    %v5811 = vpop.f32.mrf.mxu0
    %v5812 = vadd.f32 %v5799, %v5811
    %v5813 = vpop.f32.mrf.mxu0
    %5814 = vdwg.mxu0
    %5815 = vmatpush.bf16.msra.mxu0 %v2320
    %5816 = vmatpush.bf16.msra.mxu0 %v2314
    %5817 = vmatpush.bf16.msra.mxu0 %v2308
    %5818 = vmatpush.bf16.msra.mxu0 %v2302
    %5819 = vmatpush.bf16.msra.mxu0 %v2296
    %5820 = vmatpush.bf16.msra.mxu0 %v2290
    %5821 = vmatpush.bf16.msra.mxu0 %v2284
    %5822 = vmatpush.bf16.msra.mxu0 %v2278
    %5823 = vmatmul.bf16.gmra.mxu0 %v5733
    %v5824 = vpop.f32.mrf.mxu0
    %v5825 = vadd.f32 %v2471, %v5824
    %v5826 = vpop.f32.mrf.mxu0
    %5827 = vdwg.mxu0
    %5828 = vmatpush.bf16.msra.mxu0 %v2368
    %5829 = vmatpush.bf16.msra.mxu0 %v2362
    %5830 = vmatpush.bf16.msra.mxu0 %v2356
    %5831 = vmatpush.bf16.msra.mxu0 %v2350
    %5832 = vmatpush.bf16.msra.mxu0 %v2344
    %5833 = vmatpush.bf16.msra.mxu0 %v2338
    %5834 = vmatpush.bf16.msra.mxu0 %v2332
    %5835 = vmatpush.bf16.msra.mxu0 %v2326
    %5836 = vmatmul.bf16.gmra.mxu0 %v5734
    %v5837 = vpop.f32.mrf.mxu0
    %v5838 = vadd.f32 %v5825, %v5837
    %v5839 = vpop.f32.mrf.mxu0
    %5840 = vdwg.mxu0
    %5841 = vmatpush.bf16.msra.mxu0 %v2321
    %5842 = vmatpush.bf16.msra.mxu0 %v2315
    %5843 = vmatpush.bf16.msra.mxu0 %v2309
    %5844 = vmatpush.bf16.msra.mxu0 %v2303
    %5845 = vmatpush.bf16.msra.mxu0 %v2297
    %5846 = vmatpush.bf16.msra.mxu0 %v2291
    %5847 = vmatpush.bf16.msra.mxu0 %v2285
    %5848 = vmatpush.bf16.msra.mxu0 %v2279
    %5849 = vmatmul.bf16.gmra.mxu0 %v5733
    %v5850 = vpop.f32.mrf.mxu0
    %v5851 = vadd.f32 %v2472, %v5850
    %v5852 = vpop.f32.mrf.mxu0
    %5853 = vdwg.mxu0
    %5854 = vmatpush.bf16.msra.mxu0 %v2369
    %5855 = vmatpush.bf16.msra.mxu0 %v2363
    %5856 = vmatpush.bf16.msra.mxu0 %v2357
    %5857 = vmatpush.bf16.msra.mxu0 %v2351
    %5858 = vmatpush.bf16.msra.mxu0 %v2345
    %5859 = vmatpush.bf16.msra.mxu0 %v2339
    %5860 = vmatpush.bf16.msra.mxu0 %v2333
    %5861 = vmatpush.bf16.msra.mxu0 %v2327
    %5862 = vmatmul.bf16.gmra.mxu0 %v5734
    %v5863 = vpop.f32.mrf.mxu0
    %v5864 = vadd.f32 %v5851, %v5863
    %v5865 = vpop.f32.mrf.mxu0
    %5866 = vdwg.mxu0
    %5867 = vmatpush.bf16.msra.mxu0 %v2322
    %5868 = vmatpush.bf16.msra.mxu0 %v2316
    %5869 = vmatpush.bf16.msra.mxu0 %v2310
    %5870 = vmatpush.bf16.msra.mxu0 %v2304
    %5871 = vmatpush.bf16.msra.mxu0 %v2298
    %5872 = vmatpush.bf16.msra.mxu0 %v2292
    %5873 = vmatpush.bf16.msra.mxu0 %v2286
    %5874 = vmatpush.bf16.msra.mxu0 %v2280
    %5875 = vmatmul.bf16.gmra.mxu0 %v5733
    %v5876 = vpop.f32.mrf.mxu0
    %v5877 = vadd.f32 %v2473, %v5876
    %v5878 = vpop.f32.mrf.mxu0
    %5879 = vdwg.mxu0
    %5880 = vmatpush.bf16.msra.mxu0 %v2370
    %5881 = vmatpush.bf16.msra.mxu0 %v2364
    %5882 = vmatpush.bf16.msra.mxu0 %v2358
    %5883 = vmatpush.bf16.msra.mxu0 %v2352
    %5884 = vmatpush.bf16.msra.mxu0 %v2346
    %5885 = vmatpush.bf16.msra.mxu0 %v2340
    %5886 = vmatpush.bf16.msra.mxu0 %v2334
    %5887 = vmatpush.bf16.msra.mxu0 %v2328
    %5888 = vmatmul.bf16.gmra.mxu0 %v5734
    %v5889 = vpop.f32.mrf.mxu0
    %v5890 = vadd.f32 %v5877, %v5889
    %v5891 = vpop.f32.mrf.mxu0
    %5892 = vdwg.mxu0
    %v5893 = vpack.c.bf16 %v5453, %v5453
    %v5894 = vpack.c.bf16 %v5454, %v5454
    %5895 = vmatpush.bf16.msra.mxu0 %v2966
    %5896 = vmatpush.bf16.msra.mxu0 %v2960
    %5897 = vmatpush.bf16.msra.mxu0 %v2954
    %5898 = vmatpush.bf16.msra.mxu0 %v2948
    %5899 = vmatpush.bf16.msra.mxu0 %v2942
    %5900 = vmatpush.bf16.msra.mxu0 %v2936
    %5901 = vmatpush.bf16.msra.mxu0 %v2930
    %5902 = vmatpush.bf16.msra.mxu0 %v2924
    %5903 = vmatmul.bf16.gmra.mxu0 %v5893
    %v5904 = vpop.f32.mrf.mxu0
    %v5905 = vadd.f32 %v3117, %v5904
    %v5906 = vpop.f32.mrf.mxu0
    %5907 = vdwg.mxu0
    %5908 = vmatpush.bf16.msra.mxu0 %v3014
    %5909 = vmatpush.bf16.msra.mxu0 %v3008
    %5910 = vmatpush.bf16.msra.mxu0 %v3002
    %5911 = vmatpush.bf16.msra.mxu0 %v2996
    %5912 = vmatpush.bf16.msra.mxu0 %v2990
    %5913 = vmatpush.bf16.msra.mxu0 %v2984
    %5914 = vmatpush.bf16.msra.mxu0 %v2978
    %5915 = vmatpush.bf16.msra.mxu0 %v2972
    %5916 = vmatmul.bf16.gmra.mxu0 %v5894
    %v5917 = vpop.f32.mrf.mxu0
    %v5918 = vadd.f32 %v5905, %v5917
    %v5919 = vpop.f32.mrf.mxu0
    %5920 = vdwg.mxu0
    %5921 = vmatpush.bf16.msra.mxu0 %v2967
    %5922 = vmatpush.bf16.msra.mxu0 %v2961
    %5923 = vmatpush.bf16.msra.mxu0 %v2955
    %5924 = vmatpush.bf16.msra.mxu0 %v2949
    %5925 = vmatpush.bf16.msra.mxu0 %v2943
    %5926 = vmatpush.bf16.msra.mxu0 %v2937
    %5927 = vmatpush.bf16.msra.mxu0 %v2931
    %5928 = vmatpush.bf16.msra.mxu0 %v2925
    %5929 = vmatmul.bf16.gmra.mxu0 %v5893
    %v5930 = vpop.f32.mrf.mxu0
    %v5931 = vadd.f32 %v3118, %v5930
    %v5932 = vpop.f32.mrf.mxu0
    %5933 = vdwg.mxu0
    %5934 = vmatpush.bf16.msra.mxu0 %v3015
    %5935 = vmatpush.bf16.msra.mxu0 %v3009
    %5936 = vmatpush.bf16.msra.mxu0 %v3003
    %5937 = vmatpush.bf16.msra.mxu0 %v2997
    %5938 = vmatpush.bf16.msra.mxu0 %v2991
    %5939 = vmatpush.bf16.msra.mxu0 %v2985
    %5940 = vmatpush.bf16.msra.mxu0 %v2979
    %5941 = vmatpush.bf16.msra.mxu0 %v2973
    %5942 = vmatmul.bf16.gmra.mxu0 %v5894
    %v5943 = vpop.f32.mrf.mxu0
    %v5944 = vadd.f32 %v5931, %v5943
    %v5945 = vpop.f32.mrf.mxu0
    %5946 = vdwg.mxu0
    %5947 = vmatpush.bf16.msra.mxu0 %v2968
    %5948 = vmatpush.bf16.msra.mxu0 %v2962
    %5949 = vmatpush.bf16.msra.mxu0 %v2956
    %5950 = vmatpush.bf16.msra.mxu0 %v2950
    %5951 = vmatpush.bf16.msra.mxu0 %v2944
    %5952 = vmatpush.bf16.msra.mxu0 %v2938
    %5953 = vmatpush.bf16.msra.mxu0 %v2932
    %5954 = vmatpush.bf16.msra.mxu0 %v2926
    %5955 = vmatmul.bf16.gmra.mxu0 %v5893
    %v5956 = vpop.f32.mrf.mxu0
    %v5957 = vadd.f32 %v3119, %v5956
    %v5958 = vpop.f32.mrf.mxu0
    %5959 = vdwg.mxu0
    %5960 = vmatpush.bf16.msra.mxu0 %v3016
    %5961 = vmatpush.bf16.msra.mxu0 %v3010
    %5962 = vmatpush.bf16.msra.mxu0 %v3004
    %5963 = vmatpush.bf16.msra.mxu0 %v2998
    %5964 = vmatpush.bf16.msra.mxu0 %v2992
    %5965 = vmatpush.bf16.msra.mxu0 %v2986
    %5966 = vmatpush.bf16.msra.mxu0 %v2980
    %5967 = vmatpush.bf16.msra.mxu0 %v2974
    %5968 = vmatmul.bf16.gmra.mxu0 %v5894
    %v5969 = vpop.f32.mrf.mxu0
    %v5970 = vadd.f32 %v5957, %v5969
    %v5971 = vpop.f32.mrf.mxu0
    %5972 = vdwg.mxu0
    %5973 = vmatpush.bf16.msra.mxu0 %v2969
    %5974 = vmatpush.bf16.msra.mxu0 %v2963
    %5975 = vmatpush.bf16.msra.mxu0 %v2957
    %5976 = vmatpush.bf16.msra.mxu0 %v2951
    %5977 = vmatpush.bf16.msra.mxu0 %v2945
    %5978 = vmatpush.bf16.msra.mxu0 %v2939
    %5979 = vmatpush.bf16.msra.mxu0 %v2933
    %5980 = vmatpush.bf16.msra.mxu0 %v2927
    %5981 = vmatmul.bf16.gmra.mxu0 %v5893
    %v5982 = vpop.f32.mrf.mxu0
    %v5983 = vadd.f32 %v3120, %v5982
    %v5984 = vpop.f32.mrf.mxu0
    %5985 = vdwg.mxu0
    %5986 = vmatpush.bf16.msra.mxu0 %v3017
    %5987 = vmatpush.bf16.msra.mxu0 %v3011
    %5988 = vmatpush.bf16.msra.mxu0 %v3005
    %5989 = vmatpush.bf16.msra.mxu0 %v2999
    %5990 = vmatpush.bf16.msra.mxu0 %v2993
    %5991 = vmatpush.bf16.msra.mxu0 %v2987
    %5992 = vmatpush.bf16.msra.mxu0 %v2981
    %5993 = vmatpush.bf16.msra.mxu0 %v2975
    %5994 = vmatmul.bf16.gmra.mxu0 %v5894
    %v5995 = vpop.f32.mrf.mxu0
    %v5996 = vadd.f32 %v5983, %v5995
    %v5997 = vpop.f32.mrf.mxu0
    %5998 = vdwg.mxu0
    %5999 = vmatpush.bf16.msra.mxu0 %v2970
    %6000 = vmatpush.bf16.msra.mxu0 %v2964
    %6001 = vmatpush.bf16.msra.mxu0 %v2958
    %6002 = vmatpush.bf16.msra.mxu0 %v2952
    %6003 = vmatpush.bf16.msra.mxu0 %v2946
    %6004 = vmatpush.bf16.msra.mxu0 %v2940
    %6005 = vmatpush.bf16.msra.mxu0 %v2934
    %6006 = vmatpush.bf16.msra.mxu0 %v2928
    %6007 = vmatmul.bf16.gmra.mxu0 %v5893
    %v6008 = vpop.f32.mrf.mxu0
    %v6009 = vadd.f32 %v3121, %v6008
    %v6010 = vpop.f32.mrf.mxu0
    %6011 = vdwg.mxu0
    %6012 = vmatpush.bf16.msra.mxu0 %v3018
    %6013 = vmatpush.bf16.msra.mxu0 %v3012
    %6014 = vmatpush.bf16.msra.mxu0 %v3006
    %6015 = vmatpush.bf16.msra.mxu0 %v3000
    %6016 = vmatpush.bf16.msra.mxu0 %v2994
    %6017 = vmatpush.bf16.msra.mxu0 %v2988
    %6018 = vmatpush.bf16.msra.mxu0 %v2982
    %6019 = vmatpush.bf16.msra.mxu0 %v2976
    %6020 = vmatmul.bf16.gmra.mxu0 %v5894
    %v6021 = vpop.f32.mrf.mxu0
    %v6022 = vadd.f32 %v6009, %v6021
    %v6023 = vpop.f32.mrf.mxu0
    %6024 = vdwg.mxu0
    %6025 = vmatpush.bf16.msra.mxu0 %v2971
    %6026 = vmatpush.bf16.msra.mxu0 %v2965
    %6027 = vmatpush.bf16.msra.mxu0 %v2959
    %6028 = vmatpush.bf16.msra.mxu0 %v2953
    %6029 = vmatpush.bf16.msra.mxu0 %v2947
    %6030 = vmatpush.bf16.msra.mxu0 %v2941
    %6031 = vmatpush.bf16.msra.mxu0 %v2935
    %6032 = vmatpush.bf16.msra.mxu0 %v2929
    %6033 = vmatmul.bf16.gmra.mxu0 %v5893
    %v6034 = vpop.f32.mrf.mxu0
    %v6035 = vadd.f32 %v3122, %v6034
    %v6036 = vpop.f32.mrf.mxu0
    %6037 = vdwg.mxu0
    %6038 = vmatpush.bf16.msra.mxu0 %v3019
    %6039 = vmatpush.bf16.msra.mxu0 %v3013
    %6040 = vmatpush.bf16.msra.mxu0 %v3007
    %6041 = vmatpush.bf16.msra.mxu0 %v3001
    %6042 = vmatpush.bf16.msra.mxu0 %v2995
    %6043 = vmatpush.bf16.msra.mxu0 %v2989
    %6044 = vmatpush.bf16.msra.mxu0 %v2983
    %6045 = vmatpush.bf16.msra.mxu0 %v2977
    %6046 = vmatmul.bf16.gmra.mxu0 %v5894
    %v6047 = vpop.f32.mrf.mxu0
    %v6048 = vadd.f32 %v6035, %v6047
    %v6049 = vpop.f32.mrf.mxu0
    %6050 = vdwg.mxu0
    %v6051 = vadd.f32 %v5760, %v5918
    %v6052 = vadd.f32 %v5786, %v5944
    %v6053 = vxor.u32 %v6051, 2147483648
    %v6054 = vxor.u32 %v6052, 2147483648
    %v6055 = vmul.f32 %v6053, 1.442695
    %v6056 = vpow.pop %v6055
    %v6057 = vmul.f32 %v6054, 1.442695
    %v6058 = vpow.pop %v6057
    %v6059 = vadd.f32 %v6056, 1.0
    %v6060 = vadd.f32 %v6058, 1.0
    %v6061 = vrcp.pop %v6059
    %v6062 = vmul.f32 %v6059, %v6061
    %v6063 = vsub.f32 1.0, %v6062
    %v6064 = vmul.f32 %v6061, %v6063
    %v6065 = vadd.f32 %v6061, %v6064
    %vm6066 = vweird.f32 %v6059
    %vm6067 = vweird.f32 %v6061
    %vm6068 = vmor %vm6066, %vm6067
    %v6069 = vsel %vm6068, %v6061, %v6065
    %v6070 = vand.u32 2147483647, %v6059
    %vm6071 = vcmp.eq.f32.partialorder %v6070, 8.507059e+37
    %v6072 = vand.u32 %v6059, 2147483648
    %v6073 = vor.u32 1.1754944e-38, %v6072
    %v6074 = vsel %vm6071, %v6073, %v6069
    %v6075 = vmul.f32 1.0, %v6074
    %v6076 = vrcp.pop %v6060
    %v6077 = vmul.f32 %v6060, %v6076
    %v6078 = vsub.f32 1.0, %v6077
    %v6079 = vmul.f32 %v6076, %v6078
    %v6080 = vadd.f32 %v6076, %v6079
    %vm6081 = vweird.f32 %v6060
    %vm6082 = vweird.f32 %v6076
    %vm6083 = vmor %vm6081, %vm6082
    %v6084 = vsel %vm6083, %v6076, %v6080
    %v6085 = vand.u32 2147483647, %v6060
    %vm6086 = vcmp.eq.f32.partialorder %v6085, 8.507059e+37
    %v6087 = vand.u32 %v6060, 2147483648
    %v6088 = vor.u32 1.1754944e-38, %v6087
    %v6089 = vsel %vm6086, %v6088, %v6084
    %v6090 = vmul.f32 1.0, %v6089
    %v6091 = vadd.f32 %v5812, %v5970
    %v6092 = vadd.f32 %v5838, %v5996
    %v6093 = vxor.u32 %v6091, 2147483648
    %v6094 = vxor.u32 %v6092, 2147483648
    %v6095 = vmul.f32 %v6093, 1.442695
    %v6096 = vpow.pop %v6095
    %v6097 = vmul.f32 %v6094, 1.442695
    %v6098 = vpow.pop %v6097
    %v6099 = vadd.f32 %v6096, 1.0
    %v6100 = vadd.f32 %v6098, 1.0
    %v6101 = vrcp.pop %v6099
    %v6102 = vmul.f32 %v6099, %v6101
    %v6103 = vsub.f32 1.0, %v6102
    %v6104 = vmul.f32 %v6101, %v6103
    %v6105 = vadd.f32 %v6101, %v6104
    %vm6106 = vweird.f32 %v6099
    %vm6107 = vweird.f32 %v6101
    %vm6108 = vmor %vm6106, %vm6107
    %v6109 = vsel %vm6108, %v6101, %v6105
    %v6110 = vand.u32 2147483647, %v6099
    %vm6111 = vcmp.eq.f32.partialorder %v6110, 8.507059e+37
    %v6112 = vand.u32 %v6099, 2147483648
    %v6113 = vor.u32 1.1754944e-38, %v6112
    %v6114 = vsel %vm6111, %v6113, %v6109
    %v6115 = vmul.f32 1.0, %v6114
    %v6116 = vrcp.pop %v6100
    %v6117 = vmul.f32 %v6100, %v6116
    %v6118 = vsub.f32 1.0, %v6117
    %v6119 = vmul.f32 %v6116, %v6118
    %v6120 = vadd.f32 %v6116, %v6119
    %vm6121 = vweird.f32 %v6100
    %vm6122 = vweird.f32 %v6116
    %vm6123 = vmor %vm6121, %vm6122
    %v6124 = vsel %vm6123, %v6116, %v6120
    %v6125 = vand.u32 2147483647, %v6100
    %vm6126 = vcmp.eq.f32.partialorder %v6125, 8.507059e+37
    %v6127 = vand.u32 %v6100, 2147483648
    %v6128 = vor.u32 1.1754944e-38, %v6127
    %v6129 = vsel %vm6126, %v6128, %v6124
    %v6130 = vmul.f32 1.0, %v6129
    %v6131 = vmul.f32 %v6075, %v6022
    %v6132 = vmul.f32 %v6090, %v6048
    %v6133 = vadd.f32 %v5864, %v6131
    %v6134 = vadd.f32 %v5890, %v6132
    %v6135 = vtanh.pop %v6133
    %v6136 = vtanh.pop %v6134
    %v6137 = vsub.f32 1.0, %v6115
    %v6138 = vsub.f32 1.0, %v6130
    %v6139 = vmul.f32 %v6137, %v6135
    %v6140 = vmul.f32 %v6138, %v6136
    %v6141 = vmul.f32 %v6115, %v5453
    %v6142 = vmul.f32 %v6130, %v5454
    %v6143 = vadd.f32 %v6139, %v6141
    %v6144 = vadd.f32 %v6140, %v6142
    %6145 = vmatpush.bf16.msra.mxu0 %v1572
    %6146 = vmatpush.bf16.msra.mxu0 %v1566
    %6147 = vmatpush.bf16.msra.mxu0 %v1560
    %6148 = vmatpush.bf16.msra.mxu0 %v1554
    %6149 = vmatpush.bf16.msra.mxu0 %v1548
    %6150 = vmatpush.bf16.msra.mxu0 %v1542
    %6151 = vmatpush.bf16.msra.mxu0 %v1536
    %6152 = vmatpush.bf16.msra.mxu0 %v1530
    %6153 = vmatmul.bf16.gmra.mxu0 %v5733
    %v6154 = vpop.f32.mrf.mxu0
    %v6155 = vadd.f32 %v1723, %v6154
    %v6156 = vpop.f32.mrf.mxu0
    %6157 = vdwg.mxu0
    %6158 = vmatpush.bf16.msra.mxu0 %v1620
    %6159 = vmatpush.bf16.msra.mxu0 %v1614
    %6160 = vmatpush.bf16.msra.mxu0 %v1608
    %6161 = vmatpush.bf16.msra.mxu0 %v1602
    %6162 = vmatpush.bf16.msra.mxu0 %v1596
    %6163 = vmatpush.bf16.msra.mxu0 %v1590
    %6164 = vmatpush.bf16.msra.mxu0 %v1584
    %6165 = vmatpush.bf16.msra.mxu0 %v1578
    %6166 = vmatmul.bf16.gmra.mxu0 %v5734
    %v6167 = vpop.f32.mrf.mxu0
    %v6168 = vadd.f32 %v6155, %v6167
    %v6169 = vpop.f32.mrf.mxu0
    %6170 = vdwg.mxu0
    %6171 = vmatpush.bf16.msra.mxu0 %v1573
    %6172 = vmatpush.bf16.msra.mxu0 %v1567
    %6173 = vmatpush.bf16.msra.mxu0 %v1561
    %6174 = vmatpush.bf16.msra.mxu0 %v1555
    %6175 = vmatpush.bf16.msra.mxu0 %v1549
    %6176 = vmatpush.bf16.msra.mxu0 %v1543
    %6177 = vmatpush.bf16.msra.mxu0 %v1537
    %6178 = vmatpush.bf16.msra.mxu0 %v1531
    %6179 = vmatmul.bf16.gmra.mxu0 %v5733
    %v6180 = vpop.f32.mrf.mxu0
    %v6181 = vadd.f32 %v1724, %v6180
    %v6182 = vpop.f32.mrf.mxu0
    %6183 = vdwg.mxu0
    %6184 = vmatpush.bf16.msra.mxu0 %v1621
    %6185 = vmatpush.bf16.msra.mxu0 %v1615
    %6186 = vmatpush.bf16.msra.mxu0 %v1609
    %6187 = vmatpush.bf16.msra.mxu0 %v1603
    %6188 = vmatpush.bf16.msra.mxu0 %v1597
    %6189 = vmatpush.bf16.msra.mxu0 %v1591
    %6190 = vmatpush.bf16.msra.mxu0 %v1585
    %6191 = vmatpush.bf16.msra.mxu0 %v1579
    %6192 = vmatmul.bf16.gmra.mxu0 %v5734
    %v6193 = vpop.f32.mrf.mxu0
    %v6194 = vadd.f32 %v6181, %v6193
    %v6195 = vpop.f32.mrf.mxu0
    %6196 = vdwg.mxu0
    %6197 = vmatpush.bf16.msra.mxu0 %v1574
    %6198 = vmatpush.bf16.msra.mxu0 %v1568
    %6199 = vmatpush.bf16.msra.mxu0 %v1562
    %6200 = vmatpush.bf16.msra.mxu0 %v1556
    %6201 = vmatpush.bf16.msra.mxu0 %v1550
    %6202 = vmatpush.bf16.msra.mxu0 %v1544
    %6203 = vmatpush.bf16.msra.mxu0 %v1538
    %6204 = vmatpush.bf16.msra.mxu0 %v1532
    %6205 = vmatmul.bf16.gmra.mxu0 %v5733
    %v6206 = vpop.f32.mrf.mxu0
    %v6207 = vadd.f32 %v1725, %v6206
    %v6208 = vpop.f32.mrf.mxu0
    %6209 = vdwg.mxu0
    %6210 = vmatpush.bf16.msra.mxu0 %v1622
    %6211 = vmatpush.bf16.msra.mxu0 %v1616
    %6212 = vmatpush.bf16.msra.mxu0 %v1610
    %6213 = vmatpush.bf16.msra.mxu0 %v1604
    %6214 = vmatpush.bf16.msra.mxu0 %v1598
    %6215 = vmatpush.bf16.msra.mxu0 %v1592
    %6216 = vmatpush.bf16.msra.mxu0 %v1586
    %6217 = vmatpush.bf16.msra.mxu0 %v1580
    %6218 = vmatmul.bf16.gmra.mxu0 %v5734
    %v6219 = vpop.f32.mrf.mxu0
    %v6220 = vadd.f32 %v6207, %v6219
    %v6221 = vpop.f32.mrf.mxu0
    %6222 = vdwg.mxu0
    %6223 = vmatpush.bf16.msra.mxu0 %v1575
    %6224 = vmatpush.bf16.msra.mxu0 %v1569
    %6225 = vmatpush.bf16.msra.mxu0 %v1563
    %6226 = vmatpush.bf16.msra.mxu0 %v1557
    %6227 = vmatpush.bf16.msra.mxu0 %v1551
    %6228 = vmatpush.bf16.msra.mxu0 %v1545
    %6229 = vmatpush.bf16.msra.mxu0 %v1539
    %6230 = vmatpush.bf16.msra.mxu0 %v1533
    %6231 = vmatmul.bf16.gmra.mxu0 %v5733
    %v6232 = vpop.f32.mrf.mxu0
    %v6233 = vadd.f32 %v1726, %v6232
    %v6234 = vpop.f32.mrf.mxu0
    %6235 = vdwg.mxu0
    %6236 = vmatpush.bf16.msra.mxu0 %v1623
    %6237 = vmatpush.bf16.msra.mxu0 %v1617
    %6238 = vmatpush.bf16.msra.mxu0 %v1611
    %6239 = vmatpush.bf16.msra.mxu0 %v1605
    %6240 = vmatpush.bf16.msra.mxu0 %v1599
    %6241 = vmatpush.bf16.msra.mxu0 %v1593
    %6242 = vmatpush.bf16.msra.mxu0 %v1587
    %6243 = vmatpush.bf16.msra.mxu0 %v1581
    %6244 = vmatmul.bf16.gmra.mxu0 %v5734
    %v6245 = vpop.f32.mrf.mxu0
    %v6246 = vadd.f32 %v6233, %v6245
    %v6247 = vpop.f32.mrf.mxu0
    %6248 = vdwg.mxu0
    %6249 = vmatpush.bf16.msra.mxu0 %v1576
    %6250 = vmatpush.bf16.msra.mxu0 %v1570
    %6251 = vmatpush.bf16.msra.mxu0 %v1564
    %6252 = vmatpush.bf16.msra.mxu0 %v1558
    %6253 = vmatpush.bf16.msra.mxu0 %v1552
    %6254 = vmatpush.bf16.msra.mxu0 %v1546
    %6255 = vmatpush.bf16.msra.mxu0 %v1540
    %6256 = vmatpush.bf16.msra.mxu0 %v1534
    %6257 = vmatmul.bf16.gmra.mxu0 %v5733
    %v6258 = vpop.f32.mrf.mxu0
    %v6259 = vadd.f32 %v1727, %v6258
    %v6260 = vpop.f32.mrf.mxu0
    %6261 = vdwg.mxu0
    %6262 = vmatpush.bf16.msra.mxu0 %v1624
    %6263 = vmatpush.bf16.msra.mxu0 %v1618
    %6264 = vmatpush.bf16.msra.mxu0 %v1612
    %6265 = vmatpush.bf16.msra.mxu0 %v1606
    %6266 = vmatpush.bf16.msra.mxu0 %v1600
    %6267 = vmatpush.bf16.msra.mxu0 %v1594
    %6268 = vmatpush.bf16.msra.mxu0 %v1588
    %6269 = vmatpush.bf16.msra.mxu0 %v1582
    %6270 = vmatmul.bf16.gmra.mxu0 %v5734
    %v6271 = vpop.f32.mrf.mxu0
    %v6272 = vadd.f32 %v6259, %v6271
    %v6273 = vpop.f32.mrf.mxu0
    %6274 = vdwg.mxu0
    %6275 = vmatpush.bf16.msra.mxu0 %v1577
    %6276 = vmatpush.bf16.msra.mxu0 %v1571
    %6277 = vmatpush.bf16.msra.mxu0 %v1565
    %6278 = vmatpush.bf16.msra.mxu0 %v1559
    %6279 = vmatpush.bf16.msra.mxu0 %v1553
    %6280 = vmatpush.bf16.msra.mxu0 %v1547
    %6281 = vmatpush.bf16.msra.mxu0 %v1541
    %6282 = vmatpush.bf16.msra.mxu0 %v1535
    %6283 = vmatmul.bf16.gmra.mxu0 %v5733
    %v6284 = vpop.f32.mrf.mxu0
    %v6285 = vadd.f32 %v1728, %v6284
    %v6286 = vpop.f32.mrf.mxu0
    %6287 = vdwg.mxu0
    %6288 = vmatpush.bf16.msra.mxu0 %v1625
    %6289 = vmatpush.bf16.msra.mxu0 %v1619
    %6290 = vmatpush.bf16.msra.mxu0 %v1613
    %6291 = vmatpush.bf16.msra.mxu0 %v1607
    %6292 = vmatpush.bf16.msra.mxu0 %v1601
    %6293 = vmatpush.bf16.msra.mxu0 %v1595
    %6294 = vmatpush.bf16.msra.mxu0 %v1589
    %6295 = vmatpush.bf16.msra.mxu0 %v1583
    %6296 = vmatmul.bf16.gmra.mxu0 %v5734
    %v6297 = vpop.f32.mrf.mxu0
    %v6298 = vadd.f32 %v6285, %v6297
    %v6299 = vpop.f32.mrf.mxu0
    %6300 = vdwg.mxu0
    %v6303 = vrot.slane %v6168, 3
    %v6304 = vrot.slane %v6194, 3
    %v6307 = vadd.f32 %v914, %v6303
    %v6308 = vadd.f32 %v940, %v6304
    %v6309 = vxor.u32 %v6307, 2147483648
    %v6310 = vxor.u32 %v6308, 2147483648
    %v6311 = vmul.f32 %v6309, 1.442695
    %v6312 = vpow.pop %v6311
    %v6313 = vmul.f32 %v6310, 1.442695
    %v6314 = vpow.pop %v6313
    %v6315 = vadd.f32 %v6312, 1.0
    %v6316 = vadd.f32 %v6314, 1.0
    %v6317 = vrcp.pop %v6315
    %v6318 = vmul.f32 %v6315, %v6317
    %v6319 = vsub.f32 1.0, %v6318
    %v6320 = vmul.f32 %v6317, %v6319
    %v6321 = vadd.f32 %v6317, %v6320
    %vm6322 = vweird.f32 %v6315
    %vm6323 = vweird.f32 %v6317
    %vm6324 = vmor %vm6322, %vm6323
    %v6325 = vsel %vm6324, %v6317, %v6321
    %v6326 = vand.u32 2147483647, %v6315
    %vm6327 = vcmp.eq.f32.partialorder %v6326, 8.507059e+37
    %v6328 = vand.u32 %v6315, 2147483648
    %v6329 = vor.u32 1.1754944e-38, %v6328
    %v6330 = vsel %vm6327, %v6329, %v6325
    %v6331 = vmul.f32 1.0, %v6330
    %v6332 = vrcp.pop %v6316
    %v6333 = vmul.f32 %v6316, %v6332
    %v6334 = vsub.f32 1.0, %v6333
    %v6335 = vmul.f32 %v6332, %v6334
    %v6336 = vadd.f32 %v6332, %v6335
    %vm6337 = vweird.f32 %v6316
    %vm6338 = vweird.f32 %v6332
    %vm6339 = vmor %vm6337, %vm6338
    %v6340 = vsel %vm6339, %v6332, %v6336
    %v6341 = vand.u32 2147483647, %v6316
    %vm6342 = vcmp.eq.f32.partialorder %v6341, 8.507059e+37
    %v6343 = vand.u32 %v6316, 2147483648
    %v6344 = vor.u32 1.1754944e-38, %v6343
    %v6345 = vsel %vm6342, %v6344, %v6340
    %v6346 = vmul.f32 1.0, %v6345
    %v6349 = vrot.slane %v6220, 3
    %v6350 = vrot.slane %v6246, 3
    %v6353 = vadd.f32 %v966, %v6349
    %v6354 = vadd.f32 %v992, %v6350
    %v6355 = vxor.u32 %v6353, 2147483648
    %v6356 = vxor.u32 %v6354, 2147483648
    %v6357 = vmul.f32 %v6355, 1.442695
    %v6358 = vpow.pop %v6357
    %v6359 = vmul.f32 %v6356, 1.442695
    %v6360 = vpow.pop %v6359
    %v6361 = vadd.f32 %v6358, 1.0
    %v6362 = vadd.f32 %v6360, 1.0
    %v6363 = vrcp.pop %v6361
    %v6364 = vmul.f32 %v6361, %v6363
    %v6365 = vsub.f32 1.0, %v6364
    %v6366 = vmul.f32 %v6363, %v6365
    %v6367 = vadd.f32 %v6363, %v6366
    %vm6368 = vweird.f32 %v6361
    %vm6369 = vweird.f32 %v6363
    %vm6370 = vmor %vm6368, %vm6369
    %v6371 = vsel %vm6370, %v6363, %v6367
    %v6372 = vand.u32 2147483647, %v6361
    %vm6373 = vcmp.eq.f32.partialorder %v6372, 8.507059e+37
    %v6374 = vand.u32 %v6361, 2147483648
    %v6375 = vor.u32 1.1754944e-38, %v6374
    %v6376 = vsel %vm6373, %v6375, %v6371
    %v6377 = vmul.f32 1.0, %v6376
    %v6378 = vrcp.pop %v6362
    %v6379 = vmul.f32 %v6362, %v6378
    %v6380 = vsub.f32 1.0, %v6379
    %v6381 = vmul.f32 %v6378, %v6380
    %v6382 = vadd.f32 %v6378, %v6381
    %vm6383 = vweird.f32 %v6362
    %vm6384 = vweird.f32 %v6378
    %vm6385 = vmor %vm6383, %vm6384
    %v6386 = vsel %vm6385, %v6378, %v6382
    %v6387 = vand.u32 2147483647, %v6362
    %vm6388 = vcmp.eq.f32.partialorder %v6387, 8.507059e+37
    %v6389 = vand.u32 %v6362, 2147483648
    %v6390 = vor.u32 1.1754944e-38, %v6389
    %v6391 = vsel %vm6388, %v6390, %v6386
    %v6392 = vmul.f32 1.0, %v6391
    %v6395 = vrot.slane %v6272, 3
    %v6396 = vrot.slane %v6298, 3
    %v6399 = vmul.f32 %v6331, %v6395
    %v6400 = vmul.f32 %v6346, %v6396
    %v6401 = vadd.f32 %v1018, %v6399
    %v6402 = vadd.f32 %v1044, %v6400
    %v6403 = vtanh.pop %v6401
    %v6404 = vtanh.pop %v6402
    %v6405 = vsub.f32 1.0, %v6377
    %v6406 = vsub.f32 1.0, %v6392
    %v6407 = vmul.f32 %v6405, %v6403
    %v6408 = vmul.f32 %v6406, %v6404
    %v6411 = vrot.slane %v5727, 7
    %v6412 = vrot.slane %v5728, 7
    %v6415 = vmul.f32 %v6377, %v6411
    %v6416 = vmul.f32 %v6392, %v6412
    %v6417 = vadd.f32 %v6407, %v6415
    %v6418 = vadd.f32 %v6408, %v6416
    %v6419 = vpack.c.bf16 %v6417, %v6417
    %v6420 = vpack.c.bf16 %v6418, %v6418
    %v6422 = vshrl.u32 %v6419, 16
    %v6424 = vrot.slane %v6422, 2
    %v6426 = vshrl.u32 %v6420, 16
    %v6428 = vrot.slane %v6426, 2
    %6431 = vmatpush.bf16.msra.mxu0 %v2317
    %6432 = vmatpush.bf16.msra.mxu0 %v2311
    %6433 = vmatpush.bf16.msra.mxu0 %v2305
    %6434 = vmatpush.bf16.msra.mxu0 %v2299
    %6435 = vmatpush.bf16.msra.mxu0 %v2293
    %6436 = vmatpush.bf16.msra.mxu0 %v2287
    %6437 = vmatpush.bf16.msra.mxu0 %v2281
    %6438 = vmatpush.bf16.msra.mxu0 %v2275
    %6439 = vmatmul.bf16.gmra.mxu0 %v6424
    %v6440 = vpop.f32.mrf.mxu0
    %v6441 = vadd.f32 %v2468, %v6440
    %v6442 = vpop.f32.mrf.mxu0
    %6443 = vdwg.mxu0
    %6444 = vmatpush.bf16.msra.mxu0 %v2365
    %6445 = vmatpush.bf16.msra.mxu0 %v2359
    %6446 = vmatpush.bf16.msra.mxu0 %v2353
    %6447 = vmatpush.bf16.msra.mxu0 %v2347
    %6448 = vmatpush.bf16.msra.mxu0 %v2341
    %6449 = vmatpush.bf16.msra.mxu0 %v2335
    %6450 = vmatpush.bf16.msra.mxu0 %v2329
    %6451 = vmatpush.bf16.msra.mxu0 %v2323
    %6452 = vmatmul.bf16.gmra.mxu0 %v6428
    %v6453 = vpop.f32.mrf.mxu0
    %v6454 = vadd.f32 %v6441, %v6453
    %v6455 = vpop.f32.mrf.mxu0
    %6456 = vdwg.mxu0
    %6457 = vmatpush.bf16.msra.mxu0 %v2318
    %6458 = vmatpush.bf16.msra.mxu0 %v2312
    %6459 = vmatpush.bf16.msra.mxu0 %v2306
    %6460 = vmatpush.bf16.msra.mxu0 %v2300
    %6461 = vmatpush.bf16.msra.mxu0 %v2294
    %6462 = vmatpush.bf16.msra.mxu0 %v2288
    %6463 = vmatpush.bf16.msra.mxu0 %v2282
    %6464 = vmatpush.bf16.msra.mxu0 %v2276
    %6465 = vmatmul.bf16.gmra.mxu0 %v6424
    %v6466 = vpop.f32.mrf.mxu0
    %v6467 = vadd.f32 %v2469, %v6466
    %v6468 = vpop.f32.mrf.mxu0
    %6469 = vdwg.mxu0
    %6470 = vmatpush.bf16.msra.mxu0 %v2366
    %6471 = vmatpush.bf16.msra.mxu0 %v2360
    %6472 = vmatpush.bf16.msra.mxu0 %v2354
    %6473 = vmatpush.bf16.msra.mxu0 %v2348
    %6474 = vmatpush.bf16.msra.mxu0 %v2342
    %6475 = vmatpush.bf16.msra.mxu0 %v2336
    %6476 = vmatpush.bf16.msra.mxu0 %v2330
    %6477 = vmatpush.bf16.msra.mxu0 %v2324
    %6478 = vmatmul.bf16.gmra.mxu0 %v6428
    %v6479 = vpop.f32.mrf.mxu0
    %v6480 = vadd.f32 %v6467, %v6479
    %v6481 = vpop.f32.mrf.mxu0
    %6482 = vdwg.mxu0
    %6483 = vmatpush.bf16.msra.mxu0 %v2319
    %6484 = vmatpush.bf16.msra.mxu0 %v2313
    %6485 = vmatpush.bf16.msra.mxu0 %v2307
    %6486 = vmatpush.bf16.msra.mxu0 %v2301
    %6487 = vmatpush.bf16.msra.mxu0 %v2295
    %6488 = vmatpush.bf16.msra.mxu0 %v2289
    %6489 = vmatpush.bf16.msra.mxu0 %v2283
    %6490 = vmatpush.bf16.msra.mxu0 %v2277
    %6491 = vmatmul.bf16.gmra.mxu0 %v6424
    %v6492 = vpop.f32.mrf.mxu0
    %v6493 = vadd.f32 %v2470, %v6492
    %v6494 = vpop.f32.mrf.mxu0
    %6495 = vdwg.mxu0
    %6496 = vmatpush.bf16.msra.mxu0 %v2367
    %6497 = vmatpush.bf16.msra.mxu0 %v2361
    %6498 = vmatpush.bf16.msra.mxu0 %v2355
    %6499 = vmatpush.bf16.msra.mxu0 %v2349
    %6500 = vmatpush.bf16.msra.mxu0 %v2343
    %6501 = vmatpush.bf16.msra.mxu0 %v2337
    %6502 = vmatpush.bf16.msra.mxu0 %v2331
    %6503 = vmatpush.bf16.msra.mxu0 %v2325
    %6504 = vmatmul.bf16.gmra.mxu0 %v6428
    %v6505 = vpop.f32.mrf.mxu0
    %v6506 = vadd.f32 %v6493, %v6505
    %v6507 = vpop.f32.mrf.mxu0
    %6508 = vdwg.mxu0
    %6509 = vmatpush.bf16.msra.mxu0 %v2320
    %6510 = vmatpush.bf16.msra.mxu0 %v2314
    %6511 = vmatpush.bf16.msra.mxu0 %v2308
    %6512 = vmatpush.bf16.msra.mxu0 %v2302
    %6513 = vmatpush.bf16.msra.mxu0 %v2296
    %6514 = vmatpush.bf16.msra.mxu0 %v2290
    %6515 = vmatpush.bf16.msra.mxu0 %v2284
    %6516 = vmatpush.bf16.msra.mxu0 %v2278
    %6517 = vmatmul.bf16.gmra.mxu0 %v6424
    %v6518 = vpop.f32.mrf.mxu0
    %v6519 = vadd.f32 %v2471, %v6518
    %v6520 = vpop.f32.mrf.mxu0
    %6521 = vdwg.mxu0
    %6522 = vmatpush.bf16.msra.mxu0 %v2368
    %6523 = vmatpush.bf16.msra.mxu0 %v2362
    %6524 = vmatpush.bf16.msra.mxu0 %v2356
    %6525 = vmatpush.bf16.msra.mxu0 %v2350
    %6526 = vmatpush.bf16.msra.mxu0 %v2344
    %6527 = vmatpush.bf16.msra.mxu0 %v2338
    %6528 = vmatpush.bf16.msra.mxu0 %v2332
    %6529 = vmatpush.bf16.msra.mxu0 %v2326
    %6530 = vmatmul.bf16.gmra.mxu0 %v6428
    %v6531 = vpop.f32.mrf.mxu0
    %v6532 = vadd.f32 %v6519, %v6531
    %v6533 = vpop.f32.mrf.mxu0
    %6534 = vdwg.mxu0
    %6535 = vmatpush.bf16.msra.mxu0 %v2321
    %6536 = vmatpush.bf16.msra.mxu0 %v2315
    %6537 = vmatpush.bf16.msra.mxu0 %v2309
    %6538 = vmatpush.bf16.msra.mxu0 %v2303
    %6539 = vmatpush.bf16.msra.mxu0 %v2297
    %6540 = vmatpush.bf16.msra.mxu0 %v2291
    %6541 = vmatpush.bf16.msra.mxu0 %v2285
    %6542 = vmatpush.bf16.msra.mxu0 %v2279
    %6543 = vmatmul.bf16.gmra.mxu0 %v6424
    %v6544 = vpop.f32.mrf.mxu0
    %v6545 = vadd.f32 %v2472, %v6544
    %v6546 = vpop.f32.mrf.mxu0
    %6547 = vdwg.mxu0
    %6548 = vmatpush.bf16.msra.mxu0 %v2369
    %6549 = vmatpush.bf16.msra.mxu0 %v2363
    %6550 = vmatpush.bf16.msra.mxu0 %v2357
    %6551 = vmatpush.bf16.msra.mxu0 %v2351
    %6552 = vmatpush.bf16.msra.mxu0 %v2345
    %6553 = vmatpush.bf16.msra.mxu0 %v2339
    %6554 = vmatpush.bf16.msra.mxu0 %v2333
    %6555 = vmatpush.bf16.msra.mxu0 %v2327
    %6556 = vmatmul.bf16.gmra.mxu0 %v6428
    %v6557 = vpop.f32.mrf.mxu0
    %v6558 = vadd.f32 %v6545, %v6557
    %v6559 = vpop.f32.mrf.mxu0
    %6560 = vdwg.mxu0
    %6561 = vmatpush.bf16.msra.mxu0 %v2322
    %6562 = vmatpush.bf16.msra.mxu0 %v2316
    %6563 = vmatpush.bf16.msra.mxu0 %v2310
    %6564 = vmatpush.bf16.msra.mxu0 %v2304
    %6565 = vmatpush.bf16.msra.mxu0 %v2298
    %6566 = vmatpush.bf16.msra.mxu0 %v2292
    %6567 = vmatpush.bf16.msra.mxu0 %v2286
    %6568 = vmatpush.bf16.msra.mxu0 %v2280
    %6569 = vmatmul.bf16.gmra.mxu0 %v6424
    %v6570 = vpop.f32.mrf.mxu0
    %v6571 = vadd.f32 %v2473, %v6570
    %v6572 = vpop.f32.mrf.mxu0
    %6573 = vdwg.mxu0
    %6574 = vmatpush.bf16.msra.mxu0 %v2370
    %6575 = vmatpush.bf16.msra.mxu0 %v2364
    %6576 = vmatpush.bf16.msra.mxu0 %v2358
    %6577 = vmatpush.bf16.msra.mxu0 %v2352
    %6578 = vmatpush.bf16.msra.mxu0 %v2346
    %6579 = vmatpush.bf16.msra.mxu0 %v2340
    %6580 = vmatpush.bf16.msra.mxu0 %v2334
    %6581 = vmatpush.bf16.msra.mxu0 %v2328
    %6582 = vmatmul.bf16.gmra.mxu0 %v6428
    %v6583 = vpop.f32.mrf.mxu0
    %v6584 = vadd.f32 %v6571, %v6583
    %v6585 = vpop.f32.mrf.mxu0
    %6586 = vdwg.mxu0
    %v6587 = vpack.c.bf16 %v6143, %v6143
    %v6588 = vpack.c.bf16 %v6144, %v6144
    %6589 = vmatpush.bf16.msra.mxu0 %v2966
    %6590 = vmatpush.bf16.msra.mxu0 %v2960
    %6591 = vmatpush.bf16.msra.mxu0 %v2954
    %6592 = vmatpush.bf16.msra.mxu0 %v2948
    %6593 = vmatpush.bf16.msra.mxu0 %v2942
    %6594 = vmatpush.bf16.msra.mxu0 %v2936
    %6595 = vmatpush.bf16.msra.mxu0 %v2930
    %6596 = vmatpush.bf16.msra.mxu0 %v2924
    %6597 = vmatmul.bf16.gmra.mxu0 %v6587
    %v6598 = vpop.f32.mrf.mxu0
    %v6599 = vadd.f32 %v3117, %v6598
    %v6600 = vpop.f32.mrf.mxu0
    %6601 = vdwg.mxu0
    %6602 = vmatpush.bf16.msra.mxu0 %v3014
    %6603 = vmatpush.bf16.msra.mxu0 %v3008
    %6604 = vmatpush.bf16.msra.mxu0 %v3002
    %6605 = vmatpush.bf16.msra.mxu0 %v2996
    %6606 = vmatpush.bf16.msra.mxu0 %v2990
    %6607 = vmatpush.bf16.msra.mxu0 %v2984
    %6608 = vmatpush.bf16.msra.mxu0 %v2978
    %6609 = vmatpush.bf16.msra.mxu0 %v2972
    %6610 = vmatmul.bf16.gmra.mxu0 %v6588
    %v6611 = vpop.f32.mrf.mxu0
    %v6612 = vadd.f32 %v6599, %v6611
    %v6613 = vpop.f32.mrf.mxu0
    %6614 = vdwg.mxu0
    %6615 = vmatpush.bf16.msra.mxu0 %v2967
    %6616 = vmatpush.bf16.msra.mxu0 %v2961
    %6617 = vmatpush.bf16.msra.mxu0 %v2955
    %6618 = vmatpush.bf16.msra.mxu0 %v2949
    %6619 = vmatpush.bf16.msra.mxu0 %v2943
    %6620 = vmatpush.bf16.msra.mxu0 %v2937
    %6621 = vmatpush.bf16.msra.mxu0 %v2931
    %6622 = vmatpush.bf16.msra.mxu0 %v2925
    %6623 = vmatmul.bf16.gmra.mxu0 %v6587
    %v6624 = vpop.f32.mrf.mxu0
    %v6625 = vadd.f32 %v3118, %v6624
    %v6626 = vpop.f32.mrf.mxu0
    %6627 = vdwg.mxu0
    %6628 = vmatpush.bf16.msra.mxu0 %v3015
    %6629 = vmatpush.bf16.msra.mxu0 %v3009
    %6630 = vmatpush.bf16.msra.mxu0 %v3003
    %6631 = vmatpush.bf16.msra.mxu0 %v2997
    %6632 = vmatpush.bf16.msra.mxu0 %v2991
    %6633 = vmatpush.bf16.msra.mxu0 %v2985
    %6634 = vmatpush.bf16.msra.mxu0 %v2979
    %6635 = vmatpush.bf16.msra.mxu0 %v2973
    %6636 = vmatmul.bf16.gmra.mxu0 %v6588
    %v6637 = vpop.f32.mrf.mxu0
    %v6638 = vadd.f32 %v6625, %v6637
    %v6639 = vpop.f32.mrf.mxu0
    %6640 = vdwg.mxu0
    %6641 = vmatpush.bf16.msra.mxu0 %v2968
    %6642 = vmatpush.bf16.msra.mxu0 %v2962
    %6643 = vmatpush.bf16.msra.mxu0 %v2956
    %6644 = vmatpush.bf16.msra.mxu0 %v2950
    %6645 = vmatpush.bf16.msra.mxu0 %v2944
    %6646 = vmatpush.bf16.msra.mxu0 %v2938
    %6647 = vmatpush.bf16.msra.mxu0 %v2932
    %6648 = vmatpush.bf16.msra.mxu0 %v2926
    %6649 = vmatmul.bf16.gmra.mxu0 %v6587
    %v6650 = vpop.f32.mrf.mxu0
    %v6651 = vadd.f32 %v3119, %v6650
    %v6652 = vpop.f32.mrf.mxu0
    %6653 = vdwg.mxu0
    %6654 = vmatpush.bf16.msra.mxu0 %v3016
    %6655 = vmatpush.bf16.msra.mxu0 %v3010
    %6656 = vmatpush.bf16.msra.mxu0 %v3004
    %6657 = vmatpush.bf16.msra.mxu0 %v2998
    %6658 = vmatpush.bf16.msra.mxu0 %v2992
    %6659 = vmatpush.bf16.msra.mxu0 %v2986
    %6660 = vmatpush.bf16.msra.mxu0 %v2980
    %6661 = vmatpush.bf16.msra.mxu0 %v2974
    %6662 = vmatmul.bf16.gmra.mxu0 %v6588
    %v6663 = vpop.f32.mrf.mxu0
    %v6664 = vadd.f32 %v6651, %v6663
    %v6665 = vpop.f32.mrf.mxu0
    %6666 = vdwg.mxu0
    %6667 = vmatpush.bf16.msra.mxu0 %v2969
    %6668 = vmatpush.bf16.msra.mxu0 %v2963
    %6669 = vmatpush.bf16.msra.mxu0 %v2957
    %6670 = vmatpush.bf16.msra.mxu0 %v2951
    %6671 = vmatpush.bf16.msra.mxu0 %v2945
    %6672 = vmatpush.bf16.msra.mxu0 %v2939
    %6673 = vmatpush.bf16.msra.mxu0 %v2933
    %6674 = vmatpush.bf16.msra.mxu0 %v2927
    %6675 = vmatmul.bf16.gmra.mxu0 %v6587
    %v6676 = vpop.f32.mrf.mxu0
    %v6677 = vadd.f32 %v3120, %v6676
    %v6678 = vpop.f32.mrf.mxu0
    %6679 = vdwg.mxu0
    %6680 = vmatpush.bf16.msra.mxu0 %v3017
    %6681 = vmatpush.bf16.msra.mxu0 %v3011
    %6682 = vmatpush.bf16.msra.mxu0 %v3005
    %6683 = vmatpush.bf16.msra.mxu0 %v2999
    %6684 = vmatpush.bf16.msra.mxu0 %v2993
    %6685 = vmatpush.bf16.msra.mxu0 %v2987
    %6686 = vmatpush.bf16.msra.mxu0 %v2981
    %6687 = vmatpush.bf16.msra.mxu0 %v2975
    %6688 = vmatmul.bf16.gmra.mxu0 %v6588
    %v6689 = vpop.f32.mrf.mxu0
    %v6690 = vadd.f32 %v6677, %v6689
    %v6691 = vpop.f32.mrf.mxu0
    %6692 = vdwg.mxu0
    %6693 = vmatpush.bf16.msra.mxu0 %v2970
    %6694 = vmatpush.bf16.msra.mxu0 %v2964
    %6695 = vmatpush.bf16.msra.mxu0 %v2958
    %6696 = vmatpush.bf16.msra.mxu0 %v2952
    %6697 = vmatpush.bf16.msra.mxu0 %v2946
    %6698 = vmatpush.bf16.msra.mxu0 %v2940
    %6699 = vmatpush.bf16.msra.mxu0 %v2934
    %6700 = vmatpush.bf16.msra.mxu0 %v2928
    %6701 = vmatmul.bf16.gmra.mxu0 %v6587
    %v6702 = vpop.f32.mrf.mxu0
    %v6703 = vadd.f32 %v3121, %v6702
    %v6704 = vpop.f32.mrf.mxu0
    %6705 = vdwg.mxu0
    %6706 = vmatpush.bf16.msra.mxu0 %v3018
    %6707 = vmatpush.bf16.msra.mxu0 %v3012
    %6708 = vmatpush.bf16.msra.mxu0 %v3006
    %6709 = vmatpush.bf16.msra.mxu0 %v3000
    %6710 = vmatpush.bf16.msra.mxu0 %v2994
    %6711 = vmatpush.bf16.msra.mxu0 %v2988
    %6712 = vmatpush.bf16.msra.mxu0 %v2982
    %6713 = vmatpush.bf16.msra.mxu0 %v2976
    %6714 = vmatmul.bf16.gmra.mxu0 %v6588
    %v6715 = vpop.f32.mrf.mxu0
    %v6716 = vadd.f32 %v6703, %v6715
    %v6717 = vpop.f32.mrf.mxu0
    %6718 = vdwg.mxu0
    %6719 = vmatpush.bf16.msra.mxu0 %v2971
    %6720 = vmatpush.bf16.msra.mxu0 %v2965
    %6721 = vmatpush.bf16.msra.mxu0 %v2959
    %6722 = vmatpush.bf16.msra.mxu0 %v2953
    %6723 = vmatpush.bf16.msra.mxu0 %v2947
    %6724 = vmatpush.bf16.msra.mxu0 %v2941
    %6725 = vmatpush.bf16.msra.mxu0 %v2935
    %6726 = vmatpush.bf16.msra.mxu0 %v2929
    %6727 = vmatmul.bf16.gmra.mxu0 %v6587
    %v6728 = vpop.f32.mrf.mxu0
    %v6729 = vadd.f32 %v3122, %v6728
    %v6730 = vpop.f32.mrf.mxu0
    %6731 = vdwg.mxu0
    %6732 = vmatpush.bf16.msra.mxu0 %v3019
    %6733 = vmatpush.bf16.msra.mxu0 %v3013
    %6734 = vmatpush.bf16.msra.mxu0 %v3007
    %6735 = vmatpush.bf16.msra.mxu0 %v3001
    %6736 = vmatpush.bf16.msra.mxu0 %v2995
    %6737 = vmatpush.bf16.msra.mxu0 %v2989
    %6738 = vmatpush.bf16.msra.mxu0 %v2983
    %6739 = vmatpush.bf16.msra.mxu0 %v2977
    %6740 = vmatmul.bf16.gmra.mxu0 %v6588
    %v6741 = vpop.f32.mrf.mxu0
    %v6742 = vadd.f32 %v6729, %v6741
    %v6743 = vpop.f32.mrf.mxu0
    %6744 = vdwg.mxu0
    %v6745 = vadd.f32 %v6454, %v6612
    %v6746 = vadd.f32 %v6480, %v6638
    %v6747 = vxor.u32 %v6745, 2147483648
    %v6748 = vxor.u32 %v6746, 2147483648
    %v6749 = vmul.f32 %v6747, 1.442695
    %v6750 = vpow.pop %v6749
    %v6751 = vmul.f32 %v6748, 1.442695
    %v6752 = vpow.pop %v6751
    %v6753 = vadd.f32 %v6750, 1.0
    %v6754 = vadd.f32 %v6752, 1.0
    %v6755 = vrcp.pop %v6753
    %v6756 = vmul.f32 %v6753, %v6755
    %v6757 = vsub.f32 1.0, %v6756
    %v6758 = vmul.f32 %v6755, %v6757
    %v6759 = vadd.f32 %v6755, %v6758
    %vm6760 = vweird.f32 %v6753
    %vm6761 = vweird.f32 %v6755
    %vm6762 = vmor %vm6760, %vm6761
    %v6763 = vsel %vm6762, %v6755, %v6759
    %v6764 = vand.u32 2147483647, %v6753
    %vm6765 = vcmp.eq.f32.partialorder %v6764, 8.507059e+37
    %v6766 = vand.u32 %v6753, 2147483648
    %v6767 = vor.u32 1.1754944e-38, %v6766
    %v6768 = vsel %vm6765, %v6767, %v6763
    %v6769 = vmul.f32 1.0, %v6768
    %v6770 = vrcp.pop %v6754
    %v6771 = vmul.f32 %v6754, %v6770
    %v6772 = vsub.f32 1.0, %v6771
    %v6773 = vmul.f32 %v6770, %v6772
    %v6774 = vadd.f32 %v6770, %v6773
    %vm6775 = vweird.f32 %v6754
    %vm6776 = vweird.f32 %v6770
    %vm6777 = vmor %vm6775, %vm6776
    %v6778 = vsel %vm6777, %v6770, %v6774
    %v6779 = vand.u32 2147483647, %v6754
    %vm6780 = vcmp.eq.f32.partialorder %v6779, 8.507059e+37
    %v6781 = vand.u32 %v6754, 2147483648
    %v6782 = vor.u32 1.1754944e-38, %v6781
    %v6783 = vsel %vm6780, %v6782, %v6778
    %v6784 = vmul.f32 1.0, %v6783
    %v6785 = vadd.f32 %v6506, %v6664
    %v6786 = vadd.f32 %v6532, %v6690
    %v6787 = vxor.u32 %v6785, 2147483648
    %v6788 = vxor.u32 %v6786, 2147483648
    %v6789 = vmul.f32 %v6787, 1.442695
    %v6790 = vpow.pop %v6789
    %v6791 = vmul.f32 %v6788, 1.442695
    %v6792 = vpow.pop %v6791
    %v6793 = vadd.f32 %v6790, 1.0
    %v6794 = vadd.f32 %v6792, 1.0
    %v6795 = vrcp.pop %v6793
    %v6796 = vmul.f32 %v6793, %v6795
    %v6797 = vsub.f32 1.0, %v6796
    %v6798 = vmul.f32 %v6795, %v6797
    %v6799 = vadd.f32 %v6795, %v6798
    %vm6800 = vweird.f32 %v6793
    %vm6801 = vweird.f32 %v6795
    %vm6802 = vmor %vm6800, %vm6801
    %v6803 = vsel %vm6802, %v6795, %v6799
    %v6804 = vand.u32 2147483647, %v6793
    %vm6805 = vcmp.eq.f32.partialorder %v6804, 8.507059e+37
    %v6806 = vand.u32 %v6793, 2147483648
    %v6807 = vor.u32 1.1754944e-38, %v6806
    %v6808 = vsel %vm6805, %v6807, %v6803
    %v6809 = vmul.f32 1.0, %v6808
    %v6810 = vrcp.pop %v6794
    %v6811 = vmul.f32 %v6794, %v6810
    %v6812 = vsub.f32 1.0, %v6811
    %v6813 = vmul.f32 %v6810, %v6812
    %v6814 = vadd.f32 %v6810, %v6813
    %vm6815 = vweird.f32 %v6794
    %vm6816 = vweird.f32 %v6810
    %vm6817 = vmor %vm6815, %vm6816
    %v6818 = vsel %vm6817, %v6810, %v6814
    %v6819 = vand.u32 2147483647, %v6794
    %vm6820 = vcmp.eq.f32.partialorder %v6819, 8.507059e+37
    %v6821 = vand.u32 %v6794, 2147483648
    %v6822 = vor.u32 1.1754944e-38, %v6821
    %v6823 = vsel %vm6820, %v6822, %v6818
    %v6824 = vmul.f32 1.0, %v6823
    %v6825 = vmul.f32 %v6769, %v6716
    %v6826 = vmul.f32 %v6784, %v6742
    %v6827 = vadd.f32 %v6558, %v6825
    %v6828 = vadd.f32 %v6584, %v6826
    %v6829 = vtanh.pop %v6827
    %v6830 = vtanh.pop %v6828
    %v6831 = vsub.f32 1.0, %v6809
    %v6832 = vsub.f32 1.0, %v6824
    %v6833 = vmul.f32 %v6831, %v6829
    %v6834 = vmul.f32 %v6832, %v6830
    %v6835 = vmul.f32 %v6809, %v6143
    %v6836 = vmul.f32 %v6824, %v6144
    %v6837 = vadd.f32 %v6833, %v6835
    %v6838 = vadd.f32 %v6834, %v6836
    %6839 = vmatpush.bf16.msra.mxu0 %v1572
    %6840 = vmatpush.bf16.msra.mxu0 %v1566
    %6841 = vmatpush.bf16.msra.mxu0 %v1560
    %6842 = vmatpush.bf16.msra.mxu0 %v1554
    %6843 = vmatpush.bf16.msra.mxu0 %v1548
    %6844 = vmatpush.bf16.msra.mxu0 %v1542
    %6845 = vmatpush.bf16.msra.mxu0 %v1536
    %6846 = vmatpush.bf16.msra.mxu0 %v1530
    %6847 = vmatmul.bf16.gmra.mxu0 %v6424
    %v6848 = vpop.f32.mrf.mxu0
    %v6849 = vadd.f32 %v1723, %v6848
    %v6850 = vpop.f32.mrf.mxu0
    %6851 = vdwg.mxu0
    %6852 = vmatpush.bf16.msra.mxu0 %v1620
    %6853 = vmatpush.bf16.msra.mxu0 %v1614
    %6854 = vmatpush.bf16.msra.mxu0 %v1608
    %6855 = vmatpush.bf16.msra.mxu0 %v1602
    %6856 = vmatpush.bf16.msra.mxu0 %v1596
    %6857 = vmatpush.bf16.msra.mxu0 %v1590
    %6858 = vmatpush.bf16.msra.mxu0 %v1584
    %6859 = vmatpush.bf16.msra.mxu0 %v1578
    %6860 = vmatmul.bf16.gmra.mxu0 %v6428
    %v6861 = vpop.f32.mrf.mxu0
    %v6862 = vadd.f32 %v6849, %v6861
    %v6863 = vpop.f32.mrf.mxu0
    %6864 = vdwg.mxu0
    %6865 = vmatpush.bf16.msra.mxu0 %v1573
    %6866 = vmatpush.bf16.msra.mxu0 %v1567
    %6867 = vmatpush.bf16.msra.mxu0 %v1561
    %6868 = vmatpush.bf16.msra.mxu0 %v1555
    %6869 = vmatpush.bf16.msra.mxu0 %v1549
    %6870 = vmatpush.bf16.msra.mxu0 %v1543
    %6871 = vmatpush.bf16.msra.mxu0 %v1537
    %6872 = vmatpush.bf16.msra.mxu0 %v1531
    %6873 = vmatmul.bf16.gmra.mxu0 %v6424
    %v6874 = vpop.f32.mrf.mxu0
    %v6875 = vadd.f32 %v1724, %v6874
    %v6876 = vpop.f32.mrf.mxu0
    %6877 = vdwg.mxu0
    %6878 = vmatpush.bf16.msra.mxu0 %v1621
    %6879 = vmatpush.bf16.msra.mxu0 %v1615
    %6880 = vmatpush.bf16.msra.mxu0 %v1609
    %6881 = vmatpush.bf16.msra.mxu0 %v1603
    %6882 = vmatpush.bf16.msra.mxu0 %v1597
    %6883 = vmatpush.bf16.msra.mxu0 %v1591
    %6884 = vmatpush.bf16.msra.mxu0 %v1585
    %6885 = vmatpush.bf16.msra.mxu0 %v1579
    %6886 = vmatmul.bf16.gmra.mxu0 %v6428
    %v6887 = vpop.f32.mrf.mxu0
    %v6888 = vadd.f32 %v6875, %v6887
    %v6889 = vpop.f32.mrf.mxu0
    %6890 = vdwg.mxu0
    %6891 = vmatpush.bf16.msra.mxu0 %v1574
    %6892 = vmatpush.bf16.msra.mxu0 %v1568
    %6893 = vmatpush.bf16.msra.mxu0 %v1562
    %6894 = vmatpush.bf16.msra.mxu0 %v1556
    %6895 = vmatpush.bf16.msra.mxu0 %v1550
    %6896 = vmatpush.bf16.msra.mxu0 %v1544
    %6897 = vmatpush.bf16.msra.mxu0 %v1538
    %6898 = vmatpush.bf16.msra.mxu0 %v1532
    %6899 = vmatmul.bf16.gmra.mxu0 %v6424
    %v6900 = vpop.f32.mrf.mxu0
    %v6901 = vadd.f32 %v1725, %v6900
    %v6902 = vpop.f32.mrf.mxu0
    %6903 = vdwg.mxu0
    %6904 = vmatpush.bf16.msra.mxu0 %v1622
    %6905 = vmatpush.bf16.msra.mxu0 %v1616
    %6906 = vmatpush.bf16.msra.mxu0 %v1610
    %6907 = vmatpush.bf16.msra.mxu0 %v1604
    %6908 = vmatpush.bf16.msra.mxu0 %v1598
    %6909 = vmatpush.bf16.msra.mxu0 %v1592
    %6910 = vmatpush.bf16.msra.mxu0 %v1586
    %6911 = vmatpush.bf16.msra.mxu0 %v1580
    %6912 = vmatmul.bf16.gmra.mxu0 %v6428
    %v6913 = vpop.f32.mrf.mxu0
    %v6914 = vadd.f32 %v6901, %v6913
    %v6915 = vpop.f32.mrf.mxu0
    %6916 = vdwg.mxu0
    %6917 = vmatpush.bf16.msra.mxu0 %v1575
    %6918 = vmatpush.bf16.msra.mxu0 %v1569
    %6919 = vmatpush.bf16.msra.mxu0 %v1563
    %6920 = vmatpush.bf16.msra.mxu0 %v1557
    %6921 = vmatpush.bf16.msra.mxu0 %v1551
    %6922 = vmatpush.bf16.msra.mxu0 %v1545
    %6923 = vmatpush.bf16.msra.mxu0 %v1539
    %6924 = vmatpush.bf16.msra.mxu0 %v1533
    %6925 = vmatmul.bf16.gmra.mxu0 %v6424
    %v6926 = vpop.f32.mrf.mxu0
    %v6927 = vadd.f32 %v1726, %v6926
    %v6928 = vpop.f32.mrf.mxu0
    %6929 = vdwg.mxu0
    %6930 = vmatpush.bf16.msra.mxu0 %v1623
    %6931 = vmatpush.bf16.msra.mxu0 %v1617
    %6932 = vmatpush.bf16.msra.mxu0 %v1611
    %6933 = vmatpush.bf16.msra.mxu0 %v1605
    %6934 = vmatpush.bf16.msra.mxu0 %v1599
    %6935 = vmatpush.bf16.msra.mxu0 %v1593
    %6936 = vmatpush.bf16.msra.mxu0 %v1587
    %6937 = vmatpush.bf16.msra.mxu0 %v1581
    %6938 = vmatmul.bf16.gmra.mxu0 %v6428
    %v6939 = vpop.f32.mrf.mxu0
    %v6940 = vadd.f32 %v6927, %v6939
    %v6941 = vpop.f32.mrf.mxu0
    %6942 = vdwg.mxu0
    %6943 = vmatpush.bf16.msra.mxu0 %v1576
    %6944 = vmatpush.bf16.msra.mxu0 %v1570
    %6945 = vmatpush.bf16.msra.mxu0 %v1564
    %6946 = vmatpush.bf16.msra.mxu0 %v1558
    %6947 = vmatpush.bf16.msra.mxu0 %v1552
    %6948 = vmatpush.bf16.msra.mxu0 %v1546
    %6949 = vmatpush.bf16.msra.mxu0 %v1540
    %6950 = vmatpush.bf16.msra.mxu0 %v1534
    %6951 = vmatmul.bf16.gmra.mxu0 %v6424
    %v6952 = vpop.f32.mrf.mxu0
    %v6953 = vadd.f32 %v1727, %v6952
    %v6954 = vpop.f32.mrf.mxu0
    %6955 = vdwg.mxu0
    %6956 = vmatpush.bf16.msra.mxu0 %v1624
    %6957 = vmatpush.bf16.msra.mxu0 %v1618
    %6958 = vmatpush.bf16.msra.mxu0 %v1612
    %6959 = vmatpush.bf16.msra.mxu0 %v1606
    %6960 = vmatpush.bf16.msra.mxu0 %v1600
    %6961 = vmatpush.bf16.msra.mxu0 %v1594
    %6962 = vmatpush.bf16.msra.mxu0 %v1588
    %6963 = vmatpush.bf16.msra.mxu0 %v1582
    %6964 = vmatmul.bf16.gmra.mxu0 %v6428
    %v6965 = vpop.f32.mrf.mxu0
    %v6966 = vadd.f32 %v6953, %v6965
    %v6967 = vpop.f32.mrf.mxu0
    %6968 = vdwg.mxu0
    %6969 = vmatpush.bf16.msra.mxu0 %v1577
    %6970 = vmatpush.bf16.msra.mxu0 %v1571
    %6971 = vmatpush.bf16.msra.mxu0 %v1565
    %6972 = vmatpush.bf16.msra.mxu0 %v1559
    %6973 = vmatpush.bf16.msra.mxu0 %v1553
    %6974 = vmatpush.bf16.msra.mxu0 %v1547
    %6975 = vmatpush.bf16.msra.mxu0 %v1541
    %6976 = vmatpush.bf16.msra.mxu0 %v1535
    %6977 = vmatmul.bf16.gmra.mxu0 %v6424
    %v6978 = vpop.f32.mrf.mxu0
    %v6979 = vadd.f32 %v1728, %v6978
    %v6980 = vpop.f32.mrf.mxu0
    %6981 = vdwg.mxu0
    %6982 = vmatpush.bf16.msra.mxu0 %v1625
    %6983 = vmatpush.bf16.msra.mxu0 %v1619
    %6984 = vmatpush.bf16.msra.mxu0 %v1613
    %6985 = vmatpush.bf16.msra.mxu0 %v1607
    %6986 = vmatpush.bf16.msra.mxu0 %v1601
    %6987 = vmatpush.bf16.msra.mxu0 %v1595
    %6988 = vmatpush.bf16.msra.mxu0 %v1589
    %6989 = vmatpush.bf16.msra.mxu0 %v1583
    %6990 = vmatmul.bf16.gmra.mxu0 %v6428
    %v6991 = vpop.f32.mrf.mxu0
    %v6992 = vadd.f32 %v6979, %v6991
    %v6993 = vpop.f32.mrf.mxu0
    %6994 = vdwg.mxu0
    %v6997 = vrot.slane %v6862, 2
    %v6998 = vrot.slane %v6888, 2
    %v7001 = vadd.f32 %v914, %v6997
    %v7002 = vadd.f32 %v940, %v6998
    %v7003 = vxor.u32 %v7001, 2147483648
    %v7004 = vxor.u32 %v7002, 2147483648
    %v7005 = vmul.f32 %v7003, 1.442695
    %v7006 = vpow.pop %v7005
    %v7007 = vmul.f32 %v7004, 1.442695
    %v7008 = vpow.pop %v7007
    %v7009 = vadd.f32 %v7006, 1.0
    %v7010 = vadd.f32 %v7008, 1.0
    %v7011 = vrcp.pop %v7009
    %v7012 = vmul.f32 %v7009, %v7011
    %v7013 = vsub.f32 1.0, %v7012
    %v7014 = vmul.f32 %v7011, %v7013
    %v7015 = vadd.f32 %v7011, %v7014
    %vm7016 = vweird.f32 %v7009
    %vm7017 = vweird.f32 %v7011
    %vm7018 = vmor %vm7016, %vm7017
    %v7019 = vsel %vm7018, %v7011, %v7015
    %v7020 = vand.u32 2147483647, %v7009
    %vm7021 = vcmp.eq.f32.partialorder %v7020, 8.507059e+37
    %v7022 = vand.u32 %v7009, 2147483648
    %v7023 = vor.u32 1.1754944e-38, %v7022
    %v7024 = vsel %vm7021, %v7023, %v7019
    %v7025 = vmul.f32 1.0, %v7024
    %v7026 = vrcp.pop %v7010
    %v7027 = vmul.f32 %v7010, %v7026
    %v7028 = vsub.f32 1.0, %v7027
    %v7029 = vmul.f32 %v7026, %v7028
    %v7030 = vadd.f32 %v7026, %v7029
    %vm7031 = vweird.f32 %v7010
    %vm7032 = vweird.f32 %v7026
    %vm7033 = vmor %vm7031, %vm7032
    %v7034 = vsel %vm7033, %v7026, %v7030
    %v7035 = vand.u32 2147483647, %v7010
    %vm7036 = vcmp.eq.f32.partialorder %v7035, 8.507059e+37
    %v7037 = vand.u32 %v7010, 2147483648
    %v7038 = vor.u32 1.1754944e-38, %v7037
    %v7039 = vsel %vm7036, %v7038, %v7034
    %v7040 = vmul.f32 1.0, %v7039
    %v7043 = vrot.slane %v6914, 2
    %v7044 = vrot.slane %v6940, 2
    %v7047 = vadd.f32 %v966, %v7043
    %v7048 = vadd.f32 %v992, %v7044
    %v7049 = vxor.u32 %v7047, 2147483648
    %v7050 = vxor.u32 %v7048, 2147483648
    %v7051 = vmul.f32 %v7049, 1.442695
    %v7052 = vpow.pop %v7051
    %v7053 = vmul.f32 %v7050, 1.442695
    %v7054 = vpow.pop %v7053
    %v7055 = vadd.f32 %v7052, 1.0
    %v7056 = vadd.f32 %v7054, 1.0
    %v7057 = vrcp.pop %v7055
    %v7058 = vmul.f32 %v7055, %v7057
    %v7059 = vsub.f32 1.0, %v7058
    %v7060 = vmul.f32 %v7057, %v7059
    %v7061 = vadd.f32 %v7057, %v7060
    %vm7062 = vweird.f32 %v7055
    %vm7063 = vweird.f32 %v7057
    %vm7064 = vmor %vm7062, %vm7063
    %v7065 = vsel %vm7064, %v7057, %v7061
    %v7066 = vand.u32 2147483647, %v7055
    %vm7067 = vcmp.eq.f32.partialorder %v7066, 8.507059e+37
    %v7068 = vand.u32 %v7055, 2147483648
    %v7069 = vor.u32 1.1754944e-38, %v7068
    %v7070 = vsel %vm7067, %v7069, %v7065
    %v7071 = vmul.f32 1.0, %v7070
    %v7072 = vrcp.pop %v7056
    %v7073 = vmul.f32 %v7056, %v7072
    %v7074 = vsub.f32 1.0, %v7073
    %v7075 = vmul.f32 %v7072, %v7074
    %v7076 = vadd.f32 %v7072, %v7075
    %vm7077 = vweird.f32 %v7056
    %vm7078 = vweird.f32 %v7072
    %vm7079 = vmor %vm7077, %vm7078
    %v7080 = vsel %vm7079, %v7072, %v7076
    %v7081 = vand.u32 2147483647, %v7056
    %vm7082 = vcmp.eq.f32.partialorder %v7081, 8.507059e+37
    %v7083 = vand.u32 %v7056, 2147483648
    %v7084 = vor.u32 1.1754944e-38, %v7083
    %v7085 = vsel %vm7082, %v7084, %v7080
    %v7086 = vmul.f32 1.0, %v7085
    %v7089 = vrot.slane %v6966, 2
    %v7090 = vrot.slane %v6992, 2
    %v7093 = vmul.f32 %v7025, %v7089
    %v7094 = vmul.f32 %v7040, %v7090
    %v7095 = vadd.f32 %v1018, %v7093
    %v7096 = vadd.f32 %v1044, %v7094
    %v7097 = vtanh.pop %v7095
    %v7098 = vtanh.pop %v7096
    %v7099 = vsub.f32 1.0, %v7071
    %v7100 = vsub.f32 1.0, %v7086
    %v7101 = vmul.f32 %v7099, %v7097
    %v7102 = vmul.f32 %v7100, %v7098
    %v7105 = vrot.slane %v6417, 7
    %v7106 = vrot.slane %v6418, 7
    %v7109 = vmul.f32 %v7071, %v7105
    %v7110 = vmul.f32 %v7086, %v7106
    %v7111 = vadd.f32 %v7101, %v7109
    %v7112 = vadd.f32 %v7102, %v7110
    %v7113 = vpack.c.bf16 %v7111, %v7111
    %v7114 = vpack.c.bf16 %v7112, %v7112
    %v7117 = vrot.slane %v7113, 3
    %v7118 = vrot.slane %v7114, 3
    %7121 = vmatpush.bf16.msra.mxu0 %v2317
    %7122 = vmatpush.bf16.msra.mxu0 %v2311
    %7123 = vmatpush.bf16.msra.mxu0 %v2305
    %7124 = vmatpush.bf16.msra.mxu0 %v2299
    %7125 = vmatpush.bf16.msra.mxu0 %v2293
    %7126 = vmatpush.bf16.msra.mxu0 %v2287
    %7127 = vmatpush.bf16.msra.mxu0 %v2281
    %7128 = vmatpush.bf16.msra.mxu0 %v2275
    %7129 = vmatmul.bf16.gmra.mxu0 %v7117
    %v7130 = vpop.f32.mrf.mxu0
    %v7131 = vadd.f32 %v2468, %v7130
    %v7132 = vpop.f32.mrf.mxu0
    %7133 = vdwg.mxu0
    %7134 = vmatpush.bf16.msra.mxu0 %v2365
    %7135 = vmatpush.bf16.msra.mxu0 %v2359
    %7136 = vmatpush.bf16.msra.mxu0 %v2353
    %7137 = vmatpush.bf16.msra.mxu0 %v2347
    %7138 = vmatpush.bf16.msra.mxu0 %v2341
    %7139 = vmatpush.bf16.msra.mxu0 %v2335
    %7140 = vmatpush.bf16.msra.mxu0 %v2329
    %7141 = vmatpush.bf16.msra.mxu0 %v2323
    %7142 = vmatmul.bf16.gmra.mxu0 %v7118
    %v7143 = vpop.f32.mrf.mxu0
    %v7144 = vadd.f32 %v7131, %v7143
    %v7145 = vpop.f32.mrf.mxu0
    %7146 = vdwg.mxu0
    %7147 = vmatpush.bf16.msra.mxu0 %v2318
    %7148 = vmatpush.bf16.msra.mxu0 %v2312
    %7149 = vmatpush.bf16.msra.mxu0 %v2306
    %7150 = vmatpush.bf16.msra.mxu0 %v2300
    %7151 = vmatpush.bf16.msra.mxu0 %v2294
    %7152 = vmatpush.bf16.msra.mxu0 %v2288
    %7153 = vmatpush.bf16.msra.mxu0 %v2282
    %7154 = vmatpush.bf16.msra.mxu0 %v2276
    %7155 = vmatmul.bf16.gmra.mxu0 %v7117
    %v7156 = vpop.f32.mrf.mxu0
    %v7157 = vadd.f32 %v2469, %v7156
    %v7158 = vpop.f32.mrf.mxu0
    %7159 = vdwg.mxu0
    %7160 = vmatpush.bf16.msra.mxu0 %v2366
    %7161 = vmatpush.bf16.msra.mxu0 %v2360
    %7162 = vmatpush.bf16.msra.mxu0 %v2354
    %7163 = vmatpush.bf16.msra.mxu0 %v2348
    %7164 = vmatpush.bf16.msra.mxu0 %v2342
    %7165 = vmatpush.bf16.msra.mxu0 %v2336
    %7166 = vmatpush.bf16.msra.mxu0 %v2330
    %7167 = vmatpush.bf16.msra.mxu0 %v2324
    %7168 = vmatmul.bf16.gmra.mxu0 %v7118
    %v7169 = vpop.f32.mrf.mxu0
    %v7170 = vadd.f32 %v7157, %v7169
    %v7171 = vpop.f32.mrf.mxu0
    %7172 = vdwg.mxu0
    %7173 = vmatpush.bf16.msra.mxu0 %v2319
    %7174 = vmatpush.bf16.msra.mxu0 %v2313
    %7175 = vmatpush.bf16.msra.mxu0 %v2307
    %7176 = vmatpush.bf16.msra.mxu0 %v2301
    %7177 = vmatpush.bf16.msra.mxu0 %v2295
    %7178 = vmatpush.bf16.msra.mxu0 %v2289
    %7179 = vmatpush.bf16.msra.mxu0 %v2283
    %7180 = vmatpush.bf16.msra.mxu0 %v2277
    %7181 = vmatmul.bf16.gmra.mxu0 %v7117
    %v7182 = vpop.f32.mrf.mxu0
    %v7183 = vadd.f32 %v2470, %v7182
    %v7184 = vpop.f32.mrf.mxu0
    %7185 = vdwg.mxu0
    %7186 = vmatpush.bf16.msra.mxu0 %v2367
    %7187 = vmatpush.bf16.msra.mxu0 %v2361
    %7188 = vmatpush.bf16.msra.mxu0 %v2355
    %7189 = vmatpush.bf16.msra.mxu0 %v2349
    %7190 = vmatpush.bf16.msra.mxu0 %v2343
    %7191 = vmatpush.bf16.msra.mxu0 %v2337
    %7192 = vmatpush.bf16.msra.mxu0 %v2331
    %7193 = vmatpush.bf16.msra.mxu0 %v2325
    %7194 = vmatmul.bf16.gmra.mxu0 %v7118
    %v7195 = vpop.f32.mrf.mxu0
    %v7196 = vadd.f32 %v7183, %v7195
    %v7197 = vpop.f32.mrf.mxu0
    %7198 = vdwg.mxu0
    %7199 = vmatpush.bf16.msra.mxu0 %v2320
    %7200 = vmatpush.bf16.msra.mxu0 %v2314
    %7201 = vmatpush.bf16.msra.mxu0 %v2308
    %7202 = vmatpush.bf16.msra.mxu0 %v2302
    %7203 = vmatpush.bf16.msra.mxu0 %v2296
    %7204 = vmatpush.bf16.msra.mxu0 %v2290
    %7205 = vmatpush.bf16.msra.mxu0 %v2284
    %7206 = vmatpush.bf16.msra.mxu0 %v2278
    %7207 = vmatmul.bf16.gmra.mxu0 %v7117
    %v7208 = vpop.f32.mrf.mxu0
    %v7209 = vadd.f32 %v2471, %v7208
    %v7210 = vpop.f32.mrf.mxu0
    %7211 = vdwg.mxu0
    %7212 = vmatpush.bf16.msra.mxu0 %v2368
    %7213 = vmatpush.bf16.msra.mxu0 %v2362
    %7214 = vmatpush.bf16.msra.mxu0 %v2356
    %7215 = vmatpush.bf16.msra.mxu0 %v2350
    %7216 = vmatpush.bf16.msra.mxu0 %v2344
    %7217 = vmatpush.bf16.msra.mxu0 %v2338
    %7218 = vmatpush.bf16.msra.mxu0 %v2332
    %7219 = vmatpush.bf16.msra.mxu0 %v2326
    %7220 = vmatmul.bf16.gmra.mxu0 %v7118
    %v7221 = vpop.f32.mrf.mxu0
    %v7222 = vadd.f32 %v7209, %v7221
    %v7223 = vpop.f32.mrf.mxu0
    %7224 = vdwg.mxu0
    %7225 = vmatpush.bf16.msra.mxu0 %v2321
    %7226 = vmatpush.bf16.msra.mxu0 %v2315
    %7227 = vmatpush.bf16.msra.mxu0 %v2309
    %7228 = vmatpush.bf16.msra.mxu0 %v2303
    %7229 = vmatpush.bf16.msra.mxu0 %v2297
    %7230 = vmatpush.bf16.msra.mxu0 %v2291
    %7231 = vmatpush.bf16.msra.mxu0 %v2285
    %7232 = vmatpush.bf16.msra.mxu0 %v2279
    %7233 = vmatmul.bf16.gmra.mxu0 %v7117
    %v7234 = vpop.f32.mrf.mxu0
    %v7235 = vadd.f32 %v2472, %v7234
    %v7236 = vpop.f32.mrf.mxu0
    %7237 = vdwg.mxu0
    %7238 = vmatpush.bf16.msra.mxu0 %v2369
    %7239 = vmatpush.bf16.msra.mxu0 %v2363
    %7240 = vmatpush.bf16.msra.mxu0 %v2357
    %7241 = vmatpush.bf16.msra.mxu0 %v2351
    %7242 = vmatpush.bf16.msra.mxu0 %v2345
    %7243 = vmatpush.bf16.msra.mxu0 %v2339
    %7244 = vmatpush.bf16.msra.mxu0 %v2333
    %7245 = vmatpush.bf16.msra.mxu0 %v2327
    %7246 = vmatmul.bf16.gmra.mxu0 %v7118
    %v7247 = vpop.f32.mrf.mxu0
    %v7248 = vadd.f32 %v7235, %v7247
    %v7249 = vpop.f32.mrf.mxu0
    %7250 = vdwg.mxu0
    %7251 = vmatpush.bf16.msra.mxu0 %v2322
    %7252 = vmatpush.bf16.msra.mxu0 %v2316
    %7253 = vmatpush.bf16.msra.mxu0 %v2310
    %7254 = vmatpush.bf16.msra.mxu0 %v2304
    %7255 = vmatpush.bf16.msra.mxu0 %v2298
    %7256 = vmatpush.bf16.msra.mxu0 %v2292
    %7257 = vmatpush.bf16.msra.mxu0 %v2286
    %7258 = vmatpush.bf16.msra.mxu0 %v2280
    %7259 = vmatmul.bf16.gmra.mxu0 %v7117
    %v7260 = vpop.f32.mrf.mxu0
    %v7261 = vadd.f32 %v2473, %v7260
    %v7262 = vpop.f32.mrf.mxu0
    %7263 = vdwg.mxu0
    %7264 = vmatpush.bf16.msra.mxu0 %v2370
    %7265 = vmatpush.bf16.msra.mxu0 %v2364
    %7266 = vmatpush.bf16.msra.mxu0 %v2358
    %7267 = vmatpush.bf16.msra.mxu0 %v2352
    %7268 = vmatpush.bf16.msra.mxu0 %v2346
    %7269 = vmatpush.bf16.msra.mxu0 %v2340
    %7270 = vmatpush.bf16.msra.mxu0 %v2334
    %7271 = vmatpush.bf16.msra.mxu0 %v2328
    %7272 = vmatmul.bf16.gmra.mxu0 %v7118
    %v7273 = vpop.f32.mrf.mxu0
    %v7274 = vadd.f32 %v7261, %v7273
    %v7275 = vpop.f32.mrf.mxu0
    %7276 = vdwg.mxu0
    %v7277 = vpack.c.bf16 %v6837, %v6837
    %v7278 = vpack.c.bf16 %v6838, %v6838
    %7279 = vmatpush.bf16.msra.mxu0 %v2966
    %7280 = vmatpush.bf16.msra.mxu0 %v2960
    %7281 = vmatpush.bf16.msra.mxu0 %v2954
    %7282 = vmatpush.bf16.msra.mxu0 %v2948
    %7283 = vmatpush.bf16.msra.mxu0 %v2942
    %7284 = vmatpush.bf16.msra.mxu0 %v2936
    %7285 = vmatpush.bf16.msra.mxu0 %v2930
    %7286 = vmatpush.bf16.msra.mxu0 %v2924
    %7287 = vmatmul.bf16.gmra.mxu0 %v7277
    %v7288 = vpop.f32.mrf.mxu0
    %v7289 = vadd.f32 %v3117, %v7288
    %v7290 = vpop.f32.mrf.mxu0
    %7291 = vdwg.mxu0
    %7292 = vmatpush.bf16.msra.mxu0 %v3014
    %7293 = vmatpush.bf16.msra.mxu0 %v3008
    %7294 = vmatpush.bf16.msra.mxu0 %v3002
    %7295 = vmatpush.bf16.msra.mxu0 %v2996
    %7296 = vmatpush.bf16.msra.mxu0 %v2990
    %7297 = vmatpush.bf16.msra.mxu0 %v2984
    %7298 = vmatpush.bf16.msra.mxu0 %v2978
    %7299 = vmatpush.bf16.msra.mxu0 %v2972
    %7300 = vmatmul.bf16.gmra.mxu0 %v7278
    %v7301 = vpop.f32.mrf.mxu0
    %v7302 = vadd.f32 %v7289, %v7301
    %v7303 = vpop.f32.mrf.mxu0
    %7304 = vdwg.mxu0
    %7305 = vmatpush.bf16.msra.mxu0 %v2967
    %7306 = vmatpush.bf16.msra.mxu0 %v2961
    %7307 = vmatpush.bf16.msra.mxu0 %v2955
    %7308 = vmatpush.bf16.msra.mxu0 %v2949
    %7309 = vmatpush.bf16.msra.mxu0 %v2943
    %7310 = vmatpush.bf16.msra.mxu0 %v2937
    %7311 = vmatpush.bf16.msra.mxu0 %v2931
    %7312 = vmatpush.bf16.msra.mxu0 %v2925
    %7313 = vmatmul.bf16.gmra.mxu0 %v7277
    %v7314 = vpop.f32.mrf.mxu0
    %v7315 = vadd.f32 %v3118, %v7314
    %v7316 = vpop.f32.mrf.mxu0
    %7317 = vdwg.mxu0
    %7318 = vmatpush.bf16.msra.mxu0 %v3015
    %7319 = vmatpush.bf16.msra.mxu0 %v3009
    %7320 = vmatpush.bf16.msra.mxu0 %v3003
    %7321 = vmatpush.bf16.msra.mxu0 %v2997
    %7322 = vmatpush.bf16.msra.mxu0 %v2991
    %7323 = vmatpush.bf16.msra.mxu0 %v2985
    %7324 = vmatpush.bf16.msra.mxu0 %v2979
    %7325 = vmatpush.bf16.msra.mxu0 %v2973
    %7326 = vmatmul.bf16.gmra.mxu0 %v7278
    %v7327 = vpop.f32.mrf.mxu0
    %v7328 = vadd.f32 %v7315, %v7327
    %v7329 = vpop.f32.mrf.mxu0
    %7330 = vdwg.mxu0
    %7331 = vmatpush.bf16.msra.mxu0 %v2968
    %7332 = vmatpush.bf16.msra.mxu0 %v2962
    %7333 = vmatpush.bf16.msra.mxu0 %v2956
    %7334 = vmatpush.bf16.msra.mxu0 %v2950
    %7335 = vmatpush.bf16.msra.mxu0 %v2944
    %7336 = vmatpush.bf16.msra.mxu0 %v2938
    %7337 = vmatpush.bf16.msra.mxu0 %v2932
    %7338 = vmatpush.bf16.msra.mxu0 %v2926
    %7339 = vmatmul.bf16.gmra.mxu0 %v7277
    %v7340 = vpop.f32.mrf.mxu0
    %v7341 = vadd.f32 %v3119, %v7340
    %v7342 = vpop.f32.mrf.mxu0
    %7343 = vdwg.mxu0
    %7344 = vmatpush.bf16.msra.mxu0 %v3016
    %7345 = vmatpush.bf16.msra.mxu0 %v3010
    %7346 = vmatpush.bf16.msra.mxu0 %v3004
    %7347 = vmatpush.bf16.msra.mxu0 %v2998
    %7348 = vmatpush.bf16.msra.mxu0 %v2992
    %7349 = vmatpush.bf16.msra.mxu0 %v2986
    %7350 = vmatpush.bf16.msra.mxu0 %v2980
    %7351 = vmatpush.bf16.msra.mxu0 %v2974
    %7352 = vmatmul.bf16.gmra.mxu0 %v7278
    %v7353 = vpop.f32.mrf.mxu0
    %v7354 = vadd.f32 %v7341, %v7353
    %v7355 = vpop.f32.mrf.mxu0
    %7356 = vdwg.mxu0
    %7357 = vmatpush.bf16.msra.mxu0 %v2969
    %7358 = vmatpush.bf16.msra.mxu0 %v2963
    %7359 = vmatpush.bf16.msra.mxu0 %v2957
    %7360 = vmatpush.bf16.msra.mxu0 %v2951
    %7361 = vmatpush.bf16.msra.mxu0 %v2945
    %7362 = vmatpush.bf16.msra.mxu0 %v2939
    %7363 = vmatpush.bf16.msra.mxu0 %v2933
    %7364 = vmatpush.bf16.msra.mxu0 %v2927
    %7365 = vmatmul.bf16.gmra.mxu0 %v7277
    %v7366 = vpop.f32.mrf.mxu0
    %v7367 = vadd.f32 %v3120, %v7366
    %v7368 = vpop.f32.mrf.mxu0
    %7369 = vdwg.mxu0
    %7370 = vmatpush.bf16.msra.mxu0 %v3017
    %7371 = vmatpush.bf16.msra.mxu0 %v3011
    %7372 = vmatpush.bf16.msra.mxu0 %v3005
    %7373 = vmatpush.bf16.msra.mxu0 %v2999
    %7374 = vmatpush.bf16.msra.mxu0 %v2993
    %7375 = vmatpush.bf16.msra.mxu0 %v2987
    %7376 = vmatpush.bf16.msra.mxu0 %v2981
    %7377 = vmatpush.bf16.msra.mxu0 %v2975
    %7378 = vmatmul.bf16.gmra.mxu0 %v7278
    %v7379 = vpop.f32.mrf.mxu0
    %v7380 = vadd.f32 %v7367, %v7379
    %v7381 = vpop.f32.mrf.mxu0
    %7382 = vdwg.mxu0
    %7383 = vmatpush.bf16.msra.mxu0 %v2970
    %7384 = vmatpush.bf16.msra.mxu0 %v2964
    %7385 = vmatpush.bf16.msra.mxu0 %v2958
    %7386 = vmatpush.bf16.msra.mxu0 %v2952
    %7387 = vmatpush.bf16.msra.mxu0 %v2946
    %7388 = vmatpush.bf16.msra.mxu0 %v2940
    %7389 = vmatpush.bf16.msra.mxu0 %v2934
    %7390 = vmatpush.bf16.msra.mxu0 %v2928
    %7391 = vmatmul.bf16.gmra.mxu0 %v7277
    %v7392 = vpop.f32.mrf.mxu0
    %v7393 = vadd.f32 %v3121, %v7392
    %v7394 = vpop.f32.mrf.mxu0
    %7395 = vdwg.mxu0
    %7396 = vmatpush.bf16.msra.mxu0 %v3018
    %7397 = vmatpush.bf16.msra.mxu0 %v3012
    %7398 = vmatpush.bf16.msra.mxu0 %v3006
    %7399 = vmatpush.bf16.msra.mxu0 %v3000
    %7400 = vmatpush.bf16.msra.mxu0 %v2994
    %7401 = vmatpush.bf16.msra.mxu0 %v2988
    %7402 = vmatpush.bf16.msra.mxu0 %v2982
    %7403 = vmatpush.bf16.msra.mxu0 %v2976
    %7404 = vmatmul.bf16.gmra.mxu0 %v7278
    %v7405 = vpop.f32.mrf.mxu0
    %v7406 = vadd.f32 %v7393, %v7405
    %v7407 = vpop.f32.mrf.mxu0
    %7408 = vdwg.mxu0
    %7409 = vmatpush.bf16.msra.mxu0 %v2971
    %7410 = vmatpush.bf16.msra.mxu0 %v2965
    %7411 = vmatpush.bf16.msra.mxu0 %v2959
    %7412 = vmatpush.bf16.msra.mxu0 %v2953
    %7413 = vmatpush.bf16.msra.mxu0 %v2947
    %7414 = vmatpush.bf16.msra.mxu0 %v2941
    %7415 = vmatpush.bf16.msra.mxu0 %v2935
    %7416 = vmatpush.bf16.msra.mxu0 %v2929
    %7417 = vmatmul.bf16.gmra.mxu0 %v7277
    %v7418 = vpop.f32.mrf.mxu0
    %v7419 = vadd.f32 %v3122, %v7418
    %v7420 = vpop.f32.mrf.mxu0
    %7421 = vdwg.mxu0
    %7422 = vmatpush.bf16.msra.mxu0 %v3019
    %7423 = vmatpush.bf16.msra.mxu0 %v3013
    %7424 = vmatpush.bf16.msra.mxu0 %v3007
    %7425 = vmatpush.bf16.msra.mxu0 %v3001
    %7426 = vmatpush.bf16.msra.mxu0 %v2995
    %7427 = vmatpush.bf16.msra.mxu0 %v2989
    %7428 = vmatpush.bf16.msra.mxu0 %v2983
    %7429 = vmatpush.bf16.msra.mxu0 %v2977
    %7430 = vmatmul.bf16.gmra.mxu0 %v7278
    %v7431 = vpop.f32.mrf.mxu0
    %v7432 = vadd.f32 %v7419, %v7431
    %v7433 = vpop.f32.mrf.mxu0
    %7434 = vdwg.mxu0
    %v7435 = vadd.f32 %v7144, %v7302
    %v7436 = vadd.f32 %v7170, %v7328
    %v7437 = vxor.u32 %v7435, 2147483648
    %v7438 = vxor.u32 %v7436, 2147483648
    %v7439 = vmul.f32 %v7437, 1.442695
    %v7440 = vpow.pop %v7439
    %v7441 = vmul.f32 %v7438, 1.442695
    %v7442 = vpow.pop %v7441
    %v7443 = vadd.f32 %v7440, 1.0
    %v7444 = vadd.f32 %v7442, 1.0
    %v7445 = vrcp.pop %v7443
    %v7446 = vmul.f32 %v7443, %v7445
    %v7447 = vsub.f32 1.0, %v7446
    %v7448 = vmul.f32 %v7445, %v7447
    %v7449 = vadd.f32 %v7445, %v7448
    %vm7450 = vweird.f32 %v7443
    %vm7451 = vweird.f32 %v7445
    %vm7452 = vmor %vm7450, %vm7451
    %v7453 = vsel %vm7452, %v7445, %v7449
    %v7454 = vand.u32 2147483647, %v7443
    %vm7455 = vcmp.eq.f32.partialorder %v7454, 8.507059e+37
    %v7456 = vand.u32 %v7443, 2147483648
    %v7457 = vor.u32 1.1754944e-38, %v7456
    %v7458 = vsel %vm7455, %v7457, %v7453
    %v7459 = vmul.f32 1.0, %v7458
    %v7460 = vrcp.pop %v7444
    %v7461 = vmul.f32 %v7444, %v7460
    %v7462 = vsub.f32 1.0, %v7461
    %v7463 = vmul.f32 %v7460, %v7462
    %v7464 = vadd.f32 %v7460, %v7463
    %vm7465 = vweird.f32 %v7444
    %vm7466 = vweird.f32 %v7460
    %vm7467 = vmor %vm7465, %vm7466
    %v7468 = vsel %vm7467, %v7460, %v7464
    %v7469 = vand.u32 2147483647, %v7444
    %vm7470 = vcmp.eq.f32.partialorder %v7469, 8.507059e+37
    %v7471 = vand.u32 %v7444, 2147483648
    %v7472 = vor.u32 1.1754944e-38, %v7471
    %v7473 = vsel %vm7470, %v7472, %v7468
    %v7474 = vmul.f32 1.0, %v7473
    %v7475 = vadd.f32 %v7196, %v7354
    %v7476 = vadd.f32 %v7222, %v7380
    %v7477 = vxor.u32 %v7475, 2147483648
    %v7478 = vxor.u32 %v7476, 2147483648
    %v7479 = vmul.f32 %v7477, 1.442695
    %v7480 = vpow.pop %v7479
    %v7481 = vmul.f32 %v7478, 1.442695
    %v7482 = vpow.pop %v7481
    %v7483 = vadd.f32 %v7480, 1.0
    %v7484 = vadd.f32 %v7482, 1.0
    %v7485 = vrcp.pop %v7483
    %v7486 = vmul.f32 %v7483, %v7485
    %v7487 = vsub.f32 1.0, %v7486
    %v7488 = vmul.f32 %v7485, %v7487
    %v7489 = vadd.f32 %v7485, %v7488
    %vm7490 = vweird.f32 %v7483
    %vm7491 = vweird.f32 %v7485
    %vm7492 = vmor %vm7490, %vm7491
    %v7493 = vsel %vm7492, %v7485, %v7489
    %v7494 = vand.u32 2147483647, %v7483
    %vm7495 = vcmp.eq.f32.partialorder %v7494, 8.507059e+37
    %v7496 = vand.u32 %v7483, 2147483648
    %v7497 = vor.u32 1.1754944e-38, %v7496
    %v7498 = vsel %vm7495, %v7497, %v7493
    %v7499 = vmul.f32 1.0, %v7498
    %v7500 = vrcp.pop %v7484
    %v7501 = vmul.f32 %v7484, %v7500
    %v7502 = vsub.f32 1.0, %v7501
    %v7503 = vmul.f32 %v7500, %v7502
    %v7504 = vadd.f32 %v7500, %v7503
    %vm7505 = vweird.f32 %v7484
    %vm7506 = vweird.f32 %v7500
    %vm7507 = vmor %vm7505, %vm7506
    %v7508 = vsel %vm7507, %v7500, %v7504
    %v7509 = vand.u32 2147483647, %v7484
    %vm7510 = vcmp.eq.f32.partialorder %v7509, 8.507059e+37
    %v7511 = vand.u32 %v7484, 2147483648
    %v7512 = vor.u32 1.1754944e-38, %v7511
    %v7513 = vsel %vm7510, %v7512, %v7508
    %v7514 = vmul.f32 1.0, %v7513
    %v7515 = vmul.f32 %v7459, %v7406
    %v7516 = vmul.f32 %v7474, %v7432
    %v7517 = vadd.f32 %v7248, %v7515
    %v7518 = vadd.f32 %v7274, %v7516
    %v7519 = vtanh.pop %v7517
    %v7520 = vtanh.pop %v7518
    %v7521 = vsub.f32 1.0, %v7499
    %v7522 = vsub.f32 1.0, %v7514
    %v7523 = vmul.f32 %v7521, %v7519
    %v7524 = vmul.f32 %v7522, %v7520
    %v7525 = vmul.f32 %v7499, %v6837
    %v7526 = vmul.f32 %v7514, %v6838
    %v7527 = vadd.f32 %v7523, %v7525
    %v7528 = vadd.f32 %v7524, %v7526
    %7529 = vmatpush.bf16.msra.mxu0 %v1572
    %7530 = vmatpush.bf16.msra.mxu0 %v1566
    %7531 = vmatpush.bf16.msra.mxu0 %v1560
    %7532 = vmatpush.bf16.msra.mxu0 %v1554
    %7533 = vmatpush.bf16.msra.mxu0 %v1548
    %7534 = vmatpush.bf16.msra.mxu0 %v1542
    %7535 = vmatpush.bf16.msra.mxu0 %v1536
    %7536 = vmatpush.bf16.msra.mxu0 %v1530
    %7537 = vmatmul.bf16.gmra.mxu0 %v7117
    %v7538 = vpop.f32.mrf.mxu0
    %v7539 = vadd.f32 %v1723, %v7538
    %v7540 = vpop.f32.mrf.mxu0
    %7541 = vdwg.mxu0
    %7542 = vmatpush.bf16.msra.mxu0 %v1620
    %7543 = vmatpush.bf16.msra.mxu0 %v1614
    %7544 = vmatpush.bf16.msra.mxu0 %v1608
    %7545 = vmatpush.bf16.msra.mxu0 %v1602
    %7546 = vmatpush.bf16.msra.mxu0 %v1596
    %7547 = vmatpush.bf16.msra.mxu0 %v1590
    %7548 = vmatpush.bf16.msra.mxu0 %v1584
    %7549 = vmatpush.bf16.msra.mxu0 %v1578
    %7550 = vmatmul.bf16.gmra.mxu0 %v7118
    %v7551 = vpop.f32.mrf.mxu0
    %v7552 = vadd.f32 %v7539, %v7551
    %v7553 = vpop.f32.mrf.mxu0
    %7554 = vdwg.mxu0
    %7555 = vmatpush.bf16.msra.mxu0 %v1573
    %7556 = vmatpush.bf16.msra.mxu0 %v1567
    %7557 = vmatpush.bf16.msra.mxu0 %v1561
    %7558 = vmatpush.bf16.msra.mxu0 %v1555
    %7559 = vmatpush.bf16.msra.mxu0 %v1549
    %7560 = vmatpush.bf16.msra.mxu0 %v1543
    %7561 = vmatpush.bf16.msra.mxu0 %v1537
    %7562 = vmatpush.bf16.msra.mxu0 %v1531
    %7563 = vmatmul.bf16.gmra.mxu0 %v7117
    %v7564 = vpop.f32.mrf.mxu0
    %v7565 = vadd.f32 %v1724, %v7564
    %v7566 = vpop.f32.mrf.mxu0
    %7567 = vdwg.mxu0
    %7568 = vmatpush.bf16.msra.mxu0 %v1621
    %7569 = vmatpush.bf16.msra.mxu0 %v1615
    %7570 = vmatpush.bf16.msra.mxu0 %v1609
    %7571 = vmatpush.bf16.msra.mxu0 %v1603
    %7572 = vmatpush.bf16.msra.mxu0 %v1597
    %7573 = vmatpush.bf16.msra.mxu0 %v1591
    %7574 = vmatpush.bf16.msra.mxu0 %v1585
    %7575 = vmatpush.bf16.msra.mxu0 %v1579
    %7576 = vmatmul.bf16.gmra.mxu0 %v7118
    %v7577 = vpop.f32.mrf.mxu0
    %v7578 = vadd.f32 %v7565, %v7577
    %v7579 = vpop.f32.mrf.mxu0
    %7580 = vdwg.mxu0
    %7581 = vmatpush.bf16.msra.mxu0 %v1574
    %7582 = vmatpush.bf16.msra.mxu0 %v1568
    %7583 = vmatpush.bf16.msra.mxu0 %v1562
    %7584 = vmatpush.bf16.msra.mxu0 %v1556
    %7585 = vmatpush.bf16.msra.mxu0 %v1550
    %7586 = vmatpush.bf16.msra.mxu0 %v1544
    %7587 = vmatpush.bf16.msra.mxu0 %v1538
    %7588 = vmatpush.bf16.msra.mxu0 %v1532
    %7589 = vmatmul.bf16.gmra.mxu0 %v7117
    %v7590 = vpop.f32.mrf.mxu0
    %v7591 = vadd.f32 %v1725, %v7590
    %v7592 = vpop.f32.mrf.mxu0
    %7593 = vdwg.mxu0
    %7594 = vmatpush.bf16.msra.mxu0 %v1622
    %7595 = vmatpush.bf16.msra.mxu0 %v1616
    %7596 = vmatpush.bf16.msra.mxu0 %v1610
    %7597 = vmatpush.bf16.msra.mxu0 %v1604
    %7598 = vmatpush.bf16.msra.mxu0 %v1598
    %7599 = vmatpush.bf16.msra.mxu0 %v1592
    %7600 = vmatpush.bf16.msra.mxu0 %v1586
    %7601 = vmatpush.bf16.msra.mxu0 %v1580
    %7602 = vmatmul.bf16.gmra.mxu0 %v7118
    %v7603 = vpop.f32.mrf.mxu0
    %v7604 = vadd.f32 %v7591, %v7603
    %v7605 = vpop.f32.mrf.mxu0
    %7606 = vdwg.mxu0
    %7607 = vmatpush.bf16.msra.mxu0 %v1575
    %7608 = vmatpush.bf16.msra.mxu0 %v1569
    %7609 = vmatpush.bf16.msra.mxu0 %v1563
    %7610 = vmatpush.bf16.msra.mxu0 %v1557
    %7611 = vmatpush.bf16.msra.mxu0 %v1551
    %7612 = vmatpush.bf16.msra.mxu0 %v1545
    %7613 = vmatpush.bf16.msra.mxu0 %v1539
    %7614 = vmatpush.bf16.msra.mxu0 %v1533
    %7615 = vmatmul.bf16.gmra.mxu0 %v7117
    %v7616 = vpop.f32.mrf.mxu0
    %v7617 = vadd.f32 %v1726, %v7616
    %v7618 = vpop.f32.mrf.mxu0
    %7619 = vdwg.mxu0
    %7620 = vmatpush.bf16.msra.mxu0 %v1623
    %7621 = vmatpush.bf16.msra.mxu0 %v1617
    %7622 = vmatpush.bf16.msra.mxu0 %v1611
    %7623 = vmatpush.bf16.msra.mxu0 %v1605
    %7624 = vmatpush.bf16.msra.mxu0 %v1599
    %7625 = vmatpush.bf16.msra.mxu0 %v1593
    %7626 = vmatpush.bf16.msra.mxu0 %v1587
    %7627 = vmatpush.bf16.msra.mxu0 %v1581
    %7628 = vmatmul.bf16.gmra.mxu0 %v7118
    %v7629 = vpop.f32.mrf.mxu0
    %v7630 = vadd.f32 %v7617, %v7629
    %v7631 = vpop.f32.mrf.mxu0
    %7632 = vdwg.mxu0
    %7633 = vmatpush.bf16.msra.mxu0 %v1576
    %7634 = vmatpush.bf16.msra.mxu0 %v1570
    %7635 = vmatpush.bf16.msra.mxu0 %v1564
    %7636 = vmatpush.bf16.msra.mxu0 %v1558
    %7637 = vmatpush.bf16.msra.mxu0 %v1552
    %7638 = vmatpush.bf16.msra.mxu0 %v1546
    %7639 = vmatpush.bf16.msra.mxu0 %v1540
    %7640 = vmatpush.bf16.msra.mxu0 %v1534
    %7641 = vmatmul.bf16.gmra.mxu0 %v7117
    %v7642 = vpop.f32.mrf.mxu0
    %v7643 = vadd.f32 %v1727, %v7642
    %v7644 = vpop.f32.mrf.mxu0
    %7645 = vdwg.mxu0
    %7646 = vmatpush.bf16.msra.mxu0 %v1624
    %7647 = vmatpush.bf16.msra.mxu0 %v1618
    %7648 = vmatpush.bf16.msra.mxu0 %v1612
    %7649 = vmatpush.bf16.msra.mxu0 %v1606
    %7650 = vmatpush.bf16.msra.mxu0 %v1600
    %7651 = vmatpush.bf16.msra.mxu0 %v1594
    %7652 = vmatpush.bf16.msra.mxu0 %v1588
    %7653 = vmatpush.bf16.msra.mxu0 %v1582
    %7654 = vmatmul.bf16.gmra.mxu0 %v7118
    %v7655 = vpop.f32.mrf.mxu0
    %v7656 = vadd.f32 %v7643, %v7655
    %v7657 = vpop.f32.mrf.mxu0
    %7658 = vdwg.mxu0
    %7659 = vmatpush.bf16.msra.mxu0 %v1577
    %7660 = vmatpush.bf16.msra.mxu0 %v1571
    %7661 = vmatpush.bf16.msra.mxu0 %v1565
    %7662 = vmatpush.bf16.msra.mxu0 %v1559
    %7663 = vmatpush.bf16.msra.mxu0 %v1553
    %7664 = vmatpush.bf16.msra.mxu0 %v1547
    %7665 = vmatpush.bf16.msra.mxu0 %v1541
    %7666 = vmatpush.bf16.msra.mxu0 %v1535
    %7667 = vmatmul.bf16.gmra.mxu0 %v7117
    %v7668 = vpop.f32.mrf.mxu0
    %v7669 = vadd.f32 %v1728, %v7668
    %v7670 = vpop.f32.mrf.mxu0
    %7671 = vdwg.mxu0
    %7672 = vmatpush.bf16.msra.mxu0 %v1625
    %7673 = vmatpush.bf16.msra.mxu0 %v1619
    %7674 = vmatpush.bf16.msra.mxu0 %v1613
    %7675 = vmatpush.bf16.msra.mxu0 %v1607
    %7676 = vmatpush.bf16.msra.mxu0 %v1601
    %7677 = vmatpush.bf16.msra.mxu0 %v1595
    %7678 = vmatpush.bf16.msra.mxu0 %v1589
    %7679 = vmatpush.bf16.msra.mxu0 %v1583
    %7680 = vmatmul.bf16.gmra.mxu0 %v7118
    %v7681 = vpop.f32.mrf.mxu0
    %v7682 = vadd.f32 %v7669, %v7681
    %v7683 = vpop.f32.mrf.mxu0
    %7684 = vdwg.mxu0
    %v7687 = vrot.slane %v7552, 1
    %v7688 = vrot.slane %v7578, 1
    %v7691 = vadd.f32 %v914, %v7687
    %v7692 = vadd.f32 %v940, %v7688
    %v7693 = vxor.u32 %v7691, 2147483648
    %v7694 = vxor.u32 %v7692, 2147483648
    %v7695 = vmul.f32 %v7693, 1.442695
    %v7696 = vpow.pop %v7695
    %v7697 = vmul.f32 %v7694, 1.442695
    %v7698 = vpow.pop %v7697
    %v7699 = vadd.f32 %v7696, 1.0
    %v7700 = vadd.f32 %v7698, 1.0
    %v7701 = vrcp.pop %v7699
    %v7702 = vmul.f32 %v7699, %v7701
    %v7703 = vsub.f32 1.0, %v7702
    %v7704 = vmul.f32 %v7701, %v7703
    %v7705 = vadd.f32 %v7701, %v7704
    %vm7706 = vweird.f32 %v7699
    %vm7707 = vweird.f32 %v7701
    %vm7708 = vmor %vm7706, %vm7707
    %v7709 = vsel %vm7708, %v7701, %v7705
    %v7710 = vand.u32 2147483647, %v7699
    %vm7711 = vcmp.eq.f32.partialorder %v7710, 8.507059e+37
    %v7712 = vand.u32 %v7699, 2147483648
    %v7713 = vor.u32 1.1754944e-38, %v7712
    %v7714 = vsel %vm7711, %v7713, %v7709
    %v7715 = vmul.f32 1.0, %v7714
    %v7716 = vrcp.pop %v7700
    %v7717 = vmul.f32 %v7700, %v7716
    %v7718 = vsub.f32 1.0, %v7717
    %v7719 = vmul.f32 %v7716, %v7718
    %v7720 = vadd.f32 %v7716, %v7719
    %vm7721 = vweird.f32 %v7700
    %vm7722 = vweird.f32 %v7716
    %vm7723 = vmor %vm7721, %vm7722
    %v7724 = vsel %vm7723, %v7716, %v7720
    %v7725 = vand.u32 2147483647, %v7700
    %vm7726 = vcmp.eq.f32.partialorder %v7725, 8.507059e+37
    %v7727 = vand.u32 %v7700, 2147483648
    %v7728 = vor.u32 1.1754944e-38, %v7727
    %v7729 = vsel %vm7726, %v7728, %v7724
    %v7730 = vmul.f32 1.0, %v7729
    %v7733 = vrot.slane %v7604, 1
    %v7734 = vrot.slane %v7630, 1
    %v7737 = vadd.f32 %v966, %v7733
    %v7738 = vadd.f32 %v992, %v7734
    %v7739 = vxor.u32 %v7737, 2147483648
    %v7740 = vxor.u32 %v7738, 2147483648
    %v7741 = vmul.f32 %v7739, 1.442695
    %v7742 = vpow.pop %v7741
    %v7743 = vmul.f32 %v7740, 1.442695
    %v7744 = vpow.pop %v7743
    %v7745 = vadd.f32 %v7742, 1.0
    %v7746 = vadd.f32 %v7744, 1.0
    %v7747 = vrcp.pop %v7745
    %v7748 = vmul.f32 %v7745, %v7747
    %v7749 = vsub.f32 1.0, %v7748
    %v7750 = vmul.f32 %v7747, %v7749
    %v7751 = vadd.f32 %v7747, %v7750
    %vm7752 = vweird.f32 %v7745
    %vm7753 = vweird.f32 %v7747
    %vm7754 = vmor %vm7752, %vm7753
    %v7755 = vsel %vm7754, %v7747, %v7751
    %v7756 = vand.u32 2147483647, %v7745
    %vm7757 = vcmp.eq.f32.partialorder %v7756, 8.507059e+37
    %v7758 = vand.u32 %v7745, 2147483648
    %v7759 = vor.u32 1.1754944e-38, %v7758
    %v7760 = vsel %vm7757, %v7759, %v7755
    %v7761 = vmul.f32 1.0, %v7760
    %v7762 = vrcp.pop %v7746
    %v7763 = vmul.f32 %v7746, %v7762
    %v7764 = vsub.f32 1.0, %v7763
    %v7765 = vmul.f32 %v7762, %v7764
    %v7766 = vadd.f32 %v7762, %v7765
    %vm7767 = vweird.f32 %v7746
    %vm7768 = vweird.f32 %v7762
    %vm7769 = vmor %vm7767, %vm7768
    %v7770 = vsel %vm7769, %v7762, %v7766
    %v7771 = vand.u32 2147483647, %v7746
    %vm7772 = vcmp.eq.f32.partialorder %v7771, 8.507059e+37
    %v7773 = vand.u32 %v7746, 2147483648
    %v7774 = vor.u32 1.1754944e-38, %v7773
    %v7775 = vsel %vm7772, %v7774, %v7770
    %v7776 = vmul.f32 1.0, %v7775
    %v7779 = vrot.slane %v7656, 1
    %v7780 = vrot.slane %v7682, 1
    %v7783 = vmul.f32 %v7715, %v7779
    %v7784 = vmul.f32 %v7730, %v7780
    %v7785 = vadd.f32 %v1018, %v7783
    %v7786 = vadd.f32 %v1044, %v7784
    %v7787 = vtanh.pop %v7785
    %v7788 = vtanh.pop %v7786
    %v7789 = vsub.f32 1.0, %v7761
    %v7790 = vsub.f32 1.0, %v7776
    %v7791 = vmul.f32 %v7789, %v7787
    %v7792 = vmul.f32 %v7790, %v7788
    %v7795 = vrot.slane %v7111, 7
    %v7796 = vrot.slane %v7112, 7
    %v7799 = vmul.f32 %v7761, %v7795
    %v7800 = vmul.f32 %v7776, %v7796
    %v7801 = vadd.f32 %v7791, %v7799
    %v7802 = vadd.f32 %v7792, %v7800
    %v7803 = vpack.c.bf16 %v7801, %v7801
    %v7804 = vpack.c.bf16 %v7802, %v7802
    %v7806 = vshrl.u32 %v7803, 16
    %v7808 = vrot.slane %v7806, 3
    %v7810 = vshrl.u32 %v7804, 16
    %v7812 = vrot.slane %v7810, 3
    %7815 = vmatpush.bf16.msra.mxu0 %v2317
    %7816 = vmatpush.bf16.msra.mxu0 %v2311
    %7817 = vmatpush.bf16.msra.mxu0 %v2305
    %7818 = vmatpush.bf16.msra.mxu0 %v2299
    %7819 = vmatpush.bf16.msra.mxu0 %v2293
    %7820 = vmatpush.bf16.msra.mxu0 %v2287
    %7821 = vmatpush.bf16.msra.mxu0 %v2281
    %7822 = vmatpush.bf16.msra.mxu0 %v2275
    %7823 = vmatmul.bf16.gmra.mxu0 %v7808
    %v7824 = vpop.f32.mrf.mxu0
    %v7825 = vadd.f32 %v2468, %v7824
    %v7826 = vpop.f32.mrf.mxu0
    %7827 = vdwg.mxu0
    %7828 = vmatpush.bf16.msra.mxu0 %v2365
    %7829 = vmatpush.bf16.msra.mxu0 %v2359
    %7830 = vmatpush.bf16.msra.mxu0 %v2353
    %7831 = vmatpush.bf16.msra.mxu0 %v2347
    %7832 = vmatpush.bf16.msra.mxu0 %v2341
    %7833 = vmatpush.bf16.msra.mxu0 %v2335
    %7834 = vmatpush.bf16.msra.mxu0 %v2329
    %7835 = vmatpush.bf16.msra.mxu0 %v2323
    %7836 = vmatmul.bf16.gmra.mxu0 %v7812
    %v7837 = vpop.f32.mrf.mxu0
    %v7838 = vadd.f32 %v7825, %v7837
    %v7839 = vpop.f32.mrf.mxu0
    %7840 = vdwg.mxu0
    %7841 = vmatpush.bf16.msra.mxu0 %v2318
    %7842 = vmatpush.bf16.msra.mxu0 %v2312
    %7843 = vmatpush.bf16.msra.mxu0 %v2306
    %7844 = vmatpush.bf16.msra.mxu0 %v2300
    %7845 = vmatpush.bf16.msra.mxu0 %v2294
    %7846 = vmatpush.bf16.msra.mxu0 %v2288
    %7847 = vmatpush.bf16.msra.mxu0 %v2282
    %7848 = vmatpush.bf16.msra.mxu0 %v2276
    %7849 = vmatmul.bf16.gmra.mxu0 %v7808
    %v7850 = vpop.f32.mrf.mxu0
    %v7851 = vadd.f32 %v2469, %v7850
    %v7852 = vpop.f32.mrf.mxu0
    %7853 = vdwg.mxu0
    %7854 = vmatpush.bf16.msra.mxu0 %v2366
    %7855 = vmatpush.bf16.msra.mxu0 %v2360
    %7856 = vmatpush.bf16.msra.mxu0 %v2354
    %7857 = vmatpush.bf16.msra.mxu0 %v2348
    %7858 = vmatpush.bf16.msra.mxu0 %v2342
    %7859 = vmatpush.bf16.msra.mxu0 %v2336
    %7860 = vmatpush.bf16.msra.mxu0 %v2330
    %7861 = vmatpush.bf16.msra.mxu0 %v2324
    %7862 = vmatmul.bf16.gmra.mxu0 %v7812
    %v7863 = vpop.f32.mrf.mxu0
    %v7864 = vadd.f32 %v7851, %v7863
    %v7865 = vpop.f32.mrf.mxu0
    %7866 = vdwg.mxu0
    %7867 = vmatpush.bf16.msra.mxu0 %v2319
    %7868 = vmatpush.bf16.msra.mxu0 %v2313
    %7869 = vmatpush.bf16.msra.mxu0 %v2307
    %7870 = vmatpush.bf16.msra.mxu0 %v2301
    %7871 = vmatpush.bf16.msra.mxu0 %v2295
    %7872 = vmatpush.bf16.msra.mxu0 %v2289
    %7873 = vmatpush.bf16.msra.mxu0 %v2283
    %7874 = vmatpush.bf16.msra.mxu0 %v2277
    %7875 = vmatmul.bf16.gmra.mxu0 %v7808
    %v7876 = vpop.f32.mrf.mxu0
    %v7877 = vadd.f32 %v2470, %v7876
    %v7878 = vpop.f32.mrf.mxu0
    %7879 = vdwg.mxu0
    %7880 = vmatpush.bf16.msra.mxu0 %v2367
    %7881 = vmatpush.bf16.msra.mxu0 %v2361
    %7882 = vmatpush.bf16.msra.mxu0 %v2355
    %7883 = vmatpush.bf16.msra.mxu0 %v2349
    %7884 = vmatpush.bf16.msra.mxu0 %v2343
    %7885 = vmatpush.bf16.msra.mxu0 %v2337
    %7886 = vmatpush.bf16.msra.mxu0 %v2331
    %7887 = vmatpush.bf16.msra.mxu0 %v2325
    %7888 = vmatmul.bf16.gmra.mxu0 %v7812
    %v7889 = vpop.f32.mrf.mxu0
    %v7890 = vadd.f32 %v7877, %v7889
    %v7891 = vpop.f32.mrf.mxu0
    %7892 = vdwg.mxu0
    %7893 = vmatpush.bf16.msra.mxu0 %v2320
    %7894 = vmatpush.bf16.msra.mxu0 %v2314
    %7895 = vmatpush.bf16.msra.mxu0 %v2308
    %7896 = vmatpush.bf16.msra.mxu0 %v2302
    %7897 = vmatpush.bf16.msra.mxu0 %v2296
    %7898 = vmatpush.bf16.msra.mxu0 %v2290
    %7899 = vmatpush.bf16.msra.mxu0 %v2284
    %7900 = vmatpush.bf16.msra.mxu0 %v2278
    %7901 = vmatmul.bf16.gmra.mxu0 %v7808
    %v7902 = vpop.f32.mrf.mxu0
    %v7903 = vadd.f32 %v2471, %v7902
    %v7904 = vpop.f32.mrf.mxu0
    %7905 = vdwg.mxu0
    %7906 = vmatpush.bf16.msra.mxu0 %v2368
    %7907 = vmatpush.bf16.msra.mxu0 %v2362
    %7908 = vmatpush.bf16.msra.mxu0 %v2356
    %7909 = vmatpush.bf16.msra.mxu0 %v2350
    %7910 = vmatpush.bf16.msra.mxu0 %v2344
    %7911 = vmatpush.bf16.msra.mxu0 %v2338
    %7912 = vmatpush.bf16.msra.mxu0 %v2332
    %7913 = vmatpush.bf16.msra.mxu0 %v2326
    %7914 = vmatmul.bf16.gmra.mxu0 %v7812
    %v7915 = vpop.f32.mrf.mxu0
    %v7916 = vadd.f32 %v7903, %v7915
    %v7917 = vpop.f32.mrf.mxu0
    %7918 = vdwg.mxu0
    %7919 = vmatpush.bf16.msra.mxu0 %v2321
    %7920 = vmatpush.bf16.msra.mxu0 %v2315
    %7921 = vmatpush.bf16.msra.mxu0 %v2309
    %7922 = vmatpush.bf16.msra.mxu0 %v2303
    %7923 = vmatpush.bf16.msra.mxu0 %v2297
    %7924 = vmatpush.bf16.msra.mxu0 %v2291
    %7925 = vmatpush.bf16.msra.mxu0 %v2285
    %7926 = vmatpush.bf16.msra.mxu0 %v2279
    %7927 = vmatmul.bf16.gmra.mxu0 %v7808
    %v7928 = vpop.f32.mrf.mxu0
    %v7929 = vadd.f32 %v2472, %v7928
    %v7930 = vpop.f32.mrf.mxu0
    %7931 = vdwg.mxu0
    %7932 = vmatpush.bf16.msra.mxu0 %v2369
    %7933 = vmatpush.bf16.msra.mxu0 %v2363
    %7934 = vmatpush.bf16.msra.mxu0 %v2357
    %7935 = vmatpush.bf16.msra.mxu0 %v2351
    %7936 = vmatpush.bf16.msra.mxu0 %v2345
    %7937 = vmatpush.bf16.msra.mxu0 %v2339
    %7938 = vmatpush.bf16.msra.mxu0 %v2333
    %7939 = vmatpush.bf16.msra.mxu0 %v2327
    %7940 = vmatmul.bf16.gmra.mxu0 %v7812
    %v7941 = vpop.f32.mrf.mxu0
    %v7942 = vadd.f32 %v7929, %v7941
    %v7943 = vpop.f32.mrf.mxu0
    %7944 = vdwg.mxu0
    %7945 = vmatpush.bf16.msra.mxu0 %v2322
    %7946 = vmatpush.bf16.msra.mxu0 %v2316
    %7947 = vmatpush.bf16.msra.mxu0 %v2310
    %7948 = vmatpush.bf16.msra.mxu0 %v2304
    %7949 = vmatpush.bf16.msra.mxu0 %v2298
    %7950 = vmatpush.bf16.msra.mxu0 %v2292
    %7951 = vmatpush.bf16.msra.mxu0 %v2286
    %7952 = vmatpush.bf16.msra.mxu0 %v2280
    %7953 = vmatmul.bf16.gmra.mxu0 %v7808
    %v7954 = vpop.f32.mrf.mxu0
    %v7955 = vadd.f32 %v2473, %v7954
    %v7956 = vpop.f32.mrf.mxu0
    %7957 = vdwg.mxu0
    %7958 = vmatpush.bf16.msra.mxu0 %v2370
    %7959 = vmatpush.bf16.msra.mxu0 %v2364
    %7960 = vmatpush.bf16.msra.mxu0 %v2358
    %7961 = vmatpush.bf16.msra.mxu0 %v2352
    %7962 = vmatpush.bf16.msra.mxu0 %v2346
    %7963 = vmatpush.bf16.msra.mxu0 %v2340
    %7964 = vmatpush.bf16.msra.mxu0 %v2334
    %7965 = vmatpush.bf16.msra.mxu0 %v2328
    %7966 = vmatmul.bf16.gmra.mxu0 %v7812
    %v7967 = vpop.f32.mrf.mxu0
    %v7968 = vadd.f32 %v7955, %v7967
    %v7969 = vpop.f32.mrf.mxu0
    %7970 = vdwg.mxu0
    %v7971 = vpack.c.bf16 %v7527, %v7527
    %v7972 = vpack.c.bf16 %v7528, %v7528
    %7973 = vmatpush.bf16.msra.mxu0 %v2966
    %7974 = vmatpush.bf16.msra.mxu0 %v2960
    %7975 = vmatpush.bf16.msra.mxu0 %v2954
    %7976 = vmatpush.bf16.msra.mxu0 %v2948
    %7977 = vmatpush.bf16.msra.mxu0 %v2942
    %7978 = vmatpush.bf16.msra.mxu0 %v2936
    %7979 = vmatpush.bf16.msra.mxu0 %v2930
    %7980 = vmatpush.bf16.msra.mxu0 %v2924
    %7981 = vmatmul.bf16.gmra.mxu0 %v7971
    %v7982 = vpop.f32.mrf.mxu0
    %v7983 = vadd.f32 %v3117, %v7982
    %v7984 = vpop.f32.mrf.mxu0
    %7985 = vdwg.mxu0
    %7986 = vmatpush.bf16.msra.mxu0 %v3014
    %7987 = vmatpush.bf16.msra.mxu0 %v3008
    %7988 = vmatpush.bf16.msra.mxu0 %v3002
    %7989 = vmatpush.bf16.msra.mxu0 %v2996
    %7990 = vmatpush.bf16.msra.mxu0 %v2990
    %7991 = vmatpush.bf16.msra.mxu0 %v2984
    %7992 = vmatpush.bf16.msra.mxu0 %v2978
    %7993 = vmatpush.bf16.msra.mxu0 %v2972
    %7994 = vmatmul.bf16.gmra.mxu0 %v7972
    %v7995 = vpop.f32.mrf.mxu0
    %v7996 = vadd.f32 %v7983, %v7995
    %v7997 = vpop.f32.mrf.mxu0
    %7998 = vdwg.mxu0
    %7999 = vmatpush.bf16.msra.mxu0 %v2967
    %8000 = vmatpush.bf16.msra.mxu0 %v2961
    %8001 = vmatpush.bf16.msra.mxu0 %v2955
    %8002 = vmatpush.bf16.msra.mxu0 %v2949
    %8003 = vmatpush.bf16.msra.mxu0 %v2943
    %8004 = vmatpush.bf16.msra.mxu0 %v2937
    %8005 = vmatpush.bf16.msra.mxu0 %v2931
    %8006 = vmatpush.bf16.msra.mxu0 %v2925
    %8007 = vmatmul.bf16.gmra.mxu0 %v7971
    %v8008 = vpop.f32.mrf.mxu0
    %v8009 = vadd.f32 %v3118, %v8008
    %v8010 = vpop.f32.mrf.mxu0
    %8011 = vdwg.mxu0
    %8012 = vmatpush.bf16.msra.mxu0 %v3015
    %8013 = vmatpush.bf16.msra.mxu0 %v3009
    %8014 = vmatpush.bf16.msra.mxu0 %v3003
    %8015 = vmatpush.bf16.msra.mxu0 %v2997
    %8016 = vmatpush.bf16.msra.mxu0 %v2991
    %8017 = vmatpush.bf16.msra.mxu0 %v2985
    %8018 = vmatpush.bf16.msra.mxu0 %v2979
    %8019 = vmatpush.bf16.msra.mxu0 %v2973
    %8020 = vmatmul.bf16.gmra.mxu0 %v7972
    %v8021 = vpop.f32.mrf.mxu0
    %v8022 = vadd.f32 %v8009, %v8021
    %v8023 = vpop.f32.mrf.mxu0
    %8024 = vdwg.mxu0
    %8025 = vmatpush.bf16.msra.mxu0 %v2968
    %8026 = vmatpush.bf16.msra.mxu0 %v2962
    %8027 = vmatpush.bf16.msra.mxu0 %v2956
    %8028 = vmatpush.bf16.msra.mxu0 %v2950
    %8029 = vmatpush.bf16.msra.mxu0 %v2944
    %8030 = vmatpush.bf16.msra.mxu0 %v2938
    %8031 = vmatpush.bf16.msra.mxu0 %v2932
    %8032 = vmatpush.bf16.msra.mxu0 %v2926
    %8033 = vmatmul.bf16.gmra.mxu0 %v7971
    %v8034 = vpop.f32.mrf.mxu0
    %v8035 = vadd.f32 %v3119, %v8034
    %v8036 = vpop.f32.mrf.mxu0
    %8037 = vdwg.mxu0
    %8038 = vmatpush.bf16.msra.mxu0 %v3016
    %8039 = vmatpush.bf16.msra.mxu0 %v3010
    %8040 = vmatpush.bf16.msra.mxu0 %v3004
    %8041 = vmatpush.bf16.msra.mxu0 %v2998
    %8042 = vmatpush.bf16.msra.mxu0 %v2992
    %8043 = vmatpush.bf16.msra.mxu0 %v2986
    %8044 = vmatpush.bf16.msra.mxu0 %v2980
    %8045 = vmatpush.bf16.msra.mxu0 %v2974
    %8046 = vmatmul.bf16.gmra.mxu0 %v7972
    %v8047 = vpop.f32.mrf.mxu0
    %v8048 = vadd.f32 %v8035, %v8047
    %v8049 = vpop.f32.mrf.mxu0
    %8050 = vdwg.mxu0
    %8051 = vmatpush.bf16.msra.mxu0 %v2969
    %8052 = vmatpush.bf16.msra.mxu0 %v2963
    %8053 = vmatpush.bf16.msra.mxu0 %v2957
    %8054 = vmatpush.bf16.msra.mxu0 %v2951
    %8055 = vmatpush.bf16.msra.mxu0 %v2945
    %8056 = vmatpush.bf16.msra.mxu0 %v2939
    %8057 = vmatpush.bf16.msra.mxu0 %v2933
    %8058 = vmatpush.bf16.msra.mxu0 %v2927
    %8059 = vmatmul.bf16.gmra.mxu0 %v7971
    %v8060 = vpop.f32.mrf.mxu0
    %v8061 = vadd.f32 %v3120, %v8060
    %v8062 = vpop.f32.mrf.mxu0
    %8063 = vdwg.mxu0
    %8064 = vmatpush.bf16.msra.mxu0 %v3017
    %8065 = vmatpush.bf16.msra.mxu0 %v3011
    %8066 = vmatpush.bf16.msra.mxu0 %v3005
    %8067 = vmatpush.bf16.msra.mxu0 %v2999
    %8068 = vmatpush.bf16.msra.mxu0 %v2993
    %8069 = vmatpush.bf16.msra.mxu0 %v2987
    %8070 = vmatpush.bf16.msra.mxu0 %v2981
    %8071 = vmatpush.bf16.msra.mxu0 %v2975
    %8072 = vmatmul.bf16.gmra.mxu0 %v7972
    %v8073 = vpop.f32.mrf.mxu0
    %v8074 = vadd.f32 %v8061, %v8073
    %v8075 = vpop.f32.mrf.mxu0
    %8076 = vdwg.mxu0
    %8077 = vmatpush.bf16.msra.mxu0 %v2970
    %8078 = vmatpush.bf16.msra.mxu0 %v2964
    %8079 = vmatpush.bf16.msra.mxu0 %v2958
    %8080 = vmatpush.bf16.msra.mxu0 %v2952
    %8081 = vmatpush.bf16.msra.mxu0 %v2946
    %8082 = vmatpush.bf16.msra.mxu0 %v2940
    %8083 = vmatpush.bf16.msra.mxu0 %v2934
    %8084 = vmatpush.bf16.msra.mxu0 %v2928
    %8085 = vmatmul.bf16.gmra.mxu0 %v7971
    %v8086 = vpop.f32.mrf.mxu0
    %v8087 = vadd.f32 %v3121, %v8086
    %v8088 = vpop.f32.mrf.mxu0
    %8089 = vdwg.mxu0
    %8090 = vmatpush.bf16.msra.mxu0 %v3018
    %8091 = vmatpush.bf16.msra.mxu0 %v3012
    %8092 = vmatpush.bf16.msra.mxu0 %v3006
    %8093 = vmatpush.bf16.msra.mxu0 %v3000
    %8094 = vmatpush.bf16.msra.mxu0 %v2994
    %8095 = vmatpush.bf16.msra.mxu0 %v2988
    %8096 = vmatpush.bf16.msra.mxu0 %v2982
    %8097 = vmatpush.bf16.msra.mxu0 %v2976
    %8098 = vmatmul.bf16.gmra.mxu0 %v7972
    %v8099 = vpop.f32.mrf.mxu0
    %v8100 = vadd.f32 %v8087, %v8099
    %v8101 = vpop.f32.mrf.mxu0
    %8102 = vdwg.mxu0
    %8103 = vmatpush.bf16.msra.mxu0 %v2971
    %8104 = vmatpush.bf16.msra.mxu0 %v2965
    %8105 = vmatpush.bf16.msra.mxu0 %v2959
    %8106 = vmatpush.bf16.msra.mxu0 %v2953
    %8107 = vmatpush.bf16.msra.mxu0 %v2947
    %8108 = vmatpush.bf16.msra.mxu0 %v2941
    %8109 = vmatpush.bf16.msra.mxu0 %v2935
    %8110 = vmatpush.bf16.msra.mxu0 %v2929
    %8111 = vmatmul.bf16.gmra.mxu0 %v7971
    %v8112 = vpop.f32.mrf.mxu0
    %v8113 = vadd.f32 %v3122, %v8112
    %v8114 = vpop.f32.mrf.mxu0
    %8115 = vdwg.mxu0
    %8116 = vmatpush.bf16.msra.mxu0 %v3019
    %8117 = vmatpush.bf16.msra.mxu0 %v3013
    %8118 = vmatpush.bf16.msra.mxu0 %v3007
    %8119 = vmatpush.bf16.msra.mxu0 %v3001
    %8120 = vmatpush.bf16.msra.mxu0 %v2995
    %8121 = vmatpush.bf16.msra.mxu0 %v2989
    %8122 = vmatpush.bf16.msra.mxu0 %v2983
    %8123 = vmatpush.bf16.msra.mxu0 %v2977
    %8124 = vmatmul.bf16.gmra.mxu0 %v7972
    %v8125 = vpop.f32.mrf.mxu0
    %v8126 = vadd.f32 %v8113, %v8125
    %v8127 = vpop.f32.mrf.mxu0
    %8128 = vdwg.mxu0
    %v8129 = vadd.f32 %v7838, %v7996
    %v8130 = vadd.f32 %v7864, %v8022
    %v8131 = vxor.u32 %v8129, 2147483648
    %v8132 = vxor.u32 %v8130, 2147483648
    %v8133 = vmul.f32 %v8131, 1.442695
    %v8134 = vpow.pop %v8133
    %v8135 = vmul.f32 %v8132, 1.442695
    %v8136 = vpow.pop %v8135
    %v8137 = vadd.f32 %v8134, 1.0
    %v8138 = vadd.f32 %v8136, 1.0
    %v8139 = vrcp.pop %v8137
    %v8140 = vmul.f32 %v8137, %v8139
    %v8141 = vsub.f32 1.0, %v8140
    %v8142 = vmul.f32 %v8139, %v8141
    %v8143 = vadd.f32 %v8139, %v8142
    %vm8144 = vweird.f32 %v8137
    %vm8145 = vweird.f32 %v8139
    %vm8146 = vmor %vm8144, %vm8145
    %v8147 = vsel %vm8146, %v8139, %v8143
    %v8148 = vand.u32 2147483647, %v8137
    %vm8149 = vcmp.eq.f32.partialorder %v8148, 8.507059e+37
    %v8150 = vand.u32 %v8137, 2147483648
    %v8151 = vor.u32 1.1754944e-38, %v8150
    %v8152 = vsel %vm8149, %v8151, %v8147
    %v8153 = vmul.f32 1.0, %v8152
    %v8154 = vrcp.pop %v8138
    %v8155 = vmul.f32 %v8138, %v8154
    %v8156 = vsub.f32 1.0, %v8155
    %v8157 = vmul.f32 %v8154, %v8156
    %v8158 = vadd.f32 %v8154, %v8157
    %vm8159 = vweird.f32 %v8138
    %vm8160 = vweird.f32 %v8154
    %vm8161 = vmor %vm8159, %vm8160
    %v8162 = vsel %vm8161, %v8154, %v8158
    %v8163 = vand.u32 2147483647, %v8138
    %vm8164 = vcmp.eq.f32.partialorder %v8163, 8.507059e+37
    %v8165 = vand.u32 %v8138, 2147483648
    %v8166 = vor.u32 1.1754944e-38, %v8165
    %v8167 = vsel %vm8164, %v8166, %v8162
    %v8168 = vmul.f32 1.0, %v8167
    %v8169 = vadd.f32 %v7890, %v8048
    %v8170 = vadd.f32 %v7916, %v8074
    %v8171 = vxor.u32 %v8169, 2147483648
    %v8172 = vxor.u32 %v8170, 2147483648
    %v8173 = vmul.f32 %v8171, 1.442695
    %v8174 = vpow.pop %v8173
    %v8175 = vmul.f32 %v8172, 1.442695
    %v8176 = vpow.pop %v8175
    %v8177 = vadd.f32 %v8174, 1.0
    %v8178 = vadd.f32 %v8176, 1.0
    %v8179 = vrcp.pop %v8177
    %v8180 = vmul.f32 %v8177, %v8179
    %v8181 = vsub.f32 1.0, %v8180
    %v8182 = vmul.f32 %v8179, %v8181
    %v8183 = vadd.f32 %v8179, %v8182
    %vm8184 = vweird.f32 %v8177
    %vm8185 = vweird.f32 %v8179
    %vm8186 = vmor %vm8184, %vm8185
    %v8187 = vsel %vm8186, %v8179, %v8183
    %v8188 = vand.u32 2147483647, %v8177
    %vm8189 = vcmp.eq.f32.partialorder %v8188, 8.507059e+37
    %v8190 = vand.u32 %v8177, 2147483648
    %v8191 = vor.u32 1.1754944e-38, %v8190
    %v8192 = vsel %vm8189, %v8191, %v8187
    %v8193 = vmul.f32 1.0, %v8192
    %v8194 = vrcp.pop %v8178
    %v8195 = vmul.f32 %v8178, %v8194
    %v8196 = vsub.f32 1.0, %v8195
    %v8197 = vmul.f32 %v8194, %v8196
    %v8198 = vadd.f32 %v8194, %v8197
    %vm8199 = vweird.f32 %v8178
    %vm8200 = vweird.f32 %v8194
    %vm8201 = vmor %vm8199, %vm8200
    %v8202 = vsel %vm8201, %v8194, %v8198
    %v8203 = vand.u32 2147483647, %v8178
    %vm8204 = vcmp.eq.f32.partialorder %v8203, 8.507059e+37
    %v8205 = vand.u32 %v8178, 2147483648
    %v8206 = vor.u32 1.1754944e-38, %v8205
    %v8207 = vsel %vm8204, %v8206, %v8202
    %v8208 = vmul.f32 1.0, %v8207
    %v8209 = vmul.f32 %v8153, %v8100
    %v8210 = vmul.f32 %v8168, %v8126
    %v8211 = vadd.f32 %v7942, %v8209
    %v8212 = vadd.f32 %v7968, %v8210
    %v8213 = vtanh.pop %v8211
    %v8214 = vtanh.pop %v8212
    %v8215 = vsub.f32 1.0, %v8193
    %v8216 = vsub.f32 1.0, %v8208
    %v8217 = vmul.f32 %v8215, %v8213
    %v8218 = vmul.f32 %v8216, %v8214
    %v8219 = vmul.f32 %v8193, %v7527
    %v8220 = vmul.f32 %v8208, %v7528
    %v8221 = vadd.f32 %v8217, %v8219
    %v8222 = vadd.f32 %v8218, %v8220
    %v8225 = vrot.slane %v4069, 7
    %v8226 = vrot.slane %v4070, 7
    %v8231 = vrot.slane %v4759, 6
    %v8232 = vrot.slane %v4760, 6
    %v8237 = vrot.slane %v5453, 5
    %v8238 = vrot.slane %v5454, 5
    %v8243 = vrot.slane %v6143, 4
    %v8244 = vrot.slane %v6144, 4
    %v8249 = vrot.slane %v6837, 3
    %v8250 = vrot.slane %v6838, 3
    %v8255 = vrot.slane %v7527, 2
    %v8256 = vrot.slane %v7528, 2
    %v8261 = vrot.slane %v8221, 1
    %v8262 = vrot.slane %v8222, 1
    %vm8265 = vcmask 1040384
    %v8266 = vsel %vm8265, %v3377, %v8225
    %v8267 = vsel %vm8265, %v3378, %v8226
    %vm8268 = vcmask 1041408
    %v8269 = vsel %vm8268, %v8266, %v8231
    %v8270 = vsel %vm8268, %v8267, %v8232
    %vm8271 = vcmask 1042432
    %v8272 = vsel %vm8271, %v8269, %v8237
    %v8273 = vsel %vm8271, %v8270, %v8238
    %vm8274 = vcmask 1043456
    %v8275 = vsel %vm8274, %v8272, %v8243
    %v8276 = vsel %vm8274, %v8273, %v8244
    %vm8277 = vcmask 1044480
    %v8278 = vsel %vm8277, %v8275, %v8249
    %v8279 = vsel %vm8277, %v8276, %v8250
    %vm8280 = vcmask 1045504
    %v8281 = vsel %vm8280, %v8278, %v8255
    %v8282 = vsel %vm8280, %v8279, %v8256
    %vm8283 = vcmask 1046528
    %v8284 = vsel %vm8283, %v8281, %v8261
    %v8285 = vsel %vm8283, %v8282, %v8262
    %s8286 = smul.u32 4, 5
    %s8287 = smul.u32 %s8286, 32
    %s8288 = smul.u32 %s8287, 2
    %s8289 = sshll.u32 %s8288, 4
    %8290 = dma.done %s92, %s8289
    %v8291 = vld [vmem:[#allocation4] sm:$0xff]
    %v8292 = vld [vmem:[#allocation4 + $0x8] sm:$0xff]
    %v8293 = vld [vmem:[#allocation4 + $0x10] sm:$0xff]
    %v8294 = vld [vmem:[#allocation4 + $0x18] sm:$0xff]
    %v8295 = vld [vmem:[#allocation4 + $0x20] sm:$0xff]
    %v8296 = vld [vmem:[#allocation4 + $0x28] sm:$0xff]
    %v8297 = vld [vmem:[#allocation4 + $0x30] sm:$0xff]
    %v8298 = vld [vmem:[#allocation4 + $0x38] sm:$0xff]
    %v8299 = vld [vmem:[#allocation4 + $0x40] sm:$0xff]
    %v8300 = vld [vmem:[#allocation4 + $0x48] sm:$0xff]
    %v8301 = vld [vmem:[#allocation4 + $0x50] sm:$0xff]
    %v8302 = vld [vmem:[#allocation4 + $0x58] sm:$0xff]
    %v8303 = vld [vmem:[#allocation4 + $0x60] sm:$0xff]
    %v8304 = vld [vmem:[#allocation4 + $0x68] sm:$0xff]
    %v8305 = vld [vmem:[#allocation4 + $0x70] sm:$0xff]
    %v8306 = vld [vmem:[#allocation4 + $0x78] sm:$0xff]
    %v8307 = vld [vmem:[#allocation4 + $0x80] sm:$0xff]
    %v8308 = vld [vmem:[#allocation4 + $0x88] sm:$0xff]
    %v8309 = vld [vmem:[#allocation4 + $0x90] sm:$0xff]
    %v8310 = vld [vmem:[#allocation4 + $0x98] sm:$0xff]
    %v8311 = vld [vmem:[#allocation4 + $0xa0] sm:$0xff]
    %v8312 = vld [vmem:[#allocation4 + $0xa8] sm:$0xff]
    %v8313 = vld [vmem:[#allocation4 + $0xb0] sm:$0xff]
    %v8314 = vld [vmem:[#allocation4 + $0xb8] sm:$0xff]
    %v8315 = vld [vmem:[#allocation4 + $0xc0] sm:$0xff]
    %v8316 = vld [vmem:[#allocation4 + $0xc8] sm:$0xff]
    %v8317 = vld [vmem:[#allocation4 + $0xd0] sm:$0xff]
    %v8318 = vld [vmem:[#allocation4 + $0xd8] sm:$0xff]
    %v8319 = vld [vmem:[#allocation4 + $0xe0] sm:$0xff]
    %v8320 = vld [vmem:[#allocation4 + $0xe8] sm:$0xff]
    %v8321 = vld [vmem:[#allocation4 + $0xf0] sm:$0xff]
    %v8322 = vld [vmem:[#allocation4 + $0xf8] sm:$0xff]
    %v8323 = vpack.c.bf16 %v8284, %v8284
    %v8324 = vpack.c.bf16 %v8285, %v8285
    %v8326 = vperm.slane %v124, 0
    %v8327 = vperm.slane %v124, 1
    %v8362 = vunpack.c.l.b16 %v8291
    %v8363 = vunpack.c.h.b16 %v8291
    %v8364 = vunpack.c.l.b16 %v8292
    %v8365 = vunpack.c.h.b16 %v8292
    %v8366 = vunpack.c.l.b16 %v8293
    %v8367 = vunpack.c.h.b16 %v8293
    %v8368 = vunpack.c.l.b16 %v8294
    %v8369 = vunpack.c.h.b16 %v8294
    %v8370 = vunpack.c.l.b16 %v8295
    %v8371 = vunpack.c.h.b16 %v8295
    %v8372 = vunpack.c.l.b16 %v8296
    %v8373 = vunpack.c.h.b16 %v8296
    %v8374 = vunpack.c.l.b16 %v8297
    %v8375 = vunpack.c.h.b16 %v8297
    %v8376 = vunpack.c.l.b16 %v8298
    %v8377 = vunpack.c.h.b16 %v8298
    %v8378 = vunpack.c.l.b16 %v8299
    %v8379 = vunpack.c.h.b16 %v8299
    %v8380 = vunpack.c.l.b16 %v8300
    %v8381 = vunpack.c.h.b16 %v8300
    %v8382 = vunpack.c.l.b16 %v8301
    %v8383 = vunpack.c.h.b16 %v8301
    %v8384 = vunpack.c.l.b16 %v8302
    %v8385 = vunpack.c.h.b16 %v8302
    %v8386 = vunpack.c.l.b16 %v8303
    %v8387 = vunpack.c.h.b16 %v8303
    %v8388 = vunpack.c.l.b16 %v8304
    %v8389 = vunpack.c.h.b16 %v8304
    %v8390 = vunpack.c.l.b16 %v8305
    %v8391 = vunpack.c.h.b16 %v8305
    %v8392 = vunpack.c.l.b16 %v8306
    %v8393 = vunpack.c.h.b16 %v8306
    %v8394 = vunpack.c.l.b16 %v8307
    %v8395 = vunpack.c.h.b16 %v8307
    %v8396 = vunpack.c.l.b16 %v8308
    %v8397 = vunpack.c.h.b16 %v8308
    %v8398 = vunpack.c.l.b16 %v8309
    %v8399 = vunpack.c.h.b16 %v8309
    %v8400 = vunpack.c.l.b16 %v8310
    %v8401 = vunpack.c.h.b16 %v8310
    %v8402 = vunpack.c.l.b16 %v8311
    %v8403 = vunpack.c.h.b16 %v8311
    %v8404 = vunpack.c.l.b16 %v8312
    %v8405 = vunpack.c.h.b16 %v8312
    %v8406 = vunpack.c.l.b16 %v8313
    %v8407 = vunpack.c.h.b16 %v8313
    %v8408 = vunpack.c.l.b16 %v8314
    %v8409 = vunpack.c.h.b16 %v8314
    %v8410 = vunpack.c.l.b16 %v8315
    %v8411 = vunpack.c.h.b16 %v8315
    %v8412 = vunpack.c.l.b16 %v8316
    %v8413 = vunpack.c.h.b16 %v8316
    %v8414 = vunpack.c.l.b16 %v8317
    %v8415 = vunpack.c.h.b16 %v8317
    %v8416 = vunpack.c.l.b16 %v8318
    %v8417 = vunpack.c.h.b16 %v8318
    %v8418 = vunpack.c.l.b16 %v8319
    %v8419 = vunpack.c.h.b16 %v8319
    %v8420 = vunpack.c.l.b16 %v8320
    %v8421 = vunpack.c.h.b16 %v8320
    %v8422 = vunpack.c.l.b16 %v8321
    %v8423 = vunpack.c.h.b16 %v8321
    %v8424 = vunpack.c.l.b16 %v8322
    %v8425 = vunpack.c.h.b16 %v8322
    %v8426 = vpack.c.b16 %v8364, %v8362
    %v8427 = vpack.c.b16 %v8365, %v8363
    %v8428 = vpack.c.b16 %v8368, %v8366
    %v8429 = vpack.c.b16 %v8369, %v8367
    %v8430 = vpack.c.b16 %v8372, %v8370
    %v8431 = vpack.c.b16 %v8373, %v8371
    %v8432 = vpack.c.b16 %v8376, %v8374
    %v8433 = vpack.c.b16 %v8377, %v8375
    %v8434 = vpack.c.b16 %v8380, %v8378
    %v8435 = vpack.c.b16 %v8381, %v8379
    %v8436 = vpack.c.b16 %v8384, %v8382
    %v8437 = vpack.c.b16 %v8385, %v8383
    %v8438 = vpack.c.b16 %v8388, %v8386
    %v8439 = vpack.c.b16 %v8389, %v8387
    %v8440 = vpack.c.b16 %v8392, %v8390
    %v8441 = vpack.c.b16 %v8393, %v8391
    %v8442 = vpack.c.b16 %v8396, %v8394
    %v8443 = vpack.c.b16 %v8397, %v8395
    %v8444 = vpack.c.b16 %v8400, %v8398
    %v8445 = vpack.c.b16 %v8401, %v8399
    %v8446 = vpack.c.b16 %v8404, %v8402
    %v8447 = vpack.c.b16 %v8405, %v8403
    %v8448 = vpack.c.b16 %v8408, %v8406
    %v8449 = vpack.c.b16 %v8409, %v8407
    %v8450 = vpack.c.b16 %v8412, %v8410
    %v8451 = vpack.c.b16 %v8413, %v8411
    %v8452 = vpack.c.b16 %v8416, %v8414
    %v8453 = vpack.c.b16 %v8417, %v8415
    %v8454 = vpack.c.b16 %v8420, %v8418
    %v8455 = vpack.c.b16 %v8421, %v8419
    %v8456 = vpack.c.b16 %v8424, %v8422
    %v8457 = vpack.c.b16 %v8425, %v8423
    %8490 = vmatpush.bf16.msra.mxu0 %v8440
    %8491 = vmatpush.bf16.msra.mxu0 %v8438
    %8492 = vmatpush.bf16.msra.mxu0 %v8436
    %8493 = vmatpush.bf16.msra.mxu0 %v8434
    %8494 = vmatpush.bf16.msra.mxu0 %v8432
    %8495 = vmatpush.bf16.msra.mxu0 %v8430
    %8496 = vmatpush.bf16.msra.mxu0 %v8428
    %8497 = vmatpush.bf16.msra.mxu0 %v8426
    %8498 = vmatmul.bf16.gmra.mxu0 %v8323
    %v8499 = vpop.f32.mrf.mxu0
    %v8500 = vadd.f32 %v8326, %v8499
    %v8501 = vpop.f32.mrf.mxu0
    %8502 = vdwg.mxu0
    %8503 = vmatpush.bf16.msra.mxu0 %v8456
    %8504 = vmatpush.bf16.msra.mxu0 %v8454
    %8505 = vmatpush.bf16.msra.mxu0 %v8452
    %8506 = vmatpush.bf16.msra.mxu0 %v8450
    %8507 = vmatpush.bf16.msra.mxu0 %v8448
    %8508 = vmatpush.bf16.msra.mxu0 %v8446
    %8509 = vmatpush.bf16.msra.mxu0 %v8444
    %8510 = vmatpush.bf16.msra.mxu0 %v8442
    %8511 = vmatmul.bf16.gmra.mxu0 %v8324
    %v8512 = vpop.f32.mrf.mxu0
    %v8513 = vadd.f32 %v8500, %v8512
    %v8514 = vpop.f32.mrf.mxu0
    %8515 = vdwg.mxu0
    %8516 = vmatpush.bf16.msra.mxu0 %v8441
    %8517 = vmatpush.bf16.msra.mxu0 %v8439
    %8518 = vmatpush.bf16.msra.mxu0 %v8437
    %8519 = vmatpush.bf16.msra.mxu0 %v8435
    %8520 = vmatpush.bf16.msra.mxu0 %v8433
    %8521 = vmatpush.bf16.msra.mxu0 %v8431
    %8522 = vmatpush.bf16.msra.mxu0 %v8429
    %8523 = vmatpush.bf16.msra.mxu0 %v8427
    %8524 = vmatmul.bf16.gmra.mxu0 %v8323
    %v8525 = vpop.f32.mrf.mxu0
    %v8526 = vadd.f32 %v8327, %v8525
    %v8527 = vpop.f32.mrf.mxu0
    %8528 = vdwg.mxu0
    %8529 = vmatpush.bf16.msra.mxu0 %v8457
    %8530 = vmatpush.bf16.msra.mxu0 %v8455
    %8531 = vmatpush.bf16.msra.mxu0 %v8453
    %8532 = vmatpush.bf16.msra.mxu0 %v8451
    %8533 = vmatpush.bf16.msra.mxu0 %v8449
    %8534 = vmatpush.bf16.msra.mxu0 %v8447
    %8535 = vmatpush.bf16.msra.mxu0 %v8445
    %8536 = vmatpush.bf16.msra.mxu0 %v8443
    %8537 = vmatmul.bf16.gmra.mxu0 %v8324
    %v8538 = vpop.f32.mrf.mxu0
    %v8539 = vadd.f32 %v8526, %v8538
    %v8540 = vpop.f32.mrf.mxu0
    %8541 = vdwg.mxu0
    %v8542 = vmax.f32 %v8513, 0.0
    %v8543 = vmax.f32 %v8539, 0.0
    %s8544 = scalar_lea.vmem [#allocation4], 256
    %v8545 = vld [vmem:[%s8544] sm:$0xff]
    %v8546 = vld [vmem:[%s8544 + $0x8] sm:$0xff]
    %v8547 = vld [vmem:[%s8544 + $0x10] sm:$0xff]
    %v8548 = vld [vmem:[%s8544 + $0x18] sm:$0xff]
    %v8549 = vld [vmem:[%s8544 + $0x20] sm:$0xff]
    %v8550 = vld [vmem:[%s8544 + $0x28] sm:$0xff]
    %v8551 = vld [vmem:[%s8544 + $0x30] sm:$0xff]
    %v8552 = vld [vmem:[%s8544 + $0x38] sm:$0xff]
    %v8553 = vld [vmem:[%s8544 + $0x40] sm:$0xff]
    %v8554 = vld [vmem:[%s8544 + $0x48] sm:$0xff]
    %v8555 = vld [vmem:[%s8544 + $0x50] sm:$0xff]
    %v8556 = vld [vmem:[%s8544 + $0x58] sm:$0xff]
    %v8557 = vld [vmem:[%s8544 + $0x60] sm:$0xff]
    %v8558 = vld [vmem:[%s8544 + $0x68] sm:$0xff]
    %v8559 = vld [vmem:[%s8544 + $0x70] sm:$0xff]
    %v8560 = vld [vmem:[%s8544 + $0x78] sm:$0xff]
    %v8561 = vld [vmem:[%s8544 + $0x80] sm:$0xff]
    %v8562 = vld [vmem:[%s8544 + $0x88] sm:$0xff]
    %v8563 = vld [vmem:[%s8544 + $0x90] sm:$0xff]
    %v8564 = vld [vmem:[%s8544 + $0x98] sm:$0xff]
    %v8565 = vld [vmem:[%s8544 + $0xa0] sm:$0xff]
    %v8566 = vld [vmem:[%s8544 + $0xa8] sm:$0xff]
    %v8567 = vld [vmem:[%s8544 + $0xb0] sm:$0xff]
    %v8568 = vld [vmem:[%s8544 + $0xb8] sm:$0xff]
    %v8569 = vld [vmem:[%s8544 + $0xc0] sm:$0xff]
    %v8570 = vld [vmem:[%s8544 + $0xc8] sm:$0xff]
    %v8571 = vld [vmem:[%s8544 + $0xd0] sm:$0xff]
    %v8572 = vld [vmem:[%s8544 + $0xd8] sm:$0xff]
    %v8573 = vld [vmem:[%s8544 + $0xe0] sm:$0xff]
    %v8574 = vld [vmem:[%s8544 + $0xe8] sm:$0xff]
    %v8575 = vld [vmem:[%s8544 + $0xf0] sm:$0xff]
    %v8576 = vld [vmem:[%s8544 + $0xf8] sm:$0xff]
    %v8577 = vpack.c.bf16 %v8542, %v8542
    %v8578 = vpack.c.bf16 %v8543, %v8543
    %v8580 = vperm.slane %v126, 0
    %v8581 = vperm.slane %v126, 1
    %v8616 = vunpack.c.l.b16 %v8545
    %v8617 = vunpack.c.h.b16 %v8545
    %v8618 = vunpack.c.l.b16 %v8546
    %v8619 = vunpack.c.h.b16 %v8546
    %v8620 = vunpack.c.l.b16 %v8547
    %v8621 = vunpack.c.h.b16 %v8547
    %v8622 = vunpack.c.l.b16 %v8548
    %v8623 = vunpack.c.h.b16 %v8548
    %v8624 = vunpack.c.l.b16 %v8549
    %v8625 = vunpack.c.h.b16 %v8549
    %v8626 = vunpack.c.l.b16 %v8550
    %v8627 = vunpack.c.h.b16 %v8550
    %v8628 = vunpack.c.l.b16 %v8551
    %v8629 = vunpack.c.h.b16 %v8551
    %v8630 = vunpack.c.l.b16 %v8552
    %v8631 = vunpack.c.h.b16 %v8552
    %v8632 = vunpack.c.l.b16 %v8553
    %v8633 = vunpack.c.h.b16 %v8553
    %v8634 = vunpack.c.l.b16 %v8554
    %v8635 = vunpack.c.h.b16 %v8554
    %v8636 = vunpack.c.l.b16 %v8555
    %v8637 = vunpack.c.h.b16 %v8555
    %v8638 = vunpack.c.l.b16 %v8556
    %v8639 = vunpack.c.h.b16 %v8556
    %v8640 = vunpack.c.l.b16 %v8557
    %v8641 = vunpack.c.h.b16 %v8557
    %v8642 = vunpack.c.l.b16 %v8558
    %v8643 = vunpack.c.h.b16 %v8558
    %v8644 = vunpack.c.l.b16 %v8559
    %v8645 = vunpack.c.h.b16 %v8559
    %v8646 = vunpack.c.l.b16 %v8560
    %v8647 = vunpack.c.h.b16 %v8560
    %v8648 = vunpack.c.l.b16 %v8561
    %v8649 = vunpack.c.h.b16 %v8561
    %v8650 = vunpack.c.l.b16 %v8562
    %v8651 = vunpack.c.h.b16 %v8562
    %v8652 = vunpack.c.l.b16 %v8563
    %v8653 = vunpack.c.h.b16 %v8563
    %v8654 = vunpack.c.l.b16 %v8564
    %v8655 = vunpack.c.h.b16 %v8564
    %v8656 = vunpack.c.l.b16 %v8565
    %v8657 = vunpack.c.h.b16 %v8565
    %v8658 = vunpack.c.l.b16 %v8566
    %v8659 = vunpack.c.h.b16 %v8566
    %v8660 = vunpack.c.l.b16 %v8567
    %v8661 = vunpack.c.h.b16 %v8567
    %v8662 = vunpack.c.l.b16 %v8568
    %v8663 = vunpack.c.h.b16 %v8568
    %v8664 = vunpack.c.l.b16 %v8569
    %v8665 = vunpack.c.h.b16 %v8569
    %v8666 = vunpack.c.l.b16 %v8570
    %v8667 = vunpack.c.h.b16 %v8570
    %v8668 = vunpack.c.l.b16 %v8571
    %v8669 = vunpack.c.h.b16 %v8571
    %v8670 = vunpack.c.l.b16 %v8572
    %v8671 = vunpack.c.h.b16 %v8572
    %v8672 = vunpack.c.l.b16 %v8573
    %v8673 = vunpack.c.h.b16 %v8573
    %v8674 = vunpack.c.l.b16 %v8574
    %v8675 = vunpack.c.h.b16 %v8574
    %v8676 = vunpack.c.l.b16 %v8575
    %v8677 = vunpack.c.h.b16 %v8575
    %v8678 = vunpack.c.l.b16 %v8576
    %v8679 = vunpack.c.h.b16 %v8576
    %v8680 = vpack.c.b16 %v8618, %v8616
    %v8681 = vpack.c.b16 %v8619, %v8617
    %v8682 = vpack.c.b16 %v8622, %v8620
    %v8683 = vpack.c.b16 %v8623, %v8621
    %v8684 = vpack.c.b16 %v8626, %v8624
    %v8685 = vpack.c.b16 %v8627, %v8625
    %v8686 = vpack.c.b16 %v8630, %v8628
    %v8687 = vpack.c.b16 %v8631, %v8629
    %v8688 = vpack.c.b16 %v8634, %v8632
    %v8689 = vpack.c.b16 %v8635, %v8633
    %v8690 = vpack.c.b16 %v8638, %v8636
    %v8691 = vpack.c.b16 %v8639, %v8637
    %v8692 = vpack.c.b16 %v8642, %v8640
    %v8693 = vpack.c.b16 %v8643, %v8641
    %v8694 = vpack.c.b16 %v8646, %v8644
    %v8695 = vpack.c.b16 %v8647, %v8645
    %v8696 = vpack.c.b16 %v8650, %v8648
    %v8697 = vpack.c.b16 %v8651, %v8649
    %v8698 = vpack.c.b16 %v8654, %v8652
    %v8699 = vpack.c.b16 %v8655, %v8653
    %v8700 = vpack.c.b16 %v8658, %v8656
    %v8701 = vpack.c.b16 %v8659, %v8657
    %v8702 = vpack.c.b16 %v8662, %v8660
    %v8703 = vpack.c.b16 %v8663, %v8661
    %v8704 = vpack.c.b16 %v8666, %v8664
    %v8705 = vpack.c.b16 %v8667, %v8665
    %v8706 = vpack.c.b16 %v8670, %v8668
    %v8707 = vpack.c.b16 %v8671, %v8669
    %v8708 = vpack.c.b16 %v8674, %v8672
    %v8709 = vpack.c.b16 %v8675, %v8673
    %v8710 = vpack.c.b16 %v8678, %v8676
    %v8711 = vpack.c.b16 %v8679, %v8677
    %8744 = vmatpush.bf16.msra.mxu0 %v8694
    %8745 = vmatpush.bf16.msra.mxu0 %v8692
    %8746 = vmatpush.bf16.msra.mxu0 %v8690
    %8747 = vmatpush.bf16.msra.mxu0 %v8688
    %8748 = vmatpush.bf16.msra.mxu0 %v8686
    %8749 = vmatpush.bf16.msra.mxu0 %v8684
    %8750 = vmatpush.bf16.msra.mxu0 %v8682
    %8751 = vmatpush.bf16.msra.mxu0 %v8680
    %8752 = vmatmul.bf16.gmra.mxu0 %v8577
    %v8753 = vpop.f32.mrf.mxu0
    %v8754 = vadd.f32 %v8580, %v8753
    %v8755 = vpop.f32.mrf.mxu0
    %8756 = vdwg.mxu0
    %8757 = vmatpush.bf16.msra.mxu0 %v8710
    %8758 = vmatpush.bf16.msra.mxu0 %v8708
    %8759 = vmatpush.bf16.msra.mxu0 %v8706
    %8760 = vmatpush.bf16.msra.mxu0 %v8704
    %8761 = vmatpush.bf16.msra.mxu0 %v8702
    %8762 = vmatpush.bf16.msra.mxu0 %v8700
    %8763 = vmatpush.bf16.msra.mxu0 %v8698
    %8764 = vmatpush.bf16.msra.mxu0 %v8696
    %8765 = vmatmul.bf16.gmra.mxu0 %v8578
    %v8766 = vpop.f32.mrf.mxu0
    %v8767 = vadd.f32 %v8754, %v8766
    %v8768 = vpop.f32.mrf.mxu0
    %8769 = vdwg.mxu0
    %8770 = vmatpush.bf16.msra.mxu0 %v8695
    %8771 = vmatpush.bf16.msra.mxu0 %v8693
    %8772 = vmatpush.bf16.msra.mxu0 %v8691
    %8773 = vmatpush.bf16.msra.mxu0 %v8689
    %8774 = vmatpush.bf16.msra.mxu0 %v8687
    %8775 = vmatpush.bf16.msra.mxu0 %v8685
    %8776 = vmatpush.bf16.msra.mxu0 %v8683
    %8777 = vmatpush.bf16.msra.mxu0 %v8681
    %8778 = vmatmul.bf16.gmra.mxu0 %v8577
    %v8779 = vpop.f32.mrf.mxu0
    %v8780 = vadd.f32 %v8581, %v8779
    %v8781 = vpop.f32.mrf.mxu0
    %8782 = vdwg.mxu0
    %8783 = vmatpush.bf16.msra.mxu0 %v8711
    %8784 = vmatpush.bf16.msra.mxu0 %v8709
    %8785 = vmatpush.bf16.msra.mxu0 %v8707
    %8786 = vmatpush.bf16.msra.mxu0 %v8705
    %8787 = vmatpush.bf16.msra.mxu0 %v8703
    %8788 = vmatpush.bf16.msra.mxu0 %v8701
    %8789 = vmatpush.bf16.msra.mxu0 %v8699
    %8790 = vmatpush.bf16.msra.mxu0 %v8697
    %8791 = vmatmul.bf16.gmra.mxu0 %v8578
    %v8792 = vpop.f32.mrf.mxu0
    %v8793 = vadd.f32 %v8780, %v8792
    %v8794 = vpop.f32.mrf.mxu0
    %8795 = vdwg.mxu0
    %vm8796 = vcmp.ge.f32.partialorder %v8767, 0.0
    %vm8797 = vcmp.ge.f32.partialorder %v8793, 0.0
    %v8798 = vmul.f32 %v8767, 0.01
    %v8799 = vmul.f32 %v8793, 0.01
    %v8800 = vsel %vm8796, %v8767, %v8798
    %v8801 = vsel %vm8797, %v8793, %v8799
    %s8802 = scalar_lea.vmem [#allocation4], 512
    %v8803 = vld [vmem:[%s8802] sm:$0xff]
    %v8804 = vld [vmem:[%s8802 + $0x8] sm:$0xff]
    %v8805 = vld [vmem:[%s8802 + $0x10] sm:$0xff]
    %v8806 = vld [vmem:[%s8802 + $0x18] sm:$0xff]
    %v8807 = vld [vmem:[%s8802 + $0x20] sm:$0xff]
    %v8808 = vld [vmem:[%s8802 + $0x28] sm:$0xff]
    %v8809 = vld [vmem:[%s8802 + $0x30] sm:$0xff]
    %v8810 = vld [vmem:[%s8802 + $0x38] sm:$0xff]
    %v8811 = vld [vmem:[%s8802 + $0x40] sm:$0xff]
    %v8812 = vld [vmem:[%s8802 + $0x48] sm:$0xff]
    %v8813 = vld [vmem:[%s8802 + $0x50] sm:$0xff]
    %v8814 = vld [vmem:[%s8802 + $0x58] sm:$0xff]
    %v8815 = vld [vmem:[%s8802 + $0x60] sm:$0xff]
    %v8816 = vld [vmem:[%s8802 + $0x68] sm:$0xff]
    %v8817 = vld [vmem:[%s8802 + $0x70] sm:$0xff]
    %v8818 = vld [vmem:[%s8802 + $0x78] sm:$0xff]
    %v8819 = vld [vmem:[%s8802 + $0x80] sm:$0xff]
    %v8820 = vld [vmem:[%s8802 + $0x88] sm:$0xff]
    %v8821 = vld [vmem:[%s8802 + $0x90] sm:$0xff]
    %v8822 = vld [vmem:[%s8802 + $0x98] sm:$0xff]
    %v8823 = vld [vmem:[%s8802 + $0xa0] sm:$0xff]
    %v8824 = vld [vmem:[%s8802 + $0xa8] sm:$0xff]
    %v8825 = vld [vmem:[%s8802 + $0xb0] sm:$0xff]
    %v8826 = vld [vmem:[%s8802 + $0xb8] sm:$0xff]
    %v8827 = vld [vmem:[%s8802 + $0xc0] sm:$0xff]
    %v8828 = vld [vmem:[%s8802 + $0xc8] sm:$0xff]
    %v8829 = vld [vmem:[%s8802 + $0xd0] sm:$0xff]
    %v8830 = vld [vmem:[%s8802 + $0xd8] sm:$0xff]
    %v8831 = vld [vmem:[%s8802 + $0xe0] sm:$0xff]
    %v8832 = vld [vmem:[%s8802 + $0xe8] sm:$0xff]
    %v8833 = vld [vmem:[%s8802 + $0xf0] sm:$0xff]
    %v8834 = vld [vmem:[%s8802 + $0xf8] sm:$0xff]
    %v8835 = vpack.c.bf16 %v8800, %v8800
    %v8836 = vpack.c.bf16 %v8801, %v8801
    %v8838 = vperm.slane %v128, 0
    %v8839 = vperm.slane %v128, 1
    %v8874 = vunpack.c.l.b16 %v8803
    %v8875 = vunpack.c.h.b16 %v8803
    %v8876 = vunpack.c.l.b16 %v8804
    %v8877 = vunpack.c.h.b16 %v8804
    %v8878 = vunpack.c.l.b16 %v8805
    %v8879 = vunpack.c.h.b16 %v8805
    %v8880 = vunpack.c.l.b16 %v8806
    %v8881 = vunpack.c.h.b16 %v8806
    %v8882 = vunpack.c.l.b16 %v8807
    %v8883 = vunpack.c.h.b16 %v8807
    %v8884 = vunpack.c.l.b16 %v8808
    %v8885 = vunpack.c.h.b16 %v8808
    %v8886 = vunpack.c.l.b16 %v8809
    %v8887 = vunpack.c.h.b16 %v8809
    %v8888 = vunpack.c.l.b16 %v8810
    %v8889 = vunpack.c.h.b16 %v8810
    %v8890 = vunpack.c.l.b16 %v8811
    %v8891 = vunpack.c.h.b16 %v8811
    %v8892 = vunpack.c.l.b16 %v8812
    %v8893 = vunpack.c.h.b16 %v8812
    %v8894 = vunpack.c.l.b16 %v8813
    %v8895 = vunpack.c.h.b16 %v8813
    %v8896 = vunpack.c.l.b16 %v8814
    %v8897 = vunpack.c.h.b16 %v8814
    %v8898 = vunpack.c.l.b16 %v8815
    %v8899 = vunpack.c.h.b16 %v8815
    %v8900 = vunpack.c.l.b16 %v8816
    %v8901 = vunpack.c.h.b16 %v8816
    %v8902 = vunpack.c.l.b16 %v8817
    %v8903 = vunpack.c.h.b16 %v8817
    %v8904 = vunpack.c.l.b16 %v8818
    %v8905 = vunpack.c.h.b16 %v8818
    %v8906 = vunpack.c.l.b16 %v8819
    %v8907 = vunpack.c.h.b16 %v8819
    %v8908 = vunpack.c.l.b16 %v8820
    %v8909 = vunpack.c.h.b16 %v8820
    %v8910 = vunpack.c.l.b16 %v8821
    %v8911 = vunpack.c.h.b16 %v8821
    %v8912 = vunpack.c.l.b16 %v8822
    %v8913 = vunpack.c.h.b16 %v8822
    %v8914 = vunpack.c.l.b16 %v8823
    %v8915 = vunpack.c.h.b16 %v8823
    %v8916 = vunpack.c.l.b16 %v8824
    %v8917 = vunpack.c.h.b16 %v8824
    %v8918 = vunpack.c.l.b16 %v8825
    %v8919 = vunpack.c.h.b16 %v8825
    %v8920 = vunpack.c.l.b16 %v8826
    %v8921 = vunpack.c.h.b16 %v8826
    %v8922 = vunpack.c.l.b16 %v8827
    %v8923 = vunpack.c.h.b16 %v8827
    %v8924 = vunpack.c.l.b16 %v8828
    %v8925 = vunpack.c.h.b16 %v8828
    %v8926 = vunpack.c.l.b16 %v8829
    %v8927 = vunpack.c.h.b16 %v8829
    %v8928 = vunpack.c.l.b16 %v8830
    %v8929 = vunpack.c.h.b16 %v8830
    %v8930 = vunpack.c.l.b16 %v8831
    %v8931 = vunpack.c.h.b16 %v8831
    %v8932 = vunpack.c.l.b16 %v8832
    %v8933 = vunpack.c.h.b16 %v8832
    %v8934 = vunpack.c.l.b16 %v8833
    %v8935 = vunpack.c.h.b16 %v8833
    %v8936 = vunpack.c.l.b16 %v8834
    %v8937 = vunpack.c.h.b16 %v8834
    %v8938 = vpack.c.b16 %v8876, %v8874
    %v8939 = vpack.c.b16 %v8877, %v8875
    %v8940 = vpack.c.b16 %v8880, %v8878
    %v8941 = vpack.c.b16 %v8881, %v8879
    %v8942 = vpack.c.b16 %v8884, %v8882
    %v8943 = vpack.c.b16 %v8885, %v8883
    %v8944 = vpack.c.b16 %v8888, %v8886
    %v8945 = vpack.c.b16 %v8889, %v8887
    %v8946 = vpack.c.b16 %v8892, %v8890
    %v8947 = vpack.c.b16 %v8893, %v8891
    %v8948 = vpack.c.b16 %v8896, %v8894
    %v8949 = vpack.c.b16 %v8897, %v8895
    %v8950 = vpack.c.b16 %v8900, %v8898
    %v8951 = vpack.c.b16 %v8901, %v8899
    %v8952 = vpack.c.b16 %v8904, %v8902
    %v8953 = vpack.c.b16 %v8905, %v8903
    %v8954 = vpack.c.b16 %v8908, %v8906
    %v8955 = vpack.c.b16 %v8909, %v8907
    %v8956 = vpack.c.b16 %v8912, %v8910
    %v8957 = vpack.c.b16 %v8913, %v8911
    %v8958 = vpack.c.b16 %v8916, %v8914
    %v8959 = vpack.c.b16 %v8917, %v8915
    %v8960 = vpack.c.b16 %v8920, %v8918
    %v8961 = vpack.c.b16 %v8921, %v8919
    %v8962 = vpack.c.b16 %v8924, %v8922
    %v8963 = vpack.c.b16 %v8925, %v8923
    %v8964 = vpack.c.b16 %v8928, %v8926
    %v8965 = vpack.c.b16 %v8929, %v8927
    %v8966 = vpack.c.b16 %v8932, %v8930
    %v8967 = vpack.c.b16 %v8933, %v8931
    %v8968 = vpack.c.b16 %v8936, %v8934
    %v8969 = vpack.c.b16 %v8937, %v8935
    %9002 = vmatpush.bf16.msra.mxu0 %v8952
    %9003 = vmatpush.bf16.msra.mxu0 %v8950
    %9004 = vmatpush.bf16.msra.mxu0 %v8948
    %9005 = vmatpush.bf16.msra.mxu0 %v8946
    %9006 = vmatpush.bf16.msra.mxu0 %v8944
    %9007 = vmatpush.bf16.msra.mxu0 %v8942
    %9008 = vmatpush.bf16.msra.mxu0 %v8940
    %9009 = vmatpush.bf16.msra.mxu0 %v8938
    %9010 = vmatmul.bf16.gmra.mxu0 %v8835
    %v9011 = vpop.f32.mrf.mxu0
    %v9012 = vadd.f32 %v8838, %v9011
    %v9013 = vpop.f32.mrf.mxu0
    %9014 = vdwg.mxu0
    %9015 = vmatpush.bf16.msra.mxu0 %v8968
    %9016 = vmatpush.bf16.msra.mxu0 %v8966
    %9017 = vmatpush.bf16.msra.mxu0 %v8964
    %9018 = vmatpush.bf16.msra.mxu0 %v8962
    %9019 = vmatpush.bf16.msra.mxu0 %v8960
    %9020 = vmatpush.bf16.msra.mxu0 %v8958
    %9021 = vmatpush.bf16.msra.mxu0 %v8956
    %9022 = vmatpush.bf16.msra.mxu0 %v8954
    %9023 = vmatmul.bf16.gmra.mxu0 %v8836
    %v9024 = vpop.f32.mrf.mxu0
    %v9025 = vadd.f32 %v9012, %v9024
    %v9026 = vpop.f32.mrf.mxu0
    %9027 = vdwg.mxu0
    %9028 = vmatpush.bf16.msra.mxu0 %v8953
    %9029 = vmatpush.bf16.msra.mxu0 %v8951
    %9030 = vmatpush.bf16.msra.mxu0 %v8949
    %9031 = vmatpush.bf16.msra.mxu0 %v8947
    %9032 = vmatpush.bf16.msra.mxu0 %v8945
    %9033 = vmatpush.bf16.msra.mxu0 %v8943
    %9034 = vmatpush.bf16.msra.mxu0 %v8941
    %9035 = vmatpush.bf16.msra.mxu0 %v8939
    %9036 = vmatmul.bf16.gmra.mxu0 %v8835
    %v9037 = vpop.f32.mrf.mxu0
    %v9038 = vadd.f32 %v8839, %v9037
    %v9039 = vpop.f32.mrf.mxu0
    %9040 = vdwg.mxu0
    %9041 = vmatpush.bf16.msra.mxu0 %v8969
    %9042 = vmatpush.bf16.msra.mxu0 %v8967
    %9043 = vmatpush.bf16.msra.mxu0 %v8965
    %9044 = vmatpush.bf16.msra.mxu0 %v8963
    %9045 = vmatpush.bf16.msra.mxu0 %v8961
    %9046 = vmatpush.bf16.msra.mxu0 %v8959
    %9047 = vmatpush.bf16.msra.mxu0 %v8957
    %9048 = vmatpush.bf16.msra.mxu0 %v8955
    %9049 = vmatmul.bf16.gmra.mxu0 %v8836
    %v9050 = vpop.f32.mrf.mxu0
    %v9051 = vadd.f32 %v9038, %v9050
    %v9052 = vpop.f32.mrf.mxu0
    %9053 = vdwg.mxu0
    %vm9054 = vcmp.ge.f32.partialorder %v9025, 0.0
    %vm9055 = vcmp.ge.f32.partialorder %v9051, 0.0
    %v9056 = vmul.f32 %v9025, 0.01
    %v9057 = vmul.f32 %v9051, 0.01
    %v9058 = vsel %vm9054, %v9025, %v9056
    %v9059 = vsel %vm9055, %v9051, %v9057
    %v9060 = vadd.f32 %v9058, %v8542
    %v9061 = vadd.f32 %v9059, %v8543
    %s9062 = scalar_lea.vmem [#allocation4], 768
    %v9063 = vld [vmem:[%s9062] sm:$0xff]
    %v9064 = vld [vmem:[%s9062 + $0x8] sm:$0xff]
    %v9065 = vld [vmem:[%s9062 + $0x10] sm:$0xff]
    %v9066 = vld [vmem:[%s9062 + $0x18] sm:$0xff]
    %v9067 = vld [vmem:[%s9062 + $0x20] sm:$0xff]
    %v9068 = vld [vmem:[%s9062 + $0x28] sm:$0xff]
    %v9069 = vld [vmem:[%s9062 + $0x30] sm:$0xff]
    %v9070 = vld [vmem:[%s9062 + $0x38] sm:$0xff]
    %v9071 = vld [vmem:[%s9062 + $0x40] sm:$0xff]
    %v9072 = vld [vmem:[%s9062 + $0x48] sm:$0xff]
    %v9073 = vld [vmem:[%s9062 + $0x50] sm:$0xff]
    %v9074 = vld [vmem:[%s9062 + $0x58] sm:$0xff]
    %v9075 = vld [vmem:[%s9062 + $0x60] sm:$0xff]
    %v9076 = vld [vmem:[%s9062 + $0x68] sm:$0xff]
    %v9077 = vld [vmem:[%s9062 + $0x70] sm:$0xff]
    %v9078 = vld [vmem:[%s9062 + $0x78] sm:$0xff]
    %v9079 = vld [vmem:[%s9062 + $0x80] sm:$0xff]
    %v9080 = vld [vmem:[%s9062 + $0x88] sm:$0xff]
    %v9081 = vld [vmem:[%s9062 + $0x90] sm:$0xff]
    %v9082 = vld [vmem:[%s9062 + $0x98] sm:$0xff]
    %v9083 = vld [vmem:[%s9062 + $0xa0] sm:$0xff]
    %v9084 = vld [vmem:[%s9062 + $0xa8] sm:$0xff]
    %v9085 = vld [vmem:[%s9062 + $0xb0] sm:$0xff]
    %v9086 = vld [vmem:[%s9062 + $0xb8] sm:$0xff]
    %v9087 = vld [vmem:[%s9062 + $0xc0] sm:$0xff]
    %v9088 = vld [vmem:[%s9062 + $0xc8] sm:$0xff]
    %v9089 = vld [vmem:[%s9062 + $0xd0] sm:$0xff]
    %v9090 = vld [vmem:[%s9062 + $0xd8] sm:$0xff]
    %v9091 = vld [vmem:[%s9062 + $0xe0] sm:$0xff]
    %v9092 = vld [vmem:[%s9062 + $0xe8] sm:$0xff]
    %v9093 = vld [vmem:[%s9062 + $0xf0] sm:$0xff]
    %v9094 = vld [vmem:[%s9062 + $0xf8] sm:$0xff]
    %v9095 = vpack.c.bf16 %v9060, %v9060
    %v9096 = vpack.c.bf16 %v9061, %v9061
    %v9098 = vperm.slane %v130, 0
    %v9099 = vperm.slane %v130, 1
    %v9134 = vunpack.c.l.b16 %v9063
    %v9135 = vunpack.c.h.b16 %v9063
    %v9136 = vunpack.c.l.b16 %v9064
    %v9137 = vunpack.c.h.b16 %v9064
    %v9138 = vunpack.c.l.b16 %v9065
    %v9139 = vunpack.c.h.b16 %v9065
    %v9140 = vunpack.c.l.b16 %v9066
    %v9141 = vunpack.c.h.b16 %v9066
    %v9142 = vunpack.c.l.b16 %v9067
    %v9143 = vunpack.c.h.b16 %v9067
    %v9144 = vunpack.c.l.b16 %v9068
    %v9145 = vunpack.c.h.b16 %v9068
    %v9146 = vunpack.c.l.b16 %v9069
    %v9147 = vunpack.c.h.b16 %v9069
    %v9148 = vunpack.c.l.b16 %v9070
    %v9149 = vunpack.c.h.b16 %v9070
    %v9150 = vunpack.c.l.b16 %v9071
    %v9151 = vunpack.c.h.b16 %v9071
    %v9152 = vunpack.c.l.b16 %v9072
    %v9153 = vunpack.c.h.b16 %v9072
    %v9154 = vunpack.c.l.b16 %v9073
    %v9155 = vunpack.c.h.b16 %v9073
    %v9156 = vunpack.c.l.b16 %v9074
    %v9157 = vunpack.c.h.b16 %v9074
    %v9158 = vunpack.c.l.b16 %v9075
    %v9159 = vunpack.c.h.b16 %v9075
    %v9160 = vunpack.c.l.b16 %v9076
    %v9161 = vunpack.c.h.b16 %v9076
    %v9162 = vunpack.c.l.b16 %v9077
    %v9163 = vunpack.c.h.b16 %v9077
    %v9164 = vunpack.c.l.b16 %v9078
    %v9165 = vunpack.c.h.b16 %v9078
    %v9166 = vunpack.c.l.b16 %v9079
    %v9167 = vunpack.c.h.b16 %v9079
    %v9168 = vunpack.c.l.b16 %v9080
    %v9169 = vunpack.c.h.b16 %v9080
    %v9170 = vunpack.c.l.b16 %v9081
    %v9171 = vunpack.c.h.b16 %v9081
    %v9172 = vunpack.c.l.b16 %v9082
    %v9173 = vunpack.c.h.b16 %v9082
    %v9174 = vunpack.c.l.b16 %v9083
    %v9175 = vunpack.c.h.b16 %v9083
    %v9176 = vunpack.c.l.b16 %v9084
    %v9177 = vunpack.c.h.b16 %v9084
    %v9178 = vunpack.c.l.b16 %v9085
    %v9179 = vunpack.c.h.b16 %v9085
    %v9180 = vunpack.c.l.b16 %v9086
    %v9181 = vunpack.c.h.b16 %v9086
    %v9182 = vunpack.c.l.b16 %v9087
    %v9183 = vunpack.c.h.b16 %v9087
    %v9184 = vunpack.c.l.b16 %v9088
    %v9185 = vunpack.c.h.b16 %v9088
    %v9186 = vunpack.c.l.b16 %v9089
    %v9187 = vunpack.c.h.b16 %v9089
    %v9188 = vunpack.c.l.b16 %v9090
    %v9189 = vunpack.c.h.b16 %v9090
    %v9190 = vunpack.c.l.b16 %v9091
    %v9191 = vunpack.c.h.b16 %v9091
    %v9192 = vunpack.c.l.b16 %v9092
    %v9193 = vunpack.c.h.b16 %v9092
    %v9194 = vunpack.c.l.b16 %v9093
    %v9195 = vunpack.c.h.b16 %v9093
    %v9196 = vunpack.c.l.b16 %v9094
    %v9197 = vunpack.c.h.b16 %v9094
    %v9198 = vpack.c.b16 %v9136, %v9134
    %v9199 = vpack.c.b16 %v9137, %v9135
    %v9200 = vpack.c.b16 %v9140, %v9138
    %v9201 = vpack.c.b16 %v9141, %v9139
    %v9202 = vpack.c.b16 %v9144, %v9142
    %v9203 = vpack.c.b16 %v9145, %v9143
    %v9204 = vpack.c.b16 %v9148, %v9146
    %v9205 = vpack.c.b16 %v9149, %v9147
    %v9206 = vpack.c.b16 %v9152, %v9150
    %v9207 = vpack.c.b16 %v9153, %v9151
    %v9208 = vpack.c.b16 %v9156, %v9154
    %v9209 = vpack.c.b16 %v9157, %v9155
    %v9210 = vpack.c.b16 %v9160, %v9158
    %v9211 = vpack.c.b16 %v9161, %v9159
    %v9212 = vpack.c.b16 %v9164, %v9162
    %v9213 = vpack.c.b16 %v9165, %v9163
    %v9214 = vpack.c.b16 %v9168, %v9166
    %v9215 = vpack.c.b16 %v9169, %v9167
    %v9216 = vpack.c.b16 %v9172, %v9170
    %v9217 = vpack.c.b16 %v9173, %v9171
    %v9218 = vpack.c.b16 %v9176, %v9174
    %v9219 = vpack.c.b16 %v9177, %v9175
    %v9220 = vpack.c.b16 %v9180, %v9178
    %v9221 = vpack.c.b16 %v9181, %v9179
    %v9222 = vpack.c.b16 %v9184, %v9182
    %v9223 = vpack.c.b16 %v9185, %v9183
    %v9224 = vpack.c.b16 %v9188, %v9186
    %v9225 = vpack.c.b16 %v9189, %v9187
    %v9226 = vpack.c.b16 %v9192, %v9190
    %v9227 = vpack.c.b16 %v9193, %v9191
    %v9228 = vpack.c.b16 %v9196, %v9194
    %v9229 = vpack.c.b16 %v9197, %v9195
    %9262 = vmatpush.bf16.msra.mxu0 %v9212
    %9263 = vmatpush.bf16.msra.mxu0 %v9210
    %9264 = vmatpush.bf16.msra.mxu0 %v9208
    %9265 = vmatpush.bf16.msra.mxu0 %v9206
    %9266 = vmatpush.bf16.msra.mxu0 %v9204
    %9267 = vmatpush.bf16.msra.mxu0 %v9202
    %9268 = vmatpush.bf16.msra.mxu0 %v9200
    %9269 = vmatpush.bf16.msra.mxu0 %v9198
    %9270 = vmatmul.bf16.gmra.mxu0 %v9095
    %v9271 = vpop.f32.mrf.mxu0
    %v9272 = vadd.f32 %v9098, %v9271
    %v9273 = vpop.f32.mrf.mxu0
    %9274 = vdwg.mxu0
    %9275 = vmatpush.bf16.msra.mxu0 %v9228
    %9276 = vmatpush.bf16.msra.mxu0 %v9226
    %9277 = vmatpush.bf16.msra.mxu0 %v9224
    %9278 = vmatpush.bf16.msra.mxu0 %v9222
    %9279 = vmatpush.bf16.msra.mxu0 %v9220
    %9280 = vmatpush.bf16.msra.mxu0 %v9218
    %9281 = vmatpush.bf16.msra.mxu0 %v9216
    %9282 = vmatpush.bf16.msra.mxu0 %v9214
    %9283 = vmatmul.bf16.gmra.mxu0 %v9096
    %v9284 = vpop.f32.mrf.mxu0
    %v9285 = vadd.f32 %v9272, %v9284
    %v9286 = vpop.f32.mrf.mxu0
    %9287 = vdwg.mxu0
    %9288 = vmatpush.bf16.msra.mxu0 %v9213
    %9289 = vmatpush.bf16.msra.mxu0 %v9211
    %9290 = vmatpush.bf16.msra.mxu0 %v9209
    %9291 = vmatpush.bf16.msra.mxu0 %v9207
    %9292 = vmatpush.bf16.msra.mxu0 %v9205
    %9293 = vmatpush.bf16.msra.mxu0 %v9203
    %9294 = vmatpush.bf16.msra.mxu0 %v9201
    %9295 = vmatpush.bf16.msra.mxu0 %v9199
    %9296 = vmatmul.bf16.gmra.mxu0 %v9095
    %v9297 = vpop.f32.mrf.mxu0
    %v9298 = vadd.f32 %v9099, %v9297
    %v9299 = vpop.f32.mrf.mxu0
    %9300 = vdwg.mxu0
    %9301 = vmatpush.bf16.msra.mxu0 %v9229
    %9302 = vmatpush.bf16.msra.mxu0 %v9227
    %9303 = vmatpush.bf16.msra.mxu0 %v9225
    %9304 = vmatpush.bf16.msra.mxu0 %v9223
    %9305 = vmatpush.bf16.msra.mxu0 %v9221
    %9306 = vmatpush.bf16.msra.mxu0 %v9219
    %9307 = vmatpush.bf16.msra.mxu0 %v9217
    %9308 = vmatpush.bf16.msra.mxu0 %v9215
    %9309 = vmatmul.bf16.gmra.mxu0 %v9096
    %v9310 = vpop.f32.mrf.mxu0
    %v9311 = vadd.f32 %v9298, %v9310
    %v9312 = vpop.f32.mrf.mxu0
    %9313 = vdwg.mxu0
    %vm9314 = vcmp.ge.f32.partialorder %v9285, 0.0
    %vm9315 = vcmp.ge.f32.partialorder %v9311, 0.0
    %v9316 = vmul.f32 %v9285, 0.01
    %v9317 = vmul.f32 %v9311, 0.01
    %v9318 = vsel %vm9314, %v9285, %v9316
    %v9319 = vsel %vm9315, %v9311, %v9317
    %s9320 = scalar_lea.vmem [#allocation4], 1024
    %v9321 = vld [vmem:[%s9320] sm:$0xff]
    %v9322 = vld [vmem:[%s9320 + $0x8] sm:$0xff]
    %v9323 = vld [vmem:[%s9320 + $0x10] sm:$0xff]
    %v9324 = vld [vmem:[%s9320 + $0x18] sm:$0xff]
    %v9325 = vld [vmem:[%s9320 + $0x20] sm:$0xff]
    %v9326 = vld [vmem:[%s9320 + $0x28] sm:$0xff]
    %v9327 = vld [vmem:[%s9320 + $0x30] sm:$0xff]
    %v9328 = vld [vmem:[%s9320 + $0x38] sm:$0xff]
    %v9329 = vld [vmem:[%s9320 + $0x40] sm:$0xff]
    %v9330 = vld [vmem:[%s9320 + $0x48] sm:$0xff]
    %v9331 = vld [vmem:[%s9320 + $0x50] sm:$0xff]
    %v9332 = vld [vmem:[%s9320 + $0x58] sm:$0xff]
    %v9333 = vld [vmem:[%s9320 + $0x60] sm:$0xff]
    %v9334 = vld [vmem:[%s9320 + $0x68] sm:$0xff]
    %v9335 = vld [vmem:[%s9320 + $0x70] sm:$0xff]
    %v9336 = vld [vmem:[%s9320 + $0x78] sm:$0xff]
    %v9337 = vld [vmem:[%s9320 + $0x80] sm:$0xff]
    %v9338 = vld [vmem:[%s9320 + $0x88] sm:$0xff]
    %v9339 = vld [vmem:[%s9320 + $0x90] sm:$0xff]
    %v9340 = vld [vmem:[%s9320 + $0x98] sm:$0xff]
    %v9341 = vld [vmem:[%s9320 + $0xa0] sm:$0xff]
    %v9342 = vld [vmem:[%s9320 + $0xa8] sm:$0xff]
    %v9343 = vld [vmem:[%s9320 + $0xb0] sm:$0xff]
    %v9344 = vld [vmem:[%s9320 + $0xb8] sm:$0xff]
    %v9345 = vld [vmem:[%s9320 + $0xc0] sm:$0xff]
    %v9346 = vld [vmem:[%s9320 + $0xc8] sm:$0xff]
    %v9347 = vld [vmem:[%s9320 + $0xd0] sm:$0xff]
    %v9348 = vld [vmem:[%s9320 + $0xd8] sm:$0xff]
    %v9349 = vld [vmem:[%s9320 + $0xe0] sm:$0xff]
    %v9350 = vld [vmem:[%s9320 + $0xe8] sm:$0xff]
    %v9351 = vld [vmem:[%s9320 + $0xf0] sm:$0xff]
    %v9352 = vld [vmem:[%s9320 + $0xf8] sm:$0xff]
    %v9353 = vpack.c.bf16 %v9318, %v9318
    %v9354 = vpack.c.bf16 %v9319, %v9319
    %v9356 = vperm.slane %v132, 0
    %v9357 = vperm.slane %v132, 1
    %v9392 = vunpack.c.l.b16 %v9321
    %v9393 = vunpack.c.h.b16 %v9321
    %v9394 = vunpack.c.l.b16 %v9322
    %v9395 = vunpack.c.h.b16 %v9322
    %v9396 = vunpack.c.l.b16 %v9323
    %v9397 = vunpack.c.h.b16 %v9323
    %v9398 = vunpack.c.l.b16 %v9324
    %v9399 = vunpack.c.h.b16 %v9324
    %v9400 = vunpack.c.l.b16 %v9325
    %v9401 = vunpack.c.h.b16 %v9325
    %v9402 = vunpack.c.l.b16 %v9326
    %v9403 = vunpack.c.h.b16 %v9326
    %v9404 = vunpack.c.l.b16 %v9327
    %v9405 = vunpack.c.h.b16 %v9327
    %v9406 = vunpack.c.l.b16 %v9328
    %v9407 = vunpack.c.h.b16 %v9328
    %v9408 = vunpack.c.l.b16 %v9329
    %v9409 = vunpack.c.h.b16 %v9329
    %v9410 = vunpack.c.l.b16 %v9330
    %v9411 = vunpack.c.h.b16 %v9330
    %v9412 = vunpack.c.l.b16 %v9331
    %v9413 = vunpack.c.h.b16 %v9331
    %v9414 = vunpack.c.l.b16 %v9332
    %v9415 = vunpack.c.h.b16 %v9332
    %v9416 = vunpack.c.l.b16 %v9333
    %v9417 = vunpack.c.h.b16 %v9333
    %v9418 = vunpack.c.l.b16 %v9334
    %v9419 = vunpack.c.h.b16 %v9334
    %v9420 = vunpack.c.l.b16 %v9335
    %v9421 = vunpack.c.h.b16 %v9335
    %v9422 = vunpack.c.l.b16 %v9336
    %v9423 = vunpack.c.h.b16 %v9336
    %v9424 = vunpack.c.l.b16 %v9337
    %v9425 = vunpack.c.h.b16 %v9337
    %v9426 = vunpack.c.l.b16 %v9338
    %v9427 = vunpack.c.h.b16 %v9338
    %v9428 = vunpack.c.l.b16 %v9339
    %v9429 = vunpack.c.h.b16 %v9339
    %v9430 = vunpack.c.l.b16 %v9340
    %v9431 = vunpack.c.h.b16 %v9340
    %v9432 = vunpack.c.l.b16 %v9341
    %v9433 = vunpack.c.h.b16 %v9341
    %v9434 = vunpack.c.l.b16 %v9342
    %v9435 = vunpack.c.h.b16 %v9342
    %v9436 = vunpack.c.l.b16 %v9343
    %v9437 = vunpack.c.h.b16 %v9343
    %v9438 = vunpack.c.l.b16 %v9344
    %v9439 = vunpack.c.h.b16 %v9344
    %v9440 = vunpack.c.l.b16 %v9345
    %v9441 = vunpack.c.h.b16 %v9345
    %v9442 = vunpack.c.l.b16 %v9346
    %v9443 = vunpack.c.h.b16 %v9346
    %v9444 = vunpack.c.l.b16 %v9347
    %v9445 = vunpack.c.h.b16 %v9347
    %v9446 = vunpack.c.l.b16 %v9348
    %v9447 = vunpack.c.h.b16 %v9348
    %v9448 = vunpack.c.l.b16 %v9349
    %v9449 = vunpack.c.h.b16 %v9349
    %v9450 = vunpack.c.l.b16 %v9350
    %v9451 = vunpack.c.h.b16 %v9350
    %v9452 = vunpack.c.l.b16 %v9351
    %v9453 = vunpack.c.h.b16 %v9351
    %v9454 = vunpack.c.l.b16 %v9352
    %v9455 = vunpack.c.h.b16 %v9352
    %v9456 = vpack.c.b16 %v9394, %v9392
    %v9457 = vpack.c.b16 %v9395, %v9393
    %v9458 = vpack.c.b16 %v9398, %v9396
    %v9459 = vpack.c.b16 %v9399, %v9397
    %v9460 = vpack.c.b16 %v9402, %v9400
    %v9461 = vpack.c.b16 %v9403, %v9401
    %v9462 = vpack.c.b16 %v9406, %v9404
    %v9463 = vpack.c.b16 %v9407, %v9405
    %v9464 = vpack.c.b16 %v9410, %v9408
    %v9465 = vpack.c.b16 %v9411, %v9409
    %v9466 = vpack.c.b16 %v9414, %v9412
    %v9467 = vpack.c.b16 %v9415, %v9413
    %v9468 = vpack.c.b16 %v9418, %v9416
    %v9469 = vpack.c.b16 %v9419, %v9417
    %v9470 = vpack.c.b16 %v9422, %v9420
    %v9471 = vpack.c.b16 %v9423, %v9421
    %v9472 = vpack.c.b16 %v9426, %v9424
    %v9473 = vpack.c.b16 %v9427, %v9425
    %v9474 = vpack.c.b16 %v9430, %v9428
    %v9475 = vpack.c.b16 %v9431, %v9429
    %v9476 = vpack.c.b16 %v9434, %v9432
    %v9477 = vpack.c.b16 %v9435, %v9433
    %v9478 = vpack.c.b16 %v9438, %v9436
    %v9479 = vpack.c.b16 %v9439, %v9437
    %v9480 = vpack.c.b16 %v9442, %v9440
    %v9481 = vpack.c.b16 %v9443, %v9441
    %v9482 = vpack.c.b16 %v9446, %v9444
    %v9483 = vpack.c.b16 %v9447, %v9445
    %v9484 = vpack.c.b16 %v9450, %v9448
    %v9485 = vpack.c.b16 %v9451, %v9449
    %v9486 = vpack.c.b16 %v9454, %v9452
    %v9487 = vpack.c.b16 %v9455, %v9453
    %9520 = vmatpush.bf16.msra.mxu0 %v9470
    %9521 = vmatpush.bf16.msra.mxu0 %v9468
    %9522 = vmatpush.bf16.msra.mxu0 %v9466
    %9523 = vmatpush.bf16.msra.mxu0 %v9464
    %9524 = vmatpush.bf16.msra.mxu0 %v9462
    %9525 = vmatpush.bf16.msra.mxu0 %v9460
    %9526 = vmatpush.bf16.msra.mxu0 %v9458
    %9527 = vmatpush.bf16.msra.mxu0 %v9456
    %9528 = vmatmul.bf16.gmra.mxu0 %v9353
    %v9529 = vpop.f32.mrf.mxu0
    %v9530 = vadd.f32 %v9356, %v9529
    %v9531 = vpop.f32.mrf.mxu0
    %9532 = vdwg.mxu0
    %9533 = vmatpush.bf16.msra.mxu0 %v9486
    %9534 = vmatpush.bf16.msra.mxu0 %v9484
    %9535 = vmatpush.bf16.msra.mxu0 %v9482
    %9536 = vmatpush.bf16.msra.mxu0 %v9480
    %9537 = vmatpush.bf16.msra.mxu0 %v9478
    %9538 = vmatpush.bf16.msra.mxu0 %v9476
    %9539 = vmatpush.bf16.msra.mxu0 %v9474
    %9540 = vmatpush.bf16.msra.mxu0 %v9472
    %9541 = vmatmul.bf16.gmra.mxu0 %v9354
    %v9542 = vpop.f32.mrf.mxu0
    %v9543 = vadd.f32 %v9530, %v9542
    %v9544 = vpop.f32.mrf.mxu0
    %9545 = vdwg.mxu0
    %9546 = vmatpush.bf16.msra.mxu0 %v9471
    %9547 = vmatpush.bf16.msra.mxu0 %v9469
    %9548 = vmatpush.bf16.msra.mxu0 %v9467
    %9549 = vmatpush.bf16.msra.mxu0 %v9465
    %9550 = vmatpush.bf16.msra.mxu0 %v9463
    %9551 = vmatpush.bf16.msra.mxu0 %v9461
    %9552 = vmatpush.bf16.msra.mxu0 %v9459
    %9553 = vmatpush.bf16.msra.mxu0 %v9457
    %9554 = vmatmul.bf16.gmra.mxu0 %v9353
    %v9555 = vpop.f32.mrf.mxu0
    %v9556 = vadd.f32 %v9357, %v9555
    %v9557 = vpop.f32.mrf.mxu0
    %9558 = vdwg.mxu0
    %9559 = vmatpush.bf16.msra.mxu0 %v9487
    %9560 = vmatpush.bf16.msra.mxu0 %v9485
    %9561 = vmatpush.bf16.msra.mxu0 %v9483
    %9562 = vmatpush.bf16.msra.mxu0 %v9481
    %9563 = vmatpush.bf16.msra.mxu0 %v9479
    %9564 = vmatpush.bf16.msra.mxu0 %v9477
    %9565 = vmatpush.bf16.msra.mxu0 %v9475
    %9566 = vmatpush.bf16.msra.mxu0 %v9473
    %9567 = vmatmul.bf16.gmra.mxu0 %v9354
    %v9568 = vpop.f32.mrf.mxu0
    %v9569 = vadd.f32 %v9556, %v9568
    %v9570 = vpop.f32.mrf.mxu0
    %9571 = vdwg.mxu0
    %vm9572 = vcmp.ge.f32.partialorder %v9543, 0.0
    %vm9573 = vcmp.ge.f32.partialorder %v9569, 0.0
    %v9574 = vmul.f32 %v9543, 0.01
    %v9575 = vmul.f32 %v9569, 0.01
    %v9576 = vsel %vm9572, %v9543, %v9574
    %v9577 = vsel %vm9573, %v9569, %v9575
    %v9578 = vadd.f32 %v9576, %v9060
    %v9579 = vadd.f32 %v9577, %v9061
    %v9581 = vperm.slane %v134, 0
    %v9582 = vperm.slane %v134, 1
    %v9585 = vmul.f32 %v9578, %v9581
    %v9586 = vmul.f32 %v9579, %v9582
    %v9587 = vadd.f32 %v9585, %v9586
    %9588 = vadd.xlane.f32.xlu0 %v9587
    %v9589 = vpop.xlane.xlu0 %9588
    %s9590 = sld [smem:[#allocation6]]
    %v9591 = vstv %s9590
    %v9592 = vadd.f32 %v9589, %v9591
    %v9593 = vxor.u32 %v9592, 2147483648
    %v9594 = vmul.f32 %v9593, 1.442695
    %v9595 = vpow.pop %v9594
    %v9596 = vadd.f32 %v9595, 1.0
    %v9597 = vrcp.pop %v9596
    %v9598 = vmul.f32 %v9596, %v9597
    %v9599 = vsub.f32 1.0, %v9598
    %v9600 = vmul.f32 %v9597, %v9599
    %v9601 = vadd.f32 %v9597, %v9600
    %vm9602 = vweird.f32 %v9596
    %vm9603 = vweird.f32 %v9597
    %vm9604 = vmor %vm9602, %vm9603
    %v9605 = vsel %vm9604, %v9597, %v9601
    %v9606 = vand.u32 2147483647, %v9596
    %vm9607 = vcmp.eq.f32.partialorder %v9606, 8.507059e+37
    %v9608 = vand.u32 %v9596, 2147483648
    %v9609 = vor.u32 1.1754944e-38, %v9608
    %v9610 = vsel %vm9607, %v9609, %v9605
    %v9611 = vmul.f32 1.0, %v9610
    %v9612 = vmul.f32 %v9611, 20000000.0
    %v9613 = vmax.f32 %v9612, 10.0
    %vm9614 = vcmask 7168
    %9615 = vst.msk [vmem:[%s7] sm:$0xff] %vm9614, %v9613
    // Predicated region
    $region42: #{tpu_custom_call.1} parent=1 // pred_check
      _
    $region43: #{tpu_custom_call.1} parent=1 // pred_check_branch
      %9617 = sbr.rel (0) target = $region45
    $region44: #{tpu_custom_call.1} parent=1 // pred_region
      _
    $region45: #{tpu_custom_call.1} parent=1 // pred_fallthru
      _
    // Predicated region
    $region46: #{tpu_custom_call.1} parent=1 // pred_check
      _
    $region47: #{tpu_custom_call.1} parent=1 // pred_check_branch
      %9619 = sbr.rel (0) target = $region49
    $region48: #{tpu_custom_call.1} parent=1 // pred_region
      _
    $region49: #{tpu_custom_call.1} parent=1 // pred_fallthru
      _
    %9620 = vsyncpa [#allocation8], 1
    %9621 = vsyncpa [#allocation10], 1
  %9622 = vsyncmov [#allocation5]
  %s9623 = vpop.sfrf %9622
  %p9624 = scmp.eq.s32.totalorder %s9623, 0
  %p9625 = pneg %p9624
  %9627 = shalt.err (%p9625)
  %s9628 = scalar_lea.sflag [#allocation5], 1
  %9629 = vsyncmov %s9628
  %s9630 = vpop.sfrf %9629
  %p9631 = scmp.eq.s32.totalorder %s9630, 0
  %p9632 = pneg %p9631
  %9634 = shalt.err (%p9632)
  %s9635 = scalar_lea.sflag [#allocation5], 2
  %9636 = vsyncmov %s9635
  %s9637 = vpop.sfrf %9636
  %p9638 = scmp.eq.s32.totalorder %s9637, 0
  %p9639 = pneg %p9638
  %9641 = shalt.err (%p9639)

</llo_original>
